<compile_context>
chip_gen: v6e
topology: v6e:2x2x1
jax: 0.10.0
libtpu: 0.0.40
codegen_flags: <defaults>
</compile_context>

<pallas_src>
import jax
import jax.numpy as jnp
from jax.experimental import pallas as pl
from jax.experimental.pallas import tpu as pltpu

LOG_EPS = 1e-6

# Architecture constants from CNNNet.__init__
OUTPUT_SIZE = 125                     # features after dropping scattering channel 0
HIDDEN = (2048, 1024, 512, 256, 128, 64)
NUM_CLASSES = 2
J, Q, T = 6, 8, 40000
T_PRIME = T // (2 ** J)               # 625 time samples after scattering subsampling
NUM_SCAT_CHANNELS = OUTPUT_SIZE + 1   # 126 (channel 0 is dropped logically)

NUM_LAYERS = len(HIDDEN) + 1          # 7 linear layers
_LAYER_WIDTHS = HIDDEN + (NUM_CLASSES,)
_BIAS_PACK_W = max(_LAYER_WIDTHS)     # 2048

# W1 rows padded to 128 for clean int8 (32,128) tiling / DMA:
#   row 0            -> dropped 0th-order scattering channel (kept zero)
#   rows 1..125      -> real h1 weights
#   rows 126..127    -> zero padding (excluded by the in-kernel slice)
_W1_ROWS = 128

# Tail pack (layers 5, 6 and output coalesced into one int8 buffer):
#   rows   0:256 cols 0:128 -> W5 (256 x 128)
#   rows 256:384 cols 0: 64 -> W6 (128 x  64)
#   rows 384:448 cols 0:  2 -> Wo ( 64 x   2)
_T5, _T6, _TO = 0, 256, 384
_TAIL_ROWS, _TAIL_COLS = 448, 128     # 448 is a multiple of the int8 sublane tile (32)


def _cnn_kernel(x_ref, bs_ref, tail_ref,
                w1_hbm, w2_hbm, w3_hbm, w4_hbm,
                out_ref,
                w1_vmem, w2_vmem, w3_vmem, w4_vmem, sem):
    """log|x|+eps -> mean over time -> 6x(int8 Linear + ReLU) -> int8 Linear."""
    # Stream the int8 weight matrices HBM->VMEM from inside the body so the big
    # copies are issued as early as possible (the body only waits for the small
    # VMEM-spec inputs: x, bias/scale pack, tail pack).  Issue order = use order
    # so the first wait (W1) is the shortest and W2 drains next.
    cp1 = pltpu.make_async_copy(w1_hbm, w1_vmem, sem.at[0])
    cp2 = pltpu.make_async_copy(w2_hbm, w2_vmem, sem.at[1])
    cp3 = pltpu.make_async_copy(w3_hbm, w3_vmem, sem.at[2])
    cp4 = pltpu.make_async_copy(w4_hbm, w4_vmem, sem.at[3])
    cp1.start()
    cp2.start()
    cp3.start()
    cp4.start()

    # Prologue kept in f32 (v5e has no bf16 VPU/EUP); hides under the W1/W2 DMA.
    # TODO(synk): a time-chunked running-sum prologue would avoid the ~630 KiB
    #             log intermediate on v5e; neutral on v6e/v7x, kept simple.
    x = x_ref[...]                                   # (B, 126, T')  f32
    x = jnp.log(jnp.abs(x) + LOG_EPS)
    x = jnp.mean(x, axis=-1)                         # (B, 126)
    # Channel 0 (the dropped 0th-order coefficient) is neutralized by a zero
    # row 0 in W1, so no misaligned sublane slice is needed here.

    def dense(h, w_i8, layer, width, relu=True):
        # Dequant on the VPU: int8 -> f32 -> bf16 (int8 values are exact in
        # bf16).  The per-output-channel scale is applied to the (B, width)
        # result instead of the (in, width) weight tile.
        w = w_i8.astype(jnp.float32).astype(jnp.bfloat16)
        y = jnp.dot(h.astype(jnp.bfloat16), w,
                    preferred_element_type=jnp.float32)
        scale = bs_ref[NUM_LAYERS + layer:NUM_LAYERS + layer + 1, :width]
        bias = bs_ref[layer:layer + 1, :width]
        y = y * scale + bias
        return jnp.maximum(y, 0.0) if relu else y

    cp1.wait()
    h = dense(x, w1_vmem[0:NUM_SCAT_CHANNELS, :], 0, HIDDEN[0])     # (B, 2048)
    cp2.wait()
    h = dense(h, w2_vmem[...], 1, HIDDEN[1])                        # (B, 1024)
    cp3.wait()
    h = dense(h, w3_vmem[...], 2, HIDDEN[2])                        # (B, 512)
    cp4.wait()
    h = dense(h, w4_vmem[...], 3, HIDDEN[3])                        # (B, 256)
    h = dense(h, tail_ref[_T5:_T6, :], 4, HIDDEN[4])                # (B, 128)
    h = dense(h, tail_ref[_T6:_TO, 0:HIDDEN[5]], 5, HIDDEN[5])      # (B, 64)
    out = dense(h, tail_ref[_TO:_TAIL_ROWS, 0:NUM_CLASSES], 6, NUM_CLASSES,
                relu=False)
    out_ref[...] = out.astype(out_ref.dtype)                        # (B, 2)


def init_params(key):
    """Deterministic PyTorch-style Linear init: U(-1/sqrt(fan_in), 1/sqrt(fan_in))."""
    dims = (OUTPUT_SIZE,) + HIDDEN + (NUM_CLASSES,)
    params = []
    for i in range(len(dims) - 1):
        fan_in, fan_out = dims[i], dims[i + 1]
        key, kw, kb = jax.random.split(key, 3)
        bound = 1.0 / (fan_in ** 0.5)
        # Stored as (in, out) so the kernel can do x @ W directly
        # (equivalent to torch's x @ weight.T with weight of shape (out, in)).
        w = jax.random.uniform(kw, (fan_in, fan_out), jnp.float32, -bound, bound)
        b = jax.random.uniform(kb, (fan_out,), jnp.float32, -bound, bound)
        params.append((w, b))
    return params


def _quantize_per_out_channel(w):
    """Symmetric int8 quantization with a per-output-column f32 scale."""
    s = jnp.max(jnp.abs(w), axis=0) / 127.0
    s = jnp.maximum(s, 1e-12)
    q = jnp.clip(jnp.round(w / s), -127.0, 127.0).astype(jnp.int8)
    return q, s


def pack_params(params):
    """Kernel-ready params: int8 weights + packed f32 biases/scales.

    Returns (kernel_args, dq_params) where dq_params carries the dequantized
    (q_f32, scale, bias) triples so the pure-JAX reference matches the kernel's
    quantized numerics exactly.
    """
    quant = [(_quantize_per_out_channel(w) + (b,)) for w, b in params]  # (q, s, b)

    # W1: row 0 zero (the dropped 0th-order scattering channel), rows 1..125 are
    # the real weights, rows 126..127 zero padding for int8 tiling.
    q1 = quant[0][0]
    w1q = jnp.zeros((_W1_ROWS, HIDDEN[0]), jnp.int8)
    w1q = w1q.at[1:1 + OUTPUT_SIZE, :].set(q1)

    w2q, w3q, w4q = quant[1][0], quant[2][0], quant[3][0]

    # Coalesced tail pack (W5 | W6 | Wout), column-padded to 128 lanes.
    tail = jnp.zeros((_TAIL_ROWS, _TAIL_COLS), jnp.int8)
    tail = tail.at[_T5:_T6, :HIDDEN[4]].set(quant[4][0])
    tail = tail.at[_T6:_TO, :HIDDEN[5]].set(quant[5][0])
    tail = tail.at[_TO:_TAIL_ROWS, :NUM_CLASSES].set(quant[6][0])

    # One (14, 2048) f32 buffer: rows 0..6 biases, rows 7..13 dequant scales.
    bs = jnp.zeros((2 * NUM_LAYERS, _BIAS_PACK_W), jnp.float32)
    for i, (q, s, b) in enumerate(quant):
        bs = bs.at[i, :b.shape[0]].set(b)
        bs = bs.at[NUM_LAYERS + i, :s.shape[0]].set(s)

    kernel_args = (w1q, w2q, w3q, w4q, tail, bs)
    dq_params = [(q.astype(jnp.float32), s, b) for q, s, b in quant]
    return kernel_args, dq_params


@jax.jit
def cnn_forward(scat_coeffs, packed):
    """scat_coeffs: (B, 126, T') scattering output (includes the 0th-order channel)."""
    w1q, w2q, w3q, w4q, tail_q, bs_pack = packed
    b = scat_coeffs.shape[0]

    vmem = pl.BlockSpec(memory_space=pltpu.MemorySpace.VMEM)
    hbm = pl.BlockSpec(memory_space=pl.ANY)   # raw HBM ref; DMA'd manually in-kernel

    # Advisory cost estimate so XLA can overlap neighbouring ops with this
    # HBM-bound custom call.
    ins = (NUM_SCAT_CHANNELS,) + HIDDEN
    outs = HIDDEN + (NUM_CLASSES,)
    flops = 2 * b * sum(i * o for i, o in zip(ins, outs))
    transcendentals = b * NUM_SCAT_CHANNELS * T_PRIME
    bytes_accessed = (scat_coeffs.size * 4
                      + w1q.size + w2q.size + w3q.size + w4q.size + tail_q.size
                      + bs_pack.size * 4 + b * NUM_CLASSES * 4)

    # NOTE: at large batch, a batch grid with constant-index_map weight specs
    # (weights resident, x streamed) and dimension_semantics=("parallel",) for
    # v7x's two TCs would amortize the weight DMA; at B=2 it would only
    # duplicate weight reads, so the call stays gridless here.
    return pl.pallas_call(
        _cnn_kernel,
        out_shape=jax.ShapeDtypeStruct((b, NUM_CLASSES), jnp.float32),
        in_specs=[vmem, vmem, vmem, hbm, hbm, hbm, hbm],
        out_specs=vmem,
        scratch_shapes=[
            pltpu.VMEM(w1q.shape, jnp.int8),
            pltpu.VMEM(w2q.shape, jnp.int8),
            pltpu.VMEM(w3q.shape, jnp.int8),
            pltpu.VMEM(w4q.shape, jnp.int8),
            pltpu.SemaphoreType.DMA((4,)),
        ],
        # Working set is ~9 MiB (int8 weights + bf16 dequant temp + x); 32 MiB
        # leaves headroom yet fits v7x's 64 MiB physical VMEM.
        compiler_params=pltpu.CompilerParams(vmem_limit_bytes=32 * 1024 * 1024),
        cost_estimate=pl.CostEstimate(flops=flops,
                                      transcendentals=transcendentals,
                                      bytes_accessed=bytes_accessed),
    )(scat_coeffs, bs_pack, tail_q, w1q, w2q, w3q, w4q)


def cnn_forward_ref(scat_coeffs, dq_params):
    """Pure-JAX reference mirroring the PyTorch forward, using the same
    quantized weight representation and operand rounding as the kernel."""
    x = scat_coeffs[:, 1:, :]
    x = jnp.log(jnp.abs(x) + LOG_EPS)
    x = jnp.mean(x, axis=-1)
    n = len(dq_params)
    for i, (q, s, b) in enumerate(dq_params):
        xb = x.astype(jnp.bfloat16).astype(jnp.float32)
        x = jnp.dot(xb, q, precision=jax.lax.Precision.HIGHEST) * s + b
        if i < n - 1:
            x = jnp.maximum(x, 0.0)
    return x


if __name__ == "__main__":
    key = jax.random.PRNGKey(0)
    kp, kx = jax.random.split(key)

    params = init_params(kp)
    kernel_args, dq_params = pack_params(params)

    # Synthetic scattering coefficients: (batch=2, channels=126, T'=625).
    # (125 usable feature channels; channel 0 is neutralized via W1's zero row.)
    batch = 2
    scat = jax.random.normal(kx, (batch, NUM_SCAT_CHANNELS, T_PRIME), jnp.float32)

    out = cnn_forward(scat, kernel_args)
    out = jax.block_until_ready(out)

    ref = cnn_forward_ref(scat, dq_params)
    assert out.shape == (batch, NUM_CLASSES), out.shape
    assert jnp.allclose(out, ref, atol=2e-3, rtol=2e-3), (out, ref)

    print("KERNEL_OK")
</pallas_src>

<mosaic_0001>
module attributes {stable_mosaic.version = 11 : i64} {
  func.func @_cnn_kernel(%arg0: memref<2x126x625xf32, #tpu.memory_space<vmem>>, %arg1: memref<14x2048xf32, #tpu.memory_space<vmem>>, %arg2: memref<448x128xi8, #tpu.memory_space<vmem>>, %arg3: memref<128x2048xi8, #tpu.memory_space<any>>, %arg4: memref<2048x1024xi8, #tpu.memory_space<any>>, %arg5: memref<1024x512xi8, #tpu.memory_space<any>>, %arg6: memref<512x256xi8, #tpu.memory_space<any>>, %arg7: memref<2x2xf32, #tpu.memory_space<vmem>>, %arg8: memref<128x2048xi8, #tpu.memory_space<vmem>>, %arg9: memref<2048x1024xi8, #tpu.memory_space<vmem>>, %arg10: memref<1024x512xi8, #tpu.memory_space<vmem>>, %arg11: memref<512x256xi8, #tpu.memory_space<vmem>>, %arg12: memref<4x!tpu.dma_semaphore, #tpu.memory_space<semaphore_mem>>) attributes {dimension_semantics = [], scalar_prefetch = 0 : i64, scratch_operands = 5 : i64, tpu.core_type = #tpu.core_type<tc>} {
    %c0_i32 = arith.constant 0 : i32
    %0 = tpu.memref_slice %arg12[%c0_i32] : memref<4x!tpu.dma_semaphore, #tpu.memory_space<semaphore_mem>> -> memref<1x!tpu.dma_semaphore, #tpu.memory_space<semaphore_mem>>
    %1 = tpu.memref_squeeze %0 : memref<1x!tpu.dma_semaphore, #tpu.memory_space<semaphore_mem>> -> memref<!tpu.dma_semaphore, #tpu.memory_space<semaphore_mem>>
    tpu.enqueue_dma source(%arg3 : memref<128x2048xi8, #tpu.memory_space<any>>) target(%arg8 : memref<128x2048xi8, #tpu.memory_space<vmem>>) target_semaphore(%1 : memref<!tpu.dma_semaphore, #tpu.memory_space<semaphore_mem>>)
    %c1_i32 = arith.constant 1 : i32
    %2 = tpu.memref_slice %arg12[%c1_i32] : memref<4x!tpu.dma_semaphore, #tpu.memory_space<semaphore_mem>> -> memref<1x!tpu.dma_semaphore, #tpu.memory_space<semaphore_mem>>
    %3 = tpu.memref_squeeze %2 : memref<1x!tpu.dma_semaphore, #tpu.memory_space<semaphore_mem>> -> memref<!tpu.dma_semaphore, #tpu.memory_space<semaphore_mem>>
    tpu.enqueue_dma source(%arg4 : memref<2048x1024xi8, #tpu.memory_space<any>>) target(%arg9 : memref<2048x1024xi8, #tpu.memory_space<vmem>>) target_semaphore(%3 : memref<!tpu.dma_semaphore, #tpu.memory_space<semaphore_mem>>)
    %c2_i32 = arith.constant 2 : i32
    %4 = tpu.memref_slice %arg12[%c2_i32] : memref<4x!tpu.dma_semaphore, #tpu.memory_space<semaphore_mem>> -> memref<1x!tpu.dma_semaphore, #tpu.memory_space<semaphore_mem>>
    %5 = tpu.memref_squeeze %4 : memref<1x!tpu.dma_semaphore, #tpu.memory_space<semaphore_mem>> -> memref<!tpu.dma_semaphore, #tpu.memory_space<semaphore_mem>>
    tpu.enqueue_dma source(%arg5 : memref<1024x512xi8, #tpu.memory_space<any>>) target(%arg10 : memref<1024x512xi8, #tpu.memory_space<vmem>>) target_semaphore(%5 : memref<!tpu.dma_semaphore, #tpu.memory_space<semaphore_mem>>)
    %c3_i32 = arith.constant 3 : i32
    %6 = tpu.memref_slice %arg12[%c3_i32] : memref<4x!tpu.dma_semaphore, #tpu.memory_space<semaphore_mem>> -> memref<1x!tpu.dma_semaphore, #tpu.memory_space<semaphore_mem>>
    %7 = tpu.memref_squeeze %6 : memref<1x!tpu.dma_semaphore, #tpu.memory_space<semaphore_mem>> -> memref<!tpu.dma_semaphore, #tpu.memory_space<semaphore_mem>>
    tpu.enqueue_dma source(%arg6 : memref<512x256xi8, #tpu.memory_space<any>>) target(%arg11 : memref<512x256xi8, #tpu.memory_space<vmem>>) target_semaphore(%7 : memref<!tpu.dma_semaphore, #tpu.memory_space<semaphore_mem>>)
    %c0 = arith.constant 0 : index
    %c0_0 = arith.constant 0 : index
    %c0_1 = arith.constant 0 : index
    %8 = vector.load %arg0[%c0, %c0_0, %c0_1] : memref<2x126x625xf32, #tpu.memory_space<vmem>>, vector<2x126x625xf32>
    %9 = math.absf %8 : vector<2x126x625xf32>
    %cst = arith.constant 9.99999997E-7 : f32
    %10 = vector.broadcast %cst : f32 to vector<2x126x625xf32>
    %11 = arith.addf %9, %10 : vector<2x126x625xf32>
    %12 = math.log %11 : vector<2x126x625xf32>
    %cst_2 = arith.constant dense<0.000000e+00> : vector<2x126xf32>
    %13 = vector.multi_reduction <add>, %12, %cst_2 [2] : vector<2x126x625xf32> to vector<2x126xf32>
    %cst_3 = arith.constant 6.250000e+02 : f32
    %14 = vector.broadcast %cst_3 : f32 to vector<2x126xf32>
    %15 = arith.divf %13, %14 : vector<2x126xf32>
    %c0_i32_4 = arith.constant 0 : i32
    %16 = tpu.memref_slice %arg12[%c0_i32_4] : memref<4x!tpu.dma_semaphore, #tpu.memory_space<semaphore_mem>> -> memref<1x!tpu.dma_semaphore, #tpu.memory_space<semaphore_mem>>
    %17 = tpu.memref_squeeze %16 : memref<1x!tpu.dma_semaphore, #tpu.memory_space<semaphore_mem>> -> memref<!tpu.dma_semaphore, #tpu.memory_space<semaphore_mem>>
    tpu.wait_dma2 semaphore(%17 : memref<!tpu.dma_semaphore, #tpu.memory_space<semaphore_mem>>) src(%arg3 : memref<128x2048xi8, #tpu.memory_space<any>>) dst(%arg8 : memref<128x2048xi8, #tpu.memory_space<vmem>>)
    %c0_5 = arith.constant 0 : index
    %c0_6 = arith.constant 0 : index
    %18 = vector.load %arg8[%c0_5, %c0_6] : memref<128x2048xi8, #tpu.memory_space<vmem>>, vector<126x2048xi8>
    %19 = arith.sitofp %18 : vector<126x2048xi8> to vector<126x2048xf32>
    %20 = arith.truncf %19 : vector<126x2048xf32> to vector<126x2048xbf16>
    %21 = arith.truncf %15 : vector<2x126xf32> to vector<2x126xbf16>
    %cst_7 = arith.constant dense<0.000000e+00> : vector<2x2048xf32>
    %22 = tpu.matmul %21, %20, %cst_7 {dimension_numbers = #tpu.dot_dimension_numbers<[1], [0], [0], [1], [0, 0, 1, 1], [], []>} : vector<2x126xbf16>, vector<126x2048xbf16>, vector<2x2048xf32> -> vector<2x2048xf32>
    %c7 = arith.constant 7 : index
    %c0_8 = arith.constant 0 : index
    %23 = vector.load %arg1[%c7, %c0_8] : memref<14x2048xf32, #tpu.memory_space<vmem>>, vector<1x2048xf32>
    %c0_9 = arith.constant 0 : index
    %c0_10 = arith.constant 0 : index
    %24 = vector.load %arg1[%c0_9, %c0_10] : memref<14x2048xf32, #tpu.memory_space<vmem>>, vector<1x2048xf32>
    %25 = vector.broadcast %23 : vector<1x2048xf32> to vector<2x2048xf32>
    %26 = arith.mulf %22, %25 : vector<2x2048xf32>
    %27 = vector.broadcast %24 : vector<1x2048xf32> to vector<2x2048xf32>
    %28 = arith.addf %26, %27 : vector<2x2048xf32>
    %cst_11 = arith.constant 0.000000e+00 : f32
    %29 = vector.broadcast %cst_11 : f32 to vector<2x2048xf32>
    %30 = arith.maximumf %28, %29 : vector<2x2048xf32>
    %c1_i32_12 = arith.constant 1 : i32
    %31 = tpu.memref_slice %arg12[%c1_i32_12] : memref<4x!tpu.dma_semaphore, #tpu.memory_space<semaphore_mem>> -> memref<1x!tpu.dma_semaphore, #tpu.memory_space<semaphore_mem>>
    %32 = tpu.memref_squeeze %31 : memref<1x!tpu.dma_semaphore, #tpu.memory_space<semaphore_mem>> -> memref<!tpu.dma_semaphore, #tpu.memory_space<semaphore_mem>>
    tpu.wait_dma2 semaphore(%32 : memref<!tpu.dma_semaphore, #tpu.memory_space<semaphore_mem>>) src(%arg4 : memref<2048x1024xi8, #tpu.memory_space<any>>) dst(%arg9 : memref<2048x1024xi8, #tpu.memory_space<vmem>>)
    %c0_13 = arith.constant 0 : index
    %c0_14 = arith.constant 0 : index
    %33 = vector.load %arg9[%c0_13, %c0_14] : memref<2048x1024xi8, #tpu.memory_space<vmem>>, vector<2048x1024xi8>
    %34 = arith.sitofp %33 : vector<2048x1024xi8> to vector<2048x1024xf32>
    %35 = arith.truncf %34 : vector<2048x1024xf32> to vector<2048x1024xbf16>
    %36 = arith.truncf %30 : vector<2x2048xf32> to vector<2x2048xbf16>
    %cst_15 = arith.constant dense<0.000000e+00> : vector<2x1024xf32>
    %37 = tpu.matmul %36, %35, %cst_15 {dimension_numbers = #tpu.dot_dimension_numbers<[1], [0], [0], [1], [0, 0, 1, 1], [], []>} : vector<2x2048xbf16>, vector<2048x1024xbf16>, vector<2x1024xf32> -> vector<2x1024xf32>
    %c8 = arith.constant 8 : index
    %c0_16 = arith.constant 0 : index
    %38 = vector.load %arg1[%c8, %c0_16] : memref<14x2048xf32, #tpu.memory_space<vmem>>, vector<1x1024xf32>
    %c1 = arith.constant 1 : index
    %c0_17 = arith.constant 0 : index
    %39 = vector.load %arg1[%c1, %c0_17] : memref<14x2048xf32, #tpu.memory_space<vmem>>, vector<1x1024xf32>
    %40 = vector.broadcast %38 : vector<1x1024xf32> to vector<2x1024xf32>
    %41 = arith.mulf %37, %40 : vector<2x1024xf32>
    %42 = vector.broadcast %39 : vector<1x1024xf32> to vector<2x1024xf32>
    %43 = arith.addf %41, %42 : vector<2x1024xf32>
    %cst_18 = arith.constant 0.000000e+00 : f32
    %44 = vector.broadcast %cst_18 : f32 to vector<2x1024xf32>
    %45 = arith.maximumf %43, %44 : vector<2x1024xf32>
    %c2_i32_19 = arith.constant 2 : i32
    %46 = tpu.memref_slice %arg12[%c2_i32_19] : memref<4x!tpu.dma_semaphore, #tpu.memory_space<semaphore_mem>> -> memref<1x!tpu.dma_semaphore, #tpu.memory_space<semaphore_mem>>
    %47 = tpu.memref_squeeze %46 : memref<1x!tpu.dma_semaphore, #tpu.memory_space<semaphore_mem>> -> memref<!tpu.dma_semaphore, #tpu.memory_space<semaphore_mem>>
    tpu.wait_dma2 semaphore(%47 : memref<!tpu.dma_semaphore, #tpu.memory_space<semaphore_mem>>) src(%arg5 : memref<1024x512xi8, #tpu.memory_space<any>>) dst(%arg10 : memref<1024x512xi8, #tpu.memory_space<vmem>>)
    %c0_20 = arith.constant 0 : index
    %c0_21 = arith.constant 0 : index
    %48 = vector.load %arg10[%c0_20, %c0_21] : memref<1024x512xi8, #tpu.memory_space<vmem>>, vector<1024x512xi8>
    %49 = arith.sitofp %48 : vector<1024x512xi8> to vector<1024x512xf32>
    %50 = arith.truncf %49 : vector<1024x512xf32> to vector<1024x512xbf16>
    %51 = arith.truncf %45 : vector<2x1024xf32> to vector<2x1024xbf16>
    %cst_22 = arith.constant dense<0.000000e+00> : vector<2x512xf32>
    %52 = tpu.matmul %51, %50, %cst_22 {dimension_numbers = #tpu.dot_dimension_numbers<[1], [0], [0], [1], [0, 0, 1, 1], [], []>} : vector<2x1024xbf16>, vector<1024x512xbf16>, vector<2x512xf32> -> vector<2x512xf32>
    %c9 = arith.constant 9 : index
    %c0_23 = arith.constant 0 : index
    %53 = vector.load %arg1[%c9, %c0_23] : memref<14x2048xf32, #tpu.memory_space<vmem>>, vector<1x512xf32>
    %c2 = arith.constant 2 : index
    %c0_24 = arith.constant 0 : index
    %54 = vector.load %arg1[%c2, %c0_24] : memref<14x2048xf32, #tpu.memory_space<vmem>>, vector<1x512xf32>
    %55 = vector.broadcast %53 : vector<1x512xf32> to vector<2x512xf32>
    %56 = arith.mulf %52, %55 : vector<2x512xf32>
    %57 = vector.broadcast %54 : vector<1x512xf32> to vector<2x512xf32>
    %58 = arith.addf %56, %57 : vector<2x512xf32>
    %cst_25 = arith.constant 0.000000e+00 : f32
    %59 = vector.broadcast %cst_25 : f32 to vector<2x512xf32>
    %60 = arith.maximumf %58, %59 : vector<2x512xf32>
    %c3_i32_26 = arith.constant 3 : i32
    %61 = tpu.memref_slice %arg12[%c3_i32_26] : memref<4x!tpu.dma_semaphore, #tpu.memory_space<semaphore_mem>> -> memref<1x!tpu.dma_semaphore, #tpu.memory_space<semaphore_mem>>
    %62 = tpu.memref_squeeze %61 : memref<1x!tpu.dma_semaphore, #tpu.memory_space<semaphore_mem>> -> memref<!tpu.dma_semaphore, #tpu.memory_space<semaphore_mem>>
    tpu.wait_dma2 semaphore(%62 : memref<!tpu.dma_semaphore, #tpu.memory_space<semaphore_mem>>) src(%arg6 : memref<512x256xi8, #tpu.memory_space<any>>) dst(%arg11 : memref<512x256xi8, #tpu.memory_space<vmem>>)
    %c0_27 = arith.constant 0 : index
    %c0_28 = arith.constant 0 : index
    %63 = vector.load %arg11[%c0_27, %c0_28] : memref<512x256xi8, #tpu.memory_space<vmem>>, vector<512x256xi8>
    %64 = arith.sitofp %63 : vector<512x256xi8> to vector<512x256xf32>
    %65 = arith.truncf %64 : vector<512x256xf32> to vector<512x256xbf16>
    %66 = arith.truncf %60 : vector<2x512xf32> to vector<2x512xbf16>
    %cst_29 = arith.constant dense<0.000000e+00> : vector<2x256xf32>
    %67 = tpu.matmul %66, %65, %cst_29 {dimension_numbers = #tpu.dot_dimension_numbers<[1], [0], [0], [1], [0, 0, 1, 1], [], []>} : vector<2x512xbf16>, vector<512x256xbf16>, vector<2x256xf32> -> vector<2x256xf32>
    %c10 = arith.constant 10 : index
    %c0_30 = arith.constant 0 : index
    %68 = vector.load %arg1[%c10, %c0_30] : memref<14x2048xf32, #tpu.memory_space<vmem>>, vector<1x256xf32>
    %c3 = arith.constant 3 : index
    %c0_31 = arith.constant 0 : index
    %69 = vector.load %arg1[%c3, %c0_31] : memref<14x2048xf32, #tpu.memory_space<vmem>>, vector<1x256xf32>
    %70 = vector.broadcast %68 : vector<1x256xf32> to vector<2x256xf32>
    %71 = arith.mulf %67, %70 : vector<2x256xf32>
    %72 = vector.broadcast %69 : vector<1x256xf32> to vector<2x256xf32>
    %73 = arith.addf %71, %72 : vector<2x256xf32>
    %cst_32 = arith.constant 0.000000e+00 : f32
    %74 = vector.broadcast %cst_32 : f32 to vector<2x256xf32>
    %75 = arith.maximumf %73, %74 : vector<2x256xf32>
    %c0_33 = arith.constant 0 : index
    %c0_34 = arith.constant 0 : index
    %76 = vector.load %arg2[%c0_33, %c0_34] : memref<448x128xi8, #tpu.memory_space<vmem>>, vector<256x128xi8>
    %77 = arith.sitofp %76 : vector<256x128xi8> to vector<256x128xf32>
    %78 = arith.truncf %77 : vector<256x128xf32> to vector<256x128xbf16>
    %79 = arith.truncf %75 : vector<2x256xf32> to vector<2x256xbf16>
    %cst_35 = arith.constant dense<0.000000e+00> : vector<2x128xf32>
    %80 = tpu.matmul %79, %78, %cst_35 {dimension_numbers = #tpu.dot_dimension_numbers<[1], [0], [0], [1], [0, 0, 1, 1], [], []>} : vector<2x256xbf16>, vector<256x128xbf16>, vector<2x128xf32> -> vector<2x128xf32>
    %c11 = arith.constant 11 : index
    %c0_36 = arith.constant 0 : index
    %81 = vector.load %arg1[%c11, %c0_36] : memref<14x2048xf32, #tpu.memory_space<vmem>>, vector<1x128xf32>
    %c4 = arith.constant 4 : index
    %c0_37 = arith.constant 0 : index
    %82 = vector.load %arg1[%c4, %c0_37] : memref<14x2048xf32, #tpu.memory_space<vmem>>, vector<1x128xf32>
    %83 = vector.broadcast %81 : vector<1x128xf32> to vector<2x128xf32>
    %84 = arith.mulf %80, %83 : vector<2x128xf32>
    %85 = vector.broadcast %82 : vector<1x128xf32> to vector<2x128xf32>
    %86 = arith.addf %84, %85 : vector<2x128xf32>
    %cst_38 = arith.constant 0.000000e+00 : f32
    %87 = vector.broadcast %cst_38 : f32 to vector<2x128xf32>
    %88 = arith.maximumf %86, %87 : vector<2x128xf32>
    %c256 = arith.constant 256 : index
    %c0_39 = arith.constant 0 : index
    %89 = vector.load %arg2[%c256, %c0_39] : memref<448x128xi8, #tpu.memory_space<vmem>>, vector<128x64xi8>
    %90 = arith.sitofp %89 : vector<128x64xi8> to vector<128x64xf32>
    %91 = arith.truncf %90 : vector<128x64xf32> to vector<128x64xbf16>
    %92 = arith.truncf %88 : vector<2x128xf32> to vector<2x128xbf16>
    %cst_40 = arith.constant dense<0.000000e+00> : vector<2x64xf32>
    %93 = tpu.matmul %92, %91, %cst_40 {dimension_numbers = #tpu.dot_dimension_numbers<[1], [0], [0], [1], [0, 0, 1, 1], [], []>} : vector<2x128xbf16>, vector<128x64xbf16>, vector<2x64xf32> -> vector<2x64xf32>
    %c12 = arith.constant 12 : index
    %c0_41 = arith.constant 0 : index
    %94 = vector.load %arg1[%c12, %c0_41] : memref<14x2048xf32, #tpu.memory_space<vmem>>, vector<1x64xf32>
    %c5 = arith.constant 5 : index
    %c0_42 = arith.constant 0 : index
    %95 = vector.load %arg1[%c5, %c0_42] : memref<14x2048xf32, #tpu.memory_space<vmem>>, vector<1x64xf32>
    %96 = vector.broadcast %94 : vector<1x64xf32> to vector<2x64xf32>
    %97 = arith.mulf %93, %96 : vector<2x64xf32>
    %98 = vector.broadcast %95 : vector<1x64xf32> to vector<2x64xf32>
    %99 = arith.addf %97, %98 : vector<2x64xf32>
    %cst_43 = arith.constant 0.000000e+00 : f32
    %100 = vector.broadcast %cst_43 : f32 to vector<2x64xf32>
    %101 = arith.maximumf %99, %100 : vector<2x64xf32>
    %c384 = arith.constant 384 : index
    %c0_44 = arith.constant 0 : index
    %102 = vector.load %arg2[%c384, %c0_44] : memref<448x128xi8, #tpu.memory_space<vmem>>, vector<64x2xi8>
    %103 = arith.sitofp %102 : vector<64x2xi8> to vector<64x2xf32>
    %104 = arith.truncf %103 : vector<64x2xf32> to vector<64x2xbf16>
    %105 = arith.truncf %101 : vector<2x64xf32> to vector<2x64xbf16>
    %cst_45 = arith.constant dense<0.000000e+00> : vector<2x2xf32>
    %106 = tpu.matmul %105, %104, %cst_45 {dimension_numbers = #tpu.dot_dimension_numbers<[1], [0], [0], [1], [0, 0, 1, 1], [], []>} : vector<2x64xbf16>, vector<64x2xbf16>, vector<2x2xf32> -> vector<2x2xf32>
    %c13 = arith.constant 13 : index
    %c0_46 = arith.constant 0 : index
    %107 = vector.load %arg1[%c13, %c0_46] : memref<14x2048xf32, #tpu.memory_space<vmem>>, vector<1x2xf32>
    %c6 = arith.constant 6 : index
    %c0_47 = arith.constant 0 : index
    %108 = vector.load %arg1[%c6, %c0_47] : memref<14x2048xf32, #tpu.memory_space<vmem>>, vector<1x2xf32>
    %109 = vector.broadcast %107 : vector<1x2xf32> to vector<2x2xf32>
    %110 = arith.mulf %106, %109 : vector<2x2xf32>
    %111 = vector.broadcast %108 : vector<1x2xf32> to vector<2x2xf32>
    %112 = arith.addf %110, %111 : vector<2x2xf32>
    %c0_48 = arith.constant 0 : index
    %c0_49 = arith.constant 0 : index
    %113 = vector.load %arg7[%c0_48, %c0_49] : memref<2x2xf32, #tpu.memory_space<vmem>>, vector<2x2xf32>
    tpu.vector_store %arg7[%c0_48, %c0_49], %112 {strides = array<i32>} : memref<2x2xf32, #tpu.memory_space<vmem>>, vector<2x2xf32>,
    return
  }
}

</mosaic_0001>

<llo_original>
// kernel: cnn_forward.1
$region0: #{cnn_forward.1}
  #allocation0 [shape = 'u32[]', space=smem, size = 0x4, offset = 0x4, fixed_abs, tag = 'smem constant byte address 0x4 - core index']
  #allocation1 [shape = 'u32[144,128]{1,0:T(1,128)}', space=vmem, size = 0x12000, scoped, tag = 'internal scratch']
  #allocation2 [shape = 's8[128,2048]{1,0:T(32,128)(4,1)}', space=vmem, size = 0x40000, scoped, tag = 'scratch operand']
  #allocation3 [shape = 's8[2048,1024]{1,0:T(32,128)(4,1)}', space=vmem, size = 0x200000, scoped, tag = 'scratch operand']
  #allocation4 [shape = 's8[1024,512]{1,0:T(32,128)(4,1)}', space=vmem, size = 0x80000, scoped, tag = 'scratch operand']
  #allocation5 [shape = 's8[512,256]{1,0:T(32,128)(4,1)}', space=vmem, size = 0x20000, scoped, tag = 'scratch operand']
  #allocation6 [shape = 's32[4]{0}', space=sflag, size = 0x10, scoped, tag = 'scratch operand']
  #allocation13 [shape = 's32[]', space=sflag, size = 0x4, offset = 0, fixed_abs, tag = 'sflag constant byte address 0x0 - dummy sync flag']
  #allocation14 [shape = 's32[]', space=sflag, size = 0x4, offset = 0, fixed_abs, tag = 'sflag constant byte address 0x0 - dummy sync flag']
  #allocation15 [shape = 'u32[]', space=smem, size = 0x4, offset = 0x44, fixed_abs, tag = 'smem constant byte address 0x44 - assertion arg 0']
  #allocation16 [shape = 'u32[]', space=smem, size = 0x4, offset = 0x48, fixed_abs, tag = 'smem constant byte address 0x48 - assertion arg 1']
  #allocation17 [shape = 's32[]', space=sflag, size = 0x4, offset = 0, fixed_abs, tag = 'sflag constant byte address 0x0 - dummy sync flag']
  #allocation18 [shape = 's32[]', space=sflag, size = 0x4, offset = 0, fixed_abs, tag = 'sflag constant byte address 0x0 - dummy sync flag']
  #allocation19 [shape = 's32[]', space=sflag, size = 0x4, offset = 0, fixed_abs, tag = 'sflag constant byte address 0x0 - dummy sync flag']
  #allocation20 [shape = 's32[]', space=sflag, size = 0x4, offset = 0, fixed_abs, tag = 'sflag constant byte address 0x0 - dummy sync flag']
  #allocation21 [shape = 's32[]', space=sflag, size = 0x4, offset = 0, fixed_abs, tag = 'sflag constant byte address 0x0 - dummy sync flag']
  #allocation22 [shape = 's32[]', space=sflag, size = 0x4, offset = 0, fixed_abs, tag = 'sflag constant byte address 0x0 - dummy sync flag']
  %s0 = inlined_call_operand.vmem [shape: f32[2,126,625], index: 0, kind: input, shape index: {}]
  %s1 = inlined_call_operand.hbm [shape: f32[14,2048], index: 1, kind: input, shape index: {}]
  %s2 = inlined_call_operand.hbm [shape: s8[448,128], index: 2, kind: input, shape index: {}]
  %s3 = inlined_call_operand.hbm [shape: s8[128,2048], index: 3, kind: input, shape index: {}]
  %s4 = inlined_call_operand.hbm [shape: s8[2048,1024], index: 4, kind: input, shape index: {}]
  %s5 = inlined_call_operand.hbm [shape: s8[1024,512], index: 5, kind: input, shape index: {}]
  %s6 = inlined_call_operand.hbm [shape: s8[512,256], index: 6, kind: input, shape index: {}]
  %s7 = inlined_call_operand.hbm [shape: f32[2,2], index: 7, kind: output, shape index: {}]
  %s8 = sld [smem:[#allocation0]]
  $region46: #{cnn_forward.1} parent=0
    _
  %s10 = ssub.s32 1, %s8
  %s11 = scalar_select 0, %s10, %s8
  $region1: #{cnn_forward.1} parent=0
    #allocation7 [shape = 'u8[131072]{0}', space=vmem, size = 0x20000, scoped, tag = 'input window, operand 1, single buffered']
    #allocation8 [shape = 's32[1]{0}', space=sflag, size = 0x4, scoped, tag = 'scoped memory for cnn_forward.1']
    #allocation9 [shape = 's32[1]{0}', space=sflag, size = 0x4, scoped, tag = 'scoped memory for cnn_forward.1']
    #allocation10 [shape = 'u8[57344]{0}', space=vmem, size = 0xe000, scoped, tag = 'input window, operand 2, single buffered']
    #allocation11 [shape = 's32[1]{0}', space=sflag, size = 0x4, scoped, tag = 'scoped memory for cnn_forward.1']
    #allocation12 [shape = 'u8[1024]{0}', space=vmem, size = 0x400, scoped, tag = 'output window, operand 0, single buffered']
    %12 = vsyncpa [#allocation8], 0
    %13 = vsyncpa [#allocation11], 0
    %14 = vsyncpa [#allocation9], 0
    // Predicated region
    $region2: #{cnn_forward.1} parent=1 // pred_check
      _
    $region3: #{cnn_forward.1} parent=1 // pred_check_branch
      %16 = sbr.rel (0) target = $region5
    $region4: #{cnn_forward.1} parent=1 // pred_region
      _
    $region5: #{cnn_forward.1} parent=1 // pred_fallthru
      _
    // Predicated region
    $region6: #{cnn_forward.1} parent=1 // pred_check
      _
    $region7: #{cnn_forward.1} parent=1 // pred_check_branch
      %18 = sbr.rel (0) target = $region9
    $region8: #{cnn_forward.1} parent=1 // pred_region
      %s20 = ssub.s32 4096, 4096
      %21 = vsyncadd [#allocation8], %s20
      %s22 = sshll.u32 [#allocation7], 4
      %s23 = int_to_ptr.vmem [resolvable:$true] %s22
      %28 = dma.hbm_to_vmem [thread:$0]  %s1, 4096, %s23, [#allocation8], 2048, 2048, 128
    $region9: #{cnn_forward.1} parent=1 // pred_fallthru
      _
    // Predicated region
    $region10: #{cnn_forward.1} parent=1 // pred_check
      _
    $region11: #{cnn_forward.1} parent=1 // pred_check_branch
      %30 = sbr.rel (0) target = $region13
    $region12: #{cnn_forward.1} parent=1 // pred_region
      %s32 = ssub.s32 1792, 1792
      %33 = vsyncadd [#allocation11], %s32
      %s34 = sshll.u32 [#allocation10], 4
      %s35 = int_to_ptr.vmem [resolvable:$true] %s34
      %40 = dma.hbm_to_vmem [thread:$0]  %s2, 1792, %s35, [#allocation11], 128, 128, 8
    $region13: #{cnn_forward.1} parent=1 // pred_fallthru
      _
    // Predicated region
    $region14: #{cnn_forward.1} parent=1 // pred_check
      _
    $region15: #{cnn_forward.1} parent=1 // pred_check_branch
      %42 = sbr.rel (0) target = $region17
    $region16: #{cnn_forward.1} parent=1 // pred_region
      %43 = dma.done [#allocation8], 4096
    $region17: #{cnn_forward.1} parent=1 // pred_fallthru
      _
    // Predicated region
    $region18: #{cnn_forward.1} parent=1 // pred_check
      _
    $region19: #{cnn_forward.1} parent=1 // pred_check_branch
      %45 = sbr.rel (0) target = $region21
    $region20: #{cnn_forward.1} parent=1 // pred_region
      %46 = dma.done [#allocation11], 1792
    $region21: #{cnn_forward.1} parent=1 // pred_fallthru
      _
    // Predicated region
    $region22: #{cnn_forward.1} parent=1 // pred_check
      _
    $region23: #{cnn_forward.1} parent=1 // pred_check_branch
      %49 = sbr.rel target = $region25
    $region24: #{cnn_forward.1} parent=1 // pred_region
      %50 = sst [smem:[#allocation15]] [#allocation14]
      %51 = sst [smem:[#allocation16]] [#allocation13]
    $region25: #{cnn_forward.1} parent=1 // pred_fallthru
      _
    %53 = shalt.err (0)
    %s55 = sshll.u32 [#allocation2], 4
    %s56 = int_to_ptr.vmem [resolvable:$true] %s55
    %58 = dma.hbm_to_vmem [thread:$0]  %s3, 8192, %s56, [#allocation6]
    %s59 = scalar_lea.sflag [#allocation6], 1
    // Predicated region
    $region26: #{cnn_forward.1} parent=1 // pred_check
      _
    $region27: #{cnn_forward.1} parent=1 // pred_check_branch
      %61 = sbr.rel target = $region29
    $region28: #{cnn_forward.1} parent=1 // pred_region
      %62 = sst [smem:[#allocation15]] [#allocation18]
      %63 = sst [smem:[#allocation16]] [#allocation17]
    $region29: #{cnn_forward.1} parent=1 // pred_fallthru
      _
    %65 = shalt.err (0)
    %s67 = sshll.u32 [#allocation3], 4
    %s68 = int_to_ptr.vmem [resolvable:$true] %s67
    %70 = dma.hbm_to_vmem [thread:$0]  %s4, 65536, %s68, %s59
    %s71 = scalar_lea.sflag [#allocation6], 2
    // Predicated region
    $region30: #{cnn_forward.1} parent=1 // pred_check
      _
    $region31: #{cnn_forward.1} parent=1 // pred_check_branch
      %73 = sbr.rel target = $region33
    $region32: #{cnn_forward.1} parent=1 // pred_region
      %74 = sst [smem:[#allocation15]] [#allocation20]
      %75 = sst [smem:[#allocation16]] [#allocation19]
    $region33: #{cnn_forward.1} parent=1 // pred_fallthru
      _
    %77 = shalt.err (0)
    %s79 = sshll.u32 [#allocation4], 4
    %s80 = int_to_ptr.vmem [resolvable:$true] %s79
    %82 = dma.hbm_to_vmem [thread:$0]  %s5, 16384, %s80, %s71
    %s83 = scalar_lea.sflag [#allocation6], 3
    // Predicated region
    $region34: #{cnn_forward.1} parent=1 // pred_check
      _
    $region35: #{cnn_forward.1} parent=1 // pred_check_branch
      %85 = sbr.rel target = $region37
    $region36: #{cnn_forward.1} parent=1 // pred_region
      %86 = sst [smem:[#allocation15]] [#allocation22]
      %87 = sst [smem:[#allocation16]] [#allocation21]
    $region37: #{cnn_forward.1} parent=1 // pred_fallthru
      _
    %89 = shalt.err (0)
    %s91 = sshll.u32 [#allocation5], 4
    %s92 = int_to_ptr.vmem [resolvable:$true] %s91
    %94 = dma.hbm_to_vmem [thread:$0]  %s6, 4096, %s92, %s83
    %v95 = vld [vmem:[%s0] sm:$0xff]
    %v96 = vld [vmem:[%s0 + $0x8] sm:$0xff]
    %v97 = vld [vmem:[%s0 + $0x10] sm:$0xff]
    %v98 = vld [vmem:[%s0 + $0x18] sm:$0xff]
    %v99 = vld [vmem:[%s0 + $0x20] sm:$0xff]
    %v100 = vld [vmem:[%s0 + $0x28] sm:$0xff]
    %v101 = vld [vmem:[%s0 + $0x30] sm:$0xff]
    %v102 = vld [vmem:[%s0 + $0x38] sm:$0xff]
    %v103 = vld [vmem:[%s0 + $0x40] sm:$0xff]
    %v104 = vld [vmem:[%s0 + $0x48] sm:$0xff]
    %v105 = vld [vmem:[%s0 + $0x50] sm:$0xff]
    %v106 = vld [vmem:[%s0 + $0x58] sm:$0xff]
    %v107 = vld [vmem:[%s0 + $0x60] sm:$0xff]
    %v108 = vld [vmem:[%s0 + $0x68] sm:$0xff]
    %v109 = vld [vmem:[%s0 + $0x70] sm:$0xff]
    %v110 = vld [vmem:[%s0 + $0x78] sm:$0xff]
    %v111 = vld [vmem:[%s0 + $0x80] sm:$0xff]
    %v112 = vld [vmem:[%s0 + $0x88] sm:$0xff]
    %v113 = vld [vmem:[%s0 + $0x90] sm:$0xff]
    %v114 = vld [vmem:[%s0 + $0x98] sm:$0xff]
    %v115 = vld [vmem:[%s0 + $0xa0] sm:$0xff]
    %v116 = vld [vmem:[%s0 + $0xa8] sm:$0xff]
    %v117 = vld [vmem:[%s0 + $0xb0] sm:$0xff]
    %v118 = vld [vmem:[%s0 + $0xb8] sm:$0xff]
    %v119 = vld [vmem:[%s0 + $0xc0] sm:$0xff]
    %v120 = vld [vmem:[%s0 + $0xc8] sm:$0xff]
    %v121 = vld [vmem:[%s0 + $0xd0] sm:$0xff]
    %v122 = vld [vmem:[%s0 + $0xd8] sm:$0xff]
    %v123 = vld [vmem:[%s0 + $0xe0] sm:$0xff]
    %v124 = vld [vmem:[%s0 + $0xe8] sm:$0xff]
    %v125 = vld [vmem:[%s0 + $0xf0] sm:$0xff]
    %v126 = vld [vmem:[%s0 + $0xf8] sm:$0xff]
    %v127 = vld [vmem:[%s0 + $0x100] sm:$0xff]
    %v128 = vld [vmem:[%s0 + $0x108] sm:$0xff]
    %v129 = vld [vmem:[%s0 + $0x110] sm:$0xff]
    %v130 = vld [vmem:[%s0 + $0x118] sm:$0xff]
    %v131 = vld [vmem:[%s0 + $0x120] sm:$0xff]
    %v132 = vld [vmem:[%s0 + $0x128] sm:$0xff]
    %v133 = vld [vmem:[%s0 + $0x130] sm:$0xff]
    %v134 = vld [vmem:[%s0 + $0x138] sm:$0xff]
    %v135 = vld [vmem:[%s0 + $0x140] sm:$0xff]
    %v136 = vld [vmem:[%s0 + $0x148] sm:$0xff]
    %v137 = vld [vmem:[%s0 + $0x150] sm:$0xff]
    %v138 = vld [vmem:[%s0 + $0x158] sm:$0xff]
    %v139 = vld [vmem:[%s0 + $0x160] sm:$0xff]
    %v140 = vld [vmem:[%s0 + $0x168] sm:$0xff]
    %v141 = vld [vmem:[%s0 + $0x170] sm:$0xff]
    %v142 = vld [vmem:[%s0 + $0x178] sm:$0xff]
    %v143 = vld [vmem:[%s0 + $0x180] sm:$0xff]
    %v144 = vld [vmem:[%s0 + $0x188] sm:$0xff]
    %v145 = vld [vmem:[%s0 + $0x190] sm:$0xff]
    %v146 = vld [vmem:[%s0 + $0x198] sm:$0xff]
    %v147 = vld [vmem:[%s0 + $0x1a0] sm:$0xff]
    %v148 = vld [vmem:[%s0 + $0x1a8] sm:$0xff]
    %v149 = vld [vmem:[%s0 + $0x1b0] sm:$0xff]
    %v150 = vld [vmem:[%s0 + $0x1b8] sm:$0xff]
    %v151 = vld [vmem:[%s0 + $0x1c0] sm:$0xff]
    %v152 = vld [vmem:[%s0 + $0x1c8] sm:$0xff]
    %v153 = vld [vmem:[%s0 + $0x1d0] sm:$0xff]
    %v154 = vld [vmem:[%s0 + $0x1d8] sm:$0xff]
    %v155 = vld [vmem:[%s0 + $0x1e0] sm:$0xff]
    %v156 = vld [vmem:[%s0 + $0x1e8] sm:$0xff]
    %v157 = vld [vmem:[%s0 + $0x1f0] sm:$0xff]
    %v158 = vld [vmem:[%s0 + $0x1f8] sm:$0xff]
    %v159 = vld [vmem:[%s0 + $0x200] sm:$0xff]
    %v160 = vld [vmem:[%s0 + $0x208] sm:$0xff]
    %v161 = vld [vmem:[%s0 + $0x210] sm:$0xff]
    %v162 = vld [vmem:[%s0 + $0x218] sm:$0xff]
    %v163 = vld [vmem:[%s0 + $0x220] sm:$0xff]
    %v164 = vld [vmem:[%s0 + $0x228] sm:$0xff]
    %v165 = vld [vmem:[%s0 + $0x230] sm:$0xff]
    %v166 = vld [vmem:[%s0 + $0x238] sm:$0xff]
    %v167 = vld [vmem:[%s0 + $0x240] sm:$0xff]
    %v168 = vld [vmem:[%s0 + $0x248] sm:$0xff]
    %v169 = vld [vmem:[%s0 + $0x250] sm:$0xff]
    %v170 = vld [vmem:[%s0 + $0x258] sm:$0x3f]
    %v171 = vld [vmem:[%s0 + $0x260] sm:$0x3f]
    %v172 = vld [vmem:[%s0 + $0x268] sm:$0x3f]
    %v173 = vld [vmem:[%s0 + $0x270] sm:$0x3f]
    %v174 = vld [vmem:[%s0 + $0x278] sm:$0x3f]
    %v175 = vld [vmem:[%s0 + $0x280] sm:$0xff]
    %v176 = vld [vmem:[%s0 + $0x288] sm:$0xff]
    %v177 = vld [vmem:[%s0 + $0x290] sm:$0xff]
    %v178 = vld [vmem:[%s0 + $0x298] sm:$0xff]
    %v179 = vld [vmem:[%s0 + $0x2a0] sm:$0xff]
    %v180 = vld [vmem:[%s0 + $0x2a8] sm:$0xff]
    %v181 = vld [vmem:[%s0 + $0x2b0] sm:$0xff]
    %v182 = vld [vmem:[%s0 + $0x2b8] sm:$0xff]
    %v183 = vld [vmem:[%s0 + $0x2c0] sm:$0xff]
    %v184 = vld [vmem:[%s0 + $0x2c8] sm:$0xff]
    %v185 = vld [vmem:[%s0 + $0x2d0] sm:$0xff]
    %v186 = vld [vmem:[%s0 + $0x2d8] sm:$0xff]
    %v187 = vld [vmem:[%s0 + $0x2e0] sm:$0xff]
    %v188 = vld [vmem:[%s0 + $0x2e8] sm:$0xff]
    %v189 = vld [vmem:[%s0 + $0x2f0] sm:$0xff]
    %v190 = vld [vmem:[%s0 + $0x2f8] sm:$0xff]
    %v191 = vld [vmem:[%s0 + $0x300] sm:$0xff]
    %v192 = vld [vmem:[%s0 + $0x308] sm:$0xff]
    %v193 = vld [vmem:[%s0 + $0x310] sm:$0xff]
    %v194 = vld [vmem:[%s0 + $0x318] sm:$0xff]
    %v195 = vld [vmem:[%s0 + $0x320] sm:$0xff]
    %v196 = vld [vmem:[%s0 + $0x328] sm:$0xff]
    %v197 = vld [vmem:[%s0 + $0x330] sm:$0xff]
    %v198 = vld [vmem:[%s0 + $0x338] sm:$0xff]
    %v199 = vld [vmem:[%s0 + $0x340] sm:$0xff]
    %v200 = vld [vmem:[%s0 + $0x348] sm:$0xff]
    %v201 = vld [vmem:[%s0 + $0x350] sm:$0xff]
    %v202 = vld [vmem:[%s0 + $0x358] sm:$0xff]
    %v203 = vld [vmem:[%s0 + $0x360] sm:$0xff]
    %v204 = vld [vmem:[%s0 + $0x368] sm:$0xff]
    %v205 = vld [vmem:[%s0 + $0x370] sm:$0xff]
    %v206 = vld [vmem:[%s0 + $0x378] sm:$0xff]
    %v207 = vld [vmem:[%s0 + $0x380] sm:$0xff]
    %v208 = vld [vmem:[%s0 + $0x388] sm:$0xff]
    %v209 = vld [vmem:[%s0 + $0x390] sm:$0xff]
    %v210 = vld [vmem:[%s0 + $0x398] sm:$0xff]
    %v211 = vld [vmem:[%s0 + $0x3a0] sm:$0xff]
    %v212 = vld [vmem:[%s0 + $0x3a8] sm:$0xff]
    %v213 = vld [vmem:[%s0 + $0x3b0] sm:$0xff]
    %v214 = vld [vmem:[%s0 + $0x3b8] sm:$0xff]
    %v215 = vld [vmem:[%s0 + $0x3c0] sm:$0xff]
    %v216 = vld [vmem:[%s0 + $0x3c8] sm:$0xff]
    %v217 = vld [vmem:[%s0 + $0x3d0] sm:$0xff]
    %v218 = vld [vmem:[%s0 + $0x3d8] sm:$0xff]
    %v219 = vld [vmem:[%s0 + $0x3e0] sm:$0xff]
    %v220 = vld [vmem:[%s0 + $0x3e8] sm:$0xff]
    %v221 = vld [vmem:[%s0 + $0x3f0] sm:$0xff]
    %v222 = vld [vmem:[%s0 + $0x3f8] sm:$0xff]
    %v223 = vld [vmem:[%s0 + $0x400] sm:$0xff]
    %v224 = vld [vmem:[%s0 + $0x408] sm:$0xff]
    %v225 = vld [vmem:[%s0 + $0x410] sm:$0xff]
    %v226 = vld [vmem:[%s0 + $0x418] sm:$0xff]
    %v227 = vld [vmem:[%s0 + $0x420] sm:$0xff]
    %v228 = vld [vmem:[%s0 + $0x428] sm:$0xff]
    %v229 = vld [vmem:[%s0 + $0x430] sm:$0xff]
    %v230 = vld [vmem:[%s0 + $0x438] sm:$0xff]
    %v231 = vld [vmem:[%s0 + $0x440] sm:$0xff]
    %v232 = vld [vmem:[%s0 + $0x448] sm:$0xff]
    %v233 = vld [vmem:[%s0 + $0x450] sm:$0xff]
    %v234 = vld [vmem:[%s0 + $0x458] sm:$0xff]
    %v235 = vld [vmem:[%s0 + $0x460] sm:$0xff]
    %v236 = vld [vmem:[%s0 + $0x468] sm:$0xff]
    %v237 = vld [vmem:[%s0 + $0x470] sm:$0xff]
    %v238 = vld [vmem:[%s0 + $0x478] sm:$0xff]
    %v239 = vld [vmem:[%s0 + $0x480] sm:$0xff]
    %v240 = vld [vmem:[%s0 + $0x488] sm:$0xff]
    %v241 = vld [vmem:[%s0 + $0x490] sm:$0xff]
    %v242 = vld [vmem:[%s0 + $0x498] sm:$0xff]
    %v243 = vld [vmem:[%s0 + $0x4a0] sm:$0xff]
    %v244 = vld [vmem:[%s0 + $0x4a8] sm:$0xff]
    %v245 = vld [vmem:[%s0 + $0x4b0] sm:$0xff]
    %v246 = vld [vmem:[%s0 + $0x4b8] sm:$0xff]
    %v247 = vld [vmem:[%s0 + $0x4c0] sm:$0xff]
    %v248 = vld [vmem:[%s0 + $0x4c8] sm:$0xff]
    %v249 = vld [vmem:[%s0 + $0x4d0] sm:$0xff]
    %v250 = vld [vmem:[%s0 + $0x4d8] sm:$0x3f]
    %v251 = vld [vmem:[%s0 + $0x4e0] sm:$0x3f]
    %v252 = vld [vmem:[%s0 + $0x4e8] sm:$0x3f]
    %v253 = vld [vmem:[%s0 + $0x4f0] sm:$0x3f]
    %v254 = vld [vmem:[%s0 + $0x4f8] sm:$0x3f]
    %v255 = vand.u32 2147483647, %v95
    %v256 = vand.u32 2147483647, %v96
    %v257 = vand.u32 2147483647, %v97
    %v258 = vand.u32 2147483647, %v98
    %v259 = vand.u32 2147483647, %v99
    %v260 = vand.u32 2147483647, %v100
    %v261 = vand.u32 2147483647, %v101
    %v262 = vand.u32 2147483647, %v102
    %v263 = vand.u32 2147483647, %v103
    %v264 = vand.u32 2147483647, %v104
    %v265 = vand.u32 2147483647, %v105
    %v266 = vand.u32 2147483647, %v106
    %v267 = vand.u32 2147483647, %v107
    %v268 = vand.u32 2147483647, %v108
    %v269 = vand.u32 2147483647, %v109
    %v270 = vand.u32 2147483647, %v110
    %v271 = vand.u32 2147483647, %v111
    %v272 = vand.u32 2147483647, %v112
    %v273 = vand.u32 2147483647, %v113
    %v274 = vand.u32 2147483647, %v114
    %v275 = vand.u32 2147483647, %v115
    %v276 = vand.u32 2147483647, %v116
    %v277 = vand.u32 2147483647, %v117
    %v278 = vand.u32 2147483647, %v118
    %v279 = vand.u32 2147483647, %v119
    %v280 = vand.u32 2147483647, %v120
    %v281 = vand.u32 2147483647, %v121
    %v282 = vand.u32 2147483647, %v122
    %v283 = vand.u32 2147483647, %v123
    %v284 = vand.u32 2147483647, %v124
    %v285 = vand.u32 2147483647, %v125
    %v286 = vand.u32 2147483647, %v126
    %v287 = vand.u32 2147483647, %v127
    %v288 = vand.u32 2147483647, %v128
    %v289 = vand.u32 2147483647, %v129
    %v290 = vand.u32 2147483647, %v130
    %v291 = vand.u32 2147483647, %v131
    %v292 = vand.u32 2147483647, %v132
    %v293 = vand.u32 2147483647, %v133
    %v294 = vand.u32 2147483647, %v134
    %v295 = vand.u32 2147483647, %v135
    %v296 = vand.u32 2147483647, %v136
    %v297 = vand.u32 2147483647, %v137
    %v298 = vand.u32 2147483647, %v138
    %v299 = vand.u32 2147483647, %v139
    %v300 = vand.u32 2147483647, %v140
    %v301 = vand.u32 2147483647, %v141
    %v302 = vand.u32 2147483647, %v142
    %v303 = vand.u32 2147483647, %v143
    %v304 = vand.u32 2147483647, %v144
    %v305 = vand.u32 2147483647, %v145
    %v306 = vand.u32 2147483647, %v146
    %v307 = vand.u32 2147483647, %v147
    %v308 = vand.u32 2147483647, %v148
    %v309 = vand.u32 2147483647, %v149
    %v310 = vand.u32 2147483647, %v150
    %v311 = vand.u32 2147483647, %v151
    %v312 = vand.u32 2147483647, %v152
    %v313 = vand.u32 2147483647, %v153
    %v314 = vand.u32 2147483647, %v154
    %v315 = vand.u32 2147483647, %v155
    %v316 = vand.u32 2147483647, %v156
    %v317 = vand.u32 2147483647, %v157
    %v318 = vand.u32 2147483647, %v158
    %v319 = vand.u32 2147483647, %v159
    %v320 = vand.u32 2147483647, %v160
    %v321 = vand.u32 2147483647, %v161
    %v322 = vand.u32 2147483647, %v162
    %v323 = vand.u32 2147483647, %v163
    %v324 = vand.u32 2147483647, %v164
    %v325 = vand.u32 2147483647, %v165
    %v326 = vand.u32 2147483647, %v166
    %v327 = vand.u32 2147483647, %v167
    %v328 = vand.u32 2147483647, %v168
    %v329 = vand.u32 2147483647, %v169
    %v330 = vand.u32 2147483647, %v170
    %v331 = vand.u32 2147483647, %v171
    %v332 = vand.u32 2147483647, %v172
    %v333 = vand.u32 2147483647, %v173
    %v334 = vand.u32 2147483647, %v174
    %v335 = vand.u32 2147483647, %v175
    %v336 = vand.u32 2147483647, %v176
    %v337 = vand.u32 2147483647, %v177
    %v338 = vand.u32 2147483647, %v178
    %v339 = vand.u32 2147483647, %v179
    %v340 = vand.u32 2147483647, %v180
    %v341 = vand.u32 2147483647, %v181
    %v342 = vand.u32 2147483647, %v182
    %v343 = vand.u32 2147483647, %v183
    %v344 = vand.u32 2147483647, %v184
    %v345 = vand.u32 2147483647, %v185
    %v346 = vand.u32 2147483647, %v186
    %v347 = vand.u32 2147483647, %v187
    %v348 = vand.u32 2147483647, %v188
    %v349 = vand.u32 2147483647, %v189
    %v350 = vand.u32 2147483647, %v190
    %v351 = vand.u32 2147483647, %v191
    %v352 = vand.u32 2147483647, %v192
    %v353 = vand.u32 2147483647, %v193
    %v354 = vand.u32 2147483647, %v194
    %v355 = vand.u32 2147483647, %v195
    %v356 = vand.u32 2147483647, %v196
    %v357 = vand.u32 2147483647, %v197
    %v358 = vand.u32 2147483647, %v198
    %v359 = vand.u32 2147483647, %v199
    %v360 = vand.u32 2147483647, %v200
    %v361 = vand.u32 2147483647, %v201
    %v362 = vand.u32 2147483647, %v202
    %v363 = vand.u32 2147483647, %v203
    %v364 = vand.u32 2147483647, %v204
    %v365 = vand.u32 2147483647, %v205
    %v366 = vand.u32 2147483647, %v206
    %v367 = vand.u32 2147483647, %v207
    %v368 = vand.u32 2147483647, %v208
    %v369 = vand.u32 2147483647, %v209
    %v370 = vand.u32 2147483647, %v210
    %v371 = vand.u32 2147483647, %v211
    %v372 = vand.u32 2147483647, %v212
    %v373 = vand.u32 2147483647, %v213
    %v374 = vand.u32 2147483647, %v214
    %v375 = vand.u32 2147483647, %v215
    %v376 = vand.u32 2147483647, %v216
    %v377 = vand.u32 2147483647, %v217
    %v378 = vand.u32 2147483647, %v218
    %v379 = vand.u32 2147483647, %v219
    %v380 = vand.u32 2147483647, %v220
    %v381 = vand.u32 2147483647, %v221
    %v382 = vand.u32 2147483647, %v222
    %v383 = vand.u32 2147483647, %v223
    %v384 = vand.u32 2147483647, %v224
    %v385 = vand.u32 2147483647, %v225
    %v386 = vand.u32 2147483647, %v226
    %v387 = vand.u32 2147483647, %v227
    %v388 = vand.u32 2147483647, %v228
    %v389 = vand.u32 2147483647, %v229
    %v390 = vand.u32 2147483647, %v230
    %v391 = vand.u32 2147483647, %v231
    %v392 = vand.u32 2147483647, %v232
    %v393 = vand.u32 2147483647, %v233
    %v394 = vand.u32 2147483647, %v234
    %v395 = vand.u32 2147483647, %v235
    %v396 = vand.u32 2147483647, %v236
    %v397 = vand.u32 2147483647, %v237
    %v398 = vand.u32 2147483647, %v238
    %v399 = vand.u32 2147483647, %v239
    %v400 = vand.u32 2147483647, %v240
    %v401 = vand.u32 2147483647, %v241
    %v402 = vand.u32 2147483647, %v242
    %v403 = vand.u32 2147483647, %v243
    %v404 = vand.u32 2147483647, %v244
    %v405 = vand.u32 2147483647, %v245
    %v406 = vand.u32 2147483647, %v246
    %v407 = vand.u32 2147483647, %v247
    %v408 = vand.u32 2147483647, %v248
    %v409 = vand.u32 2147483647, %v249
    %v410 = vand.u32 2147483647, %v250
    %v411 = vand.u32 2147483647, %v251
    %v412 = vand.u32 2147483647, %v252
    %v413 = vand.u32 2147483647, %v253
    %v414 = vand.u32 2147483647, %v254
    %v415 = vadd.f32 %v255, 1e-06
    %v416 = vadd.f32 %v256, 1e-06
    %v417 = vadd.f32 %v257, 1e-06
    %v418 = vadd.f32 %v258, 1e-06
    %v419 = vadd.f32 %v259, 1e-06
    %v420 = vadd.f32 %v260, 1e-06
    %v421 = vadd.f32 %v261, 1e-06
    %v422 = vadd.f32 %v262, 1e-06
    %v423 = vadd.f32 %v263, 1e-06
    %v424 = vadd.f32 %v264, 1e-06
    %v425 = vadd.f32 %v265, 1e-06
    %v426 = vadd.f32 %v266, 1e-06
    %v427 = vadd.f32 %v267, 1e-06
    %v428 = vadd.f32 %v268, 1e-06
    %v429 = vadd.f32 %v269, 1e-06
    %v430 = vadd.f32 %v270, 1e-06
    %v431 = vadd.f32 %v271, 1e-06
    %v432 = vadd.f32 %v272, 1e-06
    %v433 = vadd.f32 %v273, 1e-06
    %v434 = vadd.f32 %v274, 1e-06
    %v435 = vadd.f32 %v275, 1e-06
    %v436 = vadd.f32 %v276, 1e-06
    %v437 = vadd.f32 %v277, 1e-06
    %v438 = vadd.f32 %v278, 1e-06
    %v439 = vadd.f32 %v279, 1e-06
    %v440 = vadd.f32 %v280, 1e-06
    %v441 = vadd.f32 %v281, 1e-06
    %v442 = vadd.f32 %v282, 1e-06
    %v443 = vadd.f32 %v283, 1e-06
    %v444 = vadd.f32 %v284, 1e-06
    %v445 = vadd.f32 %v285, 1e-06
    %v446 = vadd.f32 %v286, 1e-06
    %v447 = vadd.f32 %v287, 1e-06
    %v448 = vadd.f32 %v288, 1e-06
    %v449 = vadd.f32 %v289, 1e-06
    %v450 = vadd.f32 %v290, 1e-06
    %v451 = vadd.f32 %v291, 1e-06
    %v452 = vadd.f32 %v292, 1e-06
    %v453 = vadd.f32 %v293, 1e-06
    %v454 = vadd.f32 %v294, 1e-06
    %v455 = vadd.f32 %v295, 1e-06
    %v456 = vadd.f32 %v296, 1e-06
    %v457 = vadd.f32 %v297, 1e-06
    %v458 = vadd.f32 %v298, 1e-06
    %v459 = vadd.f32 %v299, 1e-06
    %v460 = vadd.f32 %v300, 1e-06
    %v461 = vadd.f32 %v301, 1e-06
    %v462 = vadd.f32 %v302, 1e-06
    %v463 = vadd.f32 %v303, 1e-06
    %v464 = vadd.f32 %v304, 1e-06
    %v465 = vadd.f32 %v305, 1e-06
    %v466 = vadd.f32 %v306, 1e-06
    %v467 = vadd.f32 %v307, 1e-06
    %v468 = vadd.f32 %v308, 1e-06
    %v469 = vadd.f32 %v309, 1e-06
    %v470 = vadd.f32 %v310, 1e-06
    %v471 = vadd.f32 %v311, 1e-06
    %v472 = vadd.f32 %v312, 1e-06
    %v473 = vadd.f32 %v313, 1e-06
    %v474 = vadd.f32 %v314, 1e-06
    %v475 = vadd.f32 %v315, 1e-06
    %v476 = vadd.f32 %v316, 1e-06
    %v477 = vadd.f32 %v317, 1e-06
    %v478 = vadd.f32 %v318, 1e-06
    %v479 = vadd.f32 %v319, 1e-06
    %v480 = vadd.f32 %v320, 1e-06
    %v481 = vadd.f32 %v321, 1e-06
    %v482 = vadd.f32 %v322, 1e-06
    %v483 = vadd.f32 %v323, 1e-06
    %v484 = vadd.f32 %v324, 1e-06
    %v485 = vadd.f32 %v325, 1e-06
    %v486 = vadd.f32 %v326, 1e-06
    %v487 = vadd.f32 %v327, 1e-06
    %v488 = vadd.f32 %v328, 1e-06
    %v489 = vadd.f32 %v329, 1e-06
    %v490 = vadd.f32 %v330, 1e-06
    %v491 = vadd.f32 %v331, 1e-06
    %v492 = vadd.f32 %v332, 1e-06
    %v493 = vadd.f32 %v333, 1e-06
    %v494 = vadd.f32 %v334, 1e-06
    %v495 = vadd.f32 %v335, 1e-06
    %v496 = vadd.f32 %v336, 1e-06
    %v497 = vadd.f32 %v337, 1e-06
    %v498 = vadd.f32 %v338, 1e-06
    %v499 = vadd.f32 %v339, 1e-06
    %v500 = vadd.f32 %v340, 1e-06
    %v501 = vadd.f32 %v341, 1e-06
    %v502 = vadd.f32 %v342, 1e-06
    %v503 = vadd.f32 %v343, 1e-06
    %v504 = vadd.f32 %v344, 1e-06
    %v505 = vadd.f32 %v345, 1e-06
    %v506 = vadd.f32 %v346, 1e-06
    %v507 = vadd.f32 %v347, 1e-06
    %v508 = vadd.f32 %v348, 1e-06
    %v509 = vadd.f32 %v349, 1e-06
    %v510 = vadd.f32 %v350, 1e-06
    %v511 = vadd.f32 %v351, 1e-06
    %v512 = vadd.f32 %v352, 1e-06
    %v513 = vadd.f32 %v353, 1e-06
    %v514 = vadd.f32 %v354, 1e-06
    %v515 = vadd.f32 %v355, 1e-06
    %v516 = vadd.f32 %v356, 1e-06
    %v517 = vadd.f32 %v357, 1e-06
    %v518 = vadd.f32 %v358, 1e-06
    %v519 = vadd.f32 %v359, 1e-06
    %v520 = vadd.f32 %v360, 1e-06
    %v521 = vadd.f32 %v361, 1e-06
    %v522 = vadd.f32 %v362, 1e-06
    %v523 = vadd.f32 %v363, 1e-06
    %v524 = vadd.f32 %v364, 1e-06
    %v525 = vadd.f32 %v365, 1e-06
    %v526 = vadd.f32 %v366, 1e-06
    %v527 = vadd.f32 %v367, 1e-06
    %v528 = vadd.f32 %v368, 1e-06
    %v529 = vadd.f32 %v369, 1e-06
    %v530 = vadd.f32 %v370, 1e-06
    %v531 = vadd.f32 %v371, 1e-06
    %v532 = vadd.f32 %v372, 1e-06
    %v533 = vadd.f32 %v373, 1e-06
    %v534 = vadd.f32 %v374, 1e-06
    %v535 = vadd.f32 %v375, 1e-06
    %v536 = vadd.f32 %v376, 1e-06
    %v537 = vadd.f32 %v377, 1e-06
    %v538 = vadd.f32 %v378, 1e-06
    %v539 = vadd.f32 %v379, 1e-06
    %v540 = vadd.f32 %v380, 1e-06
    %v541 = vadd.f32 %v381, 1e-06
    %v542 = vadd.f32 %v382, 1e-06
    %v543 = vadd.f32 %v383, 1e-06
    %v544 = vadd.f32 %v384, 1e-06
    %v545 = vadd.f32 %v385, 1e-06
    %v546 = vadd.f32 %v386, 1e-06
    %v547 = vadd.f32 %v387, 1e-06
    %v548 = vadd.f32 %v388, 1e-06
    %v549 = vadd.f32 %v389, 1e-06
    %v550 = vadd.f32 %v390, 1e-06
    %v551 = vadd.f32 %v391, 1e-06
    %v552 = vadd.f32 %v392, 1e-06
    %v553 = vadd.f32 %v393, 1e-06
    %v554 = vadd.f32 %v394, 1e-06
    %v555 = vadd.f32 %v395, 1e-06
    %v556 = vadd.f32 %v396, 1e-06
    %v557 = vadd.f32 %v397, 1e-06
    %v558 = vadd.f32 %v398, 1e-06
    %v559 = vadd.f32 %v399, 1e-06
    %v560 = vadd.f32 %v400, 1e-06
    %v561 = vadd.f32 %v401, 1e-06
    %v562 = vadd.f32 %v402, 1e-06
    %v563 = vadd.f32 %v403, 1e-06
    %v564 = vadd.f32 %v404, 1e-06
    %v565 = vadd.f32 %v405, 1e-06
    %v566 = vadd.f32 %v406, 1e-06
    %v567 = vadd.f32 %v407, 1e-06
    %v568 = vadd.f32 %v408, 1e-06
    %v569 = vadd.f32 %v409, 1e-06
    %v570 = vadd.f32 %v410, 1e-06
    %v571 = vadd.f32 %v411, 1e-06
    %v572 = vadd.f32 %v412, 1e-06
    %v573 = vadd.f32 %v413, 1e-06
    %v574 = vadd.f32 %v414, 1e-06
    %v575 = vlog2.pop %v415
    %v576 = vmul.f32 %v575, 0.6931472
    %v577 = vlog2.pop %v416
    %v578 = vmul.f32 %v577, 0.6931472
    %v579 = vlog2.pop %v417
    %v580 = vmul.f32 %v579, 0.6931472
    %v581 = vlog2.pop %v418
    %v582 = vmul.f32 %v581, 0.6931472
    %v583 = vlog2.pop %v419
    %v584 = vmul.f32 %v583, 0.6931472
    %v585 = vlog2.pop %v420
    %v586 = vmul.f32 %v585, 0.6931472
    %v587 = vlog2.pop %v421
    %v588 = vmul.f32 %v587, 0.6931472
    %v589 = vlog2.pop %v422
    %v590 = vmul.f32 %v589, 0.6931472
    %v591 = vlog2.pop %v423
    %v592 = vmul.f32 %v591, 0.6931472
    %v593 = vlog2.pop %v424
    %v594 = vmul.f32 %v593, 0.6931472
    %v595 = vlog2.pop %v425
    %v596 = vmul.f32 %v595, 0.6931472
    %v597 = vlog2.pop %v426
    %v598 = vmul.f32 %v597, 0.6931472
    %v599 = vlog2.pop %v427
    %v600 = vmul.f32 %v599, 0.6931472
    %v601 = vlog2.pop %v428
    %v602 = vmul.f32 %v601, 0.6931472
    %v603 = vlog2.pop %v429
    %v604 = vmul.f32 %v603, 0.6931472
    %v605 = vlog2.pop %v430
    %v606 = vmul.f32 %v605, 0.6931472
    %v607 = vlog2.pop %v431
    %v608 = vmul.f32 %v607, 0.6931472
    %v609 = vlog2.pop %v432
    %v610 = vmul.f32 %v609, 0.6931472
    %v611 = vlog2.pop %v433
    %v612 = vmul.f32 %v611, 0.6931472
    %v613 = vlog2.pop %v434
    %v614 = vmul.f32 %v613, 0.6931472
    %v615 = vlog2.pop %v435
    %v616 = vmul.f32 %v615, 0.6931472
    %v617 = vlog2.pop %v436
    %v618 = vmul.f32 %v617, 0.6931472
    %v619 = vlog2.pop %v437
    %v620 = vmul.f32 %v619, 0.6931472
    %v621 = vlog2.pop %v438
    %v622 = vmul.f32 %v621, 0.6931472
    %v623 = vlog2.pop %v439
    %v624 = vmul.f32 %v623, 0.6931472
    %v625 = vlog2.pop %v440
    %v626 = vmul.f32 %v625, 0.6931472
    %v627 = vlog2.pop %v441
    %v628 = vmul.f32 %v627, 0.6931472
    %v629 = vlog2.pop %v442
    %v630 = vmul.f32 %v629, 0.6931472
    %v631 = vlog2.pop %v443
    %v632 = vmul.f32 %v631, 0.6931472
    %v633 = vlog2.pop %v444
    %v634 = vmul.f32 %v633, 0.6931472
    %v635 = vlog2.pop %v445
    %v636 = vmul.f32 %v635, 0.6931472
    %v637 = vlog2.pop %v446
    %v638 = vmul.f32 %v637, 0.6931472
    %v639 = vlog2.pop %v447
    %v640 = vmul.f32 %v639, 0.6931472
    %v641 = vlog2.pop %v448
    %v642 = vmul.f32 %v641, 0.6931472
    %v643 = vlog2.pop %v449
    %v644 = vmul.f32 %v643, 0.6931472
    %v645 = vlog2.pop %v450
    %v646 = vmul.f32 %v645, 0.6931472
    %v647 = vlog2.pop %v451
    %v648 = vmul.f32 %v647, 0.6931472
    %v649 = vlog2.pop %v452
    %v650 = vmul.f32 %v649, 0.6931472
    %v651 = vlog2.pop %v453
    %v652 = vmul.f32 %v651, 0.6931472
    %v653 = vlog2.pop %v454
    %v654 = vmul.f32 %v653, 0.6931472
    %v655 = vlog2.pop %v455
    %v656 = vmul.f32 %v655, 0.6931472
    %v657 = vlog2.pop %v456
    %v658 = vmul.f32 %v657, 0.6931472
    %v659 = vlog2.pop %v457
    %v660 = vmul.f32 %v659, 0.6931472
    %v661 = vlog2.pop %v458
    %v662 = vmul.f32 %v661, 0.6931472
    %v663 = vlog2.pop %v459
    %v664 = vmul.f32 %v663, 0.6931472
    %v665 = vlog2.pop %v460
    %v666 = vmul.f32 %v665, 0.6931472
    %v667 = vlog2.pop %v461
    %v668 = vmul.f32 %v667, 0.6931472
    %v669 = vlog2.pop %v462
    %v670 = vmul.f32 %v669, 0.6931472
    %v671 = vlog2.pop %v463
    %v672 = vmul.f32 %v671, 0.6931472
    %v673 = vlog2.pop %v464
    %v674 = vmul.f32 %v673, 0.6931472
    %v675 = vlog2.pop %v465
    %v676 = vmul.f32 %v675, 0.6931472
    %v677 = vlog2.pop %v466
    %v678 = vmul.f32 %v677, 0.6931472
    %v679 = vlog2.pop %v467
    %v680 = vmul.f32 %v679, 0.6931472
    %v681 = vlog2.pop %v468
    %v682 = vmul.f32 %v681, 0.6931472
    %v683 = vlog2.pop %v469
    %v684 = vmul.f32 %v683, 0.6931472
    %v685 = vlog2.pop %v470
    %v686 = vmul.f32 %v685, 0.6931472
    %v687 = vlog2.pop %v471
    %v688 = vmul.f32 %v687, 0.6931472
    %v689 = vlog2.pop %v472
    %v690 = vmul.f32 %v689, 0.6931472
    %v691 = vlog2.pop %v473
    %v692 = vmul.f32 %v691, 0.6931472
    %v693 = vlog2.pop %v474
    %v694 = vmul.f32 %v693, 0.6931472
    %v695 = vlog2.pop %v475
    %v696 = vmul.f32 %v695, 0.6931472
    %v697 = vlog2.pop %v476
    %v698 = vmul.f32 %v697, 0.6931472
    %v699 = vlog2.pop %v477
    %v700 = vmul.f32 %v699, 0.6931472
    %v701 = vlog2.pop %v478
    %v702 = vmul.f32 %v701, 0.6931472
    %v703 = vlog2.pop %v479
    %v704 = vmul.f32 %v703, 0.6931472
    %v705 = vlog2.pop %v480
    %v706 = vmul.f32 %v705, 0.6931472
    %v707 = vlog2.pop %v481
    %v708 = vmul.f32 %v707, 0.6931472
    %v709 = vlog2.pop %v482
    %v710 = vmul.f32 %v709, 0.6931472
    %v711 = vlog2.pop %v483
    %v712 = vmul.f32 %v711, 0.6931472
    %v713 = vlog2.pop %v484
    %v714 = vmul.f32 %v713, 0.6931472
    %v715 = vlog2.pop %v485
    %v716 = vmul.f32 %v715, 0.6931472
    %v717 = vlog2.pop %v486
    %v718 = vmul.f32 %v717, 0.6931472
    %v719 = vlog2.pop %v487
    %v720 = vmul.f32 %v719, 0.6931472
    %v721 = vlog2.pop %v488
    %v722 = vmul.f32 %v721, 0.6931472
    %v723 = vlog2.pop %v489
    %v724 = vmul.f32 %v723, 0.6931472
    %v725 = vlog2.pop %v490
    %v726 = vmul.f32 %v725, 0.6931472
    %v727 = vlog2.pop %v491
    %v728 = vmul.f32 %v727, 0.6931472
    %v729 = vlog2.pop %v492
    %v730 = vmul.f32 %v729, 0.6931472
    %v731 = vlog2.pop %v493
    %v732 = vmul.f32 %v731, 0.6931472
    %v733 = vlog2.pop %v494
    %v734 = vmul.f32 %v733, 0.6931472
    %v735 = vlog2.pop %v495
    %v736 = vmul.f32 %v735, 0.6931472
    %v737 = vlog2.pop %v496
    %v738 = vmul.f32 %v737, 0.6931472
    %v739 = vlog2.pop %v497
    %v740 = vmul.f32 %v739, 0.6931472
    %v741 = vlog2.pop %v498
    %v742 = vmul.f32 %v741, 0.6931472
    %v743 = vlog2.pop %v499
    %v744 = vmul.f32 %v743, 0.6931472
    %v745 = vlog2.pop %v500
    %v746 = vmul.f32 %v745, 0.6931472
    %v747 = vlog2.pop %v501
    %v748 = vmul.f32 %v747, 0.6931472
    %v749 = vlog2.pop %v502
    %v750 = vmul.f32 %v749, 0.6931472
    %v751 = vlog2.pop %v503
    %v752 = vmul.f32 %v751, 0.6931472
    %v753 = vlog2.pop %v504
    %v754 = vmul.f32 %v753, 0.6931472
    %v755 = vlog2.pop %v505
    %v756 = vmul.f32 %v755, 0.6931472
    %v757 = vlog2.pop %v506
    %v758 = vmul.f32 %v757, 0.6931472
    %v759 = vlog2.pop %v507
    %v760 = vmul.f32 %v759, 0.6931472
    %v761 = vlog2.pop %v508
    %v762 = vmul.f32 %v761, 0.6931472
    %v763 = vlog2.pop %v509
    %v764 = vmul.f32 %v763, 0.6931472
    %v765 = vlog2.pop %v510
    %v766 = vmul.f32 %v765, 0.6931472
    %v767 = vlog2.pop %v511
    %v768 = vmul.f32 %v767, 0.6931472
    %v769 = vlog2.pop %v512
    %v770 = vmul.f32 %v769, 0.6931472
    %v771 = vlog2.pop %v513
    %v772 = vmul.f32 %v771, 0.6931472
    %v773 = vlog2.pop %v514
    %v774 = vmul.f32 %v773, 0.6931472
    %v775 = vlog2.pop %v515
    %v776 = vmul.f32 %v775, 0.6931472
    %v777 = vlog2.pop %v516
    %v778 = vmul.f32 %v777, 0.6931472
    %v779 = vlog2.pop %v517
    %v780 = vmul.f32 %v779, 0.6931472
    %v781 = vlog2.pop %v518
    %v782 = vmul.f32 %v781, 0.6931472
    %v783 = vlog2.pop %v519
    %v784 = vmul.f32 %v783, 0.6931472
    %v785 = vlog2.pop %v520
    %v786 = vmul.f32 %v785, 0.6931472
    %v787 = vlog2.pop %v521
    %v788 = vmul.f32 %v787, 0.6931472
    %v789 = vlog2.pop %v522
    %v790 = vmul.f32 %v789, 0.6931472
    %v791 = vlog2.pop %v523
    %v792 = vmul.f32 %v791, 0.6931472
    %v793 = vlog2.pop %v524
    %v794 = vmul.f32 %v793, 0.6931472
    %v795 = vlog2.pop %v525
    %v796 = vmul.f32 %v795, 0.6931472
    %v797 = vlog2.pop %v526
    %v798 = vmul.f32 %v797, 0.6931472
    %v799 = vlog2.pop %v527
    %v800 = vmul.f32 %v799, 0.6931472
    %v801 = vlog2.pop %v528
    %v802 = vmul.f32 %v801, 0.6931472
    %v803 = vlog2.pop %v529
    %v804 = vmul.f32 %v803, 0.6931472
    %v805 = vlog2.pop %v530
    %v806 = vmul.f32 %v805, 0.6931472
    %v807 = vlog2.pop %v531
    %v808 = vmul.f32 %v807, 0.6931472
    %v809 = vlog2.pop %v532
    %v810 = vmul.f32 %v809, 0.6931472
    %v811 = vlog2.pop %v533
    %v812 = vmul.f32 %v811, 0.6931472
    %v813 = vlog2.pop %v534
    %v814 = vmul.f32 %v813, 0.6931472
    %v815 = vlog2.pop %v535
    %v816 = vmul.f32 %v815, 0.6931472
    %v817 = vlog2.pop %v536
    %v818 = vmul.f32 %v817, 0.6931472
    %v819 = vlog2.pop %v537
    %v820 = vmul.f32 %v819, 0.6931472
    %v821 = vlog2.pop %v538
    %v822 = vmul.f32 %v821, 0.6931472
    %v823 = vlog2.pop %v539
    %v824 = vmul.f32 %v823, 0.6931472
    %v825 = vlog2.pop %v540
    %v826 = vmul.f32 %v825, 0.6931472
    %v827 = vlog2.pop %v541
    %v828 = vmul.f32 %v827, 0.6931472
    %v829 = vlog2.pop %v542
    %v830 = vmul.f32 %v829, 0.6931472
    %v831 = vlog2.pop %v543
    %v832 = vmul.f32 %v831, 0.6931472
    %v833 = vlog2.pop %v544
    %v834 = vmul.f32 %v833, 0.6931472
    %v835 = vlog2.pop %v545
    %v836 = vmul.f32 %v835, 0.6931472
    %v837 = vlog2.pop %v546
    %v838 = vmul.f32 %v837, 0.6931472
    %v839 = vlog2.pop %v547
    %v840 = vmul.f32 %v839, 0.6931472
    %v841 = vlog2.pop %v548
    %v842 = vmul.f32 %v841, 0.6931472
    %v843 = vlog2.pop %v549
    %v844 = vmul.f32 %v843, 0.6931472
    %v845 = vlog2.pop %v550
    %v846 = vmul.f32 %v845, 0.6931472
    %v847 = vlog2.pop %v551
    %v848 = vmul.f32 %v847, 0.6931472
    %v849 = vlog2.pop %v552
    %v850 = vmul.f32 %v849, 0.6931472
    %v851 = vlog2.pop %v553
    %v852 = vmul.f32 %v851, 0.6931472
    %v853 = vlog2.pop %v554
    %v854 = vmul.f32 %v853, 0.6931472
    %v855 = vlog2.pop %v555
    %v856 = vmul.f32 %v855, 0.6931472
    %v857 = vlog2.pop %v556
    %v858 = vmul.f32 %v857, 0.6931472
    %v859 = vlog2.pop %v557
    %v860 = vmul.f32 %v859, 0.6931472
    %v861 = vlog2.pop %v558
    %v862 = vmul.f32 %v861, 0.6931472
    %v863 = vlog2.pop %v559
    %v864 = vmul.f32 %v863, 0.6931472
    %v865 = vlog2.pop %v560
    %v866 = vmul.f32 %v865, 0.6931472
    %v867 = vlog2.pop %v561
    %v868 = vmul.f32 %v867, 0.6931472
    %v869 = vlog2.pop %v562
    %v870 = vmul.f32 %v869, 0.6931472
    %v871 = vlog2.pop %v563
    %v872 = vmul.f32 %v871, 0.6931472
    %v873 = vlog2.pop %v564
    %v874 = vmul.f32 %v873, 0.6931472
    %v875 = vlog2.pop %v565
    %v876 = vmul.f32 %v875, 0.6931472
    %v877 = vlog2.pop %v566
    %v878 = vmul.f32 %v877, 0.6931472
    %v879 = vlog2.pop %v567
    %v880 = vmul.f32 %v879, 0.6931472
    %v881 = vlog2.pop %v568
    %v882 = vmul.f32 %v881, 0.6931472
    %v883 = vlog2.pop %v569
    %v884 = vmul.f32 %v883, 0.6931472
    %v885 = vlog2.pop %v570
    %v886 = vmul.f32 %v885, 0.6931472
    %v887 = vlog2.pop %v571
    %v888 = vmul.f32 %v887, 0.6931472
    %v889 = vlog2.pop %v572
    %v890 = vmul.f32 %v889, 0.6931472
    %v891 = vlog2.pop %v573
    %v892 = vmul.f32 %v891, 0.6931472
    %v893 = vlog2.pop %v574
    %v894 = vmul.f32 %v893, 0.6931472
    %v895 = vadd.f32 %v576, %v578
    %v896 = vadd.f32 %v895, %v580
    %v897 = vadd.f32 %v896, %v582
    %vm898 = vcmask 924672
    %v899 = vsel %vm898, %v584, 0.0
    %v900 = vadd.f32 %v897, %v899
    %901 = vadd.xlane.f32.xlu0 %v900
    %v902 = vpop.xlane.xlu0 %901
    %v903 = vadd.f32 %v586, %v588
    %v904 = vadd.f32 %v903, %v590
    %v905 = vadd.f32 %v904, %v592
    %v906 = vsel %vm898, %v594, 0.0
    %v907 = vadd.f32 %v905, %v906
    %908 = vadd.xlane.f32.xlu0 %v907
    %v909 = vpop.xlane.xlu0 %908
    %v910 = vadd.f32 %v596, %v598
    %v911 = vadd.f32 %v910, %v600
    %v912 = vadd.f32 %v911, %v602
    %v913 = vsel %vm898, %v604, 0.0
    %v914 = vadd.f32 %v912, %v913
    %915 = vadd.xlane.f32.xlu0 %v914
    %v916 = vpop.xlane.xlu0 %915
    %v917 = vadd.f32 %v606, %v608
    %v918 = vadd.f32 %v917, %v610
    %v919 = vadd.f32 %v918, %v612
    %v920 = vsel %vm898, %v614, 0.0
    %v921 = vadd.f32 %v919, %v920
    %922 = vadd.xlane.f32.xlu0 %v921
    %v923 = vpop.xlane.xlu0 %922
    %v924 = vadd.f32 %v616, %v618
    %v925 = vadd.f32 %v924, %v620
    %v926 = vadd.f32 %v925, %v622
    %v927 = vsel %vm898, %v624, 0.0
    %v928 = vadd.f32 %v926, %v927
    %929 = vadd.xlane.f32.xlu0 %v928
    %v930 = vpop.xlane.xlu0 %929
    %v931 = vadd.f32 %v626, %v628
    %v932 = vadd.f32 %v931, %v630
    %v933 = vadd.f32 %v932, %v632
    %v934 = vsel %vm898, %v634, 0.0
    %v935 = vadd.f32 %v933, %v934
    %936 = vadd.xlane.f32.xlu0 %v935
    %v937 = vpop.xlane.xlu0 %936
    %v938 = vadd.f32 %v636, %v638
    %v939 = vadd.f32 %v938, %v640
    %v940 = vadd.f32 %v939, %v642
    %v941 = vsel %vm898, %v644, 0.0
    %v942 = vadd.f32 %v940, %v941
    %943 = vadd.xlane.f32.xlu0 %v942
    %v944 = vpop.xlane.xlu0 %943
    %v945 = vadd.f32 %v646, %v648
    %v946 = vadd.f32 %v945, %v650
    %v947 = vadd.f32 %v946, %v652
    %v948 = vsel %vm898, %v654, 0.0
    %v949 = vadd.f32 %v947, %v948
    %950 = vadd.xlane.f32.xlu0 %v949
    %v951 = vpop.xlane.xlu0 %950
    %v952 = vadd.f32 %v656, %v658
    %v953 = vadd.f32 %v952, %v660
    %v954 = vadd.f32 %v953, %v662
    %v955 = vsel %vm898, %v664, 0.0
    %v956 = vadd.f32 %v954, %v955
    %957 = vadd.xlane.f32.xlu0 %v956
    %v958 = vpop.xlane.xlu0 %957
    %v959 = vadd.f32 %v666, %v668
    %v960 = vadd.f32 %v959, %v670
    %v961 = vadd.f32 %v960, %v672
    %v962 = vsel %vm898, %v674, 0.0
    %v963 = vadd.f32 %v961, %v962
    %964 = vadd.xlane.f32.xlu0 %v963
    %v965 = vpop.xlane.xlu0 %964
    %v966 = vadd.f32 %v676, %v678
    %v967 = vadd.f32 %v966, %v680
    %v968 = vadd.f32 %v967, %v682
    %v969 = vsel %vm898, %v684, 0.0
    %v970 = vadd.f32 %v968, %v969
    %971 = vadd.xlane.f32.xlu0 %v970
    %v972 = vpop.xlane.xlu0 %971
    %v973 = vadd.f32 %v686, %v688
    %v974 = vadd.f32 %v973, %v690
    %v975 = vadd.f32 %v974, %v692
    %v976 = vsel %vm898, %v694, 0.0
    %v977 = vadd.f32 %v975, %v976
    %978 = vadd.xlane.f32.xlu0 %v977
    %v979 = vpop.xlane.xlu0 %978
    %v980 = vadd.f32 %v696, %v698
    %v981 = vadd.f32 %v980, %v700
    %v982 = vadd.f32 %v981, %v702
    %v983 = vsel %vm898, %v704, 0.0
    %v984 = vadd.f32 %v982, %v983
    %985 = vadd.xlane.f32.xlu0 %v984
    %v986 = vpop.xlane.xlu0 %985
    %v987 = vadd.f32 %v706, %v708
    %v988 = vadd.f32 %v987, %v710
    %v989 = vadd.f32 %v988, %v712
    %v990 = vsel %vm898, %v714, 0.0
    %v991 = vadd.f32 %v989, %v990
    %992 = vadd.xlane.f32.xlu0 %v991
    %v993 = vpop.xlane.xlu0 %992
    %v994 = vadd.f32 %v716, %v718
    %v995 = vadd.f32 %v994, %v720
    %v996 = vadd.f32 %v995, %v722
    %v997 = vsel %vm898, %v724, 0.0
    %v998 = vadd.f32 %v996, %v997
    %999 = vadd.xlane.f32.xlu0 %v998
    %v1000 = vpop.xlane.xlu0 %999
    %vm1001 = vcmask 1045504
    %v1002 = vsel %vm1001, %v726, 0.0
    %v1003 = vsel %vm1001, %v728, 0.0
    %v1004 = vadd.f32 %v1002, %v1003
    %v1005 = vsel %vm1001, %v730, 0.0
    %v1006 = vadd.f32 %v1004, %v1005
    %v1007 = vsel %vm1001, %v732, 0.0
    %v1008 = vadd.f32 %v1006, %v1007
    %vm1009 = vcmask 922624
    %v1010 = vsel %vm1009, %v734, 0.0
    %v1011 = vadd.f32 %v1008, %v1010
    %1012 = vadd.xlane.f32.xlu0 %v1011
    %v1013 = vpop.xlane.xlu0 %1012
    %v1014 = vadd.f32 %v736, %v738
    %v1015 = vadd.f32 %v1014, %v740
    %v1016 = vadd.f32 %v1015, %v742
    %v1017 = vsel %vm898, %v744, 0.0
    %v1018 = vadd.f32 %v1016, %v1017
    %1019 = vadd.xlane.f32.xlu0 %v1018
    %v1020 = vpop.xlane.xlu0 %1019
    %v1021 = vadd.f32 %v746, %v748
    %v1022 = vadd.f32 %v1021, %v750
    %v1023 = vadd.f32 %v1022, %v752
    %v1024 = vsel %vm898, %v754, 0.0
    %v1025 = vadd.f32 %v1023, %v1024
    %1026 = vadd.xlane.f32.xlu0 %v1025
    %v1027 = vpop.xlane.xlu0 %1026
    %v1028 = vadd.f32 %v756, %v758
    %v1029 = vadd.f32 %v1028, %v760
    %v1030 = vadd.f32 %v1029, %v762
    %v1031 = vsel %vm898, %v764, 0.0
    %v1032 = vadd.f32 %v1030, %v1031
    %1033 = vadd.xlane.f32.xlu0 %v1032
    %v1034 = vpop.xlane.xlu0 %1033
    %v1035 = vadd.f32 %v766, %v768
    %v1036 = vadd.f32 %v1035, %v770
    %v1037 = vadd.f32 %v1036, %v772
    %v1038 = vsel %vm898, %v774, 0.0
    %v1039 = vadd.f32 %v1037, %v1038
    %1040 = vadd.xlane.f32.xlu0 %v1039
    %v1041 = vpop.xlane.xlu0 %1040
    %v1042 = vadd.f32 %v776, %v778
    %v1043 = vadd.f32 %v1042, %v780
    %v1044 = vadd.f32 %v1043, %v782
    %v1045 = vsel %vm898, %v784, 0.0
    %v1046 = vadd.f32 %v1044, %v1045
    %1047 = vadd.xlane.f32.xlu0 %v1046
    %v1048 = vpop.xlane.xlu0 %1047
    %v1049 = vadd.f32 %v786, %v788
    %v1050 = vadd.f32 %v1049, %v790
    %v1051 = vadd.f32 %v1050, %v792
    %v1052 = vsel %vm898, %v794, 0.0
    %v1053 = vadd.f32 %v1051, %v1052
    %1054 = vadd.xlane.f32.xlu0 %v1053
    %v1055 = vpop.xlane.xlu0 %1054
    %v1056 = vadd.f32 %v796, %v798
    %v1057 = vadd.f32 %v1056, %v800
    %v1058 = vadd.f32 %v1057, %v802
    %v1059 = vsel %vm898, %v804, 0.0
    %v1060 = vadd.f32 %v1058, %v1059
    %1061 = vadd.xlane.f32.xlu0 %v1060
    %v1062 = vpop.xlane.xlu0 %1061
    %v1063 = vadd.f32 %v806, %v808
    %v1064 = vadd.f32 %v1063, %v810
    %v1065 = vadd.f32 %v1064, %v812
    %v1066 = vsel %vm898, %v814, 0.0
    %v1067 = vadd.f32 %v1065, %v1066
    %1068 = vadd.xlane.f32.xlu0 %v1067
    %v1069 = vpop.xlane.xlu0 %1068
    %v1070 = vadd.f32 %v816, %v818
    %v1071 = vadd.f32 %v1070, %v820
    %v1072 = vadd.f32 %v1071, %v822
    %v1073 = vsel %vm898, %v824, 0.0
    %v1074 = vadd.f32 %v1072, %v1073
    %1075 = vadd.xlane.f32.xlu0 %v1074
    %v1076 = vpop.xlane.xlu0 %1075
    %v1077 = vadd.f32 %v826, %v828
    %v1078 = vadd.f32 %v1077, %v830
    %v1079 = vadd.f32 %v1078, %v832
    %v1080 = vsel %vm898, %v834, 0.0
    %v1081 = vadd.f32 %v1079, %v1080
    %1082 = vadd.xlane.f32.xlu0 %v1081
    %v1083 = vpop.xlane.xlu0 %1082
    %v1084 = vadd.f32 %v836, %v838
    %v1085 = vadd.f32 %v1084, %v840
    %v1086 = vadd.f32 %v1085, %v842
    %v1087 = vsel %vm898, %v844, 0.0
    %v1088 = vadd.f32 %v1086, %v1087
    %1089 = vadd.xlane.f32.xlu0 %v1088
    %v1090 = vpop.xlane.xlu0 %1089
    %v1091 = vadd.f32 %v846, %v848
    %v1092 = vadd.f32 %v1091, %v850
    %v1093 = vadd.f32 %v1092, %v852
    %v1094 = vsel %vm898, %v854, 0.0
    %v1095 = vadd.f32 %v1093, %v1094
    %1096 = vadd.xlane.f32.xlu0 %v1095
    %v1097 = vpop.xlane.xlu0 %1096
    %v1098 = vadd.f32 %v856, %v858
    %v1099 = vadd.f32 %v1098, %v860
    %v1100 = vadd.f32 %v1099, %v862
    %v1101 = vsel %vm898, %v864, 0.0
    %v1102 = vadd.f32 %v1100, %v1101
    %1103 = vadd.xlane.f32.xlu0 %v1102
    %v1104 = vpop.xlane.xlu0 %1103
    %v1105 = vadd.f32 %v866, %v868
    %v1106 = vadd.f32 %v1105, %v870
    %v1107 = vadd.f32 %v1106, %v872
    %v1108 = vsel %vm898, %v874, 0.0
    %v1109 = vadd.f32 %v1107, %v1108
    %1110 = vadd.xlane.f32.xlu0 %v1109
    %v1111 = vpop.xlane.xlu0 %1110
    %v1112 = vadd.f32 %v876, %v878
    %v1113 = vadd.f32 %v1112, %v880
    %v1114 = vadd.f32 %v1113, %v882
    %v1115 = vsel %vm898, %v884, 0.0
    %v1116 = vadd.f32 %v1114, %v1115
    %1117 = vadd.xlane.f32.xlu0 %v1116
    %v1118 = vpop.xlane.xlu0 %1117
    %v1119 = vsel %vm1001, %v886, 0.0
    %v1120 = vsel %vm1001, %v888, 0.0
    %v1121 = vadd.f32 %v1119, %v1120
    %v1122 = vsel %vm1001, %v890, 0.0
    %v1123 = vadd.f32 %v1121, %v1122
    %v1124 = vsel %vm1001, %v892, 0.0
    %v1125 = vadd.f32 %v1123, %v1124
    %v1126 = vsel %vm1009, %v894, 0.0
    %v1127 = vadd.f32 %v1125, %v1126
    %1128 = vadd.xlane.f32.xlu0 %v1127
    %v1129 = vpop.xlane.xlu0 %1128
    %v1130 = vrcp.pop 625.0
    %v1131 = vmul.f32 %v902, %v1130
    %v1132 = vmul.f32 %v909, %v1130
    %v1133 = vmul.f32 %v916, %v1130
    %v1134 = vmul.f32 %v923, %v1130
    %v1135 = vmul.f32 %v930, %v1130
    %v1136 = vmul.f32 %v937, %v1130
    %v1137 = vmul.f32 %v944, %v1130
    %v1138 = vmul.f32 %v951, %v1130
    %v1139 = vmul.f32 %v958, %v1130
    %v1140 = vmul.f32 %v965, %v1130
    %v1141 = vmul.f32 %v972, %v1130
    %v1142 = vmul.f32 %v979, %v1130
    %v1143 = vmul.f32 %v986, %v1130
    %v1144 = vmul.f32 %v993, %v1130
    %v1145 = vmul.f32 %v1000, %v1130
    %v1146 = vmul.f32 %v1013, %v1130
    %v1147 = vmul.f32 %v1020, %v1130
    %v1148 = vmul.f32 %v1027, %v1130
    %v1149 = vmul.f32 %v1034, %v1130
    %v1150 = vmul.f32 %v1041, %v1130
    %v1151 = vmul.f32 %v1048, %v1130
    %v1152 = vmul.f32 %v1055, %v1130
    %v1153 = vmul.f32 %v1062, %v1130
    %v1154 = vmul.f32 %v1069, %v1130
    %v1155 = vmul.f32 %v1076, %v1130
    %v1156 = vmul.f32 %v1083, %v1130
    %v1157 = vmul.f32 %v1090, %v1130
    %v1158 = vmul.f32 %v1097, %v1130
    %v1159 = vmul.f32 %v1104, %v1130
    %v1160 = vmul.f32 %v1111, %v1130
    %v1161 = vmul.f32 %v1118, %v1130
    %v1162 = vmul.f32 %v1129, %v1130
    %s1163 = smul.u32 2, 16
    %s1164 = smul.u32 %s1163, 16
    %s1165 = sshll.u32 %s1164, 4
    %1166 = dma.done [#allocation6], %s1165
    %v1167 = vld [vmem:[#allocation2] sm:$0xff]
    %v1168 = vld [vmem:[#allocation2 + $0x8] sm:$0xff]
    %v1169 = vld [vmem:[#allocation2 + $0x10] sm:$0xff]
    %v1170 = vld [vmem:[#allocation2 + $0x18] sm:$0xff]
    %v1171 = vld [vmem:[#allocation2 + $0x20] sm:$0xff]
    %v1172 = vld [vmem:[#allocation2 + $0x28] sm:$0xff]
    %v1173 = vld [vmem:[#allocation2 + $0x30] sm:$0xff]
    %v1174 = vld [vmem:[#allocation2 + $0x38] sm:$0xff]
    %v1175 = vld [vmem:[#allocation2 + $0x40] sm:$0xff]
    %v1176 = vld [vmem:[#allocation2 + $0x48] sm:$0xff]
    %v1177 = vld [vmem:[#allocation2 + $0x50] sm:$0xff]
    %v1178 = vld [vmem:[#allocation2 + $0x58] sm:$0xff]
    %v1179 = vld [vmem:[#allocation2 + $0x60] sm:$0xff]
    %v1180 = vld [vmem:[#allocation2 + $0x68] sm:$0xff]
    %v1181 = vld [vmem:[#allocation2 + $0x70] sm:$0xff]
    %v1182 = vld [vmem:[#allocation2 + $0x78] sm:$0xff]
    %v1183 = vld [vmem:[#allocation2 + $0x80] sm:$0xff]
    %v1184 = vld [vmem:[#allocation2 + $0x88] sm:$0xff]
    %v1185 = vld [vmem:[#allocation2 + $0x90] sm:$0xff]
    %v1186 = vld [vmem:[#allocation2 + $0x98] sm:$0xff]
    %v1187 = vld [vmem:[#allocation2 + $0xa0] sm:$0xff]
    %v1188 = vld [vmem:[#allocation2 + $0xa8] sm:$0xff]
    %v1189 = vld [vmem:[#allocation2 + $0xb0] sm:$0xff]
    %v1190 = vld [vmem:[#allocation2 + $0xb8] sm:$0xff]
    %v1191 = vld [vmem:[#allocation2 + $0xc0] sm:$0xff]
    %v1192 = vld [vmem:[#allocation2 + $0xc8] sm:$0xff]
    %v1193 = vld [vmem:[#allocation2 + $0xd0] sm:$0xff]
    %v1194 = vld [vmem:[#allocation2 + $0xd8] sm:$0xff]
    %v1195 = vld [vmem:[#allocation2 + $0xe0] sm:$0xff]
    %v1196 = vld [vmem:[#allocation2 + $0xe8] sm:$0xff]
    %v1197 = vld [vmem:[#allocation2 + $0xf0] sm:$0xff]
    %v1198 = vld [vmem:[#allocation2 + $0xf8] sm:$0xff]
    %v1199 = vld [vmem:[#allocation2 + $0x100] sm:$0xff]
    %v1200 = vld [vmem:[#allocation2 + $0x108] sm:$0xff]
    %v1201 = vld [vmem:[#allocation2 + $0x110] sm:$0xff]
    %v1202 = vld [vmem:[#allocation2 + $0x118] sm:$0xff]
    %v1203 = vld [vmem:[#allocation2 + $0x120] sm:$0xff]
    %v1204 = vld [vmem:[#allocation2 + $0x128] sm:$0xff]
    %v1205 = vld [vmem:[#allocation2 + $0x130] sm:$0xff]
    %v1206 = vld [vmem:[#allocation2 + $0x138] sm:$0xff]
    %v1207 = vld [vmem:[#allocation2 + $0x140] sm:$0xff]
    %v1208 = vld [vmem:[#allocation2 + $0x148] sm:$0xff]
    %v1209 = vld [vmem:[#allocation2 + $0x150] sm:$0xff]
    %v1210 = vld [vmem:[#allocation2 + $0x158] sm:$0xff]
    %v1211 = vld [vmem:[#allocation2 + $0x160] sm:$0xff]
    %v1212 = vld [vmem:[#allocation2 + $0x168] sm:$0xff]
    %v1213 = vld [vmem:[#allocation2 + $0x170] sm:$0xff]
    %v1214 = vld [vmem:[#allocation2 + $0x178] sm:$0xff]
    %v1215 = vld [vmem:[#allocation2 + $0x180] sm:$0xff]
    %v1216 = vld [vmem:[#allocation2 + $0x188] sm:$0xff]
    %v1217 = vld [vmem:[#allocation2 + $0x190] sm:$0xff]
    %v1218 = vld [vmem:[#allocation2 + $0x198] sm:$0xff]
    %v1219 = vld [vmem:[#allocation2 + $0x1a0] sm:$0xff]
    %v1220 = vld [vmem:[#allocation2 + $0x1a8] sm:$0xff]
    %v1221 = vld [vmem:[#allocation2 + $0x1b0] sm:$0xff]
    %v1222 = vld [vmem:[#allocation2 + $0x1b8] sm:$0xff]
    %v1223 = vld [vmem:[#allocation2 + $0x1c0] sm:$0xff]
    %v1224 = vld [vmem:[#allocation2 + $0x1c8] sm:$0xff]
    %v1225 = vld [vmem:[#allocation2 + $0x1d0] sm:$0xff]
    %v1226 = vld [vmem:[#allocation2 + $0x1d8] sm:$0xff]
    %v1227 = vld [vmem:[#allocation2 + $0x1e0] sm:$0xff]
    %v1228 = vld [vmem:[#allocation2 + $0x1e8] sm:$0xff]
    %v1229 = vld [vmem:[#allocation2 + $0x1f0] sm:$0xff]
    %v1230 = vld [vmem:[#allocation2 + $0x1f8] sm:$0xff]
    %v1231 = vunpack.c.l.s8.bf16 %v1167
    %v1232 = vunpack.c.l.s8.bf16 %v1168
    %v1233 = vunpack.c.l.s8.bf16 %v1169
    %v1234 = vunpack.c.l.s8.bf16 %v1170
    %v1235 = vunpack.c.l.s8.bf16 %v1171
    %v1236 = vunpack.c.l.s8.bf16 %v1172
    %v1237 = vunpack.c.l.s8.bf16 %v1173
    %v1238 = vunpack.c.l.s8.bf16 %v1174
    %v1239 = vunpack.c.l.s8.bf16 %v1175
    %v1240 = vunpack.c.l.s8.bf16 %v1176
    %v1241 = vunpack.c.l.s8.bf16 %v1177
    %v1242 = vunpack.c.l.s8.bf16 %v1178
    %v1243 = vunpack.c.l.s8.bf16 %v1179
    %v1244 = vunpack.c.l.s8.bf16 %v1180
    %v1245 = vunpack.c.l.s8.bf16 %v1181
    %v1246 = vunpack.c.l.s8.bf16 %v1182
    %v1247 = vunpack.c.h.s8.bf16 %v1167
    %v1248 = vunpack.c.h.s8.bf16 %v1168
    %v1249 = vunpack.c.h.s8.bf16 %v1169
    %v1250 = vunpack.c.h.s8.bf16 %v1170
    %v1251 = vunpack.c.h.s8.bf16 %v1171
    %v1252 = vunpack.c.h.s8.bf16 %v1172
    %v1253 = vunpack.c.h.s8.bf16 %v1173
    %v1254 = vunpack.c.h.s8.bf16 %v1174
    %v1255 = vunpack.c.h.s8.bf16 %v1175
    %v1256 = vunpack.c.h.s8.bf16 %v1176
    %v1257 = vunpack.c.h.s8.bf16 %v1177
    %v1258 = vunpack.c.h.s8.bf16 %v1178
    %v1259 = vunpack.c.h.s8.bf16 %v1179
    %v1260 = vunpack.c.h.s8.bf16 %v1180
    %v1261 = vunpack.c.h.s8.bf16 %v1181
    %v1262 = vunpack.c.h.s8.bf16 %v1182
    %v1263 = vunpack.c.l.s8.bf16 %v1183
    %v1264 = vunpack.c.l.s8.bf16 %v1184
    %v1265 = vunpack.c.l.s8.bf16 %v1185
    %v1266 = vunpack.c.l.s8.bf16 %v1186
    %v1267 = vunpack.c.l.s8.bf16 %v1187
    %v1268 = vunpack.c.l.s8.bf16 %v1188
    %v1269 = vunpack.c.l.s8.bf16 %v1189
    %v1270 = vunpack.c.l.s8.bf16 %v1190
    %v1271 = vunpack.c.l.s8.bf16 %v1191
    %v1272 = vunpack.c.l.s8.bf16 %v1192
    %v1273 = vunpack.c.l.s8.bf16 %v1193
    %v1274 = vunpack.c.l.s8.bf16 %v1194
    %v1275 = vunpack.c.l.s8.bf16 %v1195
    %v1276 = vunpack.c.l.s8.bf16 %v1196
    %v1277 = vunpack.c.l.s8.bf16 %v1197
    %v1278 = vunpack.c.l.s8.bf16 %v1198
    %v1279 = vunpack.c.h.s8.bf16 %v1183
    %v1280 = vunpack.c.h.s8.bf16 %v1184
    %v1281 = vunpack.c.h.s8.bf16 %v1185
    %v1282 = vunpack.c.h.s8.bf16 %v1186
    %v1283 = vunpack.c.h.s8.bf16 %v1187
    %v1284 = vunpack.c.h.s8.bf16 %v1188
    %v1285 = vunpack.c.h.s8.bf16 %v1189
    %v1286 = vunpack.c.h.s8.bf16 %v1190
    %v1287 = vunpack.c.h.s8.bf16 %v1191
    %v1288 = vunpack.c.h.s8.bf16 %v1192
    %v1289 = vunpack.c.h.s8.bf16 %v1193
    %v1290 = vunpack.c.h.s8.bf16 %v1194
    %v1291 = vunpack.c.h.s8.bf16 %v1195
    %v1292 = vunpack.c.h.s8.bf16 %v1196
    %v1293 = vunpack.c.h.s8.bf16 %v1197
    %v1294 = vunpack.c.h.s8.bf16 %v1198
    %v1295 = vunpack.c.l.s8.bf16 %v1199
    %v1296 = vunpack.c.l.s8.bf16 %v1200
    %v1297 = vunpack.c.l.s8.bf16 %v1201
    %v1298 = vunpack.c.l.s8.bf16 %v1202
    %v1299 = vunpack.c.l.s8.bf16 %v1203
    %v1300 = vunpack.c.l.s8.bf16 %v1204
    %v1301 = vunpack.c.l.s8.bf16 %v1205
    %v1302 = vunpack.c.l.s8.bf16 %v1206
    %v1303 = vunpack.c.l.s8.bf16 %v1207
    %v1304 = vunpack.c.l.s8.bf16 %v1208
    %v1305 = vunpack.c.l.s8.bf16 %v1209
    %v1306 = vunpack.c.l.s8.bf16 %v1210
    %v1307 = vunpack.c.l.s8.bf16 %v1211
    %v1308 = vunpack.c.l.s8.bf16 %v1212
    %v1309 = vunpack.c.l.s8.bf16 %v1213
    %v1310 = vunpack.c.l.s8.bf16 %v1214
    %v1311 = vunpack.c.h.s8.bf16 %v1199
    %v1312 = vunpack.c.h.s8.bf16 %v1200
    %v1313 = vunpack.c.h.s8.bf16 %v1201
    %v1314 = vunpack.c.h.s8.bf16 %v1202
    %v1315 = vunpack.c.h.s8.bf16 %v1203
    %v1316 = vunpack.c.h.s8.bf16 %v1204
    %v1317 = vunpack.c.h.s8.bf16 %v1205
    %v1318 = vunpack.c.h.s8.bf16 %v1206
    %v1319 = vunpack.c.h.s8.bf16 %v1207
    %v1320 = vunpack.c.h.s8.bf16 %v1208
    %v1321 = vunpack.c.h.s8.bf16 %v1209
    %v1322 = vunpack.c.h.s8.bf16 %v1210
    %v1323 = vunpack.c.h.s8.bf16 %v1211
    %v1324 = vunpack.c.h.s8.bf16 %v1212
    %v1325 = vunpack.c.h.s8.bf16 %v1213
    %v1326 = vunpack.c.h.s8.bf16 %v1214
    %v1327 = vunpack.c.l.s8.bf16 %v1215
    %v1328 = vunpack.c.l.s8.bf16 %v1216
    %v1329 = vunpack.c.l.s8.bf16 %v1217
    %v1330 = vunpack.c.l.s8.bf16 %v1218
    %v1331 = vunpack.c.l.s8.bf16 %v1219
    %v1332 = vunpack.c.l.s8.bf16 %v1220
    %v1333 = vunpack.c.l.s8.bf16 %v1221
    %v1334 = vunpack.c.l.s8.bf16 %v1222
    %v1335 = vunpack.c.l.s8.bf16 %v1223
    %v1336 = vunpack.c.l.s8.bf16 %v1224
    %v1337 = vunpack.c.l.s8.bf16 %v1225
    %v1338 = vunpack.c.l.s8.bf16 %v1226
    %v1339 = vunpack.c.l.s8.bf16 %v1227
    %v1340 = vunpack.c.l.s8.bf16 %v1228
    %v1341 = vunpack.c.l.s8.bf16 %v1229
    %v1342 = vunpack.c.l.s8.bf16 %v1230
    %v1343 = vunpack.c.h.s8.bf16 %v1215
    %v1344 = vunpack.c.h.s8.bf16 %v1216
    %v1345 = vunpack.c.h.s8.bf16 %v1217
    %v1346 = vunpack.c.h.s8.bf16 %v1218
    %v1347 = vunpack.c.h.s8.bf16 %v1219
    %v1348 = vunpack.c.h.s8.bf16 %v1220
    %v1349 = vunpack.c.h.s8.bf16 %v1221
    %v1350 = vunpack.c.h.s8.bf16 %v1222
    %v1351 = vunpack.c.h.s8.bf16 %v1223
    %v1352 = vunpack.c.h.s8.bf16 %v1224
    %v1353 = vunpack.c.h.s8.bf16 %v1225
    %v1354 = vunpack.c.h.s8.bf16 %v1226
    %v1355 = vunpack.c.h.s8.bf16 %v1227
    %v1356 = vunpack.c.h.s8.bf16 %v1228
    %v1357 = vunpack.c.h.s8.bf16 %v1229
    %v1358 = vunpack.c.h.s8.bf16 %v1230
    %v1359 = vpack.c.bf16 %v1132, %v1131
    %v1360 = vpack.c.bf16 %v1134, %v1133
    %v1361 = vpack.c.bf16 %v1136, %v1135
    %v1362 = vpack.c.bf16 %v1138, %v1137
    %v1363 = vpack.c.bf16 %v1140, %v1139
    %v1364 = vpack.c.bf16 %v1142, %v1141
    %v1365 = vpack.c.bf16 %v1144, %v1143
    %v1366 = vpack.c.bf16 %v1146, %v1145
    %v1367 = vpack.c.bf16 %v1148, %v1147
    %v1368 = vpack.c.bf16 %v1150, %v1149
    %v1369 = vpack.c.bf16 %v1152, %v1151
    %v1370 = vpack.c.bf16 %v1154, %v1153
    %v1371 = vpack.c.bf16 %v1156, %v1155
    %v1372 = vpack.c.bf16 %v1158, %v1157
    %v1373 = vpack.c.bf16 %v1160, %v1159
    %v1374 = vpack.c.bf16 %v1162, %v1161
    %v1391 = vunpack.c.l.b16 %v1359
    %v1392 = vunpack.c.h.b16 %v1359
    %v1393 = vunpack.c.l.b16 %v1360
    %v1394 = vunpack.c.h.b16 %v1360
    %v1395 = vunpack.c.l.b16 %v1361
    %v1396 = vunpack.c.h.b16 %v1361
    %v1397 = vunpack.c.l.b16 %v1362
    %v1398 = vunpack.c.h.b16 %v1362
    %v1399 = vunpack.c.l.b16 %v1363
    %v1400 = vunpack.c.h.b16 %v1363
    %v1401 = vunpack.c.l.b16 %v1364
    %v1402 = vunpack.c.h.b16 %v1364
    %v1403 = vunpack.c.l.b16 %v1365
    %v1404 = vunpack.c.h.b16 %v1365
    %v1405 = vunpack.c.l.b16 %v1366
    %v1406 = vunpack.c.h.b16 %v1366
    %v1407 = vunpack.c.l.b16 %v1367
    %v1408 = vunpack.c.h.b16 %v1367
    %v1409 = vunpack.c.l.b16 %v1368
    %v1410 = vunpack.c.h.b16 %v1368
    %v1411 = vunpack.c.l.b16 %v1369
    %v1412 = vunpack.c.h.b16 %v1369
    %v1413 = vunpack.c.l.b16 %v1370
    %v1414 = vunpack.c.h.b16 %v1370
    %v1415 = vunpack.c.l.b16 %v1371
    %v1416 = vunpack.c.h.b16 %v1371
    %v1417 = vunpack.c.l.b16 %v1372
    %v1418 = vunpack.c.h.b16 %v1372
    %v1419 = vunpack.c.l.b16 %v1373
    %v1420 = vunpack.c.h.b16 %v1373
    %v1421 = vunpack.c.l.b16 %v1374
    %v1422 = vunpack.c.h.b16 %v1374
    %v1423 = vlaneseq
    %v1424 = vand.u32 %v1423, 127
    %v1425 = vlaneseq
    %v1426 = vshrl.u32 %v1425, 7
    %v1427 = vsub.s32 %v1424, %v1426
    %v1428 = vrot.slane %v1391, %v1427
    %v1429 = vadd.s32 %v1424, 4294967288
    %v1430 = vlaneseq
    %v1431 = vshrl.u32 %v1430, 7
    %v1432 = vsub.s32 %v1429, %v1431
    %v1433 = vrot.slane %v1392, %v1432
    %vm1434 = vcmask 130112
    %v1435 = vsel %vm1434, %v1433, %v1428
    %v1436 = vadd.s32 %v1424, 4294967280
    %v1437 = vlaneseq
    %v1438 = vshrl.u32 %v1437, 7
    %v1439 = vsub.s32 %v1436, %v1438
    %v1440 = vrot.slane %v1393, %v1439
    %vm1441 = vcmask 195712
    %v1442 = vsel %vm1441, %v1440, %v1435
    %v1443 = vadd.s32 %v1424, 4294967272
    %v1444 = vlaneseq
    %v1445 = vshrl.u32 %v1444, 7
    %v1446 = vsub.s32 %v1443, %v1445
    %v1447 = vrot.slane %v1394, %v1446
    %vm1448 = vcmask 261312
    %v1449 = vsel %vm1448, %v1447, %v1442
    %v1450 = vadd.s32 %v1424, 4294967264
    %v1451 = vlaneseq
    %v1452 = vshrl.u32 %v1451, 7
    %v1453 = vsub.s32 %v1450, %v1452
    %v1454 = vrot.slane %v1395, %v1453
    %vm1455 = vcmask 326912
    %v1456 = vsel %vm1455, %v1454, %v1449
    %v1457 = vadd.s32 %v1424, 4294967256
    %v1458 = vlaneseq
    %v1459 = vshrl.u32 %v1458, 7
    %v1460 = vsub.s32 %v1457, %v1459
    %v1461 = vrot.slane %v1396, %v1460
    %vm1462 = vcmask 392512
    %v1463 = vsel %vm1462, %v1461, %v1456
    %v1464 = vadd.s32 %v1424, 4294967248
    %v1465 = vlaneseq
    %v1466 = vshrl.u32 %v1465, 7
    %v1467 = vsub.s32 %v1464, %v1466
    %v1468 = vrot.slane %v1397, %v1467
    %vm1469 = vcmask 458112
    %v1470 = vsel %vm1469, %v1468, %v1463
    %v1471 = vadd.s32 %v1424, 4294967240
    %v1472 = vlaneseq
    %v1473 = vshrl.u32 %v1472, 7
    %v1474 = vsub.s32 %v1471, %v1473
    %v1475 = vrot.slane %v1398, %v1474
    %vm1476 = vcmask 523712
    %v1477 = vsel %vm1476, %v1475, %v1470
    %v1478 = vadd.s32 %v1424, 4294967232
    %v1479 = vlaneseq
    %v1480 = vshrl.u32 %v1479, 7
    %v1481 = vsub.s32 %v1478, %v1480
    %v1482 = vrot.slane %v1399, %v1481
    %vm1483 = vcmask 589312
    %v1484 = vsel %vm1483, %v1482, %v1477
    %v1485 = vadd.s32 %v1424, 4294967224
    %v1486 = vlaneseq
    %v1487 = vshrl.u32 %v1486, 7
    %v1488 = vsub.s32 %v1485, %v1487
    %v1489 = vrot.slane %v1400, %v1488
    %vm1490 = vcmask 654912
    %v1491 = vsel %vm1490, %v1489, %v1484
    %v1492 = vadd.s32 %v1424, 4294967216
    %v1493 = vlaneseq
    %v1494 = vshrl.u32 %v1493, 7
    %v1495 = vsub.s32 %v1492, %v1494
    %v1496 = vrot.slane %v1401, %v1495
    %vm1497 = vcmask 720512
    %v1498 = vsel %vm1497, %v1496, %v1491
    %v1499 = vadd.s32 %v1424, 4294967208
    %v1500 = vlaneseq
    %v1501 = vshrl.u32 %v1500, 7
    %v1502 = vsub.s32 %v1499, %v1501
    %v1503 = vrot.slane %v1402, %v1502
    %vm1504 = vcmask 786112
    %v1505 = vsel %vm1504, %v1503, %v1498
    %v1506 = vadd.s32 %v1424, 4294967200
    %v1507 = vlaneseq
    %v1508 = vshrl.u32 %v1507, 7
    %v1509 = vsub.s32 %v1506, %v1508
    %v1510 = vrot.slane %v1403, %v1509
    %vm1511 = vcmask 851712
    %v1512 = vsel %vm1511, %v1510, %v1505
    %v1513 = vadd.s32 %v1424, 4294967192
    %v1514 = vlaneseq
    %v1515 = vshrl.u32 %v1514, 7
    %v1516 = vsub.s32 %v1513, %v1515
    %v1517 = vrot.slane %v1404, %v1516
    %vm1518 = vcmask 917312
    %v1519 = vsel %vm1518, %v1517, %v1512
    %v1520 = vadd.s32 %v1424, 4294967184
    %v1521 = vlaneseq
    %v1522 = vshrl.u32 %v1521, 7
    %v1523 = vsub.s32 %v1520, %v1522
    %v1524 = vrot.slane %v1405, %v1523
    %vm1525 = vcmask 982912
    %v1526 = vsel %vm1525, %v1524, %v1519
    %v1527 = vadd.s32 %v1424, 4294967176
    %v1528 = vlaneseq
    %v1529 = vshrl.u32 %v1528, 7
    %v1530 = vsub.s32 %v1527, %v1529
    %v1531 = vrot.slane %v1406, %v1530
    %vm1532 = vcmask 1048512
    %v1533 = vsel %vm1532, %v1531, %v1526
    %v1534 = vlaneseq
    %v1535 = vshrl.u32 %v1534, 7
    %v1536 = vsub.s32 %v1424, %v1535
    %v1537 = vrot.slane %v1407, %v1536
    %v1538 = vlaneseq
    %v1539 = vshrl.u32 %v1538, 7
    %v1540 = vsub.s32 %v1429, %v1539
    %v1541 = vrot.slane %v1408, %v1540
    %v1542 = vsel %vm1434, %v1541, %v1537
    %v1543 = vlaneseq
    %v1544 = vshrl.u32 %v1543, 7
    %v1545 = vsub.s32 %v1436, %v1544
    %v1546 = vrot.slane %v1409, %v1545
    %v1547 = vsel %vm1441, %v1546, %v1542
    %v1548 = vlaneseq
    %v1549 = vshrl.u32 %v1548, 7
    %v1550 = vsub.s32 %v1443, %v1549
    %v1551 = vrot.slane %v1410, %v1550
    %v1552 = vsel %vm1448, %v1551, %v1547
    %v1553 = vlaneseq
    %v1554 = vshrl.u32 %v1553, 7
    %v1555 = vsub.s32 %v1450, %v1554
    %v1556 = vrot.slane %v1411, %v1555
    %v1557 = vsel %vm1455, %v1556, %v1552
    %v1558 = vlaneseq
    %v1559 = vshrl.u32 %v1558, 7
    %v1560 = vsub.s32 %v1457, %v1559
    %v1561 = vrot.slane %v1412, %v1560
    %v1562 = vsel %vm1462, %v1561, %v1557
    %v1563 = vlaneseq
    %v1564 = vshrl.u32 %v1563, 7
    %v1565 = vsub.s32 %v1464, %v1564
    %v1566 = vrot.slane %v1413, %v1565
    %v1567 = vsel %vm1469, %v1566, %v1562
    %v1568 = vlaneseq
    %v1569 = vshrl.u32 %v1568, 7
    %v1570 = vsub.s32 %v1471, %v1569
    %v1571 = vrot.slane %v1414, %v1570
    %v1572 = vsel %vm1476, %v1571, %v1567
    %v1573 = vlaneseq
    %v1574 = vshrl.u32 %v1573, 7
    %v1575 = vsub.s32 %v1478, %v1574
    %v1576 = vrot.slane %v1415, %v1575
    %v1577 = vsel %vm1483, %v1576, %v1572
    %v1578 = vlaneseq
    %v1579 = vshrl.u32 %v1578, 7
    %v1580 = vsub.s32 %v1485, %v1579
    %v1581 = vrot.slane %v1416, %v1580
    %v1582 = vsel %vm1490, %v1581, %v1577
    %v1583 = vlaneseq
    %v1584 = vshrl.u32 %v1583, 7
    %v1585 = vsub.s32 %v1492, %v1584
    %v1586 = vrot.slane %v1417, %v1585
    %v1587 = vsel %vm1497, %v1586, %v1582
    %v1588 = vlaneseq
    %v1589 = vshrl.u32 %v1588, 7
    %v1590 = vsub.s32 %v1499, %v1589
    %v1591 = vrot.slane %v1418, %v1590
    %v1592 = vsel %vm1504, %v1591, %v1587
    %v1593 = vlaneseq
    %v1594 = vshrl.u32 %v1593, 7
    %v1595 = vsub.s32 %v1506, %v1594
    %v1596 = vrot.slane %v1419, %v1595
    %v1597 = vsel %vm1511, %v1596, %v1592
    %v1598 = vlaneseq
    %v1599 = vshrl.u32 %v1598, 7
    %v1600 = vsub.s32 %v1513, %v1599
    %v1601 = vrot.slane %v1420, %v1600
    %v1602 = vsel %vm1518, %v1601, %v1597
    %v1603 = vlaneseq
    %v1604 = vshrl.u32 %v1603, 7
    %v1605 = vsub.s32 %v1520, %v1604
    %v1606 = vrot.slane %v1421, %v1605
    %v1607 = vsel %vm1525, %v1606, %v1602
    %v1608 = vlaneseq
    %v1609 = vshrl.u32 %v1608, 7
    %v1610 = vsub.s32 %v1527, %v1609
    %v1611 = vrot.slane %v1422, %v1610
    %v1612 = vsel %vm1532, %v1611, %v1607
    %vm1613 = vcmask 1041409
    %v1614 = vsel %vm1613, %v1612, %v1533
    %v1615 = vpack.c.b16 %v1614, %v1614
    %vm1616 = vcmask 1031168
    %v1618 = vsel %vm1616, %v1615, 0
    %vm1620 = vcmask 1046528
    %v1622 = vsel %vm1620, %v1343, 0
    %v1625 = vsel %vm1620, %v1344, 0
    %v1628 = vsel %vm1620, %v1345, 0
    %v1631 = vsel %vm1620, %v1346, 0
    %v1634 = vsel %vm1620, %v1347, 0
    %v1637 = vsel %vm1620, %v1348, 0
    %v1640 = vsel %vm1620, %v1349, 0
    %v1643 = vsel %vm1620, %v1350, 0
    %v1646 = vsel %vm1620, %v1351, 0
    %v1649 = vsel %vm1620, %v1352, 0
    %v1652 = vsel %vm1620, %v1353, 0
    %v1655 = vsel %vm1620, %v1354, 0
    %v1658 = vsel %vm1620, %v1355, 0
    %v1661 = vsel %vm1620, %v1356, 0
    %v1664 = vsel %vm1620, %v1357, 0
    %v1667 = vsel %vm1620, %v1358, 0
    %1669 = vmatprep.subr.bf16.mxu0 %v1625
    %1670 = vmatpush1.bf16.msra.mxu0 %v1622
    %1671 = vmatprep.subr.bf16.mxu0 %v1328
    %1672 = vmatpush1.bf16.msra.mxu0 %v1327
    %1673 = vmatprep.subr.bf16.mxu0 %v1312
    %1674 = vmatpush1.bf16.msra.mxu0 %v1311
    %1675 = vmatprep.subr.bf16.mxu0 %v1296
    %1676 = vmatpush1.bf16.msra.mxu0 %v1295
    %1677 = vmatprep.subr.bf16.mxu0 %v1280
    %1678 = vmatpush1.bf16.msra.mxu0 %v1279
    %1679 = vmatprep.subr.bf16.mxu0 %v1264
    %1680 = vmatpush1.bf16.msra.mxu0 %v1263
    %1681 = vmatprep.subr.bf16.mxu0 %v1248
    %1682 = vmatpush1.bf16.msra.mxu0 %v1247
    %1683 = vmatprep.subr.bf16.mxu0 %v1232
    %1684 = vmatpush1.bf16.msra.mxu0 %v1231
    %1685 = vmatprep.subr.bf16.mxu0 0
    %1686 = vmatpush2.bf16.msra.mxu0 0
    %1687 = vmatprep.subr.bf16.mxu0 0
    %1688 = vmatpush2.bf16.msra.mxu0 0
    %1689 = vmatprep.subr.bf16.mxu0 0
    %1690 = vmatpush2.bf16.msra.mxu0 0
    %1691 = vmatprep.subr.bf16.mxu0 0
    %1692 = vmatpush2.bf16.msra.mxu0 0
    %1693 = vmatprep.subr.bf16.mxu0 0
    %1694 = vmatpush2.bf16.msra.mxu0 0
    %1695 = vmatprep.subr.bf16.mxu0 0
    %1696 = vmatpush2.bf16.msra.mxu0 0
    %1697 = vmatprep.subr.bf16.mxu0 0
    %1698 = vmatpush2.bf16.msra.mxu0 0
    %1699 = vmatprep.subr.bf16.mxu0 0
    %1700 = vmatpush2.bf16.msra.mxu0 0
    %1701 = vmatprep.mubr.bf16.mxu0 0
    %1702 = vmatmul.mubr.bf16.gmra.mxu0 %v1618
    %v1703 = vpop.f32.mrf.mxu0
    %v1704 = vadd.f32 0.0, %v1703
    %v1705 = vpop.f32.mrf.mxu0
    %v1706 = vadd.f32 0.0, %v1705
    %v1707 = vpop.f32.mrf.mxu0
    %v1708 = vpop.f32.mrf.mxu0
    %1709 = vdwg.mxu0
    %1710 = vmatprep.subr.bf16.mxu0 %v1631
    %1711 = vmatpush1.bf16.msra.mxu0 %v1628
    %1712 = vmatprep.subr.bf16.mxu0 %v1330
    %1713 = vmatpush1.bf16.msra.mxu0 %v1329
    %1714 = vmatprep.subr.bf16.mxu0 %v1314
    %1715 = vmatpush1.bf16.msra.mxu0 %v1313
    %1716 = vmatprep.subr.bf16.mxu0 %v1298
    %1717 = vmatpush1.bf16.msra.mxu0 %v1297
    %1718 = vmatprep.subr.bf16.mxu0 %v1282
    %1719 = vmatpush1.bf16.msra.mxu0 %v1281
    %1720 = vmatprep.subr.bf16.mxu0 %v1266
    %1721 = vmatpush1.bf16.msra.mxu0 %v1265
    %1722 = vmatprep.subr.bf16.mxu0 %v1250
    %1723 = vmatpush1.bf16.msra.mxu0 %v1249
    %1724 = vmatprep.subr.bf16.mxu0 %v1234
    %1725 = vmatpush1.bf16.msra.mxu0 %v1233
    %1726 = vmatprep.subr.bf16.mxu0 0
    %1727 = vmatpush2.bf16.msra.mxu0 0
    %1728 = vmatprep.subr.bf16.mxu0 0
    %1729 = vmatpush2.bf16.msra.mxu0 0
    %1730 = vmatprep.subr.bf16.mxu0 0
    %1731 = vmatpush2.bf16.msra.mxu0 0
    %1732 = vmatprep.subr.bf16.mxu0 0
    %1733 = vmatpush2.bf16.msra.mxu0 0
    %1734 = vmatprep.subr.bf16.mxu0 0
    %1735 = vmatpush2.bf16.msra.mxu0 0
    %1736 = vmatprep.subr.bf16.mxu0 0
    %1737 = vmatpush2.bf16.msra.mxu0 0
    %1738 = vmatprep.subr.bf16.mxu0 0
    %1739 = vmatpush2.bf16.msra.mxu0 0
    %1740 = vmatprep.subr.bf16.mxu0 0
    %1741 = vmatpush2.bf16.msra.mxu0 0
    %1742 = vmatprep.mubr.bf16.mxu0 0
    %1743 = vmatmul.mubr.bf16.gmra.mxu0 %v1618
    %v1744 = vpop.f32.mrf.mxu0
    %v1745 = vadd.f32 0.0, %v1744
    %v1746 = vpop.f32.mrf.mxu0
    %v1747 = vadd.f32 0.0, %v1746
    %v1748 = vpop.f32.mrf.mxu0
    %v1749 = vpop.f32.mrf.mxu0
    %1750 = vdwg.mxu0
    %1751 = vmatprep.subr.bf16.mxu0 %v1637
    %1752 = vmatpush1.bf16.msra.mxu0 %v1634
    %1753 = vmatprep.subr.bf16.mxu0 %v1332
    %1754 = vmatpush1.bf16.msra.mxu0 %v1331
    %1755 = vmatprep.subr.bf16.mxu0 %v1316
    %1756 = vmatpush1.bf16.msra.mxu0 %v1315
    %1757 = vmatprep.subr.bf16.mxu0 %v1300
    %1758 = vmatpush1.bf16.msra.mxu0 %v1299
    %1759 = vmatprep.subr.bf16.mxu0 %v1284
    %1760 = vmatpush1.bf16.msra.mxu0 %v1283
    %1761 = vmatprep.subr.bf16.mxu0 %v1268
    %1762 = vmatpush1.bf16.msra.mxu0 %v1267
    %1763 = vmatprep.subr.bf16.mxu0 %v1252
    %1764 = vmatpush1.bf16.msra.mxu0 %v1251
    %1765 = vmatprep.subr.bf16.mxu0 %v1236
    %1766 = vmatpush1.bf16.msra.mxu0 %v1235
    %1767 = vmatprep.subr.bf16.mxu0 0
    %1768 = vmatpush2.bf16.msra.mxu0 0
    %1769 = vmatprep.subr.bf16.mxu0 0
    %1770 = vmatpush2.bf16.msra.mxu0 0
    %1771 = vmatprep.subr.bf16.mxu0 0
    %1772 = vmatpush2.bf16.msra.mxu0 0
    %1773 = vmatprep.subr.bf16.mxu0 0
    %1774 = vmatpush2.bf16.msra.mxu0 0
    %1775 = vmatprep.subr.bf16.mxu0 0
    %1776 = vmatpush2.bf16.msra.mxu0 0
    %1777 = vmatprep.subr.bf16.mxu0 0
    %1778 = vmatpush2.bf16.msra.mxu0 0
    %1779 = vmatprep.subr.bf16.mxu0 0
    %1780 = vmatpush2.bf16.msra.mxu0 0
    %1781 = vmatprep.subr.bf16.mxu0 0
    %1782 = vmatpush2.bf16.msra.mxu0 0
    %1783 = vmatprep.mubr.bf16.mxu0 0
    %1784 = vmatmul.mubr.bf16.gmra.mxu0 %v1618
    %v1785 = vpop.f32.mrf.mxu0
    %v1786 = vadd.f32 0.0, %v1785
    %v1787 = vpop.f32.mrf.mxu0
    %v1788 = vadd.f32 0.0, %v1787
    %v1789 = vpop.f32.mrf.mxu0
    %v1790 = vpop.f32.mrf.mxu0
    %1791 = vdwg.mxu0
    %1792 = vmatprep.subr.bf16.mxu0 %v1643
    %1793 = vmatpush1.bf16.msra.mxu0 %v1640
    %1794 = vmatprep.subr.bf16.mxu0 %v1334
    %1795 = vmatpush1.bf16.msra.mxu0 %v1333
    %1796 = vmatprep.subr.bf16.mxu0 %v1318
    %1797 = vmatpush1.bf16.msra.mxu0 %v1317
    %1798 = vmatprep.subr.bf16.mxu0 %v1302
    %1799 = vmatpush1.bf16.msra.mxu0 %v1301
    %1800 = vmatprep.subr.bf16.mxu0 %v1286
    %1801 = vmatpush1.bf16.msra.mxu0 %v1285
    %1802 = vmatprep.subr.bf16.mxu0 %v1270
    %1803 = vmatpush1.bf16.msra.mxu0 %v1269
    %1804 = vmatprep.subr.bf16.mxu0 %v1254
    %1805 = vmatpush1.bf16.msra.mxu0 %v1253
    %1806 = vmatprep.subr.bf16.mxu0 %v1238
    %1807 = vmatpush1.bf16.msra.mxu0 %v1237
    %1808 = vmatprep.subr.bf16.mxu0 0
    %1809 = vmatpush2.bf16.msra.mxu0 0
    %1810 = vmatprep.subr.bf16.mxu0 0
    %1811 = vmatpush2.bf16.msra.mxu0 0
    %1812 = vmatprep.subr.bf16.mxu0 0
    %1813 = vmatpush2.bf16.msra.mxu0 0
    %1814 = vmatprep.subr.bf16.mxu0 0
    %1815 = vmatpush2.bf16.msra.mxu0 0
    %1816 = vmatprep.subr.bf16.mxu0 0
    %1817 = vmatpush2.bf16.msra.mxu0 0
    %1818 = vmatprep.subr.bf16.mxu0 0
    %1819 = vmatpush2.bf16.msra.mxu0 0
    %1820 = vmatprep.subr.bf16.mxu0 0
    %1821 = vmatpush2.bf16.msra.mxu0 0
    %1822 = vmatprep.subr.bf16.mxu0 0
    %1823 = vmatpush2.bf16.msra.mxu0 0
    %1824 = vmatprep.mubr.bf16.mxu0 0
    %1825 = vmatmul.mubr.bf16.gmra.mxu0 %v1618
    %v1826 = vpop.f32.mrf.mxu0
    %v1827 = vadd.f32 0.0, %v1826
    %v1828 = vpop.f32.mrf.mxu0
    %v1829 = vadd.f32 0.0, %v1828
    %v1830 = vpop.f32.mrf.mxu0
    %v1831 = vpop.f32.mrf.mxu0
    %1832 = vdwg.mxu0
    %1833 = vmatprep.subr.bf16.mxu0 %v1649
    %1834 = vmatpush1.bf16.msra.mxu0 %v1646
    %1835 = vmatprep.subr.bf16.mxu0 %v1336
    %1836 = vmatpush1.bf16.msra.mxu0 %v1335
    %1837 = vmatprep.subr.bf16.mxu0 %v1320
    %1838 = vmatpush1.bf16.msra.mxu0 %v1319
    %1839 = vmatprep.subr.bf16.mxu0 %v1304
    %1840 = vmatpush1.bf16.msra.mxu0 %v1303
    %1841 = vmatprep.subr.bf16.mxu0 %v1288
    %1842 = vmatpush1.bf16.msra.mxu0 %v1287
    %1843 = vmatprep.subr.bf16.mxu0 %v1272
    %1844 = vmatpush1.bf16.msra.mxu0 %v1271
    %1845 = vmatprep.subr.bf16.mxu0 %v1256
    %1846 = vmatpush1.bf16.msra.mxu0 %v1255
    %1847 = vmatprep.subr.bf16.mxu0 %v1240
    %1848 = vmatpush1.bf16.msra.mxu0 %v1239
    %1849 = vmatprep.subr.bf16.mxu0 0
    %1850 = vmatpush2.bf16.msra.mxu0 0
    %1851 = vmatprep.subr.bf16.mxu0 0
    %1852 = vmatpush2.bf16.msra.mxu0 0
    %1853 = vmatprep.subr.bf16.mxu0 0
    %1854 = vmatpush2.bf16.msra.mxu0 0
    %1855 = vmatprep.subr.bf16.mxu0 0
    %1856 = vmatpush2.bf16.msra.mxu0 0
    %1857 = vmatprep.subr.bf16.mxu0 0
    %1858 = vmatpush2.bf16.msra.mxu0 0
    %1859 = vmatprep.subr.bf16.mxu0 0
    %1860 = vmatpush2.bf16.msra.mxu0 0
    %1861 = vmatprep.subr.bf16.mxu0 0
    %1862 = vmatpush2.bf16.msra.mxu0 0
    %1863 = vmatprep.subr.bf16.mxu0 0
    %1864 = vmatpush2.bf16.msra.mxu0 0
    %1865 = vmatprep.mubr.bf16.mxu0 0
    %1866 = vmatmul.mubr.bf16.gmra.mxu0 %v1618
    %v1867 = vpop.f32.mrf.mxu0
    %v1868 = vadd.f32 0.0, %v1867
    %v1869 = vpop.f32.mrf.mxu0
    %v1870 = vadd.f32 0.0, %v1869
    %v1871 = vpop.f32.mrf.mxu0
    %v1872 = vpop.f32.mrf.mxu0
    %1873 = vdwg.mxu0
    %1874 = vmatprep.subr.bf16.mxu0 %v1655
    %1875 = vmatpush1.bf16.msra.mxu0 %v1652
    %1876 = vmatprep.subr.bf16.mxu0 %v1338
    %1877 = vmatpush1.bf16.msra.mxu0 %v1337
    %1878 = vmatprep.subr.bf16.mxu0 %v1322
    %1879 = vmatpush1.bf16.msra.mxu0 %v1321
    %1880 = vmatprep.subr.bf16.mxu0 %v1306
    %1881 = vmatpush1.bf16.msra.mxu0 %v1305
    %1882 = vmatprep.subr.bf16.mxu0 %v1290
    %1883 = vmatpush1.bf16.msra.mxu0 %v1289
    %1884 = vmatprep.subr.bf16.mxu0 %v1274
    %1885 = vmatpush1.bf16.msra.mxu0 %v1273
    %1886 = vmatprep.subr.bf16.mxu0 %v1258
    %1887 = vmatpush1.bf16.msra.mxu0 %v1257
    %1888 = vmatprep.subr.bf16.mxu0 %v1242
    %1889 = vmatpush1.bf16.msra.mxu0 %v1241
    %1890 = vmatprep.subr.bf16.mxu0 0
    %1891 = vmatpush2.bf16.msra.mxu0 0
    %1892 = vmatprep.subr.bf16.mxu0 0
    %1893 = vmatpush2.bf16.msra.mxu0 0
    %1894 = vmatprep.subr.bf16.mxu0 0
    %1895 = vmatpush2.bf16.msra.mxu0 0
    %1896 = vmatprep.subr.bf16.mxu0 0
    %1897 = vmatpush2.bf16.msra.mxu0 0
    %1898 = vmatprep.subr.bf16.mxu0 0
    %1899 = vmatpush2.bf16.msra.mxu0 0
    %1900 = vmatprep.subr.bf16.mxu0 0
    %1901 = vmatpush2.bf16.msra.mxu0 0
    %1902 = vmatprep.subr.bf16.mxu0 0
    %1903 = vmatpush2.bf16.msra.mxu0 0
    %1904 = vmatprep.subr.bf16.mxu0 0
    %1905 = vmatpush2.bf16.msra.mxu0 0
    %1906 = vmatprep.mubr.bf16.mxu0 0
    %1907 = vmatmul.mubr.bf16.gmra.mxu0 %v1618
    %v1908 = vpop.f32.mrf.mxu0
    %v1909 = vadd.f32 0.0, %v1908
    %v1910 = vpop.f32.mrf.mxu0
    %v1911 = vadd.f32 0.0, %v1910
    %v1912 = vpop.f32.mrf.mxu0
    %v1913 = vpop.f32.mrf.mxu0
    %1914 = vdwg.mxu0
    %1915 = vmatprep.subr.bf16.mxu0 %v1661
    %1916 = vmatpush1.bf16.msra.mxu0 %v1658
    %1917 = vmatprep.subr.bf16.mxu0 %v1340
    %1918 = vmatpush1.bf16.msra.mxu0 %v1339
    %1919 = vmatprep.subr.bf16.mxu0 %v1324
    %1920 = vmatpush1.bf16.msra.mxu0 %v1323
    %1921 = vmatprep.subr.bf16.mxu0 %v1308
    %1922 = vmatpush1.bf16.msra.mxu0 %v1307
    %1923 = vmatprep.subr.bf16.mxu0 %v1292
    %1924 = vmatpush1.bf16.msra.mxu0 %v1291
    %1925 = vmatprep.subr.bf16.mxu0 %v1276
    %1926 = vmatpush1.bf16.msra.mxu0 %v1275
    %1927 = vmatprep.subr.bf16.mxu0 %v1260
    %1928 = vmatpush1.bf16.msra.mxu0 %v1259
    %1929 = vmatprep.subr.bf16.mxu0 %v1244
    %1930 = vmatpush1.bf16.msra.mxu0 %v1243
    %1931 = vmatprep.subr.bf16.mxu0 0
    %1932 = vmatpush2.bf16.msra.mxu0 0
    %1933 = vmatprep.subr.bf16.mxu0 0
    %1934 = vmatpush2.bf16.msra.mxu0 0
    %1935 = vmatprep.subr.bf16.mxu0 0
    %1936 = vmatpush2.bf16.msra.mxu0 0
    %1937 = vmatprep.subr.bf16.mxu0 0
    %1938 = vmatpush2.bf16.msra.mxu0 0
    %1939 = vmatprep.subr.bf16.mxu0 0
    %1940 = vmatpush2.bf16.msra.mxu0 0
    %1941 = vmatprep.subr.bf16.mxu0 0
    %1942 = vmatpush2.bf16.msra.mxu0 0
    %1943 = vmatprep.subr.bf16.mxu0 0
    %1944 = vmatpush2.bf16.msra.mxu0 0
    %1945 = vmatprep.subr.bf16.mxu0 0
    %1946 = vmatpush2.bf16.msra.mxu0 0
    %1947 = vmatprep.mubr.bf16.mxu0 0
    %1948 = vmatmul.mubr.bf16.gmra.mxu0 %v1618
    %v1949 = vpop.f32.mrf.mxu0
    %v1950 = vadd.f32 0.0, %v1949
    %v1951 = vpop.f32.mrf.mxu0
    %v1952 = vadd.f32 0.0, %v1951
    %v1953 = vpop.f32.mrf.mxu0
    %v1954 = vpop.f32.mrf.mxu0
    %1955 = vdwg.mxu0
    %1956 = vmatprep.subr.bf16.mxu0 %v1667
    %1957 = vmatpush1.bf16.msra.mxu0 %v1664
    %1958 = vmatprep.subr.bf16.mxu0 %v1342
    %1959 = vmatpush1.bf16.msra.mxu0 %v1341
    %1960 = vmatprep.subr.bf16.mxu0 %v1326
    %1961 = vmatpush1.bf16.msra.mxu0 %v1325
    %1962 = vmatprep.subr.bf16.mxu0 %v1310
    %1963 = vmatpush1.bf16.msra.mxu0 %v1309
    %1964 = vmatprep.subr.bf16.mxu0 %v1294
    %1965 = vmatpush1.bf16.msra.mxu0 %v1293
    %1966 = vmatprep.subr.bf16.mxu0 %v1278
    %1967 = vmatpush1.bf16.msra.mxu0 %v1277
    %1968 = vmatprep.subr.bf16.mxu0 %v1262
    %1969 = vmatpush1.bf16.msra.mxu0 %v1261
    %1970 = vmatprep.subr.bf16.mxu0 %v1246
    %1971 = vmatpush1.bf16.msra.mxu0 %v1245
    %1972 = vmatprep.subr.bf16.mxu0 0
    %1973 = vmatpush2.bf16.msra.mxu0 0
    %1974 = vmatprep.subr.bf16.mxu0 0
    %1975 = vmatpush2.bf16.msra.mxu0 0
    %1976 = vmatprep.subr.bf16.mxu0 0
    %1977 = vmatpush2.bf16.msra.mxu0 0
    %1978 = vmatprep.subr.bf16.mxu0 0
    %1979 = vmatpush2.bf16.msra.mxu0 0
    %1980 = vmatprep.subr.bf16.mxu0 0
    %1981 = vmatpush2.bf16.msra.mxu0 0
    %1982 = vmatprep.subr.bf16.mxu0 0
    %1983 = vmatpush2.bf16.msra.mxu0 0
    %1984 = vmatprep.subr.bf16.mxu0 0
    %1985 = vmatpush2.bf16.msra.mxu0 0
    %1986 = vmatprep.subr.bf16.mxu0 0
    %1987 = vmatpush2.bf16.msra.mxu0 0
    %1988 = vmatprep.mubr.bf16.mxu0 0
    %1989 = vmatmul.mubr.bf16.gmra.mxu0 %v1618
    %v1990 = vpop.f32.mrf.mxu0
    %v1991 = vadd.f32 0.0, %v1990
    %v1992 = vpop.f32.mrf.mxu0
    %v1993 = vadd.f32 0.0, %v1992
    %v1994 = vpop.f32.mrf.mxu0
    %v1995 = vpop.f32.mrf.mxu0
    %1996 = vdwg.mxu0
    %s1997 = scalar_lea.vmem [#allocation7], 7
    %v1998 = vld [vmem:[%s1997] ss:$8 sm:$0xf]
    %v1999 = vld [vmem:[%s1997] ss:$8 sm:$0xf0]
    %v2000 = vor.u32 %v1998, %v1999
    %s2001 = scalar_lea.vmem [#allocation7], 71
    %v2002 = vld [vmem:[%s2001] ss:$8 sm:$0xf]
    %v2003 = vld [vmem:[%s2001] ss:$8 sm:$0xf0]
    %v2004 = vor.u32 %v2002, %v2003
    %v2005 = vld [vmem:[#allocation7] ss:$8 sm:$0xf]
    %v2006 = vld [vmem:[#allocation7] ss:$8 sm:$0xf0]
    %v2007 = vor.u32 %v2005, %v2006
    %s2008 = scalar_lea.vmem [#allocation7], 64
    %v2009 = vld [vmem:[%s2008] ss:$8 sm:$0xf]
    %v2010 = vld [vmem:[%s2008] ss:$8 sm:$0xf0]
    %v2011 = vor.u32 %v2009, %v2010
    %v2014 = vlaneseq
    %v2015 = vshrl.u32 %v2014, 7
    %v2016 = vsub.s32 0, %v2015
    %v2017 = vrot.slane %v2000, %v2016
    %v2018 = vlaneseq
    %v2019 = vshrl.u32 %v2018, 7
    %v2020 = vsub.s32 1, %v2019
    %v2021 = vrot.slane %v2000, %v2020
    %v2022 = vlaneseq
    %v2023 = vshrl.u32 %v2022, 7
    %v2024 = vsub.s32 2, %v2023
    %v2025 = vrot.slane %v2000, %v2024
    %v2026 = vlaneseq
    %v2027 = vshrl.u32 %v2026, 7
    %v2028 = vsub.s32 3, %v2027
    %v2029 = vrot.slane %v2000, %v2028
    %v2030 = vlaneseq
    %v2031 = vshrl.u32 %v2030, 7
    %v2032 = vsub.s32 4, %v2031
    %v2033 = vrot.slane %v2000, %v2032
    %v2034 = vlaneseq
    %v2035 = vshrl.u32 %v2034, 7
    %v2036 = vsub.s32 5, %v2035
    %v2037 = vrot.slane %v2000, %v2036
    %v2038 = vlaneseq
    %v2039 = vshrl.u32 %v2038, 7
    %v2040 = vsub.s32 6, %v2039
    %v2041 = vrot.slane %v2000, %v2040
    %v2042 = vlaneseq
    %v2043 = vshrl.u32 %v2042, 7
    %v2044 = vsub.s32 7, %v2043
    %v2045 = vrot.slane %v2000, %v2044
    %v2046 = vlaneseq
    %v2047 = vshrl.u32 %v2046, 7
    %v2048 = vsub.s32 0, %v2047
    %v2049 = vrot.slane %v2004, %v2048
    %v2050 = vlaneseq
    %v2051 = vshrl.u32 %v2050, 7
    %v2052 = vsub.s32 1, %v2051
    %v2053 = vrot.slane %v2004, %v2052
    %v2054 = vlaneseq
    %v2055 = vshrl.u32 %v2054, 7
    %v2056 = vsub.s32 2, %v2055
    %v2057 = vrot.slane %v2004, %v2056
    %v2058 = vlaneseq
    %v2059 = vshrl.u32 %v2058, 7
    %v2060 = vsub.s32 3, %v2059
    %v2061 = vrot.slane %v2004, %v2060
    %v2062 = vlaneseq
    %v2063 = vshrl.u32 %v2062, 7
    %v2064 = vsub.s32 4, %v2063
    %v2065 = vrot.slane %v2004, %v2064
    %v2066 = vlaneseq
    %v2067 = vshrl.u32 %v2066, 7
    %v2068 = vsub.s32 5, %v2067
    %v2069 = vrot.slane %v2004, %v2068
    %v2070 = vlaneseq
    %v2071 = vshrl.u32 %v2070, 7
    %v2072 = vsub.s32 6, %v2071
    %v2073 = vrot.slane %v2004, %v2072
    %v2074 = vlaneseq
    %v2075 = vshrl.u32 %v2074, 7
    %v2076 = vsub.s32 7, %v2075
    %v2077 = vrot.slane %v2004, %v2076
    %v2094 = vmul.f32 %v1704, %v2017
    %v2095 = vmul.f32 %v1706, %v2021
    %v2096 = vmul.f32 %v1745, %v2025
    %v2097 = vmul.f32 %v1747, %v2029
    %v2098 = vmul.f32 %v1786, %v2033
    %v2099 = vmul.f32 %v1788, %v2037
    %v2100 = vmul.f32 %v1827, %v2041
    %v2101 = vmul.f32 %v1829, %v2045
    %v2102 = vmul.f32 %v1868, %v2049
    %v2103 = vmul.f32 %v1870, %v2053
    %v2104 = vmul.f32 %v1909, %v2057
    %v2105 = vmul.f32 %v1911, %v2061
    %v2106 = vmul.f32 %v1950, %v2065
    %v2107 = vmul.f32 %v1952, %v2069
    %v2108 = vmul.f32 %v1991, %v2073
    %v2109 = vmul.f32 %v1993, %v2077
    %v2112 = vlaneseq
    %v2113 = vshrl.u32 %v2112, 7
    %v2114 = vsub.s32 0, %v2113
    %v2115 = vrot.slane %v2007, %v2114
    %v2116 = vlaneseq
    %v2117 = vshrl.u32 %v2116, 7
    %v2118 = vsub.s32 1, %v2117
    %v2119 = vrot.slane %v2007, %v2118
    %v2120 = vlaneseq
    %v2121 = vshrl.u32 %v2120, 7
    %v2122 = vsub.s32 2, %v2121
    %v2123 = vrot.slane %v2007, %v2122
    %v2124 = vlaneseq
    %v2125 = vshrl.u32 %v2124, 7
    %v2126 = vsub.s32 3, %v2125
    %v2127 = vrot.slane %v2007, %v2126
    %v2128 = vlaneseq
    %v2129 = vshrl.u32 %v2128, 7
    %v2130 = vsub.s32 4, %v2129
    %v2131 = vrot.slane %v2007, %v2130
    %v2132 = vlaneseq
    %v2133 = vshrl.u32 %v2132, 7
    %v2134 = vsub.s32 5, %v2133
    %v2135 = vrot.slane %v2007, %v2134
    %v2136 = vlaneseq
    %v2137 = vshrl.u32 %v2136, 7
    %v2138 = vsub.s32 6, %v2137
    %v2139 = vrot.slane %v2007, %v2138
    %v2140 = vlaneseq
    %v2141 = vshrl.u32 %v2140, 7
    %v2142 = vsub.s32 7, %v2141
    %v2143 = vrot.slane %v2007, %v2142
    %v2144 = vlaneseq
    %v2145 = vshrl.u32 %v2144, 7
    %v2146 = vsub.s32 0, %v2145
    %v2147 = vrot.slane %v2011, %v2146
    %v2148 = vlaneseq
    %v2149 = vshrl.u32 %v2148, 7
    %v2150 = vsub.s32 1, %v2149
    %v2151 = vrot.slane %v2011, %v2150
    %v2152 = vlaneseq
    %v2153 = vshrl.u32 %v2152, 7
    %v2154 = vsub.s32 2, %v2153
    %v2155 = vrot.slane %v2011, %v2154
    %v2156 = vlaneseq
    %v2157 = vshrl.u32 %v2156, 7
    %v2158 = vsub.s32 3, %v2157
    %v2159 = vrot.slane %v2011, %v2158
    %v2160 = vlaneseq
    %v2161 = vshrl.u32 %v2160, 7
    %v2162 = vsub.s32 4, %v2161
    %v2163 = vrot.slane %v2011, %v2162
    %v2164 = vlaneseq
    %v2165 = vshrl.u32 %v2164, 7
    %v2166 = vsub.s32 5, %v2165
    %v2167 = vrot.slane %v2011, %v2166
    %v2168 = vlaneseq
    %v2169 = vshrl.u32 %v2168, 7
    %v2170 = vsub.s32 6, %v2169
    %v2171 = vrot.slane %v2011, %v2170
    %v2172 = vlaneseq
    %v2173 = vshrl.u32 %v2172, 7
    %v2174 = vsub.s32 7, %v2173
    %v2175 = vrot.slane %v2011, %v2174
    %v2192 = vadd.f32 %v2094, %v2115
    %v2193 = vadd.f32 %v2095, %v2119
    %v2194 = vadd.f32 %v2096, %v2123
    %v2195 = vadd.f32 %v2097, %v2127
    %v2196 = vadd.f32 %v2098, %v2131
    %v2197 = vadd.f32 %v2099, %v2135
    %v2198 = vadd.f32 %v2100, %v2139
    %v2199 = vadd.f32 %v2101, %v2143
    %v2200 = vadd.f32 %v2102, %v2147
    %v2201 = vadd.f32 %v2103, %v2151
    %v2202 = vadd.f32 %v2104, %v2155
    %v2203 = vadd.f32 %v2105, %v2159
    %v2204 = vadd.f32 %v2106, %v2163
    %v2205 = vadd.f32 %v2107, %v2167
    %v2206 = vadd.f32 %v2108, %v2171
    %v2207 = vadd.f32 %v2109, %v2175
    %v2208 = vmax.f32 %v2192, 0.0
    %v2209 = vmax.f32 %v2193, 0.0
    %v2210 = vmax.f32 %v2194, 0.0
    %v2211 = vmax.f32 %v2195, 0.0
    %v2212 = vmax.f32 %v2196, 0.0
    %v2213 = vmax.f32 %v2197, 0.0
    %v2214 = vmax.f32 %v2198, 0.0
    %v2215 = vmax.f32 %v2199, 0.0
    %v2216 = vmax.f32 %v2200, 0.0
    %v2217 = vmax.f32 %v2201, 0.0
    %v2218 = vmax.f32 %v2202, 0.0
    %v2219 = vmax.f32 %v2203, 0.0
    %v2220 = vmax.f32 %v2204, 0.0
    %v2221 = vmax.f32 %v2205, 0.0
    %v2222 = vmax.f32 %v2206, 0.0
    %v2223 = vmax.f32 %v2207, 0.0
    %s2224 = smul.u32 2, 256
    %s2225 = smul.u32 %s2224, 8
    %s2226 = sshll.u32 %s2225, 4
    %2227 = dma.done %s59, %s2226
    %v2228 = vld [vmem:[#allocation3] sm:$0xff]
    %v2229 = vld [vmem:[#allocation3 + $0x8] sm:$0xff]
    %v2230 = vld [vmem:[#allocation3 + $0x10] sm:$0xff]
    %v2231 = vld [vmem:[#allocation3 + $0x18] sm:$0xff]
    %v2232 = vld [vmem:[#allocation3 + $0x20] sm:$0xff]
    %v2233 = vld [vmem:[#allocation3 + $0x28] sm:$0xff]
    %v2234 = vld [vmem:[#allocation3 + $0x30] sm:$0xff]
    %v2235 = vld [vmem:[#allocation3 + $0x38] sm:$0xff]
    %v2236 = vld [vmem:[#allocation3 + $0x40] sm:$0xff]
    %v2237 = vld [vmem:[#allocation3 + $0x48] sm:$0xff]
    %v2238 = vld [vmem:[#allocation3 + $0x50] sm:$0xff]
    %v2239 = vld [vmem:[#allocation3 + $0x58] sm:$0xff]
    %v2240 = vld [vmem:[#allocation3 + $0x60] sm:$0xff]
    %v2241 = vld [vmem:[#allocation3 + $0x68] sm:$0xff]
    %v2242 = vld [vmem:[#allocation3 + $0x70] sm:$0xff]
    %v2243 = vld [vmem:[#allocation3 + $0x78] sm:$0xff]
    %v2244 = vld [vmem:[#allocation3 + $0x80] sm:$0xff]
    %v2245 = vld [vmem:[#allocation3 + $0x88] sm:$0xff]
    %v2246 = vld [vmem:[#allocation3 + $0x90] sm:$0xff]
    %v2247 = vld [vmem:[#allocation3 + $0x98] sm:$0xff]
    %v2248 = vld [vmem:[#allocation3 + $0xa0] sm:$0xff]
    %v2249 = vld [vmem:[#allocation3 + $0xa8] sm:$0xff]
    %v2250 = vld [vmem:[#allocation3 + $0xb0] sm:$0xff]
    %v2251 = vld [vmem:[#allocation3 + $0xb8] sm:$0xff]
    %v2252 = vld [vmem:[#allocation3 + $0xc0] sm:$0xff]
    %v2253 = vld [vmem:[#allocation3 + $0xc8] sm:$0xff]
    %v2254 = vld [vmem:[#allocation3 + $0xd0] sm:$0xff]
    %v2255 = vld [vmem:[#allocation3 + $0xd8] sm:$0xff]
    %v2256 = vld [vmem:[#allocation3 + $0xe0] sm:$0xff]
    %v2257 = vld [vmem:[#allocation3 + $0xe8] sm:$0xff]
    %v2258 = vld [vmem:[#allocation3 + $0xf0] sm:$0xff]
    %v2259 = vld [vmem:[#allocation3 + $0xf8] sm:$0xff]
    %v2260 = vld [vmem:[#allocation3 + $0x100] sm:$0xff]
    %v2261 = vld [vmem:[#allocation3 + $0x108] sm:$0xff]
    %v2262 = vld [vmem:[#allocation3 + $0x110] sm:$0xff]
    %v2263 = vld [vmem:[#allocation3 + $0x118] sm:$0xff]
    %v2264 = vld [vmem:[#allocation3 + $0x120] sm:$0xff]
    %v2265 = vld [vmem:[#allocation3 + $0x128] sm:$0xff]
    %v2266 = vld [vmem:[#allocation3 + $0x130] sm:$0xff]
    %v2267 = vld [vmem:[#allocation3 + $0x138] sm:$0xff]
    %v2268 = vld [vmem:[#allocation3 + $0x140] sm:$0xff]
    %v2269 = vld [vmem:[#allocation3 + $0x148] sm:$0xff]
    %v2270 = vld [vmem:[#allocation3 + $0x150] sm:$0xff]
    %v2271 = vld [vmem:[#allocation3 + $0x158] sm:$0xff]
    %v2272 = vld [vmem:[#allocation3 + $0x160] sm:$0xff]
    %v2273 = vld [vmem:[#allocation3 + $0x168] sm:$0xff]
    %v2274 = vld [vmem:[#allocation3 + $0x170] sm:$0xff]
    %v2275 = vld [vmem:[#allocation3 + $0x178] sm:$0xff]
    %v2276 = vld [vmem:[#allocation3 + $0x180] sm:$0xff]
    %v2277 = vld [vmem:[#allocation3 + $0x188] sm:$0xff]
    %v2278 = vld [vmem:[#allocation3 + $0x190] sm:$0xff]
    %v2279 = vld [vmem:[#allocation3 + $0x198] sm:$0xff]
    %v2280 = vld [vmem:[#allocation3 + $0x1a0] sm:$0xff]
    %v2281 = vld [vmem:[#allocation3 + $0x1a8] sm:$0xff]
    %v2282 = vld [vmem:[#allocation3 + $0x1b0] sm:$0xff]
    %v2283 = vld [vmem:[#allocation3 + $0x1b8] sm:$0xff]
    %v2284 = vld [vmem:[#allocation3 + $0x1c0] sm:$0xff]
    %v2285 = vld [vmem:[#allocation3 + $0x1c8] sm:$0xff]
    %v2286 = vld [vmem:[#allocation3 + $0x1d0] sm:$0xff]
    %v2287 = vld [vmem:[#allocation3 + $0x1d8] sm:$0xff]
    %v2288 = vld [vmem:[#allocation3 + $0x1e0] sm:$0xff]
    %v2289 = vld [vmem:[#allocation3 + $0x1e8] sm:$0xff]
    %v2290 = vld [vmem:[#allocation3 + $0x1f0] sm:$0xff]
    %v2291 = vld [vmem:[#allocation3 + $0x1f8] sm:$0xff]
    %v2292 = vld [vmem:[#allocation3 + $0x200] sm:$0xff]
    %v2293 = vld [vmem:[#allocation3 + $0x208] sm:$0xff]
    %v2294 = vld [vmem:[#allocation3 + $0x210] sm:$0xff]
    %v2295 = vld [vmem:[#allocation3 + $0x218] sm:$0xff]
    %v2296 = vld [vmem:[#allocation3 + $0x220] sm:$0xff]
    %v2297 = vld [vmem:[#allocation3 + $0x228] sm:$0xff]
    %v2298 = vld [vmem:[#allocation3 + $0x230] sm:$0xff]
    %v2299 = vld [vmem:[#allocation3 + $0x238] sm:$0xff]
    %v2300 = vld [vmem:[#allocation3 + $0x240] sm:$0xff]
    %v2301 = vld [vmem:[#allocation3 + $0x248] sm:$0xff]
    %v2302 = vld [vmem:[#allocation3 + $0x250] sm:$0xff]
    %v2303 = vld [vmem:[#allocation3 + $0x258] sm:$0xff]
    %v2304 = vld [vmem:[#allocation3 + $0x260] sm:$0xff]
    %v2305 = vld [vmem:[#allocation3 + $0x268] sm:$0xff]
    %v2306 = vld [vmem:[#allocation3 + $0x270] sm:$0xff]
    %v2307 = vld [vmem:[#allocation3 + $0x278] sm:$0xff]
    %v2308 = vld [vmem:[#allocation3 + $0x280] sm:$0xff]
    %v2309 = vld [vmem:[#allocation3 + $0x288] sm:$0xff]
    %v2310 = vld [vmem:[#allocation3 + $0x290] sm:$0xff]
    %v2311 = vld [vmem:[#allocation3 + $0x298] sm:$0xff]
    %v2312 = vld [vmem:[#allocation3 + $0x2a0] sm:$0xff]
    %v2313 = vld [vmem:[#allocation3 + $0x2a8] sm:$0xff]
    %v2314 = vld [vmem:[#allocation3 + $0x2b0] sm:$0xff]
    %v2315 = vld [vmem:[#allocation3 + $0x2b8] sm:$0xff]
    %v2316 = vld [vmem:[#allocation3 + $0x2c0] sm:$0xff]
    %v2317 = vld [vmem:[#allocation3 + $0x2c8] sm:$0xff]
    %v2318 = vld [vmem:[#allocation3 + $0x2d0] sm:$0xff]
    %v2319 = vld [vmem:[#allocation3 + $0x2d8] sm:$0xff]
    %v2320 = vld [vmem:[#allocation3 + $0x2e0] sm:$0xff]
    %v2321 = vld [vmem:[#allocation3 + $0x2e8] sm:$0xff]
    %v2322 = vld [vmem:[#allocation3 + $0x2f0] sm:$0xff]
    %v2323 = vld [vmem:[#allocation3 + $0x2f8] sm:$0xff]
    %v2324 = vld [vmem:[#allocation3 + $0x300] sm:$0xff]
    %v2325 = vld [vmem:[#allocation3 + $0x308] sm:$0xff]
    %v2326 = vld [vmem:[#allocation3 + $0x310] sm:$0xff]
    %v2327 = vld [vmem:[#allocation3 + $0x318] sm:$0xff]
    %v2328 = vld [vmem:[#allocation3 + $0x320] sm:$0xff]
    %v2329 = vld [vmem:[#allocation3 + $0x328] sm:$0xff]
    %v2330 = vld [vmem:[#allocation3 + $0x330] sm:$0xff]
    %v2331 = vld [vmem:[#allocation3 + $0x338] sm:$0xff]
    %v2332 = vld [vmem:[#allocation3 + $0x340] sm:$0xff]
    %v2333 = vld [vmem:[#allocation3 + $0x348] sm:$0xff]
    %v2334 = vld [vmem:[#allocation3 + $0x350] sm:$0xff]
    %v2335 = vld [vmem:[#allocation3 + $0x358] sm:$0xff]
    %v2336 = vld [vmem:[#allocation3 + $0x360] sm:$0xff]
    %v2337 = vld [vmem:[#allocation3 + $0x368] sm:$0xff]
    %v2338 = vld [vmem:[#allocation3 + $0x370] sm:$0xff]
    %v2339 = vld [vmem:[#allocation3 + $0x378] sm:$0xff]
    %v2340 = vld [vmem:[#allocation3 + $0x380] sm:$0xff]
    %v2341 = vld [vmem:[#allocation3 + $0x388] sm:$0xff]
    %v2342 = vld [vmem:[#allocation3 + $0x390] sm:$0xff]
    %v2343 = vld [vmem:[#allocation3 + $0x398] sm:$0xff]
    %v2344 = vld [vmem:[#allocation3 + $0x3a0] sm:$0xff]
    %v2345 = vld [vmem:[#allocation3 + $0x3a8] sm:$0xff]
    %v2346 = vld [vmem:[#allocation3 + $0x3b0] sm:$0xff]
    %v2347 = vld [vmem:[#allocation3 + $0x3b8] sm:$0xff]
    %v2348 = vld [vmem:[#allocation3 + $0x3c0] sm:$0xff]
    %v2349 = vld [vmem:[#allocation3 + $0x3c8] sm:$0xff]
    %v2350 = vld [vmem:[#allocation3 + $0x3d0] sm:$0xff]
    %v2351 = vld [vmem:[#allocation3 + $0x3d8] sm:$0xff]
    %v2352 = vld [vmem:[#allocation3 + $0x3e0] sm:$0xff]
    %v2353 = vld [vmem:[#allocation3 + $0x3e8] sm:$0xff]
    %v2354 = vld [vmem:[#allocation3 + $0x3f0] sm:$0xff]
    %v2355 = vld [vmem:[#allocation3 + $0x3f8] sm:$0xff]
    %v2356 = vld [vmem:[#allocation3 + $0x400] sm:$0xff]
    %v2357 = vld [vmem:[#allocation3 + $0x408] sm:$0xff]
    %v2358 = vld [vmem:[#allocation3 + $0x410] sm:$0xff]
    %v2359 = vld [vmem:[#allocation3 + $0x418] sm:$0xff]
    %v2360 = vld [vmem:[#allocation3 + $0x420] sm:$0xff]
    %v2361 = vld [vmem:[#allocation3 + $0x428] sm:$0xff]
    %v2362 = vld [vmem:[#allocation3 + $0x430] sm:$0xff]
    %v2363 = vld [vmem:[#allocation3 + $0x438] sm:$0xff]
    %v2364 = vld [vmem:[#allocation3 + $0x440] sm:$0xff]
    %v2365 = vld [vmem:[#allocation3 + $0x448] sm:$0xff]
    %v2366 = vld [vmem:[#allocation3 + $0x450] sm:$0xff]
    %v2367 = vld [vmem:[#allocation3 + $0x458] sm:$0xff]
    %v2368 = vld [vmem:[#allocation3 + $0x460] sm:$0xff]
    %v2369 = vld [vmem:[#allocation3 + $0x468] sm:$0xff]
    %v2370 = vld [vmem:[#allocation3 + $0x470] sm:$0xff]
    %v2371 = vld [vmem:[#allocation3 + $0x478] sm:$0xff]
    %v2372 = vld [vmem:[#allocation3 + $0x480] sm:$0xff]
    %v2373 = vld [vmem:[#allocation3 + $0x488] sm:$0xff]
    %v2374 = vld [vmem:[#allocation3 + $0x490] sm:$0xff]
    %v2375 = vld [vmem:[#allocation3 + $0x498] sm:$0xff]
    %v2376 = vld [vmem:[#allocation3 + $0x4a0] sm:$0xff]
    %v2377 = vld [vmem:[#allocation3 + $0x4a8] sm:$0xff]
    %v2378 = vld [vmem:[#allocation3 + $0x4b0] sm:$0xff]
    %v2379 = vld [vmem:[#allocation3 + $0x4b8] sm:$0xff]
    %v2380 = vld [vmem:[#allocation3 + $0x4c0] sm:$0xff]
    %v2381 = vld [vmem:[#allocation3 + $0x4c8] sm:$0xff]
    %v2382 = vld [vmem:[#allocation3 + $0x4d0] sm:$0xff]
    %v2383 = vld [vmem:[#allocation3 + $0x4d8] sm:$0xff]
    %v2384 = vld [vmem:[#allocation3 + $0x4e0] sm:$0xff]
    %v2385 = vld [vmem:[#allocation3 + $0x4e8] sm:$0xff]
    %v2386 = vld [vmem:[#allocation3 + $0x4f0] sm:$0xff]
    %v2387 = vld [vmem:[#allocation3 + $0x4f8] sm:$0xff]
    %v2388 = vld [vmem:[#allocation3 + $0x500] sm:$0xff]
    %v2389 = vld [vmem:[#allocation3 + $0x508] sm:$0xff]
    %v2390 = vld [vmem:[#allocation3 + $0x510] sm:$0xff]
    %v2391 = vld [vmem:[#allocation3 + $0x518] sm:$0xff]
    %v2392 = vld [vmem:[#allocation3 + $0x520] sm:$0xff]
    %v2393 = vld [vmem:[#allocation3 + $0x528] sm:$0xff]
    %v2394 = vld [vmem:[#allocation3 + $0x530] sm:$0xff]
    %v2395 = vld [vmem:[#allocation3 + $0x538] sm:$0xff]
    %v2396 = vld [vmem:[#allocation3 + $0x540] sm:$0xff]
    %v2397 = vld [vmem:[#allocation3 + $0x548] sm:$0xff]
    %v2398 = vld [vmem:[#allocation3 + $0x550] sm:$0xff]
    %v2399 = vld [vmem:[#allocation3 + $0x558] sm:$0xff]
    %v2400 = vld [vmem:[#allocation3 + $0x560] sm:$0xff]
    %v2401 = vld [vmem:[#allocation3 + $0x568] sm:$0xff]
    %v2402 = vld [vmem:[#allocation3 + $0x570] sm:$0xff]
    %v2403 = vld [vmem:[#allocation3 + $0x578] sm:$0xff]
    %v2404 = vld [vmem:[#allocation3 + $0x580] sm:$0xff]
    %v2405 = vld [vmem:[#allocation3 + $0x588] sm:$0xff]
    %v2406 = vld [vmem:[#allocation3 + $0x590] sm:$0xff]
    %v2407 = vld [vmem:[#allocation3 + $0x598] sm:$0xff]
    %v2408 = vld [vmem:[#allocation3 + $0x5a0] sm:$0xff]
    %v2409 = vld [vmem:[#allocation3 + $0x5a8] sm:$0xff]
    %v2410 = vld [vmem:[#allocation3 + $0x5b0] sm:$0xff]
    %v2411 = vld [vmem:[#allocation3 + $0x5b8] sm:$0xff]
    %v2412 = vld [vmem:[#allocation3 + $0x5c0] sm:$0xff]
    %v2413 = vld [vmem:[#allocation3 + $0x5c8] sm:$0xff]
    %v2414 = vld [vmem:[#allocation3 + $0x5d0] sm:$0xff]
    %v2415 = vld [vmem:[#allocation3 + $0x5d8] sm:$0xff]
    %v2416 = vld [vmem:[#allocation3 + $0x5e0] sm:$0xff]
    %v2417 = vld [vmem:[#allocation3 + $0x5e8] sm:$0xff]
    %v2418 = vld [vmem:[#allocation3 + $0x5f0] sm:$0xff]
    %v2419 = vld [vmem:[#allocation3 + $0x5f8] sm:$0xff]
    %v2420 = vld [vmem:[#allocation3 + $0x600] sm:$0xff]
    %v2421 = vld [vmem:[#allocation3 + $0x608] sm:$0xff]
    %v2422 = vld [vmem:[#allocation3 + $0x610] sm:$0xff]
    %v2423 = vld [vmem:[#allocation3 + $0x618] sm:$0xff]
    %v2424 = vld [vmem:[#allocation3 + $0x620] sm:$0xff]
    %v2425 = vld [vmem:[#allocation3 + $0x628] sm:$0xff]
    %v2426 = vld [vmem:[#allocation3 + $0x630] sm:$0xff]
    %v2427 = vld [vmem:[#allocation3 + $0x638] sm:$0xff]
    %v2428 = vld [vmem:[#allocation3 + $0x640] sm:$0xff]
    %v2429 = vld [vmem:[#allocation3 + $0x648] sm:$0xff]
    %v2430 = vld [vmem:[#allocation3 + $0x650] sm:$0xff]
    %v2431 = vld [vmem:[#allocation3 + $0x658] sm:$0xff]
    %v2432 = vld [vmem:[#allocation3 + $0x660] sm:$0xff]
    %v2433 = vld [vmem:[#allocation3 + $0x668] sm:$0xff]
    %v2434 = vld [vmem:[#allocation3 + $0x670] sm:$0xff]
    %v2435 = vld [vmem:[#allocation3 + $0x678] sm:$0xff]
    %v2436 = vld [vmem:[#allocation3 + $0x680] sm:$0xff]
    %v2437 = vld [vmem:[#allocation3 + $0x688] sm:$0xff]
    %v2438 = vld [vmem:[#allocation3 + $0x690] sm:$0xff]
    %v2439 = vld [vmem:[#allocation3 + $0x698] sm:$0xff]
    %v2440 = vld [vmem:[#allocation3 + $0x6a0] sm:$0xff]
    %v2441 = vld [vmem:[#allocation3 + $0x6a8] sm:$0xff]
    %v2442 = vld [vmem:[#allocation3 + $0x6b0] sm:$0xff]
    %v2443 = vld [vmem:[#allocation3 + $0x6b8] sm:$0xff]
    %v2444 = vld [vmem:[#allocation3 + $0x6c0] sm:$0xff]
    %v2445 = vld [vmem:[#allocation3 + $0x6c8] sm:$0xff]
    %v2446 = vld [vmem:[#allocation3 + $0x6d0] sm:$0xff]
    %v2447 = vld [vmem:[#allocation3 + $0x6d8] sm:$0xff]
    %v2448 = vld [vmem:[#allocation3 + $0x6e0] sm:$0xff]
    %v2449 = vld [vmem:[#allocation3 + $0x6e8] sm:$0xff]
    %v2450 = vld [vmem:[#allocation3 + $0x6f0] sm:$0xff]
    %v2451 = vld [vmem:[#allocation3 + $0x6f8] sm:$0xff]
    %v2452 = vld [vmem:[#allocation3 + $0x700] sm:$0xff]
    %v2453 = vld [vmem:[#allocation3 + $0x708] sm:$0xff]
    %v2454 = vld [vmem:[#allocation3 + $0x710] sm:$0xff]
    %v2455 = vld [vmem:[#allocation3 + $0x718] sm:$0xff]
    %v2456 = vld [vmem:[#allocation3 + $0x720] sm:$0xff]
    %v2457 = vld [vmem:[#allocation3 + $0x728] sm:$0xff]
    %v2458 = vld [vmem:[#allocation3 + $0x730] sm:$0xff]
    %v2459 = vld [vmem:[#allocation3 + $0x738] sm:$0xff]
    %v2460 = vld [vmem:[#allocation3 + $0x740] sm:$0xff]
    %v2461 = vld [vmem:[#allocation3 + $0x748] sm:$0xff]
    %v2462 = vld [vmem:[#allocation3 + $0x750] sm:$0xff]
    %v2463 = vld [vmem:[#allocation3 + $0x758] sm:$0xff]
    %v2464 = vld [vmem:[#allocation3 + $0x760] sm:$0xff]
    %v2465 = vld [vmem:[#allocation3 + $0x768] sm:$0xff]
    %v2466 = vld [vmem:[#allocation3 + $0x770] sm:$0xff]
    %v2467 = vld [vmem:[#allocation3 + $0x778] sm:$0xff]
    %v2468 = vld [vmem:[#allocation3 + $0x780] sm:$0xff]
    %v2469 = vld [vmem:[#allocation3 + $0x788] sm:$0xff]
    %v2470 = vld [vmem:[#allocation3 + $0x790] sm:$0xff]
    %v2471 = vld [vmem:[#allocation3 + $0x798] sm:$0xff]
    %v2472 = vld [vmem:[#allocation3 + $0x7a0] sm:$0xff]
    %v2473 = vld [vmem:[#allocation3 + $0x7a8] sm:$0xff]
    %v2474 = vld [vmem:[#allocation3 + $0x7b0] sm:$0xff]
    %v2475 = vld [vmem:[#allocation3 + $0x7b8] sm:$0xff]
    %v2476 = vld [vmem:[#allocation3 + $0x7c0] sm:$0xff]
    %v2477 = vld [vmem:[#allocation3 + $0x7c8] sm:$0xff]
    %v2478 = vld [vmem:[#allocation3 + $0x7d0] sm:$0xff]
    %v2479 = vld [vmem:[#allocation3 + $0x7d8] sm:$0xff]
    %v2480 = vld [vmem:[#allocation3 + $0x7e0] sm:$0xff]
    %v2481 = vld [vmem:[#allocation3 + $0x7e8] sm:$0xff]
    %v2482 = vld [vmem:[#allocation3 + $0x7f0] sm:$0xff]
    %v2483 = vld [vmem:[#allocation3 + $0x7f8] sm:$0xff]
    %v2484 = vld [vmem:[#allocation3 + $0x800] sm:$0xff]
    %v2485 = vld [vmem:[#allocation3 + $0x808] sm:$0xff]
    %v2486 = vld [vmem:[#allocation3 + $0x810] sm:$0xff]
    %v2487 = vld [vmem:[#allocation3 + $0x818] sm:$0xff]
    %v2488 = vld [vmem:[#allocation3 + $0x820] sm:$0xff]
    %v2489 = vld [vmem:[#allocation3 + $0x828] sm:$0xff]
    %v2490 = vld [vmem:[#allocation3 + $0x830] sm:$0xff]
    %v2491 = vld [vmem:[#allocation3 + $0x838] sm:$0xff]
    %v2492 = vld [vmem:[#allocation3 + $0x840] sm:$0xff]
    %v2493 = vld [vmem:[#allocation3 + $0x848] sm:$0xff]
    %v2494 = vld [vmem:[#allocation3 + $0x850] sm:$0xff]
    %v2495 = vld [vmem:[#allocation3 + $0x858] sm:$0xff]
    %v2496 = vld [vmem:[#allocation3 + $0x860] sm:$0xff]
    %v2497 = vld [vmem:[#allocation3 + $0x868] sm:$0xff]
    %v2498 = vld [vmem:[#allocation3 + $0x870] sm:$0xff]
    %v2499 = vld [vmem:[#allocation3 + $0x878] sm:$0xff]
    %v2500 = vld [vmem:[#allocation3 + $0x880] sm:$0xff]
    %v2501 = vld [vmem:[#allocation3 + $0x888] sm:$0xff]
    %v2502 = vld [vmem:[#allocation3 + $0x890] sm:$0xff]
    %v2503 = vld [vmem:[#allocation3 + $0x898] sm:$0xff]
    %v2504 = vld [vmem:[#allocation3 + $0x8a0] sm:$0xff]
    %v2505 = vld [vmem:[#allocation3 + $0x8a8] sm:$0xff]
    %v2506 = vld [vmem:[#allocation3 + $0x8b0] sm:$0xff]
    %v2507 = vld [vmem:[#allocation3 + $0x8b8] sm:$0xff]
    %v2508 = vld [vmem:[#allocation3 + $0x8c0] sm:$0xff]
    %v2509 = vld [vmem:[#allocation3 + $0x8c8] sm:$0xff]
    %v2510 = vld [vmem:[#allocation3 + $0x8d0] sm:$0xff]
    %v2511 = vld [vmem:[#allocation3 + $0x8d8] sm:$0xff]
    %v2512 = vld [vmem:[#allocation3 + $0x8e0] sm:$0xff]
    %v2513 = vld [vmem:[#allocation3 + $0x8e8] sm:$0xff]
    %v2514 = vld [vmem:[#allocation3 + $0x8f0] sm:$0xff]
    %v2515 = vld [vmem:[#allocation3 + $0x8f8] sm:$0xff]
    %v2516 = vld [vmem:[#allocation3 + $0x900] sm:$0xff]
    %v2517 = vld [vmem:[#allocation3 + $0x908] sm:$0xff]
    %v2518 = vld [vmem:[#allocation3 + $0x910] sm:$0xff]
    %v2519 = vld [vmem:[#allocation3 + $0x918] sm:$0xff]
    %v2520 = vld [vmem:[#allocation3 + $0x920] sm:$0xff]
    %v2521 = vld [vmem:[#allocation3 + $0x928] sm:$0xff]
    %v2522 = vld [vmem:[#allocation3 + $0x930] sm:$0xff]
    %v2523 = vld [vmem:[#allocation3 + $0x938] sm:$0xff]
    %v2524 = vld [vmem:[#allocation3 + $0x940] sm:$0xff]
    %v2525 = vld [vmem:[#allocation3 + $0x948] sm:$0xff]
    %v2526 = vld [vmem:[#allocation3 + $0x950] sm:$0xff]
    %v2527 = vld [vmem:[#allocation3 + $0x958] sm:$0xff]
    %v2528 = vld [vmem:[#allocation3 + $0x960] sm:$0xff]
    %v2529 = vld [vmem:[#allocation3 + $0x968] sm:$0xff]
    %v2530 = vld [vmem:[#allocation3 + $0x970] sm:$0xff]
    %v2531 = vld [vmem:[#allocation3 + $0x978] sm:$0xff]
    %v2532 = vld [vmem:[#allocation3 + $0x980] sm:$0xff]
    %v2533 = vld [vmem:[#allocation3 + $0x988] sm:$0xff]
    %v2534 = vld [vmem:[#allocation3 + $0x990] sm:$0xff]
    %v2535 = vld [vmem:[#allocation3 + $0x998] sm:$0xff]
    %v2536 = vld [vmem:[#allocation3 + $0x9a0] sm:$0xff]
    %v2537 = vld [vmem:[#allocation3 + $0x9a8] sm:$0xff]
    %v2538 = vld [vmem:[#allocation3 + $0x9b0] sm:$0xff]
    %v2539 = vld [vmem:[#allocation3 + $0x9b8] sm:$0xff]
    %v2540 = vld [vmem:[#allocation3 + $0x9c0] sm:$0xff]
    %v2541 = vld [vmem:[#allocation3 + $0x9c8] sm:$0xff]
    %v2542 = vld [vmem:[#allocation3 + $0x9d0] sm:$0xff]
    %v2543 = vld [vmem:[#allocation3 + $0x9d8] sm:$0xff]
    %v2544 = vld [vmem:[#allocation3 + $0x9e0] sm:$0xff]
    %v2545 = vld [vmem:[#allocation3 + $0x9e8] sm:$0xff]
    %v2546 = vld [vmem:[#allocation3 + $0x9f0] sm:$0xff]
    %v2547 = vld [vmem:[#allocation3 + $0x9f8] sm:$0xff]
    %v2548 = vld [vmem:[#allocation3 + $0xa00] sm:$0xff]
    %v2549 = vld [vmem:[#allocation3 + $0xa08] sm:$0xff]
    %v2550 = vld [vmem:[#allocation3 + $0xa10] sm:$0xff]
    %v2551 = vld [vmem:[#allocation3 + $0xa18] sm:$0xff]
    %v2552 = vld [vmem:[#allocation3 + $0xa20] sm:$0xff]
    %v2553 = vld [vmem:[#allocation3 + $0xa28] sm:$0xff]
    %v2554 = vld [vmem:[#allocation3 + $0xa30] sm:$0xff]
    %v2555 = vld [vmem:[#allocation3 + $0xa38] sm:$0xff]
    %v2556 = vld [vmem:[#allocation3 + $0xa40] sm:$0xff]
    %v2557 = vld [vmem:[#allocation3 + $0xa48] sm:$0xff]
    %v2558 = vld [vmem:[#allocation3 + $0xa50] sm:$0xff]
    %v2559 = vld [vmem:[#allocation3 + $0xa58] sm:$0xff]
    %v2560 = vld [vmem:[#allocation3 + $0xa60] sm:$0xff]
    %v2561 = vld [vmem:[#allocation3 + $0xa68] sm:$0xff]
    %v2562 = vld [vmem:[#allocation3 + $0xa70] sm:$0xff]
    %v2563 = vld [vmem:[#allocation3 + $0xa78] sm:$0xff]
    %v2564 = vld [vmem:[#allocation3 + $0xa80] sm:$0xff]
    %v2565 = vld [vmem:[#allocation3 + $0xa88] sm:$0xff]
    %v2566 = vld [vmem:[#allocation3 + $0xa90] sm:$0xff]
    %v2567 = vld [vmem:[#allocation3 + $0xa98] sm:$0xff]
    %v2568 = vld [vmem:[#allocation3 + $0xaa0] sm:$0xff]
    %v2569 = vld [vmem:[#allocation3 + $0xaa8] sm:$0xff]
    %v2570 = vld [vmem:[#allocation3 + $0xab0] sm:$0xff]
    %v2571 = vld [vmem:[#allocation3 + $0xab8] sm:$0xff]
    %v2572 = vld [vmem:[#allocation3 + $0xac0] sm:$0xff]
    %v2573 = vld [vmem:[#allocation3 + $0xac8] sm:$0xff]
    %v2574 = vld [vmem:[#allocation3 + $0xad0] sm:$0xff]
    %v2575 = vld [vmem:[#allocation3 + $0xad8] sm:$0xff]
    %v2576 = vld [vmem:[#allocation3 + $0xae0] sm:$0xff]
    %v2577 = vld [vmem:[#allocation3 + $0xae8] sm:$0xff]
    %v2578 = vld [vmem:[#allocation3 + $0xaf0] sm:$0xff]
    %v2579 = vld [vmem:[#allocation3 + $0xaf8] sm:$0xff]
    %v2580 = vld [vmem:[#allocation3 + $0xb00] sm:$0xff]
    %v2581 = vld [vmem:[#allocation3 + $0xb08] sm:$0xff]
    %v2582 = vld [vmem:[#allocation3 + $0xb10] sm:$0xff]
    %v2583 = vld [vmem:[#allocation3 + $0xb18] sm:$0xff]
    %v2584 = vld [vmem:[#allocation3 + $0xb20] sm:$0xff]
    %v2585 = vld [vmem:[#allocation3 + $0xb28] sm:$0xff]
    %v2586 = vld [vmem:[#allocation3 + $0xb30] sm:$0xff]
    %v2587 = vld [vmem:[#allocation3 + $0xb38] sm:$0xff]
    %v2588 = vld [vmem:[#allocation3 + $0xb40] sm:$0xff]
    %v2589 = vld [vmem:[#allocation3 + $0xb48] sm:$0xff]
    %v2590 = vld [vmem:[#allocation3 + $0xb50] sm:$0xff]
    %v2591 = vld [vmem:[#allocation3 + $0xb58] sm:$0xff]
    %v2592 = vld [vmem:[#allocation3 + $0xb60] sm:$0xff]
    %v2593 = vld [vmem:[#allocation3 + $0xb68] sm:$0xff]
    %v2594 = vld [vmem:[#allocation3 + $0xb70] sm:$0xff]
    %v2595 = vld [vmem:[#allocation3 + $0xb78] sm:$0xff]
    %v2596 = vld [vmem:[#allocation3 + $0xb80] sm:$0xff]
    %v2597 = vld [vmem:[#allocation3 + $0xb88] sm:$0xff]
    %v2598 = vld [vmem:[#allocation3 + $0xb90] sm:$0xff]
    %v2599 = vld [vmem:[#allocation3 + $0xb98] sm:$0xff]
    %v2600 = vld [vmem:[#allocation3 + $0xba0] sm:$0xff]
    %v2601 = vld [vmem:[#allocation3 + $0xba8] sm:$0xff]
    %v2602 = vld [vmem:[#allocation3 + $0xbb0] sm:$0xff]
    %v2603 = vld [vmem:[#allocation3 + $0xbb8] sm:$0xff]
    %v2604 = vld [vmem:[#allocation3 + $0xbc0] sm:$0xff]
    %v2605 = vld [vmem:[#allocation3 + $0xbc8] sm:$0xff]
    %v2606 = vld [vmem:[#allocation3 + $0xbd0] sm:$0xff]
    %v2607 = vld [vmem:[#allocation3 + $0xbd8] sm:$0xff]
    %v2608 = vld [vmem:[#allocation3 + $0xbe0] sm:$0xff]
    %v2609 = vld [vmem:[#allocation3 + $0xbe8] sm:$0xff]
    %v2610 = vld [vmem:[#allocation3 + $0xbf0] sm:$0xff]
    %v2611 = vld [vmem:[#allocation3 + $0xbf8] sm:$0xff]
    %v2612 = vld [vmem:[#allocation3 + $0xc00] sm:$0xff]
    %v2613 = vld [vmem:[#allocation3 + $0xc08] sm:$0xff]
    %v2614 = vld [vmem:[#allocation3 + $0xc10] sm:$0xff]
    %v2615 = vld [vmem:[#allocation3 + $0xc18] sm:$0xff]
    %v2616 = vld [vmem:[#allocation3 + $0xc20] sm:$0xff]
    %v2617 = vld [vmem:[#allocation3 + $0xc28] sm:$0xff]
    %v2618 = vld [vmem:[#allocation3 + $0xc30] sm:$0xff]
    %v2619 = vld [vmem:[#allocation3 + $0xc38] sm:$0xff]
    %v2620 = vld [vmem:[#allocation3 + $0xc40] sm:$0xff]
    %v2621 = vld [vmem:[#allocation3 + $0xc48] sm:$0xff]
    %v2622 = vld [vmem:[#allocation3 + $0xc50] sm:$0xff]
    %v2623 = vld [vmem:[#allocation3 + $0xc58] sm:$0xff]
    %v2624 = vld [vmem:[#allocation3 + $0xc60] sm:$0xff]
    %v2625 = vld [vmem:[#allocation3 + $0xc68] sm:$0xff]
    %v2626 = vld [vmem:[#allocation3 + $0xc70] sm:$0xff]
    %v2627 = vld [vmem:[#allocation3 + $0xc78] sm:$0xff]
    %v2628 = vld [vmem:[#allocation3 + $0xc80] sm:$0xff]
    %v2629 = vld [vmem:[#allocation3 + $0xc88] sm:$0xff]
    %v2630 = vld [vmem:[#allocation3 + $0xc90] sm:$0xff]
    %v2631 = vld [vmem:[#allocation3 + $0xc98] sm:$0xff]
    %v2632 = vld [vmem:[#allocation3 + $0xca0] sm:$0xff]
    %v2633 = vld [vmem:[#allocation3 + $0xca8] sm:$0xff]
    %v2634 = vld [vmem:[#allocation3 + $0xcb0] sm:$0xff]
    %v2635 = vld [vmem:[#allocation3 + $0xcb8] sm:$0xff]
    %v2636 = vld [vmem:[#allocation3 + $0xcc0] sm:$0xff]
    %v2637 = vld [vmem:[#allocation3 + $0xcc8] sm:$0xff]
    %v2638 = vld [vmem:[#allocation3 + $0xcd0] sm:$0xff]
    %v2639 = vld [vmem:[#allocation3 + $0xcd8] sm:$0xff]
    %v2640 = vld [vmem:[#allocation3 + $0xce0] sm:$0xff]
    %v2641 = vld [vmem:[#allocation3 + $0xce8] sm:$0xff]
    %v2642 = vld [vmem:[#allocation3 + $0xcf0] sm:$0xff]
    %v2643 = vld [vmem:[#allocation3 + $0xcf8] sm:$0xff]
    %v2644 = vld [vmem:[#allocation3 + $0xd00] sm:$0xff]
    %v2645 = vld [vmem:[#allocation3 + $0xd08] sm:$0xff]
    %v2646 = vld [vmem:[#allocation3 + $0xd10] sm:$0xff]
    %v2647 = vld [vmem:[#allocation3 + $0xd18] sm:$0xff]
    %v2648 = vld [vmem:[#allocation3 + $0xd20] sm:$0xff]
    %v2649 = vld [vmem:[#allocation3 + $0xd28] sm:$0xff]
    %v2650 = vld [vmem:[#allocation3 + $0xd30] sm:$0xff]
    %v2651 = vld [vmem:[#allocation3 + $0xd38] sm:$0xff]
    %v2652 = vld [vmem:[#allocation3 + $0xd40] sm:$0xff]
    %v2653 = vld [vmem:[#allocation3 + $0xd48] sm:$0xff]
    %v2654 = vld [vmem:[#allocation3 + $0xd50] sm:$0xff]
    %v2655 = vld [vmem:[#allocation3 + $0xd58] sm:$0xff]
    %v2656 = vld [vmem:[#allocation3 + $0xd60] sm:$0xff]
    %v2657 = vld [vmem:[#allocation3 + $0xd68] sm:$0xff]
    %v2658 = vld [vmem:[#allocation3 + $0xd70] sm:$0xff]
    %v2659 = vld [vmem:[#allocation3 + $0xd78] sm:$0xff]
    %v2660 = vld [vmem:[#allocation3 + $0xd80] sm:$0xff]
    %v2661 = vld [vmem:[#allocation3 + $0xd88] sm:$0xff]
    %v2662 = vld [vmem:[#allocation3 + $0xd90] sm:$0xff]
    %v2663 = vld [vmem:[#allocation3 + $0xd98] sm:$0xff]
    %v2664 = vld [vmem:[#allocation3 + $0xda0] sm:$0xff]
    %v2665 = vld [vmem:[#allocation3 + $0xda8] sm:$0xff]
    %v2666 = vld [vmem:[#allocation3 + $0xdb0] sm:$0xff]
    %v2667 = vld [vmem:[#allocation3 + $0xdb8] sm:$0xff]
    %v2668 = vld [vmem:[#allocation3 + $0xdc0] sm:$0xff]
    %v2669 = vld [vmem:[#allocation3 + $0xdc8] sm:$0xff]
    %v2670 = vld [vmem:[#allocation3 + $0xdd0] sm:$0xff]
    %v2671 = vld [vmem:[#allocation3 + $0xdd8] sm:$0xff]
    %v2672 = vld [vmem:[#allocation3 + $0xde0] sm:$0xff]
    %v2673 = vld [vmem:[#allocation3 + $0xde8] sm:$0xff]
    %v2674 = vld [vmem:[#allocation3 + $0xdf0] sm:$0xff]
    %v2675 = vld [vmem:[#allocation3 + $0xdf8] sm:$0xff]
    %v2676 = vld [vmem:[#allocation3 + $0xe00] sm:$0xff]
    %v2677 = vld [vmem:[#allocation3 + $0xe08] sm:$0xff]
    %v2678 = vld [vmem:[#allocation3 + $0xe10] sm:$0xff]
    %v2679 = vld [vmem:[#allocation3 + $0xe18] sm:$0xff]
    %v2680 = vld [vmem:[#allocation3 + $0xe20] sm:$0xff]
    %v2681 = vld [vmem:[#allocation3 + $0xe28] sm:$0xff]
    %v2682 = vld [vmem:[#allocation3 + $0xe30] sm:$0xff]
    %v2683 = vld [vmem:[#allocation3 + $0xe38] sm:$0xff]
    %v2684 = vld [vmem:[#allocation3 + $0xe40] sm:$0xff]
    %v2685 = vld [vmem:[#allocation3 + $0xe48] sm:$0xff]
    %v2686 = vld [vmem:[#allocation3 + $0xe50] sm:$0xff]
    %v2687 = vld [vmem:[#allocation3 + $0xe58] sm:$0xff]
    %v2688 = vld [vmem:[#allocation3 + $0xe60] sm:$0xff]
    %v2689 = vld [vmem:[#allocation3 + $0xe68] sm:$0xff]
    %v2690 = vld [vmem:[#allocation3 + $0xe70] sm:$0xff]
    %v2691 = vld [vmem:[#allocation3 + $0xe78] sm:$0xff]
    %v2692 = vld [vmem:[#allocation3 + $0xe80] sm:$0xff]
    %v2693 = vld [vmem:[#allocation3 + $0xe88] sm:$0xff]
    %v2694 = vld [vmem:[#allocation3 + $0xe90] sm:$0xff]
    %v2695 = vld [vmem:[#allocation3 + $0xe98] sm:$0xff]
    %v2696 = vld [vmem:[#allocation3 + $0xea0] sm:$0xff]
    %v2697 = vld [vmem:[#allocation3 + $0xea8] sm:$0xff]
    %v2698 = vld [vmem:[#allocation3 + $0xeb0] sm:$0xff]
    %v2699 = vld [vmem:[#allocation3 + $0xeb8] sm:$0xff]
    %v2700 = vld [vmem:[#allocation3 + $0xec0] sm:$0xff]
    %v2701 = vld [vmem:[#allocation3 + $0xec8] sm:$0xff]
    %v2702 = vld [vmem:[#allocation3 + $0xed0] sm:$0xff]
    %v2703 = vld [vmem:[#allocation3 + $0xed8] sm:$0xff]
    %v2704 = vld [vmem:[#allocation3 + $0xee0] sm:$0xff]
    %v2705 = vld [vmem:[#allocation3 + $0xee8] sm:$0xff]
    %v2706 = vld [vmem:[#allocation3 + $0xef0] sm:$0xff]
    %v2707 = vld [vmem:[#allocation3 + $0xef8] sm:$0xff]
    %v2708 = vld [vmem:[#allocation3 + $0xf00] sm:$0xff]
    %v2709 = vld [vmem:[#allocation3 + $0xf08] sm:$0xff]
    %v2710 = vld [vmem:[#allocation3 + $0xf10] sm:$0xff]
    %v2711 = vld [vmem:[#allocation3 + $0xf18] sm:$0xff]
    %v2712 = vld [vmem:[#allocation3 + $0xf20] sm:$0xff]
    %v2713 = vld [vmem:[#allocation3 + $0xf28] sm:$0xff]
    %v2714 = vld [vmem:[#allocation3 + $0xf30] sm:$0xff]
    %v2715 = vld [vmem:[#allocation3 + $0xf38] sm:$0xff]
    %v2716 = vld [vmem:[#allocation3 + $0xf40] sm:$0xff]
    %v2717 = vld [vmem:[#allocation3 + $0xf48] sm:$0xff]
    %v2718 = vld [vmem:[#allocation3 + $0xf50] sm:$0xff]
    %v2719 = vld [vmem:[#allocation3 + $0xf58] sm:$0xff]
    %v2720 = vld [vmem:[#allocation3 + $0xf60] sm:$0xff]
    %v2721 = vld [vmem:[#allocation3 + $0xf68] sm:$0xff]
    %v2722 = vld [vmem:[#allocation3 + $0xf70] sm:$0xff]
    %v2723 = vld [vmem:[#allocation3 + $0xf78] sm:$0xff]
    %v2724 = vld [vmem:[#allocation3 + $0xf80] sm:$0xff]
    %v2725 = vld [vmem:[#allocation3 + $0xf88] sm:$0xff]
    %v2726 = vld [vmem:[#allocation3 + $0xf90] sm:$0xff]
    %v2727 = vld [vmem:[#allocation3 + $0xf98] sm:$0xff]
    %v2728 = vld [vmem:[#allocation3 + $0xfa0] sm:$0xff]
    %v2729 = vld [vmem:[#allocation3 + $0xfa8] sm:$0xff]
    %v2730 = vld [vmem:[#allocation3 + $0xfb0] sm:$0xff]
    %v2731 = vld [vmem:[#allocation3 + $0xfb8] sm:$0xff]
    %v2732 = vld [vmem:[#allocation3 + $0xfc0] sm:$0xff]
    %v2733 = vld [vmem:[#allocation3 + $0xfc8] sm:$0xff]
    %v2734 = vld [vmem:[#allocation3 + $0xfd0] sm:$0xff]
    %v2735 = vld [vmem:[#allocation3 + $0xfd8] sm:$0xff]
    %v2736 = vld [vmem:[#allocation3 + $0xfe0] sm:$0xff]
    %v2737 = vld [vmem:[#allocation3 + $0xfe8] sm:$0xff]
    %v2738 = vld [vmem:[#allocation3 + $0xff0] sm:$0xff]
    %v2739 = vld [vmem:[#allocation3 + $0xff8] sm:$0xff]
    %v2740 = vunpack.c.l.s8.bf16 %v2228
    %v2741 = vunpack.c.l.s8.bf16 %v2229
    %v2742 = vunpack.c.l.s8.bf16 %v2230
    %v2743 = vunpack.c.l.s8.bf16 %v2231
    %v2744 = vunpack.c.l.s8.bf16 %v2232
    %v2745 = vunpack.c.l.s8.bf16 %v2233
    %v2746 = vunpack.c.l.s8.bf16 %v2234
    %v2747 = vunpack.c.l.s8.bf16 %v2235
    %v2748 = vunpack.c.h.s8.bf16 %v2228
    %v2749 = vunpack.c.h.s8.bf16 %v2229
    %v2750 = vunpack.c.h.s8.bf16 %v2230
    %v2751 = vunpack.c.h.s8.bf16 %v2231
    %v2752 = vunpack.c.h.s8.bf16 %v2232
    %v2753 = vunpack.c.h.s8.bf16 %v2233
    %v2754 = vunpack.c.h.s8.bf16 %v2234
    %v2755 = vunpack.c.h.s8.bf16 %v2235
    %v2756 = vunpack.c.l.s8.bf16 %v2236
    %v2757 = vunpack.c.l.s8.bf16 %v2237
    %v2758 = vunpack.c.l.s8.bf16 %v2238
    %v2759 = vunpack.c.l.s8.bf16 %v2239
    %v2760 = vunpack.c.l.s8.bf16 %v2240
    %v2761 = vunpack.c.l.s8.bf16 %v2241
    %v2762 = vunpack.c.l.s8.bf16 %v2242
    %v2763 = vunpack.c.l.s8.bf16 %v2243
    %v2764 = vunpack.c.h.s8.bf16 %v2236
    %v2765 = vunpack.c.h.s8.bf16 %v2237
    %v2766 = vunpack.c.h.s8.bf16 %v2238
    %v2767 = vunpack.c.h.s8.bf16 %v2239
    %v2768 = vunpack.c.h.s8.bf16 %v2240
    %v2769 = vunpack.c.h.s8.bf16 %v2241
    %v2770 = vunpack.c.h.s8.bf16 %v2242
    %v2771 = vunpack.c.h.s8.bf16 %v2243
    %v2772 = vunpack.c.l.s8.bf16 %v2244
    %v2773 = vunpack.c.l.s8.bf16 %v2245
    %v2774 = vunpack.c.l.s8.bf16 %v2246
    %v2775 = vunpack.c.l.s8.bf16 %v2247
    %v2776 = vunpack.c.l.s8.bf16 %v2248
    %v2777 = vunpack.c.l.s8.bf16 %v2249
    %v2778 = vunpack.c.l.s8.bf16 %v2250
    %v2779 = vunpack.c.l.s8.bf16 %v2251
    %v2780 = vunpack.c.h.s8.bf16 %v2244
    %v2781 = vunpack.c.h.s8.bf16 %v2245
    %v2782 = vunpack.c.h.s8.bf16 %v2246
    %v2783 = vunpack.c.h.s8.bf16 %v2247
    %v2784 = vunpack.c.h.s8.bf16 %v2248
    %v2785 = vunpack.c.h.s8.bf16 %v2249
    %v2786 = vunpack.c.h.s8.bf16 %v2250
    %v2787 = vunpack.c.h.s8.bf16 %v2251
    %v2788 = vunpack.c.l.s8.bf16 %v2252
    %v2789 = vunpack.c.l.s8.bf16 %v2253
    %v2790 = vunpack.c.l.s8.bf16 %v2254
    %v2791 = vunpack.c.l.s8.bf16 %v2255
    %v2792 = vunpack.c.l.s8.bf16 %v2256
    %v2793 = vunpack.c.l.s8.bf16 %v2257
    %v2794 = vunpack.c.l.s8.bf16 %v2258
    %v2795 = vunpack.c.l.s8.bf16 %v2259
    %v2796 = vunpack.c.h.s8.bf16 %v2252
    %v2797 = vunpack.c.h.s8.bf16 %v2253
    %v2798 = vunpack.c.h.s8.bf16 %v2254
    %v2799 = vunpack.c.h.s8.bf16 %v2255
    %v2800 = vunpack.c.h.s8.bf16 %v2256
    %v2801 = vunpack.c.h.s8.bf16 %v2257
    %v2802 = vunpack.c.h.s8.bf16 %v2258
    %v2803 = vunpack.c.h.s8.bf16 %v2259
    %v2804 = vunpack.c.l.s8.bf16 %v2260
    %v2805 = vunpack.c.l.s8.bf16 %v2261
    %v2806 = vunpack.c.l.s8.bf16 %v2262
    %v2807 = vunpack.c.l.s8.bf16 %v2263
    %v2808 = vunpack.c.l.s8.bf16 %v2264
    %v2809 = vunpack.c.l.s8.bf16 %v2265
    %v2810 = vunpack.c.l.s8.bf16 %v2266
    %v2811 = vunpack.c.l.s8.bf16 %v2267
    %v2812 = vunpack.c.h.s8.bf16 %v2260
    %v2813 = vunpack.c.h.s8.bf16 %v2261
    %v2814 = vunpack.c.h.s8.bf16 %v2262
    %v2815 = vunpack.c.h.s8.bf16 %v2263
    %v2816 = vunpack.c.h.s8.bf16 %v2264
    %v2817 = vunpack.c.h.s8.bf16 %v2265
    %v2818 = vunpack.c.h.s8.bf16 %v2266
    %v2819 = vunpack.c.h.s8.bf16 %v2267
    %v2820 = vunpack.c.l.s8.bf16 %v2268
    %v2821 = vunpack.c.l.s8.bf16 %v2269
    %v2822 = vunpack.c.l.s8.bf16 %v2270
    %v2823 = vunpack.c.l.s8.bf16 %v2271
    %v2824 = vunpack.c.l.s8.bf16 %v2272
    %v2825 = vunpack.c.l.s8.bf16 %v2273
    %v2826 = vunpack.c.l.s8.bf16 %v2274
    %v2827 = vunpack.c.l.s8.bf16 %v2275
    %v2828 = vunpack.c.h.s8.bf16 %v2268
    %v2829 = vunpack.c.h.s8.bf16 %v2269
    %v2830 = vunpack.c.h.s8.bf16 %v2270
    %v2831 = vunpack.c.h.s8.bf16 %v2271
    %v2832 = vunpack.c.h.s8.bf16 %v2272
    %v2833 = vunpack.c.h.s8.bf16 %v2273
    %v2834 = vunpack.c.h.s8.bf16 %v2274
    %v2835 = vunpack.c.h.s8.bf16 %v2275
    %v2836 = vunpack.c.l.s8.bf16 %v2276
    %v2837 = vunpack.c.l.s8.bf16 %v2277
    %v2838 = vunpack.c.l.s8.bf16 %v2278
    %v2839 = vunpack.c.l.s8.bf16 %v2279
    %v2840 = vunpack.c.l.s8.bf16 %v2280
    %v2841 = vunpack.c.l.s8.bf16 %v2281
    %v2842 = vunpack.c.l.s8.bf16 %v2282
    %v2843 = vunpack.c.l.s8.bf16 %v2283
    %v2844 = vunpack.c.h.s8.bf16 %v2276
    %v2845 = vunpack.c.h.s8.bf16 %v2277
    %v2846 = vunpack.c.h.s8.bf16 %v2278
    %v2847 = vunpack.c.h.s8.bf16 %v2279
    %v2848 = vunpack.c.h.s8.bf16 %v2280
    %v2849 = vunpack.c.h.s8.bf16 %v2281
    %v2850 = vunpack.c.h.s8.bf16 %v2282
    %v2851 = vunpack.c.h.s8.bf16 %v2283
    %v2852 = vunpack.c.l.s8.bf16 %v2284
    %v2853 = vunpack.c.l.s8.bf16 %v2285
    %v2854 = vunpack.c.l.s8.bf16 %v2286
    %v2855 = vunpack.c.l.s8.bf16 %v2287
    %v2856 = vunpack.c.l.s8.bf16 %v2288
    %v2857 = vunpack.c.l.s8.bf16 %v2289
    %v2858 = vunpack.c.l.s8.bf16 %v2290
    %v2859 = vunpack.c.l.s8.bf16 %v2291
    %v2860 = vunpack.c.h.s8.bf16 %v2284
    %v2861 = vunpack.c.h.s8.bf16 %v2285
    %v2862 = vunpack.c.h.s8.bf16 %v2286
    %v2863 = vunpack.c.h.s8.bf16 %v2287
    %v2864 = vunpack.c.h.s8.bf16 %v2288
    %v2865 = vunpack.c.h.s8.bf16 %v2289
    %v2866 = vunpack.c.h.s8.bf16 %v2290
    %v2867 = vunpack.c.h.s8.bf16 %v2291
    %v2868 = vunpack.c.l.s8.bf16 %v2292
    %v2869 = vunpack.c.l.s8.bf16 %v2293
    %v2870 = vunpack.c.l.s8.bf16 %v2294
    %v2871 = vunpack.c.l.s8.bf16 %v2295
    %v2872 = vunpack.c.l.s8.bf16 %v2296
    %v2873 = vunpack.c.l.s8.bf16 %v2297
    %v2874 = vunpack.c.l.s8.bf16 %v2298
    %v2875 = vunpack.c.l.s8.bf16 %v2299
    %v2876 = vunpack.c.h.s8.bf16 %v2292
    %v2877 = vunpack.c.h.s8.bf16 %v2293
    %v2878 = vunpack.c.h.s8.bf16 %v2294
    %v2879 = vunpack.c.h.s8.bf16 %v2295
    %v2880 = vunpack.c.h.s8.bf16 %v2296
    %v2881 = vunpack.c.h.s8.bf16 %v2297
    %v2882 = vunpack.c.h.s8.bf16 %v2298
    %v2883 = vunpack.c.h.s8.bf16 %v2299
    %v2884 = vunpack.c.l.s8.bf16 %v2300
    %v2885 = vunpack.c.l.s8.bf16 %v2301
    %v2886 = vunpack.c.l.s8.bf16 %v2302
    %v2887 = vunpack.c.l.s8.bf16 %v2303
    %v2888 = vunpack.c.l.s8.bf16 %v2304
    %v2889 = vunpack.c.l.s8.bf16 %v2305
    %v2890 = vunpack.c.l.s8.bf16 %v2306
    %v2891 = vunpack.c.l.s8.bf16 %v2307
    %v2892 = vunpack.c.h.s8.bf16 %v2300
    %v2893 = vunpack.c.h.s8.bf16 %v2301
    %v2894 = vunpack.c.h.s8.bf16 %v2302
    %v2895 = vunpack.c.h.s8.bf16 %v2303
    %v2896 = vunpack.c.h.s8.bf16 %v2304
    %v2897 = vunpack.c.h.s8.bf16 %v2305
    %v2898 = vunpack.c.h.s8.bf16 %v2306
    %v2899 = vunpack.c.h.s8.bf16 %v2307
    %v2900 = vunpack.c.l.s8.bf16 %v2308
    %v2901 = vunpack.c.l.s8.bf16 %v2309
    %v2902 = vunpack.c.l.s8.bf16 %v2310
    %v2903 = vunpack.c.l.s8.bf16 %v2311
    %v2904 = vunpack.c.l.s8.bf16 %v2312
    %v2905 = vunpack.c.l.s8.bf16 %v2313
    %v2906 = vunpack.c.l.s8.bf16 %v2314
    %v2907 = vunpack.c.l.s8.bf16 %v2315
    %v2908 = vunpack.c.h.s8.bf16 %v2308
    %v2909 = vunpack.c.h.s8.bf16 %v2309
    %v2910 = vunpack.c.h.s8.bf16 %v2310
    %v2911 = vunpack.c.h.s8.bf16 %v2311
    %v2912 = vunpack.c.h.s8.bf16 %v2312
    %v2913 = vunpack.c.h.s8.bf16 %v2313
    %v2914 = vunpack.c.h.s8.bf16 %v2314
    %v2915 = vunpack.c.h.s8.bf16 %v2315
    %v2916 = vunpack.c.l.s8.bf16 %v2316
    %v2917 = vunpack.c.l.s8.bf16 %v2317
    %v2918 = vunpack.c.l.s8.bf16 %v2318
    %v2919 = vunpack.c.l.s8.bf16 %v2319
    %v2920 = vunpack.c.l.s8.bf16 %v2320
    %v2921 = vunpack.c.l.s8.bf16 %v2321
    %v2922 = vunpack.c.l.s8.bf16 %v2322
    %v2923 = vunpack.c.l.s8.bf16 %v2323
    %v2924 = vunpack.c.h.s8.bf16 %v2316
    %v2925 = vunpack.c.h.s8.bf16 %v2317
    %v2926 = vunpack.c.h.s8.bf16 %v2318
    %v2927 = vunpack.c.h.s8.bf16 %v2319
    %v2928 = vunpack.c.h.s8.bf16 %v2320
    %v2929 = vunpack.c.h.s8.bf16 %v2321
    %v2930 = vunpack.c.h.s8.bf16 %v2322
    %v2931 = vunpack.c.h.s8.bf16 %v2323
    %v2932 = vunpack.c.l.s8.bf16 %v2324
    %v2933 = vunpack.c.l.s8.bf16 %v2325
    %v2934 = vunpack.c.l.s8.bf16 %v2326
    %v2935 = vunpack.c.l.s8.bf16 %v2327
    %v2936 = vunpack.c.l.s8.bf16 %v2328
    %v2937 = vunpack.c.l.s8.bf16 %v2329
    %v2938 = vunpack.c.l.s8.bf16 %v2330
    %v2939 = vunpack.c.l.s8.bf16 %v2331
    %v2940 = vunpack.c.h.s8.bf16 %v2324
    %v2941 = vunpack.c.h.s8.bf16 %v2325
    %v2942 = vunpack.c.h.s8.bf16 %v2326
    %v2943 = vunpack.c.h.s8.bf16 %v2327
    %v2944 = vunpack.c.h.s8.bf16 %v2328
    %v2945 = vunpack.c.h.s8.bf16 %v2329
    %v2946 = vunpack.c.h.s8.bf16 %v2330
    %v2947 = vunpack.c.h.s8.bf16 %v2331
    %v2948 = vunpack.c.l.s8.bf16 %v2332
    %v2949 = vunpack.c.l.s8.bf16 %v2333
    %v2950 = vunpack.c.l.s8.bf16 %v2334
    %v2951 = vunpack.c.l.s8.bf16 %v2335
    %v2952 = vunpack.c.l.s8.bf16 %v2336
    %v2953 = vunpack.c.l.s8.bf16 %v2337
    %v2954 = vunpack.c.l.s8.bf16 %v2338
    %v2955 = vunpack.c.l.s8.bf16 %v2339
    %v2956 = vunpack.c.h.s8.bf16 %v2332
    %v2957 = vunpack.c.h.s8.bf16 %v2333
    %v2958 = vunpack.c.h.s8.bf16 %v2334
    %v2959 = vunpack.c.h.s8.bf16 %v2335
    %v2960 = vunpack.c.h.s8.bf16 %v2336
    %v2961 = vunpack.c.h.s8.bf16 %v2337
    %v2962 = vunpack.c.h.s8.bf16 %v2338
    %v2963 = vunpack.c.h.s8.bf16 %v2339
    %v2964 = vunpack.c.l.s8.bf16 %v2340
    %v2965 = vunpack.c.l.s8.bf16 %v2341
    %v2966 = vunpack.c.l.s8.bf16 %v2342
    %v2967 = vunpack.c.l.s8.bf16 %v2343
    %v2968 = vunpack.c.l.s8.bf16 %v2344
    %v2969 = vunpack.c.l.s8.bf16 %v2345
    %v2970 = vunpack.c.l.s8.bf16 %v2346
    %v2971 = vunpack.c.l.s8.bf16 %v2347
    %v2972 = vunpack.c.h.s8.bf16 %v2340
    %v2973 = vunpack.c.h.s8.bf16 %v2341
    %v2974 = vunpack.c.h.s8.bf16 %v2342
    %v2975 = vunpack.c.h.s8.bf16 %v2343
    %v2976 = vunpack.c.h.s8.bf16 %v2344
    %v2977 = vunpack.c.h.s8.bf16 %v2345
    %v2978 = vunpack.c.h.s8.bf16 %v2346
    %v2979 = vunpack.c.h.s8.bf16 %v2347
    %v2980 = vunpack.c.l.s8.bf16 %v2348
    %v2981 = vunpack.c.l.s8.bf16 %v2349
    %v2982 = vunpack.c.l.s8.bf16 %v2350
    %v2983 = vunpack.c.l.s8.bf16 %v2351
    %v2984 = vunpack.c.l.s8.bf16 %v2352
    %v2985 = vunpack.c.l.s8.bf16 %v2353
    %v2986 = vunpack.c.l.s8.bf16 %v2354
    %v2987 = vunpack.c.l.s8.bf16 %v2355
    %v2988 = vunpack.c.h.s8.bf16 %v2348
    %v2989 = vunpack.c.h.s8.bf16 %v2349
    %v2990 = vunpack.c.h.s8.bf16 %v2350
    %v2991 = vunpack.c.h.s8.bf16 %v2351
    %v2992 = vunpack.c.h.s8.bf16 %v2352
    %v2993 = vunpack.c.h.s8.bf16 %v2353
    %v2994 = vunpack.c.h.s8.bf16 %v2354
    %v2995 = vunpack.c.h.s8.bf16 %v2355
    %v2996 = vunpack.c.l.s8.bf16 %v2356
    %v2997 = vunpack.c.l.s8.bf16 %v2357
    %v2998 = vunpack.c.l.s8.bf16 %v2358
    %v2999 = vunpack.c.l.s8.bf16 %v2359
    %v3000 = vunpack.c.l.s8.bf16 %v2360
    %v3001 = vunpack.c.l.s8.bf16 %v2361
    %v3002 = vunpack.c.l.s8.bf16 %v2362
    %v3003 = vunpack.c.l.s8.bf16 %v2363
    %v3004 = vunpack.c.h.s8.bf16 %v2356
    %v3005 = vunpack.c.h.s8.bf16 %v2357
    %v3006 = vunpack.c.h.s8.bf16 %v2358
    %v3007 = vunpack.c.h.s8.bf16 %v2359
    %v3008 = vunpack.c.h.s8.bf16 %v2360
    %v3009 = vunpack.c.h.s8.bf16 %v2361
    %v3010 = vunpack.c.h.s8.bf16 %v2362
    %v3011 = vunpack.c.h.s8.bf16 %v2363
    %v3012 = vunpack.c.l.s8.bf16 %v2364
    %v3013 = vunpack.c.l.s8.bf16 %v2365
    %v3014 = vunpack.c.l.s8.bf16 %v2366
    %v3015 = vunpack.c.l.s8.bf16 %v2367
    %v3016 = vunpack.c.l.s8.bf16 %v2368
    %v3017 = vunpack.c.l.s8.bf16 %v2369
    %v3018 = vunpack.c.l.s8.bf16 %v2370
    %v3019 = vunpack.c.l.s8.bf16 %v2371
    %v3020 = vunpack.c.h.s8.bf16 %v2364
    %v3021 = vunpack.c.h.s8.bf16 %v2365
    %v3022 = vunpack.c.h.s8.bf16 %v2366
    %v3023 = vunpack.c.h.s8.bf16 %v2367
    %v3024 = vunpack.c.h.s8.bf16 %v2368
    %v3025 = vunpack.c.h.s8.bf16 %v2369
    %v3026 = vunpack.c.h.s8.bf16 %v2370
    %v3027 = vunpack.c.h.s8.bf16 %v2371
    %v3028 = vunpack.c.l.s8.bf16 %v2372
    %v3029 = vunpack.c.l.s8.bf16 %v2373
    %v3030 = vunpack.c.l.s8.bf16 %v2374
    %v3031 = vunpack.c.l.s8.bf16 %v2375
    %v3032 = vunpack.c.l.s8.bf16 %v2376
    %v3033 = vunpack.c.l.s8.bf16 %v2377
    %v3034 = vunpack.c.l.s8.bf16 %v2378
    %v3035 = vunpack.c.l.s8.bf16 %v2379
    %v3036 = vunpack.c.h.s8.bf16 %v2372
    %v3037 = vunpack.c.h.s8.bf16 %v2373
    %v3038 = vunpack.c.h.s8.bf16 %v2374
    %v3039 = vunpack.c.h.s8.bf16 %v2375
    %v3040 = vunpack.c.h.s8.bf16 %v2376
    %v3041 = vunpack.c.h.s8.bf16 %v2377
    %v3042 = vunpack.c.h.s8.bf16 %v2378
    %v3043 = vunpack.c.h.s8.bf16 %v2379
    %v3044 = vunpack.c.l.s8.bf16 %v2380
    %v3045 = vunpack.c.l.s8.bf16 %v2381
    %v3046 = vunpack.c.l.s8.bf16 %v2382
    %v3047 = vunpack.c.l.s8.bf16 %v2383
    %v3048 = vunpack.c.l.s8.bf16 %v2384
    %v3049 = vunpack.c.l.s8.bf16 %v2385
    %v3050 = vunpack.c.l.s8.bf16 %v2386
    %v3051 = vunpack.c.l.s8.bf16 %v2387
    %v3052 = vunpack.c.h.s8.bf16 %v2380
    %v3053 = vunpack.c.h.s8.bf16 %v2381
    %v3054 = vunpack.c.h.s8.bf16 %v2382
    %v3055 = vunpack.c.h.s8.bf16 %v2383
    %v3056 = vunpack.c.h.s8.bf16 %v2384
    %v3057 = vunpack.c.h.s8.bf16 %v2385
    %v3058 = vunpack.c.h.s8.bf16 %v2386
    %v3059 = vunpack.c.h.s8.bf16 %v2387
    %v3060 = vunpack.c.l.s8.bf16 %v2388
    %v3061 = vunpack.c.l.s8.bf16 %v2389
    %v3062 = vunpack.c.l.s8.bf16 %v2390
    %v3063 = vunpack.c.l.s8.bf16 %v2391
    %v3064 = vunpack.c.l.s8.bf16 %v2392
    %v3065 = vunpack.c.l.s8.bf16 %v2393
    %v3066 = vunpack.c.l.s8.bf16 %v2394
    %v3067 = vunpack.c.l.s8.bf16 %v2395
    %v3068 = vunpack.c.h.s8.bf16 %v2388
    %v3069 = vunpack.c.h.s8.bf16 %v2389
    %v3070 = vunpack.c.h.s8.bf16 %v2390
    %v3071 = vunpack.c.h.s8.bf16 %v2391
    %v3072 = vunpack.c.h.s8.bf16 %v2392
    %v3073 = vunpack.c.h.s8.bf16 %v2393
    %v3074 = vunpack.c.h.s8.bf16 %v2394
    %v3075 = vunpack.c.h.s8.bf16 %v2395
    %v3076 = vunpack.c.l.s8.bf16 %v2396
    %v3077 = vunpack.c.l.s8.bf16 %v2397
    %v3078 = vunpack.c.l.s8.bf16 %v2398
    %v3079 = vunpack.c.l.s8.bf16 %v2399
    %v3080 = vunpack.c.l.s8.bf16 %v2400
    %v3081 = vunpack.c.l.s8.bf16 %v2401
    %v3082 = vunpack.c.l.s8.bf16 %v2402
    %v3083 = vunpack.c.l.s8.bf16 %v2403
    %v3084 = vunpack.c.h.s8.bf16 %v2396
    %v3085 = vunpack.c.h.s8.bf16 %v2397
    %v3086 = vunpack.c.h.s8.bf16 %v2398
    %v3087 = vunpack.c.h.s8.bf16 %v2399
    %v3088 = vunpack.c.h.s8.bf16 %v2400
    %v3089 = vunpack.c.h.s8.bf16 %v2401
    %v3090 = vunpack.c.h.s8.bf16 %v2402
    %v3091 = vunpack.c.h.s8.bf16 %v2403
    %v3092 = vunpack.c.l.s8.bf16 %v2404
    %v3093 = vunpack.c.l.s8.bf16 %v2405
    %v3094 = vunpack.c.l.s8.bf16 %v2406
    %v3095 = vunpack.c.l.s8.bf16 %v2407
    %v3096 = vunpack.c.l.s8.bf16 %v2408
    %v3097 = vunpack.c.l.s8.bf16 %v2409
    %v3098 = vunpack.c.l.s8.bf16 %v2410
    %v3099 = vunpack.c.l.s8.bf16 %v2411
    %v3100 = vunpack.c.h.s8.bf16 %v2404
    %v3101 = vunpack.c.h.s8.bf16 %v2405
    %v3102 = vunpack.c.h.s8.bf16 %v2406
    %v3103 = vunpack.c.h.s8.bf16 %v2407
    %v3104 = vunpack.c.h.s8.bf16 %v2408
    %v3105 = vunpack.c.h.s8.bf16 %v2409
    %v3106 = vunpack.c.h.s8.bf16 %v2410
    %v3107 = vunpack.c.h.s8.bf16 %v2411
    %v3108 = vunpack.c.l.s8.bf16 %v2412
    %v3109 = vunpack.c.l.s8.bf16 %v2413
    %v3110 = vunpack.c.l.s8.bf16 %v2414
    %v3111 = vunpack.c.l.s8.bf16 %v2415
    %v3112 = vunpack.c.l.s8.bf16 %v2416
    %v3113 = vunpack.c.l.s8.bf16 %v2417
    %v3114 = vunpack.c.l.s8.bf16 %v2418
    %v3115 = vunpack.c.l.s8.bf16 %v2419
    %v3116 = vunpack.c.h.s8.bf16 %v2412
    %v3117 = vunpack.c.h.s8.bf16 %v2413
    %v3118 = vunpack.c.h.s8.bf16 %v2414
    %v3119 = vunpack.c.h.s8.bf16 %v2415
    %v3120 = vunpack.c.h.s8.bf16 %v2416
    %v3121 = vunpack.c.h.s8.bf16 %v2417
    %v3122 = vunpack.c.h.s8.bf16 %v2418
    %v3123 = vunpack.c.h.s8.bf16 %v2419
    %v3124 = vunpack.c.l.s8.bf16 %v2420
    %v3125 = vunpack.c.l.s8.bf16 %v2421
    %v3126 = vunpack.c.l.s8.bf16 %v2422
    %v3127 = vunpack.c.l.s8.bf16 %v2423
    %v3128 = vunpack.c.l.s8.bf16 %v2424
    %v3129 = vunpack.c.l.s8.bf16 %v2425
    %v3130 = vunpack.c.l.s8.bf16 %v2426
    %v3131 = vunpack.c.l.s8.bf16 %v2427
    %v3132 = vunpack.c.h.s8.bf16 %v2420
    %v3133 = vunpack.c.h.s8.bf16 %v2421
    %v3134 = vunpack.c.h.s8.bf16 %v2422
    %v3135 = vunpack.c.h.s8.bf16 %v2423
    %v3136 = vunpack.c.h.s8.bf16 %v2424
    %v3137 = vunpack.c.h.s8.bf16 %v2425
    %v3138 = vunpack.c.h.s8.bf16 %v2426
    %v3139 = vunpack.c.h.s8.bf16 %v2427
    %v3140 = vunpack.c.l.s8.bf16 %v2428
    %v3141 = vunpack.c.l.s8.bf16 %v2429
    %v3142 = vunpack.c.l.s8.bf16 %v2430
    %v3143 = vunpack.c.l.s8.bf16 %v2431
    %v3144 = vunpack.c.l.s8.bf16 %v2432
    %v3145 = vunpack.c.l.s8.bf16 %v2433
    %v3146 = vunpack.c.l.s8.bf16 %v2434
    %v3147 = vunpack.c.l.s8.bf16 %v2435
    %v3148 = vunpack.c.h.s8.bf16 %v2428
    %v3149 = vunpack.c.h.s8.bf16 %v2429
    %v3150 = vunpack.c.h.s8.bf16 %v2430
    %v3151 = vunpack.c.h.s8.bf16 %v2431
    %v3152 = vunpack.c.h.s8.bf16 %v2432
    %v3153 = vunpack.c.h.s8.bf16 %v2433
    %v3154 = vunpack.c.h.s8.bf16 %v2434
    %v3155 = vunpack.c.h.s8.bf16 %v2435
    %v3156 = vunpack.c.l.s8.bf16 %v2436
    %v3157 = vunpack.c.l.s8.bf16 %v2437
    %v3158 = vunpack.c.l.s8.bf16 %v2438
    %v3159 = vunpack.c.l.s8.bf16 %v2439
    %v3160 = vunpack.c.l.s8.bf16 %v2440
    %v3161 = vunpack.c.l.s8.bf16 %v2441
    %v3162 = vunpack.c.l.s8.bf16 %v2442
    %v3163 = vunpack.c.l.s8.bf16 %v2443
    %v3164 = vunpack.c.h.s8.bf16 %v2436
    %v3165 = vunpack.c.h.s8.bf16 %v2437
    %v3166 = vunpack.c.h.s8.bf16 %v2438
    %v3167 = vunpack.c.h.s8.bf16 %v2439
    %v3168 = vunpack.c.h.s8.bf16 %v2440
    %v3169 = vunpack.c.h.s8.bf16 %v2441
    %v3170 = vunpack.c.h.s8.bf16 %v2442
    %v3171 = vunpack.c.h.s8.bf16 %v2443
    %v3172 = vunpack.c.l.s8.bf16 %v2444
    %v3173 = vunpack.c.l.s8.bf16 %v2445
    %v3174 = vunpack.c.l.s8.bf16 %v2446
    %v3175 = vunpack.c.l.s8.bf16 %v2447
    %v3176 = vunpack.c.l.s8.bf16 %v2448
    %v3177 = vunpack.c.l.s8.bf16 %v2449
    %v3178 = vunpack.c.l.s8.bf16 %v2450
    %v3179 = vunpack.c.l.s8.bf16 %v2451
    %v3180 = vunpack.c.h.s8.bf16 %v2444
    %v3181 = vunpack.c.h.s8.bf16 %v2445
    %v3182 = vunpack.c.h.s8.bf16 %v2446
    %v3183 = vunpack.c.h.s8.bf16 %v2447
    %v3184 = vunpack.c.h.s8.bf16 %v2448
    %v3185 = vunpack.c.h.s8.bf16 %v2449
    %v3186 = vunpack.c.h.s8.bf16 %v2450
    %v3187 = vunpack.c.h.s8.bf16 %v2451
    %v3188 = vunpack.c.l.s8.bf16 %v2452
    %v3189 = vunpack.c.l.s8.bf16 %v2453
    %v3190 = vunpack.c.l.s8.bf16 %v2454
    %v3191 = vunpack.c.l.s8.bf16 %v2455
    %v3192 = vunpack.c.l.s8.bf16 %v2456
    %v3193 = vunpack.c.l.s8.bf16 %v2457
    %v3194 = vunpack.c.l.s8.bf16 %v2458
    %v3195 = vunpack.c.l.s8.bf16 %v2459
    %v3196 = vunpack.c.h.s8.bf16 %v2452
    %v3197 = vunpack.c.h.s8.bf16 %v2453
    %v3198 = vunpack.c.h.s8.bf16 %v2454
    %v3199 = vunpack.c.h.s8.bf16 %v2455
    %v3200 = vunpack.c.h.s8.bf16 %v2456
    %v3201 = vunpack.c.h.s8.bf16 %v2457
    %v3202 = vunpack.c.h.s8.bf16 %v2458
    %v3203 = vunpack.c.h.s8.bf16 %v2459
    %v3204 = vunpack.c.l.s8.bf16 %v2460
    %v3205 = vunpack.c.l.s8.bf16 %v2461
    %v3206 = vunpack.c.l.s8.bf16 %v2462
    %v3207 = vunpack.c.l.s8.bf16 %v2463
    %v3208 = vunpack.c.l.s8.bf16 %v2464
    %v3209 = vunpack.c.l.s8.bf16 %v2465
    %v3210 = vunpack.c.l.s8.bf16 %v2466
    %v3211 = vunpack.c.l.s8.bf16 %v2467
    %v3212 = vunpack.c.h.s8.bf16 %v2460
    %v3213 = vunpack.c.h.s8.bf16 %v2461
    %v3214 = vunpack.c.h.s8.bf16 %v2462
    %v3215 = vunpack.c.h.s8.bf16 %v2463
    %v3216 = vunpack.c.h.s8.bf16 %v2464
    %v3217 = vunpack.c.h.s8.bf16 %v2465
    %v3218 = vunpack.c.h.s8.bf16 %v2466
    %v3219 = vunpack.c.h.s8.bf16 %v2467
    %v3220 = vunpack.c.l.s8.bf16 %v2468
    %v3221 = vunpack.c.l.s8.bf16 %v2469
    %v3222 = vunpack.c.l.s8.bf16 %v2470
    %v3223 = vunpack.c.l.s8.bf16 %v2471
    %v3224 = vunpack.c.l.s8.bf16 %v2472
    %v3225 = vunpack.c.l.s8.bf16 %v2473
    %v3226 = vunpack.c.l.s8.bf16 %v2474
    %v3227 = vunpack.c.l.s8.bf16 %v2475
    %v3228 = vunpack.c.h.s8.bf16 %v2468
    %v3229 = vunpack.c.h.s8.bf16 %v2469
    %v3230 = vunpack.c.h.s8.bf16 %v2470
    %v3231 = vunpack.c.h.s8.bf16 %v2471
    %v3232 = vunpack.c.h.s8.bf16 %v2472
    %v3233 = vunpack.c.h.s8.bf16 %v2473
    %v3234 = vunpack.c.h.s8.bf16 %v2474
    %v3235 = vunpack.c.h.s8.bf16 %v2475
    %v3236 = vunpack.c.l.s8.bf16 %v2476
    %v3237 = vunpack.c.l.s8.bf16 %v2477
    %v3238 = vunpack.c.l.s8.bf16 %v2478
    %v3239 = vunpack.c.l.s8.bf16 %v2479
    %v3240 = vunpack.c.l.s8.bf16 %v2480
    %v3241 = vunpack.c.l.s8.bf16 %v2481
    %v3242 = vunpack.c.l.s8.bf16 %v2482
    %v3243 = vunpack.c.l.s8.bf16 %v2483
    %v3244 = vunpack.c.h.s8.bf16 %v2476
    %v3245 = vunpack.c.h.s8.bf16 %v2477
    %v3246 = vunpack.c.h.s8.bf16 %v2478
    %v3247 = vunpack.c.h.s8.bf16 %v2479
    %v3248 = vunpack.c.h.s8.bf16 %v2480
    %v3249 = vunpack.c.h.s8.bf16 %v2481
    %v3250 = vunpack.c.h.s8.bf16 %v2482
    %v3251 = vunpack.c.h.s8.bf16 %v2483
    %v3252 = vunpack.c.l.s8.bf16 %v2484
    %v3253 = vunpack.c.l.s8.bf16 %v2485
    %v3254 = vunpack.c.l.s8.bf16 %v2486
    %v3255 = vunpack.c.l.s8.bf16 %v2487
    %v3256 = vunpack.c.l.s8.bf16 %v2488
    %v3257 = vunpack.c.l.s8.bf16 %v2489
    %v3258 = vunpack.c.l.s8.bf16 %v2490
    %v3259 = vunpack.c.l.s8.bf16 %v2491
    %v3260 = vunpack.c.h.s8.bf16 %v2484
    %v3261 = vunpack.c.h.s8.bf16 %v2485
    %v3262 = vunpack.c.h.s8.bf16 %v2486
    %v3263 = vunpack.c.h.s8.bf16 %v2487
    %v3264 = vunpack.c.h.s8.bf16 %v2488
    %v3265 = vunpack.c.h.s8.bf16 %v2489
    %v3266 = vunpack.c.h.s8.bf16 %v2490
    %v3267 = vunpack.c.h.s8.bf16 %v2491
    %v3268 = vunpack.c.l.s8.bf16 %v2492
    %v3269 = vunpack.c.l.s8.bf16 %v2493
    %v3270 = vunpack.c.l.s8.bf16 %v2494
    %v3271 = vunpack.c.l.s8.bf16 %v2495
    %v3272 = vunpack.c.l.s8.bf16 %v2496
    %v3273 = vunpack.c.l.s8.bf16 %v2497
    %v3274 = vunpack.c.l.s8.bf16 %v2498
    %v3275 = vunpack.c.l.s8.bf16 %v2499
    %v3276 = vunpack.c.h.s8.bf16 %v2492
    %v3277 = vunpack.c.h.s8.bf16 %v2493
    %v3278 = vunpack.c.h.s8.bf16 %v2494
    %v3279 = vunpack.c.h.s8.bf16 %v2495
    %v3280 = vunpack.c.h.s8.bf16 %v2496
    %v3281 = vunpack.c.h.s8.bf16 %v2497
    %v3282 = vunpack.c.h.s8.bf16 %v2498
    %v3283 = vunpack.c.h.s8.bf16 %v2499
    %v3284 = vunpack.c.l.s8.bf16 %v2500
    %v3285 = vunpack.c.l.s8.bf16 %v2501
    %v3286 = vunpack.c.l.s8.bf16 %v2502
    %v3287 = vunpack.c.l.s8.bf16 %v2503
    %v3288 = vunpack.c.l.s8.bf16 %v2504
    %v3289 = vunpack.c.l.s8.bf16 %v2505
    %v3290 = vunpack.c.l.s8.bf16 %v2506
    %v3291 = vunpack.c.l.s8.bf16 %v2507
    %v3292 = vunpack.c.h.s8.bf16 %v2500
    %v3293 = vunpack.c.h.s8.bf16 %v2501
    %v3294 = vunpack.c.h.s8.bf16 %v2502
    %v3295 = vunpack.c.h.s8.bf16 %v2503
    %v3296 = vunpack.c.h.s8.bf16 %v2504
    %v3297 = vunpack.c.h.s8.bf16 %v2505
    %v3298 = vunpack.c.h.s8.bf16 %v2506
    %v3299 = vunpack.c.h.s8.bf16 %v2507
    %v3300 = vunpack.c.l.s8.bf16 %v2508
    %v3301 = vunpack.c.l.s8.bf16 %v2509
    %v3302 = vunpack.c.l.s8.bf16 %v2510
    %v3303 = vunpack.c.l.s8.bf16 %v2511
    %v3304 = vunpack.c.l.s8.bf16 %v2512
    %v3305 = vunpack.c.l.s8.bf16 %v2513
    %v3306 = vunpack.c.l.s8.bf16 %v2514
    %v3307 = vunpack.c.l.s8.bf16 %v2515
    %v3308 = vunpack.c.h.s8.bf16 %v2508
    %v3309 = vunpack.c.h.s8.bf16 %v2509
    %v3310 = vunpack.c.h.s8.bf16 %v2510
    %v3311 = vunpack.c.h.s8.bf16 %v2511
    %v3312 = vunpack.c.h.s8.bf16 %v2512
    %v3313 = vunpack.c.h.s8.bf16 %v2513
    %v3314 = vunpack.c.h.s8.bf16 %v2514
    %v3315 = vunpack.c.h.s8.bf16 %v2515
    %v3316 = vunpack.c.l.s8.bf16 %v2516
    %v3317 = vunpack.c.l.s8.bf16 %v2517
    %v3318 = vunpack.c.l.s8.bf16 %v2518
    %v3319 = vunpack.c.l.s8.bf16 %v2519
    %v3320 = vunpack.c.l.s8.bf16 %v2520
    %v3321 = vunpack.c.l.s8.bf16 %v2521
    %v3322 = vunpack.c.l.s8.bf16 %v2522
    %v3323 = vunpack.c.l.s8.bf16 %v2523
    %v3324 = vunpack.c.h.s8.bf16 %v2516
    %v3325 = vunpack.c.h.s8.bf16 %v2517
    %v3326 = vunpack.c.h.s8.bf16 %v2518
    %v3327 = vunpack.c.h.s8.bf16 %v2519
    %v3328 = vunpack.c.h.s8.bf16 %v2520
    %v3329 = vunpack.c.h.s8.bf16 %v2521
    %v3330 = vunpack.c.h.s8.bf16 %v2522
    %v3331 = vunpack.c.h.s8.bf16 %v2523
    %v3332 = vunpack.c.l.s8.bf16 %v2524
    %v3333 = vunpack.c.l.s8.bf16 %v2525
    %v3334 = vunpack.c.l.s8.bf16 %v2526
    %v3335 = vunpack.c.l.s8.bf16 %v2527
    %v3336 = vunpack.c.l.s8.bf16 %v2528
    %v3337 = vunpack.c.l.s8.bf16 %v2529
    %v3338 = vunpack.c.l.s8.bf16 %v2530
    %v3339 = vunpack.c.l.s8.bf16 %v2531
    %v3340 = vunpack.c.h.s8.bf16 %v2524
    %v3341 = vunpack.c.h.s8.bf16 %v2525
    %v3342 = vunpack.c.h.s8.bf16 %v2526
    %v3343 = vunpack.c.h.s8.bf16 %v2527
    %v3344 = vunpack.c.h.s8.bf16 %v2528
    %v3345 = vunpack.c.h.s8.bf16 %v2529
    %v3346 = vunpack.c.h.s8.bf16 %v2530
    %v3347 = vunpack.c.h.s8.bf16 %v2531
    %v3348 = vunpack.c.l.s8.bf16 %v2532
    %v3349 = vunpack.c.l.s8.bf16 %v2533
    %v3350 = vunpack.c.l.s8.bf16 %v2534
    %v3351 = vunpack.c.l.s8.bf16 %v2535
    %v3352 = vunpack.c.l.s8.bf16 %v2536
    %v3353 = vunpack.c.l.s8.bf16 %v2537
    %v3354 = vunpack.c.l.s8.bf16 %v2538
    %v3355 = vunpack.c.l.s8.bf16 %v2539
    %v3356 = vunpack.c.h.s8.bf16 %v2532
    %v3357 = vunpack.c.h.s8.bf16 %v2533
    %v3358 = vunpack.c.h.s8.bf16 %v2534
    %v3359 = vunpack.c.h.s8.bf16 %v2535
    %v3360 = vunpack.c.h.s8.bf16 %v2536
    %v3361 = vunpack.c.h.s8.bf16 %v2537
    %v3362 = vunpack.c.h.s8.bf16 %v2538
    %v3363 = vunpack.c.h.s8.bf16 %v2539
    %v3364 = vunpack.c.l.s8.bf16 %v2540
    %v3365 = vunpack.c.l.s8.bf16 %v2541
    %v3366 = vunpack.c.l.s8.bf16 %v2542
    %v3367 = vunpack.c.l.s8.bf16 %v2543
    %v3368 = vunpack.c.l.s8.bf16 %v2544
    %v3369 = vunpack.c.l.s8.bf16 %v2545
    %v3370 = vunpack.c.l.s8.bf16 %v2546
    %v3371 = vunpack.c.l.s8.bf16 %v2547
    %v3372 = vunpack.c.h.s8.bf16 %v2540
    %v3373 = vunpack.c.h.s8.bf16 %v2541
    %v3374 = vunpack.c.h.s8.bf16 %v2542
    %v3375 = vunpack.c.h.s8.bf16 %v2543
    %v3376 = vunpack.c.h.s8.bf16 %v2544
    %v3377 = vunpack.c.h.s8.bf16 %v2545
    %v3378 = vunpack.c.h.s8.bf16 %v2546
    %v3379 = vunpack.c.h.s8.bf16 %v2547
    %v3380 = vunpack.c.l.s8.bf16 %v2548
    %v3381 = vunpack.c.l.s8.bf16 %v2549
    %v3382 = vunpack.c.l.s8.bf16 %v2550
    %v3383 = vunpack.c.l.s8.bf16 %v2551
    %v3384 = vunpack.c.l.s8.bf16 %v2552
    %v3385 = vunpack.c.l.s8.bf16 %v2553
    %v3386 = vunpack.c.l.s8.bf16 %v2554
    %v3387 = vunpack.c.l.s8.bf16 %v2555
    %v3388 = vunpack.c.h.s8.bf16 %v2548
    %v3389 = vunpack.c.h.s8.bf16 %v2549
    %v3390 = vunpack.c.h.s8.bf16 %v2550
    %v3391 = vunpack.c.h.s8.bf16 %v2551
    %v3392 = vunpack.c.h.s8.bf16 %v2552
    %v3393 = vunpack.c.h.s8.bf16 %v2553
    %v3394 = vunpack.c.h.s8.bf16 %v2554
    %v3395 = vunpack.c.h.s8.bf16 %v2555
    %v3396 = vunpack.c.l.s8.bf16 %v2556
    %v3397 = vunpack.c.l.s8.bf16 %v2557
    %v3398 = vunpack.c.l.s8.bf16 %v2558
    %v3399 = vunpack.c.l.s8.bf16 %v2559
    %v3400 = vunpack.c.l.s8.bf16 %v2560
    %v3401 = vunpack.c.l.s8.bf16 %v2561
    %v3402 = vunpack.c.l.s8.bf16 %v2562
    %v3403 = vunpack.c.l.s8.bf16 %v2563
    %v3404 = vunpack.c.h.s8.bf16 %v2556
    %v3405 = vunpack.c.h.s8.bf16 %v2557
    %v3406 = vunpack.c.h.s8.bf16 %v2558
    %v3407 = vunpack.c.h.s8.bf16 %v2559
    %v3408 = vunpack.c.h.s8.bf16 %v2560
    %v3409 = vunpack.c.h.s8.bf16 %v2561
    %v3410 = vunpack.c.h.s8.bf16 %v2562
    %v3411 = vunpack.c.h.s8.bf16 %v2563
    %v3412 = vunpack.c.l.s8.bf16 %v2564
    %v3413 = vunpack.c.l.s8.bf16 %v2565
    %v3414 = vunpack.c.l.s8.bf16 %v2566
    %v3415 = vunpack.c.l.s8.bf16 %v2567
    %v3416 = vunpack.c.l.s8.bf16 %v2568
    %v3417 = vunpack.c.l.s8.bf16 %v2569
    %v3418 = vunpack.c.l.s8.bf16 %v2570
    %v3419 = vunpack.c.l.s8.bf16 %v2571
    %v3420 = vunpack.c.h.s8.bf16 %v2564
    %v3421 = vunpack.c.h.s8.bf16 %v2565
    %v3422 = vunpack.c.h.s8.bf16 %v2566
    %v3423 = vunpack.c.h.s8.bf16 %v2567
    %v3424 = vunpack.c.h.s8.bf16 %v2568
    %v3425 = vunpack.c.h.s8.bf16 %v2569
    %v3426 = vunpack.c.h.s8.bf16 %v2570
    %v3427 = vunpack.c.h.s8.bf16 %v2571
    %v3428 = vunpack.c.l.s8.bf16 %v2572
    %v3429 = vunpack.c.l.s8.bf16 %v2573
    %v3430 = vunpack.c.l.s8.bf16 %v2574
    %v3431 = vunpack.c.l.s8.bf16 %v2575
    %v3432 = vunpack.c.l.s8.bf16 %v2576
    %v3433 = vunpack.c.l.s8.bf16 %v2577
    %v3434 = vunpack.c.l.s8.bf16 %v2578
    %v3435 = vunpack.c.l.s8.bf16 %v2579
    %v3436 = vunpack.c.h.s8.bf16 %v2572
    %v3437 = vunpack.c.h.s8.bf16 %v2573
    %v3438 = vunpack.c.h.s8.bf16 %v2574
    %v3439 = vunpack.c.h.s8.bf16 %v2575
    %v3440 = vunpack.c.h.s8.bf16 %v2576
    %v3441 = vunpack.c.h.s8.bf16 %v2577
    %v3442 = vunpack.c.h.s8.bf16 %v2578
    %v3443 = vunpack.c.h.s8.bf16 %v2579
    %v3444 = vunpack.c.l.s8.bf16 %v2580
    %v3445 = vunpack.c.l.s8.bf16 %v2581
    %v3446 = vunpack.c.l.s8.bf16 %v2582
    %v3447 = vunpack.c.l.s8.bf16 %v2583
    %v3448 = vunpack.c.l.s8.bf16 %v2584
    %v3449 = vunpack.c.l.s8.bf16 %v2585
    %v3450 = vunpack.c.l.s8.bf16 %v2586
    %v3451 = vunpack.c.l.s8.bf16 %v2587
    %v3452 = vunpack.c.h.s8.bf16 %v2580
    %v3453 = vunpack.c.h.s8.bf16 %v2581
    %v3454 = vunpack.c.h.s8.bf16 %v2582
    %v3455 = vunpack.c.h.s8.bf16 %v2583
    %v3456 = vunpack.c.h.s8.bf16 %v2584
    %v3457 = vunpack.c.h.s8.bf16 %v2585
    %v3458 = vunpack.c.h.s8.bf16 %v2586
    %v3459 = vunpack.c.h.s8.bf16 %v2587
    %v3460 = vunpack.c.l.s8.bf16 %v2588
    %v3461 = vunpack.c.l.s8.bf16 %v2589
    %v3462 = vunpack.c.l.s8.bf16 %v2590
    %v3463 = vunpack.c.l.s8.bf16 %v2591
    %v3464 = vunpack.c.l.s8.bf16 %v2592
    %v3465 = vunpack.c.l.s8.bf16 %v2593
    %v3466 = vunpack.c.l.s8.bf16 %v2594
    %v3467 = vunpack.c.l.s8.bf16 %v2595
    %v3468 = vunpack.c.h.s8.bf16 %v2588
    %v3469 = vunpack.c.h.s8.bf16 %v2589
    %v3470 = vunpack.c.h.s8.bf16 %v2590
    %v3471 = vunpack.c.h.s8.bf16 %v2591
    %v3472 = vunpack.c.h.s8.bf16 %v2592
    %v3473 = vunpack.c.h.s8.bf16 %v2593
    %v3474 = vunpack.c.h.s8.bf16 %v2594
    %v3475 = vunpack.c.h.s8.bf16 %v2595
    %v3476 = vunpack.c.l.s8.bf16 %v2596
    %v3477 = vunpack.c.l.s8.bf16 %v2597
    %v3478 = vunpack.c.l.s8.bf16 %v2598
    %v3479 = vunpack.c.l.s8.bf16 %v2599
    %v3480 = vunpack.c.l.s8.bf16 %v2600
    %v3481 = vunpack.c.l.s8.bf16 %v2601
    %v3482 = vunpack.c.l.s8.bf16 %v2602
    %v3483 = vunpack.c.l.s8.bf16 %v2603
    %v3484 = vunpack.c.h.s8.bf16 %v2596
    %v3485 = vunpack.c.h.s8.bf16 %v2597
    %v3486 = vunpack.c.h.s8.bf16 %v2598
    %v3487 = vunpack.c.h.s8.bf16 %v2599
    %v3488 = vunpack.c.h.s8.bf16 %v2600
    %v3489 = vunpack.c.h.s8.bf16 %v2601
    %v3490 = vunpack.c.h.s8.bf16 %v2602
    %v3491 = vunpack.c.h.s8.bf16 %v2603
    %v3492 = vunpack.c.l.s8.bf16 %v2604
    %v3493 = vunpack.c.l.s8.bf16 %v2605
    %v3494 = vunpack.c.l.s8.bf16 %v2606
    %v3495 = vunpack.c.l.s8.bf16 %v2607
    %v3496 = vunpack.c.l.s8.bf16 %v2608
    %v3497 = vunpack.c.l.s8.bf16 %v2609
    %v3498 = vunpack.c.l.s8.bf16 %v2610
    %v3499 = vunpack.c.l.s8.bf16 %v2611
    %v3500 = vunpack.c.h.s8.bf16 %v2604
    %v3501 = vunpack.c.h.s8.bf16 %v2605
    %v3502 = vunpack.c.h.s8.bf16 %v2606
    %v3503 = vunpack.c.h.s8.bf16 %v2607
    %v3504 = vunpack.c.h.s8.bf16 %v2608
    %v3505 = vunpack.c.h.s8.bf16 %v2609
    %v3506 = vunpack.c.h.s8.bf16 %v2610
    %v3507 = vunpack.c.h.s8.bf16 %v2611
    %v3508 = vunpack.c.l.s8.bf16 %v2612
    %v3509 = vunpack.c.l.s8.bf16 %v2613
    %v3510 = vunpack.c.l.s8.bf16 %v2614
    %v3511 = vunpack.c.l.s8.bf16 %v2615
    %v3512 = vunpack.c.l.s8.bf16 %v2616
    %v3513 = vunpack.c.l.s8.bf16 %v2617
    %v3514 = vunpack.c.l.s8.bf16 %v2618
    %v3515 = vunpack.c.l.s8.bf16 %v2619
    %v3516 = vunpack.c.h.s8.bf16 %v2612
    %v3517 = vunpack.c.h.s8.bf16 %v2613
    %v3518 = vunpack.c.h.s8.bf16 %v2614
    %v3519 = vunpack.c.h.s8.bf16 %v2615
    %v3520 = vunpack.c.h.s8.bf16 %v2616
    %v3521 = vunpack.c.h.s8.bf16 %v2617
    %v3522 = vunpack.c.h.s8.bf16 %v2618
    %v3523 = vunpack.c.h.s8.bf16 %v2619
    %v3524 = vunpack.c.l.s8.bf16 %v2620
    %v3525 = vunpack.c.l.s8.bf16 %v2621
    %v3526 = vunpack.c.l.s8.bf16 %v2622
    %v3527 = vunpack.c.l.s8.bf16 %v2623
    %v3528 = vunpack.c.l.s8.bf16 %v2624
    %v3529 = vunpack.c.l.s8.bf16 %v2625
    %v3530 = vunpack.c.l.s8.bf16 %v2626
    %v3531 = vunpack.c.l.s8.bf16 %v2627
    %v3532 = vunpack.c.h.s8.bf16 %v2620
    %v3533 = vunpack.c.h.s8.bf16 %v2621
    %v3534 = vunpack.c.h.s8.bf16 %v2622
    %v3535 = vunpack.c.h.s8.bf16 %v2623
    %v3536 = vunpack.c.h.s8.bf16 %v2624
    %v3537 = vunpack.c.h.s8.bf16 %v2625
    %v3538 = vunpack.c.h.s8.bf16 %v2626
    %v3539 = vunpack.c.h.s8.bf16 %v2627
    %v3540 = vunpack.c.l.s8.bf16 %v2628
    %v3541 = vunpack.c.l.s8.bf16 %v2629
    %v3542 = vunpack.c.l.s8.bf16 %v2630
    %v3543 = vunpack.c.l.s8.bf16 %v2631
    %v3544 = vunpack.c.l.s8.bf16 %v2632
    %v3545 = vunpack.c.l.s8.bf16 %v2633
    %v3546 = vunpack.c.l.s8.bf16 %v2634
    %v3547 = vunpack.c.l.s8.bf16 %v2635
    %v3548 = vunpack.c.h.s8.bf16 %v2628
    %v3549 = vunpack.c.h.s8.bf16 %v2629
    %v3550 = vunpack.c.h.s8.bf16 %v2630
    %v3551 = vunpack.c.h.s8.bf16 %v2631
    %v3552 = vunpack.c.h.s8.bf16 %v2632
    %v3553 = vunpack.c.h.s8.bf16 %v2633
    %v3554 = vunpack.c.h.s8.bf16 %v2634
    %v3555 = vunpack.c.h.s8.bf16 %v2635
    %v3556 = vunpack.c.l.s8.bf16 %v2636
    %v3557 = vunpack.c.l.s8.bf16 %v2637
    %v3558 = vunpack.c.l.s8.bf16 %v2638
    %v3559 = vunpack.c.l.s8.bf16 %v2639
    %v3560 = vunpack.c.l.s8.bf16 %v2640
    %v3561 = vunpack.c.l.s8.bf16 %v2641
    %v3562 = vunpack.c.l.s8.bf16 %v2642
    %v3563 = vunpack.c.l.s8.bf16 %v2643
    %v3564 = vunpack.c.h.s8.bf16 %v2636
    %v3565 = vunpack.c.h.s8.bf16 %v2637
    %v3566 = vunpack.c.h.s8.bf16 %v2638
    %v3567 = vunpack.c.h.s8.bf16 %v2639
    %v3568 = vunpack.c.h.s8.bf16 %v2640
    %v3569 = vunpack.c.h.s8.bf16 %v2641
    %v3570 = vunpack.c.h.s8.bf16 %v2642
    %v3571 = vunpack.c.h.s8.bf16 %v2643
    %v3572 = vunpack.c.l.s8.bf16 %v2644
    %v3573 = vunpack.c.l.s8.bf16 %v2645
    %v3574 = vunpack.c.l.s8.bf16 %v2646
    %v3575 = vunpack.c.l.s8.bf16 %v2647
    %v3576 = vunpack.c.l.s8.bf16 %v2648
    %v3577 = vunpack.c.l.s8.bf16 %v2649
    %v3578 = vunpack.c.l.s8.bf16 %v2650
    %v3579 = vunpack.c.l.s8.bf16 %v2651
    %v3580 = vunpack.c.h.s8.bf16 %v2644
    %v3581 = vunpack.c.h.s8.bf16 %v2645
    %v3582 = vunpack.c.h.s8.bf16 %v2646
    %v3583 = vunpack.c.h.s8.bf16 %v2647
    %v3584 = vunpack.c.h.s8.bf16 %v2648
    %v3585 = vunpack.c.h.s8.bf16 %v2649
    %v3586 = vunpack.c.h.s8.bf16 %v2650
    %v3587 = vunpack.c.h.s8.bf16 %v2651
    %v3588 = vunpack.c.l.s8.bf16 %v2652
    %v3589 = vunpack.c.l.s8.bf16 %v2653
    %v3590 = vunpack.c.l.s8.bf16 %v2654
    %v3591 = vunpack.c.l.s8.bf16 %v2655
    %v3592 = vunpack.c.l.s8.bf16 %v2656
    %v3593 = vunpack.c.l.s8.bf16 %v2657
    %v3594 = vunpack.c.l.s8.bf16 %v2658
    %v3595 = vunpack.c.l.s8.bf16 %v2659
    %v3596 = vunpack.c.h.s8.bf16 %v2652
    %v3597 = vunpack.c.h.s8.bf16 %v2653
    %v3598 = vunpack.c.h.s8.bf16 %v2654
    %v3599 = vunpack.c.h.s8.bf16 %v2655
    %v3600 = vunpack.c.h.s8.bf16 %v2656
    %v3601 = vunpack.c.h.s8.bf16 %v2657
    %v3602 = vunpack.c.h.s8.bf16 %v2658
    %v3603 = vunpack.c.h.s8.bf16 %v2659
    %v3604 = vunpack.c.l.s8.bf16 %v2660
    %v3605 = vunpack.c.l.s8.bf16 %v2661
    %v3606 = vunpack.c.l.s8.bf16 %v2662
    %v3607 = vunpack.c.l.s8.bf16 %v2663
    %v3608 = vunpack.c.l.s8.bf16 %v2664
    %v3609 = vunpack.c.l.s8.bf16 %v2665
    %v3610 = vunpack.c.l.s8.bf16 %v2666
    %v3611 = vunpack.c.l.s8.bf16 %v2667
    %v3612 = vunpack.c.h.s8.bf16 %v2660
    %v3613 = vunpack.c.h.s8.bf16 %v2661
    %v3614 = vunpack.c.h.s8.bf16 %v2662
    %v3615 = vunpack.c.h.s8.bf16 %v2663
    %v3616 = vunpack.c.h.s8.bf16 %v2664
    %v3617 = vunpack.c.h.s8.bf16 %v2665
    %v3618 = vunpack.c.h.s8.bf16 %v2666
    %v3619 = vunpack.c.h.s8.bf16 %v2667
    %v3620 = vunpack.c.l.s8.bf16 %v2668
    %v3621 = vunpack.c.l.s8.bf16 %v2669
    %v3622 = vunpack.c.l.s8.bf16 %v2670
    %v3623 = vunpack.c.l.s8.bf16 %v2671
    %v3624 = vunpack.c.l.s8.bf16 %v2672
    %v3625 = vunpack.c.l.s8.bf16 %v2673
    %v3626 = vunpack.c.l.s8.bf16 %v2674
    %v3627 = vunpack.c.l.s8.bf16 %v2675
    %v3628 = vunpack.c.h.s8.bf16 %v2668
    %v3629 = vunpack.c.h.s8.bf16 %v2669
    %v3630 = vunpack.c.h.s8.bf16 %v2670
    %v3631 = vunpack.c.h.s8.bf16 %v2671
    %v3632 = vunpack.c.h.s8.bf16 %v2672
    %v3633 = vunpack.c.h.s8.bf16 %v2673
    %v3634 = vunpack.c.h.s8.bf16 %v2674
    %v3635 = vunpack.c.h.s8.bf16 %v2675
    %v3636 = vunpack.c.l.s8.bf16 %v2676
    %v3637 = vunpack.c.l.s8.bf16 %v2677
    %v3638 = vunpack.c.l.s8.bf16 %v2678
    %v3639 = vunpack.c.l.s8.bf16 %v2679
    %v3640 = vunpack.c.l.s8.bf16 %v2680
    %v3641 = vunpack.c.l.s8.bf16 %v2681
    %v3642 = vunpack.c.l.s8.bf16 %v2682
    %v3643 = vunpack.c.l.s8.bf16 %v2683
    %v3644 = vunpack.c.h.s8.bf16 %v2676
    %v3645 = vunpack.c.h.s8.bf16 %v2677
    %v3646 = vunpack.c.h.s8.bf16 %v2678
    %v3647 = vunpack.c.h.s8.bf16 %v2679
    %v3648 = vunpack.c.h.s8.bf16 %v2680
    %v3649 = vunpack.c.h.s8.bf16 %v2681
    %v3650 = vunpack.c.h.s8.bf16 %v2682
    %v3651 = vunpack.c.h.s8.bf16 %v2683
    %v3652 = vunpack.c.l.s8.bf16 %v2684
    %v3653 = vunpack.c.l.s8.bf16 %v2685
    %v3654 = vunpack.c.l.s8.bf16 %v2686
    %v3655 = vunpack.c.l.s8.bf16 %v2687
    %v3656 = vunpack.c.l.s8.bf16 %v2688
    %v3657 = vunpack.c.l.s8.bf16 %v2689
    %v3658 = vunpack.c.l.s8.bf16 %v2690
    %v3659 = vunpack.c.l.s8.bf16 %v2691
    %v3660 = vunpack.c.h.s8.bf16 %v2684
    %v3661 = vunpack.c.h.s8.bf16 %v2685
    %v3662 = vunpack.c.h.s8.bf16 %v2686
    %v3663 = vunpack.c.h.s8.bf16 %v2687
    %v3664 = vunpack.c.h.s8.bf16 %v2688
    %v3665 = vunpack.c.h.s8.bf16 %v2689
    %v3666 = vunpack.c.h.s8.bf16 %v2690
    %v3667 = vunpack.c.h.s8.bf16 %v2691
    %v3668 = vunpack.c.l.s8.bf16 %v2692
    %v3669 = vunpack.c.l.s8.bf16 %v2693
    %v3670 = vunpack.c.l.s8.bf16 %v2694
    %v3671 = vunpack.c.l.s8.bf16 %v2695
    %v3672 = vunpack.c.l.s8.bf16 %v2696
    %v3673 = vunpack.c.l.s8.bf16 %v2697
    %v3674 = vunpack.c.l.s8.bf16 %v2698
    %v3675 = vunpack.c.l.s8.bf16 %v2699
    %v3676 = vunpack.c.h.s8.bf16 %v2692
    %v3677 = vunpack.c.h.s8.bf16 %v2693
    %v3678 = vunpack.c.h.s8.bf16 %v2694
    %v3679 = vunpack.c.h.s8.bf16 %v2695
    %v3680 = vunpack.c.h.s8.bf16 %v2696
    %v3681 = vunpack.c.h.s8.bf16 %v2697
    %v3682 = vunpack.c.h.s8.bf16 %v2698
    %v3683 = vunpack.c.h.s8.bf16 %v2699
    %v3684 = vunpack.c.l.s8.bf16 %v2700
    %v3685 = vunpack.c.l.s8.bf16 %v2701
    %v3686 = vunpack.c.l.s8.bf16 %v2702
    %v3687 = vunpack.c.l.s8.bf16 %v2703
    %v3688 = vunpack.c.l.s8.bf16 %v2704
    %v3689 = vunpack.c.l.s8.bf16 %v2705
    %v3690 = vunpack.c.l.s8.bf16 %v2706
    %v3691 = vunpack.c.l.s8.bf16 %v2707
    %v3692 = vunpack.c.h.s8.bf16 %v2700
    %v3693 = vunpack.c.h.s8.bf16 %v2701
    %v3694 = vunpack.c.h.s8.bf16 %v2702
    %v3695 = vunpack.c.h.s8.bf16 %v2703
    %v3696 = vunpack.c.h.s8.bf16 %v2704
    %v3697 = vunpack.c.h.s8.bf16 %v2705
    %v3698 = vunpack.c.h.s8.bf16 %v2706
    %v3699 = vunpack.c.h.s8.bf16 %v2707
    %v3700 = vunpack.c.l.s8.bf16 %v2708
    %v3701 = vunpack.c.l.s8.bf16 %v2709
    %v3702 = vunpack.c.l.s8.bf16 %v2710
    %v3703 = vunpack.c.l.s8.bf16 %v2711
    %v3704 = vunpack.c.l.s8.bf16 %v2712
    %v3705 = vunpack.c.l.s8.bf16 %v2713
    %v3706 = vunpack.c.l.s8.bf16 %v2714
    %v3707 = vunpack.c.l.s8.bf16 %v2715
    %v3708 = vunpack.c.h.s8.bf16 %v2708
    %v3709 = vunpack.c.h.s8.bf16 %v2709
    %v3710 = vunpack.c.h.s8.bf16 %v2710
    %v3711 = vunpack.c.h.s8.bf16 %v2711
    %v3712 = vunpack.c.h.s8.bf16 %v2712
    %v3713 = vunpack.c.h.s8.bf16 %v2713
    %v3714 = vunpack.c.h.s8.bf16 %v2714
    %v3715 = vunpack.c.h.s8.bf16 %v2715
    %v3716 = vunpack.c.l.s8.bf16 %v2716
    %v3717 = vunpack.c.l.s8.bf16 %v2717
    %v3718 = vunpack.c.l.s8.bf16 %v2718
    %v3719 = vunpack.c.l.s8.bf16 %v2719
    %v3720 = vunpack.c.l.s8.bf16 %v2720
    %v3721 = vunpack.c.l.s8.bf16 %v2721
    %v3722 = vunpack.c.l.s8.bf16 %v2722
    %v3723 = vunpack.c.l.s8.bf16 %v2723
    %v3724 = vunpack.c.h.s8.bf16 %v2716
    %v3725 = vunpack.c.h.s8.bf16 %v2717
    %v3726 = vunpack.c.h.s8.bf16 %v2718
    %v3727 = vunpack.c.h.s8.bf16 %v2719
    %v3728 = vunpack.c.h.s8.bf16 %v2720
    %v3729 = vunpack.c.h.s8.bf16 %v2721
    %v3730 = vunpack.c.h.s8.bf16 %v2722
    %v3731 = vunpack.c.h.s8.bf16 %v2723
    %v3732 = vunpack.c.l.s8.bf16 %v2724
    %v3733 = vunpack.c.l.s8.bf16 %v2725
    %v3734 = vunpack.c.l.s8.bf16 %v2726
    %v3735 = vunpack.c.l.s8.bf16 %v2727
    %v3736 = vunpack.c.l.s8.bf16 %v2728
    %v3737 = vunpack.c.l.s8.bf16 %v2729
    %v3738 = vunpack.c.l.s8.bf16 %v2730
    %v3739 = vunpack.c.l.s8.bf16 %v2731
    %v3740 = vunpack.c.h.s8.bf16 %v2724
    %v3741 = vunpack.c.h.s8.bf16 %v2725
    %v3742 = vunpack.c.h.s8.bf16 %v2726
    %v3743 = vunpack.c.h.s8.bf16 %v2727
    %v3744 = vunpack.c.h.s8.bf16 %v2728
    %v3745 = vunpack.c.h.s8.bf16 %v2729
    %v3746 = vunpack.c.h.s8.bf16 %v2730
    %v3747 = vunpack.c.h.s8.bf16 %v2731
    %v3748 = vunpack.c.l.s8.bf16 %v2732
    %v3749 = vunpack.c.l.s8.bf16 %v2733
    %v3750 = vunpack.c.l.s8.bf16 %v2734
    %v3751 = vunpack.c.l.s8.bf16 %v2735
    %v3752 = vunpack.c.l.s8.bf16 %v2736
    %v3753 = vunpack.c.l.s8.bf16 %v2737
    %v3754 = vunpack.c.l.s8.bf16 %v2738
    %v3755 = vunpack.c.l.s8.bf16 %v2739
    %v3756 = vunpack.c.h.s8.bf16 %v2732
    %v3757 = vunpack.c.h.s8.bf16 %v2733
    %v3758 = vunpack.c.h.s8.bf16 %v2734
    %v3759 = vunpack.c.h.s8.bf16 %v2735
    %v3760 = vunpack.c.h.s8.bf16 %v2736
    %v3761 = vunpack.c.h.s8.bf16 %v2737
    %v3762 = vunpack.c.h.s8.bf16 %v2738
    %v3763 = vunpack.c.h.s8.bf16 %v2739
    %v3764 = vpack.c.bf16 %v2208, %v2208
    %v3765 = vpack.c.bf16 %v2209, %v2209
    %v3766 = vpack.c.bf16 %v2210, %v2210
    %v3767 = vpack.c.bf16 %v2211, %v2211
    %v3768 = vpack.c.bf16 %v2212, %v2212
    %v3769 = vpack.c.bf16 %v2213, %v2213
    %v3770 = vpack.c.bf16 %v2214, %v2214
    %v3771 = vpack.c.bf16 %v2215, %v2215
    %v3772 = vpack.c.bf16 %v2216, %v2216
    %v3773 = vpack.c.bf16 %v2217, %v2217
    %v3774 = vpack.c.bf16 %v2218, %v2218
    %v3775 = vpack.c.bf16 %v2219, %v2219
    %v3776 = vpack.c.bf16 %v2220, %v2220
    %v3777 = vpack.c.bf16 %v2221, %v2221
    %v3778 = vpack.c.bf16 %v2222, %v2222
    %v3779 = vpack.c.bf16 %v2223, %v2223
    %3780 = vmatprep.subr.bf16.mxu0 %v2797
    %3781 = vmatpush1.bf16.msra.mxu0 %v2796
    %3782 = vmatprep.subr.bf16.mxu0 %v2789
    %3783 = vmatpush1.bf16.msra.mxu0 %v2788
    %3784 = vmatprep.subr.bf16.mxu0 %v2781
    %3785 = vmatpush1.bf16.msra.mxu0 %v2780
    %3786 = vmatprep.subr.bf16.mxu0 %v2773
    %3787 = vmatpush1.bf16.msra.mxu0 %v2772
    %3788 = vmatprep.subr.bf16.mxu0 %v2765
    %3789 = vmatpush1.bf16.msra.mxu0 %v2764
    %3790 = vmatprep.subr.bf16.mxu0 %v2757
    %3791 = vmatpush1.bf16.msra.mxu0 %v2756
    %3792 = vmatprep.subr.bf16.mxu0 %v2749
    %3793 = vmatpush1.bf16.msra.mxu0 %v2748
    %3794 = vmatprep.subr.bf16.mxu0 %v2741
    %3795 = vmatpush1.bf16.msra.mxu0 %v2740
    %3796 = vmatprep.subr.bf16.mxu0 %v2861
    %3797 = vmatpush2.bf16.msra.mxu0 %v2860
    %3798 = vmatprep.subr.bf16.mxu0 %v2853
    %3799 = vmatpush2.bf16.msra.mxu0 %v2852
    %3800 = vmatprep.subr.bf16.mxu0 %v2845
    %3801 = vmatpush2.bf16.msra.mxu0 %v2844
    %3802 = vmatprep.subr.bf16.mxu0 %v2837
    %3803 = vmatpush2.bf16.msra.mxu0 %v2836
    %3804 = vmatprep.subr.bf16.mxu0 %v2829
    %3805 = vmatpush2.bf16.msra.mxu0 %v2828
    %3806 = vmatprep.subr.bf16.mxu0 %v2821
    %3807 = vmatpush2.bf16.msra.mxu0 %v2820
    %3808 = vmatprep.subr.bf16.mxu0 %v2813
    %3809 = vmatpush2.bf16.msra.mxu0 %v2812
    %3810 = vmatprep.subr.bf16.mxu0 %v2805
    %3811 = vmatpush2.bf16.msra.mxu0 %v2804
    %3812 = vmatprep.mubr.bf16.mxu0 %v3765
    %3813 = vmatmul.mubr.bf16.gmra.mxu0 %v3764
    %v3814 = vpop.f32.mrf.mxu0
    %v3815 = vadd.f32 0.0, %v3814
    %v3816 = vpop.f32.mrf.mxu0
    %v3817 = vadd.f32 0.0, %v3816
    %v3818 = vpop.f32.mrf.mxu0
    %v3819 = vpop.f32.mrf.mxu0
    %3820 = vdwg.mxu0
    %3821 = vmatprep.subr.bf16.mxu0 %v2925
    %3822 = vmatpush1.bf16.msra.mxu0 %v2924
    %3823 = vmatprep.subr.bf16.mxu0 %v2917
    %3824 = vmatpush1.bf16.msra.mxu0 %v2916
    %3825 = vmatprep.subr.bf16.mxu0 %v2909
    %3826 = vmatpush1.bf16.msra.mxu0 %v2908
    %3827 = vmatprep.subr.bf16.mxu0 %v2901
    %3828 = vmatpush1.bf16.msra.mxu0 %v2900
    %3829 = vmatprep.subr.bf16.mxu0 %v2893
    %3830 = vmatpush1.bf16.msra.mxu0 %v2892
    %3831 = vmatprep.subr.bf16.mxu0 %v2885
    %3832 = vmatpush1.bf16.msra.mxu0 %v2884
    %3833 = vmatprep.subr.bf16.mxu0 %v2877
    %3834 = vmatpush1.bf16.msra.mxu0 %v2876
    %3835 = vmatprep.subr.bf16.mxu0 %v2869
    %3836 = vmatpush1.bf16.msra.mxu0 %v2868
    %3837 = vmatprep.subr.bf16.mxu0 %v2989
    %3838 = vmatpush2.bf16.msra.mxu0 %v2988
    %3839 = vmatprep.subr.bf16.mxu0 %v2981
    %3840 = vmatpush2.bf16.msra.mxu0 %v2980
    %3841 = vmatprep.subr.bf16.mxu0 %v2973
    %3842 = vmatpush2.bf16.msra.mxu0 %v2972
    %3843 = vmatprep.subr.bf16.mxu0 %v2965
    %3844 = vmatpush2.bf16.msra.mxu0 %v2964
    %3845 = vmatprep.subr.bf16.mxu0 %v2957
    %3846 = vmatpush2.bf16.msra.mxu0 %v2956
    %3847 = vmatprep.subr.bf16.mxu0 %v2949
    %3848 = vmatpush2.bf16.msra.mxu0 %v2948
    %3849 = vmatprep.subr.bf16.mxu0 %v2941
    %3850 = vmatpush2.bf16.msra.mxu0 %v2940
    %3851 = vmatprep.subr.bf16.mxu0 %v2933
    %3852 = vmatpush2.bf16.msra.mxu0 %v2932
    %3853 = vmatprep.mubr.bf16.mxu0 %v3767
    %3854 = vmatmul.mubr.bf16.gmra.mxu0 %v3766
    %v3855 = vpop.f32.mrf.mxu0
    %v3856 = vadd.f32 %v3815, %v3855
    %v3857 = vpop.f32.mrf.mxu0
    %v3858 = vadd.f32 %v3817, %v3857
    %v3859 = vpop.f32.mrf.mxu0
    %v3860 = vpop.f32.mrf.mxu0
    %3861 = vdwg.mxu0
    %3862 = vmatprep.subr.bf16.mxu0 %v3053
    %3863 = vmatpush1.bf16.msra.mxu0 %v3052
    %3864 = vmatprep.subr.bf16.mxu0 %v3045
    %3865 = vmatpush1.bf16.msra.mxu0 %v3044
    %3866 = vmatprep.subr.bf16.mxu0 %v3037
    %3867 = vmatpush1.bf16.msra.mxu0 %v3036
    %3868 = vmatprep.subr.bf16.mxu0 %v3029
    %3869 = vmatpush1.bf16.msra.mxu0 %v3028
    %3870 = vmatprep.subr.bf16.mxu0 %v3021
    %3871 = vmatpush1.bf16.msra.mxu0 %v3020
    %3872 = vmatprep.subr.bf16.mxu0 %v3013
    %3873 = vmatpush1.bf16.msra.mxu0 %v3012
    %3874 = vmatprep.subr.bf16.mxu0 %v3005
    %3875 = vmatpush1.bf16.msra.mxu0 %v3004
    %3876 = vmatprep.subr.bf16.mxu0 %v2997
    %3877 = vmatpush1.bf16.msra.mxu0 %v2996
    %3878 = vmatprep.subr.bf16.mxu0 %v3117
    %3879 = vmatpush2.bf16.msra.mxu0 %v3116
    %3880 = vmatprep.subr.bf16.mxu0 %v3109
    %3881 = vmatpush2.bf16.msra.mxu0 %v3108
    %3882 = vmatprep.subr.bf16.mxu0 %v3101
    %3883 = vmatpush2.bf16.msra.mxu0 %v3100
    %3884 = vmatprep.subr.bf16.mxu0 %v3093
    %3885 = vmatpush2.bf16.msra.mxu0 %v3092
    %3886 = vmatprep.subr.bf16.mxu0 %v3085
    %3887 = vmatpush2.bf16.msra.mxu0 %v3084
    %3888 = vmatprep.subr.bf16.mxu0 %v3077
    %3889 = vmatpush2.bf16.msra.mxu0 %v3076
    %3890 = vmatprep.subr.bf16.mxu0 %v3069
    %3891 = vmatpush2.bf16.msra.mxu0 %v3068
    %3892 = vmatprep.subr.bf16.mxu0 %v3061
    %3893 = vmatpush2.bf16.msra.mxu0 %v3060
    %3894 = vmatprep.mubr.bf16.mxu0 %v3769
    %3895 = vmatmul.mubr.bf16.gmra.mxu0 %v3768
    %v3896 = vpop.f32.mrf.mxu0
    %v3897 = vadd.f32 %v3856, %v3896
    %v3898 = vpop.f32.mrf.mxu0
    %v3899 = vadd.f32 %v3858, %v3898
    %v3900 = vpop.f32.mrf.mxu0
    %v3901 = vpop.f32.mrf.mxu0
    %3902 = vdwg.mxu0
    %3903 = vmatprep.subr.bf16.mxu0 %v3181
    %3904 = vmatpush1.bf16.msra.mxu0 %v3180
    %3905 = vmatprep.subr.bf16.mxu0 %v3173
    %3906 = vmatpush1.bf16.msra.mxu0 %v3172
    %3907 = vmatprep.subr.bf16.mxu0 %v3165
    %3908 = vmatpush1.bf16.msra.mxu0 %v3164
    %3909 = vmatprep.subr.bf16.mxu0 %v3157
    %3910 = vmatpush1.bf16.msra.mxu0 %v3156
    %3911 = vmatprep.subr.bf16.mxu0 %v3149
    %3912 = vmatpush1.bf16.msra.mxu0 %v3148
    %3913 = vmatprep.subr.bf16.mxu0 %v3141
    %3914 = vmatpush1.bf16.msra.mxu0 %v3140
    %3915 = vmatprep.subr.bf16.mxu0 %v3133
    %3916 = vmatpush1.bf16.msra.mxu0 %v3132
    %3917 = vmatprep.subr.bf16.mxu0 %v3125
    %3918 = vmatpush1.bf16.msra.mxu0 %v3124
    %3919 = vmatprep.subr.bf16.mxu0 %v3245
    %3920 = vmatpush2.bf16.msra.mxu0 %v3244
    %3921 = vmatprep.subr.bf16.mxu0 %v3237
    %3922 = vmatpush2.bf16.msra.mxu0 %v3236
    %3923 = vmatprep.subr.bf16.mxu0 %v3229
    %3924 = vmatpush2.bf16.msra.mxu0 %v3228
    %3925 = vmatprep.subr.bf16.mxu0 %v3221
    %3926 = vmatpush2.bf16.msra.mxu0 %v3220
    %3927 = vmatprep.subr.bf16.mxu0 %v3213
    %3928 = vmatpush2.bf16.msra.mxu0 %v3212
    %3929 = vmatprep.subr.bf16.mxu0 %v3205
    %3930 = vmatpush2.bf16.msra.mxu0 %v3204
    %3931 = vmatprep.subr.bf16.mxu0 %v3197
    %3932 = vmatpush2.bf16.msra.mxu0 %v3196
    %3933 = vmatprep.subr.bf16.mxu0 %v3189
    %3934 = vmatpush2.bf16.msra.mxu0 %v3188
    %3935 = vmatprep.mubr.bf16.mxu0 %v3771
    %3936 = vmatmul.mubr.bf16.gmra.mxu0 %v3770
    %v3937 = vpop.f32.mrf.mxu0
    %v3938 = vadd.f32 %v3897, %v3937
    %v3939 = vpop.f32.mrf.mxu0
    %v3940 = vadd.f32 %v3899, %v3939
    %v3941 = vpop.f32.mrf.mxu0
    %v3942 = vpop.f32.mrf.mxu0
    %3943 = vdwg.mxu0
    %3944 = vmatprep.subr.bf16.mxu0 %v3309
    %3945 = vmatpush1.bf16.msra.mxu0 %v3308
    %3946 = vmatprep.subr.bf16.mxu0 %v3301
    %3947 = vmatpush1.bf16.msra.mxu0 %v3300
    %3948 = vmatprep.subr.bf16.mxu0 %v3293
    %3949 = vmatpush1.bf16.msra.mxu0 %v3292
    %3950 = vmatprep.subr.bf16.mxu0 %v3285
    %3951 = vmatpush1.bf16.msra.mxu0 %v3284
    %3952 = vmatprep.subr.bf16.mxu0 %v3277
    %3953 = vmatpush1.bf16.msra.mxu0 %v3276
    %3954 = vmatprep.subr.bf16.mxu0 %v3269
    %3955 = vmatpush1.bf16.msra.mxu0 %v3268
    %3956 = vmatprep.subr.bf16.mxu0 %v3261
    %3957 = vmatpush1.bf16.msra.mxu0 %v3260
    %3958 = vmatprep.subr.bf16.mxu0 %v3253
    %3959 = vmatpush1.bf16.msra.mxu0 %v3252
    %3960 = vmatprep.subr.bf16.mxu0 %v3373
    %3961 = vmatpush2.bf16.msra.mxu0 %v3372
    %3962 = vmatprep.subr.bf16.mxu0 %v3365
    %3963 = vmatpush2.bf16.msra.mxu0 %v3364
    %3964 = vmatprep.subr.bf16.mxu0 %v3357
    %3965 = vmatpush2.bf16.msra.mxu0 %v3356
    %3966 = vmatprep.subr.bf16.mxu0 %v3349
    %3967 = vmatpush2.bf16.msra.mxu0 %v3348
    %3968 = vmatprep.subr.bf16.mxu0 %v3341
    %3969 = vmatpush2.bf16.msra.mxu0 %v3340
    %3970 = vmatprep.subr.bf16.mxu0 %v3333
    %3971 = vmatpush2.bf16.msra.mxu0 %v3332
    %3972 = vmatprep.subr.bf16.mxu0 %v3325
    %3973 = vmatpush2.bf16.msra.mxu0 %v3324
    %3974 = vmatprep.subr.bf16.mxu0 %v3317
    %3975 = vmatpush2.bf16.msra.mxu0 %v3316
    %3976 = vmatprep.mubr.bf16.mxu0 %v3773
    %3977 = vmatmul.mubr.bf16.gmra.mxu0 %v3772
    %v3978 = vpop.f32.mrf.mxu0
    %v3979 = vadd.f32 %v3938, %v3978
    %v3980 = vpop.f32.mrf.mxu0
    %v3981 = vadd.f32 %v3940, %v3980
    %v3982 = vpop.f32.mrf.mxu0
    %v3983 = vpop.f32.mrf.mxu0
    %3984 = vdwg.mxu0
    %3985 = vmatprep.subr.bf16.mxu0 %v3437
    %3986 = vmatpush1.bf16.msra.mxu0 %v3436
    %3987 = vmatprep.subr.bf16.mxu0 %v3429
    %3988 = vmatpush1.bf16.msra.mxu0 %v3428
    %3989 = vmatprep.subr.bf16.mxu0 %v3421
    %3990 = vmatpush1.bf16.msra.mxu0 %v3420
    %3991 = vmatprep.subr.bf16.mxu0 %v3413
    %3992 = vmatpush1.bf16.msra.mxu0 %v3412
    %3993 = vmatprep.subr.bf16.mxu0 %v3405
    %3994 = vmatpush1.bf16.msra.mxu0 %v3404
    %3995 = vmatprep.subr.bf16.mxu0 %v3397
    %3996 = vmatpush1.bf16.msra.mxu0 %v3396
    %3997 = vmatprep.subr.bf16.mxu0 %v3389
    %3998 = vmatpush1.bf16.msra.mxu0 %v3388
    %3999 = vmatprep.subr.bf16.mxu0 %v3381
    %4000 = vmatpush1.bf16.msra.mxu0 %v3380
    %4001 = vmatprep.subr.bf16.mxu0 %v3501
    %4002 = vmatpush2.bf16.msra.mxu0 %v3500
    %4003 = vmatprep.subr.bf16.mxu0 %v3493
    %4004 = vmatpush2.bf16.msra.mxu0 %v3492
    %4005 = vmatprep.subr.bf16.mxu0 %v3485
    %4006 = vmatpush2.bf16.msra.mxu0 %v3484
    %4007 = vmatprep.subr.bf16.mxu0 %v3477
    %4008 = vmatpush2.bf16.msra.mxu0 %v3476
    %4009 = vmatprep.subr.bf16.mxu0 %v3469
    %4010 = vmatpush2.bf16.msra.mxu0 %v3468
    %4011 = vmatprep.subr.bf16.mxu0 %v3461
    %4012 = vmatpush2.bf16.msra.mxu0 %v3460
    %4013 = vmatprep.subr.bf16.mxu0 %v3453
    %4014 = vmatpush2.bf16.msra.mxu0 %v3452
    %4015 = vmatprep.subr.bf16.mxu0 %v3445
    %4016 = vmatpush2.bf16.msra.mxu0 %v3444
    %4017 = vmatprep.mubr.bf16.mxu0 %v3775
    %4018 = vmatmul.mubr.bf16.gmra.mxu0 %v3774
    %v4019 = vpop.f32.mrf.mxu0
    %v4020 = vadd.f32 %v3979, %v4019
    %v4021 = vpop.f32.mrf.mxu0
    %v4022 = vadd.f32 %v3981, %v4021
    %v4023 = vpop.f32.mrf.mxu0
    %v4024 = vpop.f32.mrf.mxu0
    %4025 = vdwg.mxu0
    %4026 = vmatprep.subr.bf16.mxu0 %v3565
    %4027 = vmatpush1.bf16.msra.mxu0 %v3564
    %4028 = vmatprep.subr.bf16.mxu0 %v3557
    %4029 = vmatpush1.bf16.msra.mxu0 %v3556
    %4030 = vmatprep.subr.bf16.mxu0 %v3549
    %4031 = vmatpush1.bf16.msra.mxu0 %v3548
    %4032 = vmatprep.subr.bf16.mxu0 %v3541
    %4033 = vmatpush1.bf16.msra.mxu0 %v3540
    %4034 = vmatprep.subr.bf16.mxu0 %v3533
    %4035 = vmatpush1.bf16.msra.mxu0 %v3532
    %4036 = vmatprep.subr.bf16.mxu0 %v3525
    %4037 = vmatpush1.bf16.msra.mxu0 %v3524
    %4038 = vmatprep.subr.bf16.mxu0 %v3517
    %4039 = vmatpush1.bf16.msra.mxu0 %v3516
    %4040 = vmatprep.subr.bf16.mxu0 %v3509
    %4041 = vmatpush1.bf16.msra.mxu0 %v3508
    %4042 = vmatprep.subr.bf16.mxu0 %v3629
    %4043 = vmatpush2.bf16.msra.mxu0 %v3628
    %4044 = vmatprep.subr.bf16.mxu0 %v3621
    %4045 = vmatpush2.bf16.msra.mxu0 %v3620
    %4046 = vmatprep.subr.bf16.mxu0 %v3613
    %4047 = vmatpush2.bf16.msra.mxu0 %v3612
    %4048 = vmatprep.subr.bf16.mxu0 %v3605
    %4049 = vmatpush2.bf16.msra.mxu0 %v3604
    %4050 = vmatprep.subr.bf16.mxu0 %v3597
    %4051 = vmatpush2.bf16.msra.mxu0 %v3596
    %4052 = vmatprep.subr.bf16.mxu0 %v3589
    %4053 = vmatpush2.bf16.msra.mxu0 %v3588
    %4054 = vmatprep.subr.bf16.mxu0 %v3581
    %4055 = vmatpush2.bf16.msra.mxu0 %v3580
    %4056 = vmatprep.subr.bf16.mxu0 %v3573
    %4057 = vmatpush2.bf16.msra.mxu0 %v3572
    %4058 = vmatprep.mubr.bf16.mxu0 %v3777
    %4059 = vmatmul.mubr.bf16.gmra.mxu0 %v3776
    %v4060 = vpop.f32.mrf.mxu0
    %v4061 = vadd.f32 %v4020, %v4060
    %v4062 = vpop.f32.mrf.mxu0
    %v4063 = vadd.f32 %v4022, %v4062
    %v4064 = vpop.f32.mrf.mxu0
    %v4065 = vpop.f32.mrf.mxu0
    %4066 = vdwg.mxu0
    %4067 = vmatprep.subr.bf16.mxu0 %v3693
    %4068 = vmatpush1.bf16.msra.mxu0 %v3692
    %4069 = vmatprep.subr.bf16.mxu0 %v3685
    %4070 = vmatpush1.bf16.msra.mxu0 %v3684
    %4071 = vmatprep.subr.bf16.mxu0 %v3677
    %4072 = vmatpush1.bf16.msra.mxu0 %v3676
    %4073 = vmatprep.subr.bf16.mxu0 %v3669
    %4074 = vmatpush1.bf16.msra.mxu0 %v3668
    %4075 = vmatprep.subr.bf16.mxu0 %v3661
    %4076 = vmatpush1.bf16.msra.mxu0 %v3660
    %4077 = vmatprep.subr.bf16.mxu0 %v3653
    %4078 = vmatpush1.bf16.msra.mxu0 %v3652
    %4079 = vmatprep.subr.bf16.mxu0 %v3645
    %4080 = vmatpush1.bf16.msra.mxu0 %v3644
    %4081 = vmatprep.subr.bf16.mxu0 %v3637
    %4082 = vmatpush1.bf16.msra.mxu0 %v3636
    %4083 = vmatprep.subr.bf16.mxu0 %v3757
    %4084 = vmatpush2.bf16.msra.mxu0 %v3756
    %4085 = vmatprep.subr.bf16.mxu0 %v3749
    %4086 = vmatpush2.bf16.msra.mxu0 %v3748
    %4087 = vmatprep.subr.bf16.mxu0 %v3741
    %4088 = vmatpush2.bf16.msra.mxu0 %v3740
    %4089 = vmatprep.subr.bf16.mxu0 %v3733
    %4090 = vmatpush2.bf16.msra.mxu0 %v3732
    %4091 = vmatprep.subr.bf16.mxu0 %v3725
    %4092 = vmatpush2.bf16.msra.mxu0 %v3724
    %4093 = vmatprep.subr.bf16.mxu0 %v3717
    %4094 = vmatpush2.bf16.msra.mxu0 %v3716
    %4095 = vmatprep.subr.bf16.mxu0 %v3709
    %4096 = vmatpush2.bf16.msra.mxu0 %v3708
    %4097 = vmatprep.subr.bf16.mxu0 %v3701
    %4098 = vmatpush2.bf16.msra.mxu0 %v3700
    %4099 = vmatprep.mubr.bf16.mxu0 %v3779
    %4100 = vmatmul.mubr.bf16.gmra.mxu0 %v3778
    %v4101 = vpop.f32.mrf.mxu0
    %v4102 = vadd.f32 %v4061, %v4101
    %v4103 = vpop.f32.mrf.mxu0
    %v4104 = vadd.f32 %v4063, %v4103
    %v4105 = vpop.f32.mrf.mxu0
    %v4106 = vpop.f32.mrf.mxu0
    %4107 = vdwg.mxu0
    %4108 = vmatprep.subr.bf16.mxu0 %v2799
    %4109 = vmatpush1.bf16.msra.mxu0 %v2798
    %4110 = vmatprep.subr.bf16.mxu0 %v2791
    %4111 = vmatpush1.bf16.msra.mxu0 %v2790
    %4112 = vmatprep.subr.bf16.mxu0 %v2783
    %4113 = vmatpush1.bf16.msra.mxu0 %v2782
    %4114 = vmatprep.subr.bf16.mxu0 %v2775
    %4115 = vmatpush1.bf16.msra.mxu0 %v2774
    %4116 = vmatprep.subr.bf16.mxu0 %v2767
    %4117 = vmatpush1.bf16.msra.mxu0 %v2766
    %4118 = vmatprep.subr.bf16.mxu0 %v2759
    %4119 = vmatpush1.bf16.msra.mxu0 %v2758
    %4120 = vmatprep.subr.bf16.mxu0 %v2751
    %4121 = vmatpush1.bf16.msra.mxu0 %v2750
    %4122 = vmatprep.subr.bf16.mxu0 %v2743
    %4123 = vmatpush1.bf16.msra.mxu0 %v2742
    %4124 = vmatprep.subr.bf16.mxu0 %v2863
    %4125 = vmatpush2.bf16.msra.mxu0 %v2862
    %4126 = vmatprep.subr.bf16.mxu0 %v2855
    %4127 = vmatpush2.bf16.msra.mxu0 %v2854
    %4128 = vmatprep.subr.bf16.mxu0 %v2847
    %4129 = vmatpush2.bf16.msra.mxu0 %v2846
    %4130 = vmatprep.subr.bf16.mxu0 %v2839
    %4131 = vmatpush2.bf16.msra.mxu0 %v2838
    %4132 = vmatprep.subr.bf16.mxu0 %v2831
    %4133 = vmatpush2.bf16.msra.mxu0 %v2830
    %4134 = vmatprep.subr.bf16.mxu0 %v2823
    %4135 = vmatpush2.bf16.msra.mxu0 %v2822
    %4136 = vmatprep.subr.bf16.mxu0 %v2815
    %4137 = vmatpush2.bf16.msra.mxu0 %v2814
    %4138 = vmatprep.subr.bf16.mxu0 %v2807
    %4139 = vmatpush2.bf16.msra.mxu0 %v2806
    %4140 = vmatprep.mubr.bf16.mxu0 %v3765
    %4141 = vmatmul.mubr.bf16.gmra.mxu0 %v3764
    %v4142 = vpop.f32.mrf.mxu0
    %v4143 = vadd.f32 0.0, %v4142
    %v4144 = vpop.f32.mrf.mxu0
    %v4145 = vadd.f32 0.0, %v4144
    %v4146 = vpop.f32.mrf.mxu0
    %v4147 = vpop.f32.mrf.mxu0
    %4148 = vdwg.mxu0
    %4149 = vmatprep.subr.bf16.mxu0 %v2927
    %4150 = vmatpush1.bf16.msra.mxu0 %v2926
    %4151 = vmatprep.subr.bf16.mxu0 %v2919
    %4152 = vmatpush1.bf16.msra.mxu0 %v2918
    %4153 = vmatprep.subr.bf16.mxu0 %v2911
    %4154 = vmatpush1.bf16.msra.mxu0 %v2910
    %4155 = vmatprep.subr.bf16.mxu0 %v2903
    %4156 = vmatpush1.bf16.msra.mxu0 %v2902
    %4157 = vmatprep.subr.bf16.mxu0 %v2895
    %4158 = vmatpush1.bf16.msra.mxu0 %v2894
    %4159 = vmatprep.subr.bf16.mxu0 %v2887
    %4160 = vmatpush1.bf16.msra.mxu0 %v2886
    %4161 = vmatprep.subr.bf16.mxu0 %v2879
    %4162 = vmatpush1.bf16.msra.mxu0 %v2878
    %4163 = vmatprep.subr.bf16.mxu0 %v2871
    %4164 = vmatpush1.bf16.msra.mxu0 %v2870
    %4165 = vmatprep.subr.bf16.mxu0 %v2991
    %4166 = vmatpush2.bf16.msra.mxu0 %v2990
    %4167 = vmatprep.subr.bf16.mxu0 %v2983
    %4168 = vmatpush2.bf16.msra.mxu0 %v2982
    %4169 = vmatprep.subr.bf16.mxu0 %v2975
    %4170 = vmatpush2.bf16.msra.mxu0 %v2974
    %4171 = vmatprep.subr.bf16.mxu0 %v2967
    %4172 = vmatpush2.bf16.msra.mxu0 %v2966
    %4173 = vmatprep.subr.bf16.mxu0 %v2959
    %4174 = vmatpush2.bf16.msra.mxu0 %v2958
    %4175 = vmatprep.subr.bf16.mxu0 %v2951
    %4176 = vmatpush2.bf16.msra.mxu0 %v2950
    %4177 = vmatprep.subr.bf16.mxu0 %v2943
    %4178 = vmatpush2.bf16.msra.mxu0 %v2942
    %4179 = vmatprep.subr.bf16.mxu0 %v2935
    %4180 = vmatpush2.bf16.msra.mxu0 %v2934
    %4181 = vmatprep.mubr.bf16.mxu0 %v3767
    %4182 = vmatmul.mubr.bf16.gmra.mxu0 %v3766
    %v4183 = vpop.f32.mrf.mxu0
    %v4184 = vadd.f32 %v4143, %v4183
    %v4185 = vpop.f32.mrf.mxu0
    %v4186 = vadd.f32 %v4145, %v4185
    %v4187 = vpop.f32.mrf.mxu0
    %v4188 = vpop.f32.mrf.mxu0
    %4189 = vdwg.mxu0
    %4190 = vmatprep.subr.bf16.mxu0 %v3055
    %4191 = vmatpush1.bf16.msra.mxu0 %v3054
    %4192 = vmatprep.subr.bf16.mxu0 %v3047
    %4193 = vmatpush1.bf16.msra.mxu0 %v3046
    %4194 = vmatprep.subr.bf16.mxu0 %v3039
    %4195 = vmatpush1.bf16.msra.mxu0 %v3038
    %4196 = vmatprep.subr.bf16.mxu0 %v3031
    %4197 = vmatpush1.bf16.msra.mxu0 %v3030
    %4198 = vmatprep.subr.bf16.mxu0 %v3023
    %4199 = vmatpush1.bf16.msra.mxu0 %v3022
    %4200 = vmatprep.subr.bf16.mxu0 %v3015
    %4201 = vmatpush1.bf16.msra.mxu0 %v3014
    %4202 = vmatprep.subr.bf16.mxu0 %v3007
    %4203 = vmatpush1.bf16.msra.mxu0 %v3006
    %4204 = vmatprep.subr.bf16.mxu0 %v2999
    %4205 = vmatpush1.bf16.msra.mxu0 %v2998
    %4206 = vmatprep.subr.bf16.mxu0 %v3119
    %4207 = vmatpush2.bf16.msra.mxu0 %v3118
    %4208 = vmatprep.subr.bf16.mxu0 %v3111
    %4209 = vmatpush2.bf16.msra.mxu0 %v3110
    %4210 = vmatprep.subr.bf16.mxu0 %v3103
    %4211 = vmatpush2.bf16.msra.mxu0 %v3102
    %4212 = vmatprep.subr.bf16.mxu0 %v3095
    %4213 = vmatpush2.bf16.msra.mxu0 %v3094
    %4214 = vmatprep.subr.bf16.mxu0 %v3087
    %4215 = vmatpush2.bf16.msra.mxu0 %v3086
    %4216 = vmatprep.subr.bf16.mxu0 %v3079
    %4217 = vmatpush2.bf16.msra.mxu0 %v3078
    %4218 = vmatprep.subr.bf16.mxu0 %v3071
    %4219 = vmatpush2.bf16.msra.mxu0 %v3070
    %4220 = vmatprep.subr.bf16.mxu0 %v3063
    %4221 = vmatpush2.bf16.msra.mxu0 %v3062
    %4222 = vmatprep.mubr.bf16.mxu0 %v3769
    %4223 = vmatmul.mubr.bf16.gmra.mxu0 %v3768
    %v4224 = vpop.f32.mrf.mxu0
    %v4225 = vadd.f32 %v4184, %v4224
    %v4226 = vpop.f32.mrf.mxu0
    %v4227 = vadd.f32 %v4186, %v4226
    %v4228 = vpop.f32.mrf.mxu0
    %v4229 = vpop.f32.mrf.mxu0
    %4230 = vdwg.mxu0
    %4231 = vmatprep.subr.bf16.mxu0 %v3183
    %4232 = vmatpush1.bf16.msra.mxu0 %v3182
    %4233 = vmatprep.subr.bf16.mxu0 %v3175
    %4234 = vmatpush1.bf16.msra.mxu0 %v3174
    %4235 = vmatprep.subr.bf16.mxu0 %v3167
    %4236 = vmatpush1.bf16.msra.mxu0 %v3166
    %4237 = vmatprep.subr.bf16.mxu0 %v3159
    %4238 = vmatpush1.bf16.msra.mxu0 %v3158
    %4239 = vmatprep.subr.bf16.mxu0 %v3151
    %4240 = vmatpush1.bf16.msra.mxu0 %v3150
    %4241 = vmatprep.subr.bf16.mxu0 %v3143
    %4242 = vmatpush1.bf16.msra.mxu0 %v3142
    %4243 = vmatprep.subr.bf16.mxu0 %v3135
    %4244 = vmatpush1.bf16.msra.mxu0 %v3134
    %4245 = vmatprep.subr.bf16.mxu0 %v3127
    %4246 = vmatpush1.bf16.msra.mxu0 %v3126
    %4247 = vmatprep.subr.bf16.mxu0 %v3247
    %4248 = vmatpush2.bf16.msra.mxu0 %v3246
    %4249 = vmatprep.subr.bf16.mxu0 %v3239
    %4250 = vmatpush2.bf16.msra.mxu0 %v3238
    %4251 = vmatprep.subr.bf16.mxu0 %v3231
    %4252 = vmatpush2.bf16.msra.mxu0 %v3230
    %4253 = vmatprep.subr.bf16.mxu0 %v3223
    %4254 = vmatpush2.bf16.msra.mxu0 %v3222
    %4255 = vmatprep.subr.bf16.mxu0 %v3215
    %4256 = vmatpush2.bf16.msra.mxu0 %v3214
    %4257 = vmatprep.subr.bf16.mxu0 %v3207
    %4258 = vmatpush2.bf16.msra.mxu0 %v3206
    %4259 = vmatprep.subr.bf16.mxu0 %v3199
    %4260 = vmatpush2.bf16.msra.mxu0 %v3198
    %4261 = vmatprep.subr.bf16.mxu0 %v3191
    %4262 = vmatpush2.bf16.msra.mxu0 %v3190
    %4263 = vmatprep.mubr.bf16.mxu0 %v3771
    %4264 = vmatmul.mubr.bf16.gmra.mxu0 %v3770
    %v4265 = vpop.f32.mrf.mxu0
    %v4266 = vadd.f32 %v4225, %v4265
    %v4267 = vpop.f32.mrf.mxu0
    %v4268 = vadd.f32 %v4227, %v4267
    %v4269 = vpop.f32.mrf.mxu0
    %v4270 = vpop.f32.mrf.mxu0
    %4271 = vdwg.mxu0
    %4272 = vmatprep.subr.bf16.mxu0 %v3311
    %4273 = vmatpush1.bf16.msra.mxu0 %v3310
    %4274 = vmatprep.subr.bf16.mxu0 %v3303
    %4275 = vmatpush1.bf16.msra.mxu0 %v3302
    %4276 = vmatprep.subr.bf16.mxu0 %v3295
    %4277 = vmatpush1.bf16.msra.mxu0 %v3294
    %4278 = vmatprep.subr.bf16.mxu0 %v3287
    %4279 = vmatpush1.bf16.msra.mxu0 %v3286
    %4280 = vmatprep.subr.bf16.mxu0 %v3279
    %4281 = vmatpush1.bf16.msra.mxu0 %v3278
    %4282 = vmatprep.subr.bf16.mxu0 %v3271
    %4283 = vmatpush1.bf16.msra.mxu0 %v3270
    %4284 = vmatprep.subr.bf16.mxu0 %v3263
    %4285 = vmatpush1.bf16.msra.mxu0 %v3262
    %4286 = vmatprep.subr.bf16.mxu0 %v3255
    %4287 = vmatpush1.bf16.msra.mxu0 %v3254
    %4288 = vmatprep.subr.bf16.mxu0 %v3375
    %4289 = vmatpush2.bf16.msra.mxu0 %v3374
    %4290 = vmatprep.subr.bf16.mxu0 %v3367
    %4291 = vmatpush2.bf16.msra.mxu0 %v3366
    %4292 = vmatprep.subr.bf16.mxu0 %v3359
    %4293 = vmatpush2.bf16.msra.mxu0 %v3358
    %4294 = vmatprep.subr.bf16.mxu0 %v3351
    %4295 = vmatpush2.bf16.msra.mxu0 %v3350
    %4296 = vmatprep.subr.bf16.mxu0 %v3343
    %4297 = vmatpush2.bf16.msra.mxu0 %v3342
    %4298 = vmatprep.subr.bf16.mxu0 %v3335
    %4299 = vmatpush2.bf16.msra.mxu0 %v3334
    %4300 = vmatprep.subr.bf16.mxu0 %v3327
    %4301 = vmatpush2.bf16.msra.mxu0 %v3326
    %4302 = vmatprep.subr.bf16.mxu0 %v3319
    %4303 = vmatpush2.bf16.msra.mxu0 %v3318
    %4304 = vmatprep.mubr.bf16.mxu0 %v3773
    %4305 = vmatmul.mubr.bf16.gmra.mxu0 %v3772
    %v4306 = vpop.f32.mrf.mxu0
    %v4307 = vadd.f32 %v4266, %v4306
    %v4308 = vpop.f32.mrf.mxu0
    %v4309 = vadd.f32 %v4268, %v4308
    %v4310 = vpop.f32.mrf.mxu0
    %v4311 = vpop.f32.mrf.mxu0
    %4312 = vdwg.mxu0
    %4313 = vmatprep.subr.bf16.mxu0 %v3439
    %4314 = vmatpush1.bf16.msra.mxu0 %v3438
    %4315 = vmatprep.subr.bf16.mxu0 %v3431
    %4316 = vmatpush1.bf16.msra.mxu0 %v3430
    %4317 = vmatprep.subr.bf16.mxu0 %v3423
    %4318 = vmatpush1.bf16.msra.mxu0 %v3422
    %4319 = vmatprep.subr.bf16.mxu0 %v3415
    %4320 = vmatpush1.bf16.msra.mxu0 %v3414
    %4321 = vmatprep.subr.bf16.mxu0 %v3407
    %4322 = vmatpush1.bf16.msra.mxu0 %v3406
    %4323 = vmatprep.subr.bf16.mxu0 %v3399
    %4324 = vmatpush1.bf16.msra.mxu0 %v3398
    %4325 = vmatprep.subr.bf16.mxu0 %v3391
    %4326 = vmatpush1.bf16.msra.mxu0 %v3390
    %4327 = vmatprep.subr.bf16.mxu0 %v3383
    %4328 = vmatpush1.bf16.msra.mxu0 %v3382
    %4329 = vmatprep.subr.bf16.mxu0 %v3503
    %4330 = vmatpush2.bf16.msra.mxu0 %v3502
    %4331 = vmatprep.subr.bf16.mxu0 %v3495
    %4332 = vmatpush2.bf16.msra.mxu0 %v3494
    %4333 = vmatprep.subr.bf16.mxu0 %v3487
    %4334 = vmatpush2.bf16.msra.mxu0 %v3486
    %4335 = vmatprep.subr.bf16.mxu0 %v3479
    %4336 = vmatpush2.bf16.msra.mxu0 %v3478
    %4337 = vmatprep.subr.bf16.mxu0 %v3471
    %4338 = vmatpush2.bf16.msra.mxu0 %v3470
    %4339 = vmatprep.subr.bf16.mxu0 %v3463
    %4340 = vmatpush2.bf16.msra.mxu0 %v3462
    %4341 = vmatprep.subr.bf16.mxu0 %v3455
    %4342 = vmatpush2.bf16.msra.mxu0 %v3454
    %4343 = vmatprep.subr.bf16.mxu0 %v3447
    %4344 = vmatpush2.bf16.msra.mxu0 %v3446
    %4345 = vmatprep.mubr.bf16.mxu0 %v3775
    %4346 = vmatmul.mubr.bf16.gmra.mxu0 %v3774
    %v4347 = vpop.f32.mrf.mxu0
    %v4348 = vadd.f32 %v4307, %v4347
    %v4349 = vpop.f32.mrf.mxu0
    %v4350 = vadd.f32 %v4309, %v4349
    %v4351 = vpop.f32.mrf.mxu0
    %v4352 = vpop.f32.mrf.mxu0
    %4353 = vdwg.mxu0
    %4354 = vmatprep.subr.bf16.mxu0 %v3567
    %4355 = vmatpush1.bf16.msra.mxu0 %v3566
    %4356 = vmatprep.subr.bf16.mxu0 %v3559
    %4357 = vmatpush1.bf16.msra.mxu0 %v3558
    %4358 = vmatprep.subr.bf16.mxu0 %v3551
    %4359 = vmatpush1.bf16.msra.mxu0 %v3550
    %4360 = vmatprep.subr.bf16.mxu0 %v3543
    %4361 = vmatpush1.bf16.msra.mxu0 %v3542
    %4362 = vmatprep.subr.bf16.mxu0 %v3535
    %4363 = vmatpush1.bf16.msra.mxu0 %v3534
    %4364 = vmatprep.subr.bf16.mxu0 %v3527
    %4365 = vmatpush1.bf16.msra.mxu0 %v3526
    %4366 = vmatprep.subr.bf16.mxu0 %v3519
    %4367 = vmatpush1.bf16.msra.mxu0 %v3518
    %4368 = vmatprep.subr.bf16.mxu0 %v3511
    %4369 = vmatpush1.bf16.msra.mxu0 %v3510
    %4370 = vmatprep.subr.bf16.mxu0 %v3631
    %4371 = vmatpush2.bf16.msra.mxu0 %v3630
    %4372 = vmatprep.subr.bf16.mxu0 %v3623
    %4373 = vmatpush2.bf16.msra.mxu0 %v3622
    %4374 = vmatprep.subr.bf16.mxu0 %v3615
    %4375 = vmatpush2.bf16.msra.mxu0 %v3614
    %4376 = vmatprep.subr.bf16.mxu0 %v3607
    %4377 = vmatpush2.bf16.msra.mxu0 %v3606
    %4378 = vmatprep.subr.bf16.mxu0 %v3599
    %4379 = vmatpush2.bf16.msra.mxu0 %v3598
    %4380 = vmatprep.subr.bf16.mxu0 %v3591
    %4381 = vmatpush2.bf16.msra.mxu0 %v3590
    %4382 = vmatprep.subr.bf16.mxu0 %v3583
    %4383 = vmatpush2.bf16.msra.mxu0 %v3582
    %4384 = vmatprep.subr.bf16.mxu0 %v3575
    %4385 = vmatpush2.bf16.msra.mxu0 %v3574
    %4386 = vmatprep.mubr.bf16.mxu0 %v3777
    %4387 = vmatmul.mubr.bf16.gmra.mxu0 %v3776
    %v4388 = vpop.f32.mrf.mxu0
    %v4389 = vadd.f32 %v4348, %v4388
    %v4390 = vpop.f32.mrf.mxu0
    %v4391 = vadd.f32 %v4350, %v4390
    %v4392 = vpop.f32.mrf.mxu0
    %v4393 = vpop.f32.mrf.mxu0
    %4394 = vdwg.mxu0
    %4395 = vmatprep.subr.bf16.mxu0 %v3695
    %4396 = vmatpush1.bf16.msra.mxu0 %v3694
    %4397 = vmatprep.subr.bf16.mxu0 %v3687
    %4398 = vmatpush1.bf16.msra.mxu0 %v3686
    %4399 = vmatprep.subr.bf16.mxu0 %v3679
    %4400 = vmatpush1.bf16.msra.mxu0 %v3678
    %4401 = vmatprep.subr.bf16.mxu0 %v3671
    %4402 = vmatpush1.bf16.msra.mxu0 %v3670
    %4403 = vmatprep.subr.bf16.mxu0 %v3663
    %4404 = vmatpush1.bf16.msra.mxu0 %v3662
    %4405 = vmatprep.subr.bf16.mxu0 %v3655
    %4406 = vmatpush1.bf16.msra.mxu0 %v3654
    %4407 = vmatprep.subr.bf16.mxu0 %v3647
    %4408 = vmatpush1.bf16.msra.mxu0 %v3646
    %4409 = vmatprep.subr.bf16.mxu0 %v3639
    %4410 = vmatpush1.bf16.msra.mxu0 %v3638
    %4411 = vmatprep.subr.bf16.mxu0 %v3759
    %4412 = vmatpush2.bf16.msra.mxu0 %v3758
    %4413 = vmatprep.subr.bf16.mxu0 %v3751
    %4414 = vmatpush2.bf16.msra.mxu0 %v3750
    %4415 = vmatprep.subr.bf16.mxu0 %v3743
    %4416 = vmatpush2.bf16.msra.mxu0 %v3742
    %4417 = vmatprep.subr.bf16.mxu0 %v3735
    %4418 = vmatpush2.bf16.msra.mxu0 %v3734
    %4419 = vmatprep.subr.bf16.mxu0 %v3727
    %4420 = vmatpush2.bf16.msra.mxu0 %v3726
    %4421 = vmatprep.subr.bf16.mxu0 %v3719
    %4422 = vmatpush2.bf16.msra.mxu0 %v3718
    %4423 = vmatprep.subr.bf16.mxu0 %v3711
    %4424 = vmatpush2.bf16.msra.mxu0 %v3710
    %4425 = vmatprep.subr.bf16.mxu0 %v3703
    %4426 = vmatpush2.bf16.msra.mxu0 %v3702
    %4427 = vmatprep.mubr.bf16.mxu0 %v3779
    %4428 = vmatmul.mubr.bf16.gmra.mxu0 %v3778
    %v4429 = vpop.f32.mrf.mxu0
    %v4430 = vadd.f32 %v4389, %v4429
    %v4431 = vpop.f32.mrf.mxu0
    %v4432 = vadd.f32 %v4391, %v4431
    %v4433 = vpop.f32.mrf.mxu0
    %v4434 = vpop.f32.mrf.mxu0
    %4435 = vdwg.mxu0
    %4436 = vmatprep.subr.bf16.mxu0 %v2801
    %4437 = vmatpush1.bf16.msra.mxu0 %v2800
    %4438 = vmatprep.subr.bf16.mxu0 %v2793
    %4439 = vmatpush1.bf16.msra.mxu0 %v2792
    %4440 = vmatprep.subr.bf16.mxu0 %v2785
    %4441 = vmatpush1.bf16.msra.mxu0 %v2784
    %4442 = vmatprep.subr.bf16.mxu0 %v2777
    %4443 = vmatpush1.bf16.msra.mxu0 %v2776
    %4444 = vmatprep.subr.bf16.mxu0 %v2769
    %4445 = vmatpush1.bf16.msra.mxu0 %v2768
    %4446 = vmatprep.subr.bf16.mxu0 %v2761
    %4447 = vmatpush1.bf16.msra.mxu0 %v2760
    %4448 = vmatprep.subr.bf16.mxu0 %v2753
    %4449 = vmatpush1.bf16.msra.mxu0 %v2752
    %4450 = vmatprep.subr.bf16.mxu0 %v2745
    %4451 = vmatpush1.bf16.msra.mxu0 %v2744
    %4452 = vmatprep.subr.bf16.mxu0 %v2865
    %4453 = vmatpush2.bf16.msra.mxu0 %v2864
    %4454 = vmatprep.subr.bf16.mxu0 %v2857
    %4455 = vmatpush2.bf16.msra.mxu0 %v2856
    %4456 = vmatprep.subr.bf16.mxu0 %v2849
    %4457 = vmatpush2.bf16.msra.mxu0 %v2848
    %4458 = vmatprep.subr.bf16.mxu0 %v2841
    %4459 = vmatpush2.bf16.msra.mxu0 %v2840
    %4460 = vmatprep.subr.bf16.mxu0 %v2833
    %4461 = vmatpush2.bf16.msra.mxu0 %v2832
    %4462 = vmatprep.subr.bf16.mxu0 %v2825
    %4463 = vmatpush2.bf16.msra.mxu0 %v2824
    %4464 = vmatprep.subr.bf16.mxu0 %v2817
    %4465 = vmatpush2.bf16.msra.mxu0 %v2816
    %4466 = vmatprep.subr.bf16.mxu0 %v2809
    %4467 = vmatpush2.bf16.msra.mxu0 %v2808
    %4468 = vmatprep.mubr.bf16.mxu0 %v3765
    %4469 = vmatmul.mubr.bf16.gmra.mxu0 %v3764
    %v4470 = vpop.f32.mrf.mxu0
    %v4471 = vadd.f32 0.0, %v4470
    %v4472 = vpop.f32.mrf.mxu0
    %v4473 = vadd.f32 0.0, %v4472
    %v4474 = vpop.f32.mrf.mxu0
    %v4475 = vpop.f32.mrf.mxu0
    %4476 = vdwg.mxu0
    %4477 = vmatprep.subr.bf16.mxu0 %v2929
    %4478 = vmatpush1.bf16.msra.mxu0 %v2928
    %4479 = vmatprep.subr.bf16.mxu0 %v2921
    %4480 = vmatpush1.bf16.msra.mxu0 %v2920
    %4481 = vmatprep.subr.bf16.mxu0 %v2913
    %4482 = vmatpush1.bf16.msra.mxu0 %v2912
    %4483 = vmatprep.subr.bf16.mxu0 %v2905
    %4484 = vmatpush1.bf16.msra.mxu0 %v2904
    %4485 = vmatprep.subr.bf16.mxu0 %v2897
    %4486 = vmatpush1.bf16.msra.mxu0 %v2896
    %4487 = vmatprep.subr.bf16.mxu0 %v2889
    %4488 = vmatpush1.bf16.msra.mxu0 %v2888
    %4489 = vmatprep.subr.bf16.mxu0 %v2881
    %4490 = vmatpush1.bf16.msra.mxu0 %v2880
    %4491 = vmatprep.subr.bf16.mxu0 %v2873
    %4492 = vmatpush1.bf16.msra.mxu0 %v2872
    %4493 = vmatprep.subr.bf16.mxu0 %v2993
    %4494 = vmatpush2.bf16.msra.mxu0 %v2992
    %4495 = vmatprep.subr.bf16.mxu0 %v2985
    %4496 = vmatpush2.bf16.msra.mxu0 %v2984
    %4497 = vmatprep.subr.bf16.mxu0 %v2977
    %4498 = vmatpush2.bf16.msra.mxu0 %v2976
    %4499 = vmatprep.subr.bf16.mxu0 %v2969
    %4500 = vmatpush2.bf16.msra.mxu0 %v2968
    %4501 = vmatprep.subr.bf16.mxu0 %v2961
    %4502 = vmatpush2.bf16.msra.mxu0 %v2960
    %4503 = vmatprep.subr.bf16.mxu0 %v2953
    %4504 = vmatpush2.bf16.msra.mxu0 %v2952
    %4505 = vmatprep.subr.bf16.mxu0 %v2945
    %4506 = vmatpush2.bf16.msra.mxu0 %v2944
    %4507 = vmatprep.subr.bf16.mxu0 %v2937
    %4508 = vmatpush2.bf16.msra.mxu0 %v2936
    %4509 = vmatprep.mubr.bf16.mxu0 %v3767
    %4510 = vmatmul.mubr.bf16.gmra.mxu0 %v3766
    %v4511 = vpop.f32.mrf.mxu0
    %v4512 = vadd.f32 %v4471, %v4511
    %v4513 = vpop.f32.mrf.mxu0
    %v4514 = vadd.f32 %v4473, %v4513
    %v4515 = vpop.f32.mrf.mxu0
    %v4516 = vpop.f32.mrf.mxu0
    %4517 = vdwg.mxu0
    %4518 = vmatprep.subr.bf16.mxu0 %v3057
    %4519 = vmatpush1.bf16.msra.mxu0 %v3056
    %4520 = vmatprep.subr.bf16.mxu0 %v3049
    %4521 = vmatpush1.bf16.msra.mxu0 %v3048
    %4522 = vmatprep.subr.bf16.mxu0 %v3041
    %4523 = vmatpush1.bf16.msra.mxu0 %v3040
    %4524 = vmatprep.subr.bf16.mxu0 %v3033
    %4525 = vmatpush1.bf16.msra.mxu0 %v3032
    %4526 = vmatprep.subr.bf16.mxu0 %v3025
    %4527 = vmatpush1.bf16.msra.mxu0 %v3024
    %4528 = vmatprep.subr.bf16.mxu0 %v3017
    %4529 = vmatpush1.bf16.msra.mxu0 %v3016
    %4530 = vmatprep.subr.bf16.mxu0 %v3009
    %4531 = vmatpush1.bf16.msra.mxu0 %v3008
    %4532 = vmatprep.subr.bf16.mxu0 %v3001
    %4533 = vmatpush1.bf16.msra.mxu0 %v3000
    %4534 = vmatprep.subr.bf16.mxu0 %v3121
    %4535 = vmatpush2.bf16.msra.mxu0 %v3120
    %4536 = vmatprep.subr.bf16.mxu0 %v3113
    %4537 = vmatpush2.bf16.msra.mxu0 %v3112
    %4538 = vmatprep.subr.bf16.mxu0 %v3105
    %4539 = vmatpush2.bf16.msra.mxu0 %v3104
    %4540 = vmatprep.subr.bf16.mxu0 %v3097
    %4541 = vmatpush2.bf16.msra.mxu0 %v3096
    %4542 = vmatprep.subr.bf16.mxu0 %v3089
    %4543 = vmatpush2.bf16.msra.mxu0 %v3088
    %4544 = vmatprep.subr.bf16.mxu0 %v3081
    %4545 = vmatpush2.bf16.msra.mxu0 %v3080
    %4546 = vmatprep.subr.bf16.mxu0 %v3073
    %4547 = vmatpush2.bf16.msra.mxu0 %v3072
    %4548 = vmatprep.subr.bf16.mxu0 %v3065
    %4549 = vmatpush2.bf16.msra.mxu0 %v3064
    %4550 = vmatprep.mubr.bf16.mxu0 %v3769
    %4551 = vmatmul.mubr.bf16.gmra.mxu0 %v3768
    %v4552 = vpop.f32.mrf.mxu0
    %v4553 = vadd.f32 %v4512, %v4552
    %v4554 = vpop.f32.mrf.mxu0
    %v4555 = vadd.f32 %v4514, %v4554
    %v4556 = vpop.f32.mrf.mxu0
    %v4557 = vpop.f32.mrf.mxu0
    %4558 = vdwg.mxu0
    %4559 = vmatprep.subr.bf16.mxu0 %v3185
    %4560 = vmatpush1.bf16.msra.mxu0 %v3184
    %4561 = vmatprep.subr.bf16.mxu0 %v3177
    %4562 = vmatpush1.bf16.msra.mxu0 %v3176
    %4563 = vmatprep.subr.bf16.mxu0 %v3169
    %4564 = vmatpush1.bf16.msra.mxu0 %v3168
    %4565 = vmatprep.subr.bf16.mxu0 %v3161
    %4566 = vmatpush1.bf16.msra.mxu0 %v3160
    %4567 = vmatprep.subr.bf16.mxu0 %v3153
    %4568 = vmatpush1.bf16.msra.mxu0 %v3152
    %4569 = vmatprep.subr.bf16.mxu0 %v3145
    %4570 = vmatpush1.bf16.msra.mxu0 %v3144
    %4571 = vmatprep.subr.bf16.mxu0 %v3137
    %4572 = vmatpush1.bf16.msra.mxu0 %v3136
    %4573 = vmatprep.subr.bf16.mxu0 %v3129
    %4574 = vmatpush1.bf16.msra.mxu0 %v3128
    %4575 = vmatprep.subr.bf16.mxu0 %v3249
    %4576 = vmatpush2.bf16.msra.mxu0 %v3248
    %4577 = vmatprep.subr.bf16.mxu0 %v3241
    %4578 = vmatpush2.bf16.msra.mxu0 %v3240
    %4579 = vmatprep.subr.bf16.mxu0 %v3233
    %4580 = vmatpush2.bf16.msra.mxu0 %v3232
    %4581 = vmatprep.subr.bf16.mxu0 %v3225
    %4582 = vmatpush2.bf16.msra.mxu0 %v3224
    %4583 = vmatprep.subr.bf16.mxu0 %v3217
    %4584 = vmatpush2.bf16.msra.mxu0 %v3216
    %4585 = vmatprep.subr.bf16.mxu0 %v3209
    %4586 = vmatpush2.bf16.msra.mxu0 %v3208
    %4587 = vmatprep.subr.bf16.mxu0 %v3201
    %4588 = vmatpush2.bf16.msra.mxu0 %v3200
    %4589 = vmatprep.subr.bf16.mxu0 %v3193
    %4590 = vmatpush2.bf16.msra.mxu0 %v3192
    %4591 = vmatprep.mubr.bf16.mxu0 %v3771
    %4592 = vmatmul.mubr.bf16.gmra.mxu0 %v3770
    %v4593 = vpop.f32.mrf.mxu0
    %v4594 = vadd.f32 %v4553, %v4593
    %v4595 = vpop.f32.mrf.mxu0
    %v4596 = vadd.f32 %v4555, %v4595
    %v4597 = vpop.f32.mrf.mxu0
    %v4598 = vpop.f32.mrf.mxu0
    %4599 = vdwg.mxu0
    %4600 = vmatprep.subr.bf16.mxu0 %v3313
    %4601 = vmatpush1.bf16.msra.mxu0 %v3312
    %4602 = vmatprep.subr.bf16.mxu0 %v3305
    %4603 = vmatpush1.bf16.msra.mxu0 %v3304
    %4604 = vmatprep.subr.bf16.mxu0 %v3297
    %4605 = vmatpush1.bf16.msra.mxu0 %v3296
    %4606 = vmatprep.subr.bf16.mxu0 %v3289
    %4607 = vmatpush1.bf16.msra.mxu0 %v3288
    %4608 = vmatprep.subr.bf16.mxu0 %v3281
    %4609 = vmatpush1.bf16.msra.mxu0 %v3280
    %4610 = vmatprep.subr.bf16.mxu0 %v3273
    %4611 = vmatpush1.bf16.msra.mxu0 %v3272
    %4612 = vmatprep.subr.bf16.mxu0 %v3265
    %4613 = vmatpush1.bf16.msra.mxu0 %v3264
    %4614 = vmatprep.subr.bf16.mxu0 %v3257
    %4615 = vmatpush1.bf16.msra.mxu0 %v3256
    %4616 = vmatprep.subr.bf16.mxu0 %v3377
    %4617 = vmatpush2.bf16.msra.mxu0 %v3376
    %4618 = vmatprep.subr.bf16.mxu0 %v3369
    %4619 = vmatpush2.bf16.msra.mxu0 %v3368
    %4620 = vmatprep.subr.bf16.mxu0 %v3361
    %4621 = vmatpush2.bf16.msra.mxu0 %v3360
    %4622 = vmatprep.subr.bf16.mxu0 %v3353
    %4623 = vmatpush2.bf16.msra.mxu0 %v3352
    %4624 = vmatprep.subr.bf16.mxu0 %v3345
    %4625 = vmatpush2.bf16.msra.mxu0 %v3344
    %4626 = vmatprep.subr.bf16.mxu0 %v3337
    %4627 = vmatpush2.bf16.msra.mxu0 %v3336
    %4628 = vmatprep.subr.bf16.mxu0 %v3329
    %4629 = vmatpush2.bf16.msra.mxu0 %v3328
    %4630 = vmatprep.subr.bf16.mxu0 %v3321
    %4631 = vmatpush2.bf16.msra.mxu0 %v3320
    %4632 = vmatprep.mubr.bf16.mxu0 %v3773
    %4633 = vmatmul.mubr.bf16.gmra.mxu0 %v3772
    %v4634 = vpop.f32.mrf.mxu0
    %v4635 = vadd.f32 %v4594, %v4634
    %v4636 = vpop.f32.mrf.mxu0
    %v4637 = vadd.f32 %v4596, %v4636
    %v4638 = vpop.f32.mrf.mxu0
    %v4639 = vpop.f32.mrf.mxu0
    %4640 = vdwg.mxu0
    %4641 = vmatprep.subr.bf16.mxu0 %v3441
    %4642 = vmatpush1.bf16.msra.mxu0 %v3440
    %4643 = vmatprep.subr.bf16.mxu0 %v3433
    %4644 = vmatpush1.bf16.msra.mxu0 %v3432
    %4645 = vmatprep.subr.bf16.mxu0 %v3425
    %4646 = vmatpush1.bf16.msra.mxu0 %v3424
    %4647 = vmatprep.subr.bf16.mxu0 %v3417
    %4648 = vmatpush1.bf16.msra.mxu0 %v3416
    %4649 = vmatprep.subr.bf16.mxu0 %v3409
    %4650 = vmatpush1.bf16.msra.mxu0 %v3408
    %4651 = vmatprep.subr.bf16.mxu0 %v3401
    %4652 = vmatpush1.bf16.msra.mxu0 %v3400
    %4653 = vmatprep.subr.bf16.mxu0 %v3393
    %4654 = vmatpush1.bf16.msra.mxu0 %v3392
    %4655 = vmatprep.subr.bf16.mxu0 %v3385
    %4656 = vmatpush1.bf16.msra.mxu0 %v3384
    %4657 = vmatprep.subr.bf16.mxu0 %v3505
    %4658 = vmatpush2.bf16.msra.mxu0 %v3504
    %4659 = vmatprep.subr.bf16.mxu0 %v3497
    %4660 = vmatpush2.bf16.msra.mxu0 %v3496
    %4661 = vmatprep.subr.bf16.mxu0 %v3489
    %4662 = vmatpush2.bf16.msra.mxu0 %v3488
    %4663 = vmatprep.subr.bf16.mxu0 %v3481
    %4664 = vmatpush2.bf16.msra.mxu0 %v3480
    %4665 = vmatprep.subr.bf16.mxu0 %v3473
    %4666 = vmatpush2.bf16.msra.mxu0 %v3472
    %4667 = vmatprep.subr.bf16.mxu0 %v3465
    %4668 = vmatpush2.bf16.msra.mxu0 %v3464
    %4669 = vmatprep.subr.bf16.mxu0 %v3457
    %4670 = vmatpush2.bf16.msra.mxu0 %v3456
    %4671 = vmatprep.subr.bf16.mxu0 %v3449
    %4672 = vmatpush2.bf16.msra.mxu0 %v3448
    %4673 = vmatprep.mubr.bf16.mxu0 %v3775
    %4674 = vmatmul.mubr.bf16.gmra.mxu0 %v3774
    %v4675 = vpop.f32.mrf.mxu0
    %v4676 = vadd.f32 %v4635, %v4675
    %v4677 = vpop.f32.mrf.mxu0
    %v4678 = vadd.f32 %v4637, %v4677
    %v4679 = vpop.f32.mrf.mxu0
    %v4680 = vpop.f32.mrf.mxu0
    %4681 = vdwg.mxu0
    %4682 = vmatprep.subr.bf16.mxu0 %v3569
    %4683 = vmatpush1.bf16.msra.mxu0 %v3568
    %4684 = vmatprep.subr.bf16.mxu0 %v3561
    %4685 = vmatpush1.bf16.msra.mxu0 %v3560
    %4686 = vmatprep.subr.bf16.mxu0 %v3553
    %4687 = vmatpush1.bf16.msra.mxu0 %v3552
    %4688 = vmatprep.subr.bf16.mxu0 %v3545
    %4689 = vmatpush1.bf16.msra.mxu0 %v3544
    %4690 = vmatprep.subr.bf16.mxu0 %v3537
    %4691 = vmatpush1.bf16.msra.mxu0 %v3536
    %4692 = vmatprep.subr.bf16.mxu0 %v3529
    %4693 = vmatpush1.bf16.msra.mxu0 %v3528
    %4694 = vmatprep.subr.bf16.mxu0 %v3521
    %4695 = vmatpush1.bf16.msra.mxu0 %v3520
    %4696 = vmatprep.subr.bf16.mxu0 %v3513
    %4697 = vmatpush1.bf16.msra.mxu0 %v3512
    %4698 = vmatprep.subr.bf16.mxu0 %v3633
    %4699 = vmatpush2.bf16.msra.mxu0 %v3632
    %4700 = vmatprep.subr.bf16.mxu0 %v3625
    %4701 = vmatpush2.bf16.msra.mxu0 %v3624
    %4702 = vmatprep.subr.bf16.mxu0 %v3617
    %4703 = vmatpush2.bf16.msra.mxu0 %v3616
    %4704 = vmatprep.subr.bf16.mxu0 %v3609
    %4705 = vmatpush2.bf16.msra.mxu0 %v3608
    %4706 = vmatprep.subr.bf16.mxu0 %v3601
    %4707 = vmatpush2.bf16.msra.mxu0 %v3600
    %4708 = vmatprep.subr.bf16.mxu0 %v3593
    %4709 = vmatpush2.bf16.msra.mxu0 %v3592
    %4710 = vmatprep.subr.bf16.mxu0 %v3585
    %4711 = vmatpush2.bf16.msra.mxu0 %v3584
    %4712 = vmatprep.subr.bf16.mxu0 %v3577
    %4713 = vmatpush2.bf16.msra.mxu0 %v3576
    %4714 = vmatprep.mubr.bf16.mxu0 %v3777
    %4715 = vmatmul.mubr.bf16.gmra.mxu0 %v3776
    %v4716 = vpop.f32.mrf.mxu0
    %v4717 = vadd.f32 %v4676, %v4716
    %v4718 = vpop.f32.mrf.mxu0
    %v4719 = vadd.f32 %v4678, %v4718
    %v4720 = vpop.f32.mrf.mxu0
    %v4721 = vpop.f32.mrf.mxu0
    %4722 = vdwg.mxu0
    %4723 = vmatprep.subr.bf16.mxu0 %v3697
    %4724 = vmatpush1.bf16.msra.mxu0 %v3696
    %4725 = vmatprep.subr.bf16.mxu0 %v3689
    %4726 = vmatpush1.bf16.msra.mxu0 %v3688
    %4727 = vmatprep.subr.bf16.mxu0 %v3681
    %4728 = vmatpush1.bf16.msra.mxu0 %v3680
    %4729 = vmatprep.subr.bf16.mxu0 %v3673
    %4730 = vmatpush1.bf16.msra.mxu0 %v3672
    %4731 = vmatprep.subr.bf16.mxu0 %v3665
    %4732 = vmatpush1.bf16.msra.mxu0 %v3664
    %4733 = vmatprep.subr.bf16.mxu0 %v3657
    %4734 = vmatpush1.bf16.msra.mxu0 %v3656
    %4735 = vmatprep.subr.bf16.mxu0 %v3649
    %4736 = vmatpush1.bf16.msra.mxu0 %v3648
    %4737 = vmatprep.subr.bf16.mxu0 %v3641
    %4738 = vmatpush1.bf16.msra.mxu0 %v3640
    %4739 = vmatprep.subr.bf16.mxu0 %v3761
    %4740 = vmatpush2.bf16.msra.mxu0 %v3760
    %4741 = vmatprep.subr.bf16.mxu0 %v3753
    %4742 = vmatpush2.bf16.msra.mxu0 %v3752
    %4743 = vmatprep.subr.bf16.mxu0 %v3745
    %4744 = vmatpush2.bf16.msra.mxu0 %v3744
    %4745 = vmatprep.subr.bf16.mxu0 %v3737
    %4746 = vmatpush2.bf16.msra.mxu0 %v3736
    %4747 = vmatprep.subr.bf16.mxu0 %v3729
    %4748 = vmatpush2.bf16.msra.mxu0 %v3728
    %4749 = vmatprep.subr.bf16.mxu0 %v3721
    %4750 = vmatpush2.bf16.msra.mxu0 %v3720
    %4751 = vmatprep.subr.bf16.mxu0 %v3713
    %4752 = vmatpush2.bf16.msra.mxu0 %v3712
    %4753 = vmatprep.subr.bf16.mxu0 %v3705
    %4754 = vmatpush2.bf16.msra.mxu0 %v3704
    %4755 = vmatprep.mubr.bf16.mxu0 %v3779
    %4756 = vmatmul.mubr.bf16.gmra.mxu0 %v3778
    %v4757 = vpop.f32.mrf.mxu0
    %v4758 = vadd.f32 %v4717, %v4757
    %v4759 = vpop.f32.mrf.mxu0
    %v4760 = vadd.f32 %v4719, %v4759
    %v4761 = vpop.f32.mrf.mxu0
    %v4762 = vpop.f32.mrf.mxu0
    %4763 = vdwg.mxu0
    %4764 = vmatprep.subr.bf16.mxu0 %v2803
    %4765 = vmatpush1.bf16.msra.mxu0 %v2802
    %4766 = vmatprep.subr.bf16.mxu0 %v2795
    %4767 = vmatpush1.bf16.msra.mxu0 %v2794
    %4768 = vmatprep.subr.bf16.mxu0 %v2787
    %4769 = vmatpush1.bf16.msra.mxu0 %v2786
    %4770 = vmatprep.subr.bf16.mxu0 %v2779
    %4771 = vmatpush1.bf16.msra.mxu0 %v2778
    %4772 = vmatprep.subr.bf16.mxu0 %v2771
    %4773 = vmatpush1.bf16.msra.mxu0 %v2770
    %4774 = vmatprep.subr.bf16.mxu0 %v2763
    %4775 = vmatpush1.bf16.msra.mxu0 %v2762
    %4776 = vmatprep.subr.bf16.mxu0 %v2755
    %4777 = vmatpush1.bf16.msra.mxu0 %v2754
    %4778 = vmatprep.subr.bf16.mxu0 %v2747
    %4779 = vmatpush1.bf16.msra.mxu0 %v2746
    %4780 = vmatprep.subr.bf16.mxu0 %v2867
    %4781 = vmatpush2.bf16.msra.mxu0 %v2866
    %4782 = vmatprep.subr.bf16.mxu0 %v2859
    %4783 = vmatpush2.bf16.msra.mxu0 %v2858
    %4784 = vmatprep.subr.bf16.mxu0 %v2851
    %4785 = vmatpush2.bf16.msra.mxu0 %v2850
    %4786 = vmatprep.subr.bf16.mxu0 %v2843
    %4787 = vmatpush2.bf16.msra.mxu0 %v2842
    %4788 = vmatprep.subr.bf16.mxu0 %v2835
    %4789 = vmatpush2.bf16.msra.mxu0 %v2834
    %4790 = vmatprep.subr.bf16.mxu0 %v2827
    %4791 = vmatpush2.bf16.msra.mxu0 %v2826
    %4792 = vmatprep.subr.bf16.mxu0 %v2819
    %4793 = vmatpush2.bf16.msra.mxu0 %v2818
    %4794 = vmatprep.subr.bf16.mxu0 %v2811
    %4795 = vmatpush2.bf16.msra.mxu0 %v2810
    %4796 = vmatprep.mubr.bf16.mxu0 %v3765
    %4797 = vmatmul.mubr.bf16.gmra.mxu0 %v3764
    %v4798 = vpop.f32.mrf.mxu0
    %v4799 = vadd.f32 0.0, %v4798
    %v4800 = vpop.f32.mrf.mxu0
    %v4801 = vadd.f32 0.0, %v4800
    %v4802 = vpop.f32.mrf.mxu0
    %v4803 = vpop.f32.mrf.mxu0
    %4804 = vdwg.mxu0
    %4805 = vmatprep.subr.bf16.mxu0 %v2931
    %4806 = vmatpush1.bf16.msra.mxu0 %v2930
    %4807 = vmatprep.subr.bf16.mxu0 %v2923
    %4808 = vmatpush1.bf16.msra.mxu0 %v2922
    %4809 = vmatprep.subr.bf16.mxu0 %v2915
    %4810 = vmatpush1.bf16.msra.mxu0 %v2914
    %4811 = vmatprep.subr.bf16.mxu0 %v2907
    %4812 = vmatpush1.bf16.msra.mxu0 %v2906
    %4813 = vmatprep.subr.bf16.mxu0 %v2899
    %4814 = vmatpush1.bf16.msra.mxu0 %v2898
    %4815 = vmatprep.subr.bf16.mxu0 %v2891
    %4816 = vmatpush1.bf16.msra.mxu0 %v2890
    %4817 = vmatprep.subr.bf16.mxu0 %v2883
    %4818 = vmatpush1.bf16.msra.mxu0 %v2882
    %4819 = vmatprep.subr.bf16.mxu0 %v2875
    %4820 = vmatpush1.bf16.msra.mxu0 %v2874
    %4821 = vmatprep.subr.bf16.mxu0 %v2995
    %4822 = vmatpush2.bf16.msra.mxu0 %v2994
    %4823 = vmatprep.subr.bf16.mxu0 %v2987
    %4824 = vmatpush2.bf16.msra.mxu0 %v2986
    %4825 = vmatprep.subr.bf16.mxu0 %v2979
    %4826 = vmatpush2.bf16.msra.mxu0 %v2978
    %4827 = vmatprep.subr.bf16.mxu0 %v2971
    %4828 = vmatpush2.bf16.msra.mxu0 %v2970
    %4829 = vmatprep.subr.bf16.mxu0 %v2963
    %4830 = vmatpush2.bf16.msra.mxu0 %v2962
    %4831 = vmatprep.subr.bf16.mxu0 %v2955
    %4832 = vmatpush2.bf16.msra.mxu0 %v2954
    %4833 = vmatprep.subr.bf16.mxu0 %v2947
    %4834 = vmatpush2.bf16.msra.mxu0 %v2946
    %4835 = vmatprep.subr.bf16.mxu0 %v2939
    %4836 = vmatpush2.bf16.msra.mxu0 %v2938
    %4837 = vmatprep.mubr.bf16.mxu0 %v3767
    %4838 = vmatmul.mubr.bf16.gmra.mxu0 %v3766
    %v4839 = vpop.f32.mrf.mxu0
    %v4840 = vadd.f32 %v4799, %v4839
    %v4841 = vpop.f32.mrf.mxu0
    %v4842 = vadd.f32 %v4801, %v4841
    %v4843 = vpop.f32.mrf.mxu0
    %v4844 = vpop.f32.mrf.mxu0
    %4845 = vdwg.mxu0
    %4846 = vmatprep.subr.bf16.mxu0 %v3059
    %4847 = vmatpush1.bf16.msra.mxu0 %v3058
    %4848 = vmatprep.subr.bf16.mxu0 %v3051
    %4849 = vmatpush1.bf16.msra.mxu0 %v3050
    %4850 = vmatprep.subr.bf16.mxu0 %v3043
    %4851 = vmatpush1.bf16.msra.mxu0 %v3042
    %4852 = vmatprep.subr.bf16.mxu0 %v3035
    %4853 = vmatpush1.bf16.msra.mxu0 %v3034
    %4854 = vmatprep.subr.bf16.mxu0 %v3027
    %4855 = vmatpush1.bf16.msra.mxu0 %v3026
    %4856 = vmatprep.subr.bf16.mxu0 %v3019
    %4857 = vmatpush1.bf16.msra.mxu0 %v3018
    %4858 = vmatprep.subr.bf16.mxu0 %v3011
    %4859 = vmatpush1.bf16.msra.mxu0 %v3010
    %4860 = vmatprep.subr.bf16.mxu0 %v3003
    %4861 = vmatpush1.bf16.msra.mxu0 %v3002
    %4862 = vmatprep.subr.bf16.mxu0 %v3123
    %4863 = vmatpush2.bf16.msra.mxu0 %v3122
    %4864 = vmatprep.subr.bf16.mxu0 %v3115
    %4865 = vmatpush2.bf16.msra.mxu0 %v3114
    %4866 = vmatprep.subr.bf16.mxu0 %v3107
    %4867 = vmatpush2.bf16.msra.mxu0 %v3106
    %4868 = vmatprep.subr.bf16.mxu0 %v3099
    %4869 = vmatpush2.bf16.msra.mxu0 %v3098
    %4870 = vmatprep.subr.bf16.mxu0 %v3091
    %4871 = vmatpush2.bf16.msra.mxu0 %v3090
    %4872 = vmatprep.subr.bf16.mxu0 %v3083
    %4873 = vmatpush2.bf16.msra.mxu0 %v3082
    %4874 = vmatprep.subr.bf16.mxu0 %v3075
    %4875 = vmatpush2.bf16.msra.mxu0 %v3074
    %4876 = vmatprep.subr.bf16.mxu0 %v3067
    %4877 = vmatpush2.bf16.msra.mxu0 %v3066
    %4878 = vmatprep.mubr.bf16.mxu0 %v3769
    %4879 = vmatmul.mubr.bf16.gmra.mxu0 %v3768
    %v4880 = vpop.f32.mrf.mxu0
    %v4881 = vadd.f32 %v4840, %v4880
    %v4882 = vpop.f32.mrf.mxu0
    %v4883 = vadd.f32 %v4842, %v4882
    %v4884 = vpop.f32.mrf.mxu0
    %v4885 = vpop.f32.mrf.mxu0
    %4886 = vdwg.mxu0
    %4887 = vmatprep.subr.bf16.mxu0 %v3187
    %4888 = vmatpush1.bf16.msra.mxu0 %v3186
    %4889 = vmatprep.subr.bf16.mxu0 %v3179
    %4890 = vmatpush1.bf16.msra.mxu0 %v3178
    %4891 = vmatprep.subr.bf16.mxu0 %v3171
    %4892 = vmatpush1.bf16.msra.mxu0 %v3170
    %4893 = vmatprep.subr.bf16.mxu0 %v3163
    %4894 = vmatpush1.bf16.msra.mxu0 %v3162
    %4895 = vmatprep.subr.bf16.mxu0 %v3155
    %4896 = vmatpush1.bf16.msra.mxu0 %v3154
    %4897 = vmatprep.subr.bf16.mxu0 %v3147
    %4898 = vmatpush1.bf16.msra.mxu0 %v3146
    %4899 = vmatprep.subr.bf16.mxu0 %v3139
    %4900 = vmatpush1.bf16.msra.mxu0 %v3138
    %4901 = vmatprep.subr.bf16.mxu0 %v3131
    %4902 = vmatpush1.bf16.msra.mxu0 %v3130
    %4903 = vmatprep.subr.bf16.mxu0 %v3251
    %4904 = vmatpush2.bf16.msra.mxu0 %v3250
    %4905 = vmatprep.subr.bf16.mxu0 %v3243
    %4906 = vmatpush2.bf16.msra.mxu0 %v3242
    %4907 = vmatprep.subr.bf16.mxu0 %v3235
    %4908 = vmatpush2.bf16.msra.mxu0 %v3234
    %4909 = vmatprep.subr.bf16.mxu0 %v3227
    %4910 = vmatpush2.bf16.msra.mxu0 %v3226
    %4911 = vmatprep.subr.bf16.mxu0 %v3219
    %4912 = vmatpush2.bf16.msra.mxu0 %v3218
    %4913 = vmatprep.subr.bf16.mxu0 %v3211
    %4914 = vmatpush2.bf16.msra.mxu0 %v3210
    %4915 = vmatprep.subr.bf16.mxu0 %v3203
    %4916 = vmatpush2.bf16.msra.mxu0 %v3202
    %4917 = vmatprep.subr.bf16.mxu0 %v3195
    %4918 = vmatpush2.bf16.msra.mxu0 %v3194
    %4919 = vmatprep.mubr.bf16.mxu0 %v3771
    %4920 = vmatmul.mubr.bf16.gmra.mxu0 %v3770
    %v4921 = vpop.f32.mrf.mxu0
    %v4922 = vadd.f32 %v4881, %v4921
    %v4923 = vpop.f32.mrf.mxu0
    %v4924 = vadd.f32 %v4883, %v4923
    %v4925 = vpop.f32.mrf.mxu0
    %v4926 = vpop.f32.mrf.mxu0
    %4927 = vdwg.mxu0
    %4928 = vmatprep.subr.bf16.mxu0 %v3315
    %4929 = vmatpush1.bf16.msra.mxu0 %v3314
    %4930 = vmatprep.subr.bf16.mxu0 %v3307
    %4931 = vmatpush1.bf16.msra.mxu0 %v3306
    %4932 = vmatprep.subr.bf16.mxu0 %v3299
    %4933 = vmatpush1.bf16.msra.mxu0 %v3298
    %4934 = vmatprep.subr.bf16.mxu0 %v3291
    %4935 = vmatpush1.bf16.msra.mxu0 %v3290
    %4936 = vmatprep.subr.bf16.mxu0 %v3283
    %4937 = vmatpush1.bf16.msra.mxu0 %v3282
    %4938 = vmatprep.subr.bf16.mxu0 %v3275
    %4939 = vmatpush1.bf16.msra.mxu0 %v3274
    %4940 = vmatprep.subr.bf16.mxu0 %v3267
    %4941 = vmatpush1.bf16.msra.mxu0 %v3266
    %4942 = vmatprep.subr.bf16.mxu0 %v3259
    %4943 = vmatpush1.bf16.msra.mxu0 %v3258
    %4944 = vmatprep.subr.bf16.mxu0 %v3379
    %4945 = vmatpush2.bf16.msra.mxu0 %v3378
    %4946 = vmatprep.subr.bf16.mxu0 %v3371
    %4947 = vmatpush2.bf16.msra.mxu0 %v3370
    %4948 = vmatprep.subr.bf16.mxu0 %v3363
    %4949 = vmatpush2.bf16.msra.mxu0 %v3362
    %4950 = vmatprep.subr.bf16.mxu0 %v3355
    %4951 = vmatpush2.bf16.msra.mxu0 %v3354
    %4952 = vmatprep.subr.bf16.mxu0 %v3347
    %4953 = vmatpush2.bf16.msra.mxu0 %v3346
    %4954 = vmatprep.subr.bf16.mxu0 %v3339
    %4955 = vmatpush2.bf16.msra.mxu0 %v3338
    %4956 = vmatprep.subr.bf16.mxu0 %v3331
    %4957 = vmatpush2.bf16.msra.mxu0 %v3330
    %4958 = vmatprep.subr.bf16.mxu0 %v3323
    %4959 = vmatpush2.bf16.msra.mxu0 %v3322
    %4960 = vmatprep.mubr.bf16.mxu0 %v3773
    %4961 = vmatmul.mubr.bf16.gmra.mxu0 %v3772
    %v4962 = vpop.f32.mrf.mxu0
    %v4963 = vadd.f32 %v4922, %v4962
    %v4964 = vpop.f32.mrf.mxu0
    %v4965 = vadd.f32 %v4924, %v4964
    %v4966 = vpop.f32.mrf.mxu0
    %v4967 = vpop.f32.mrf.mxu0
    %4968 = vdwg.mxu0
    %4969 = vmatprep.subr.bf16.mxu0 %v3443
    %4970 = vmatpush1.bf16.msra.mxu0 %v3442
    %4971 = vmatprep.subr.bf16.mxu0 %v3435
    %4972 = vmatpush1.bf16.msra.mxu0 %v3434
    %4973 = vmatprep.subr.bf16.mxu0 %v3427
    %4974 = vmatpush1.bf16.msra.mxu0 %v3426
    %4975 = vmatprep.subr.bf16.mxu0 %v3419
    %4976 = vmatpush1.bf16.msra.mxu0 %v3418
    %4977 = vmatprep.subr.bf16.mxu0 %v3411
    %4978 = vmatpush1.bf16.msra.mxu0 %v3410
    %4979 = vmatprep.subr.bf16.mxu0 %v3403
    %4980 = vmatpush1.bf16.msra.mxu0 %v3402
    %4981 = vmatprep.subr.bf16.mxu0 %v3395
    %4982 = vmatpush1.bf16.msra.mxu0 %v3394
    %4983 = vmatprep.subr.bf16.mxu0 %v3387
    %4984 = vmatpush1.bf16.msra.mxu0 %v3386
    %4985 = vmatprep.subr.bf16.mxu0 %v3507
    %4986 = vmatpush2.bf16.msra.mxu0 %v3506
    %4987 = vmatprep.subr.bf16.mxu0 %v3499
    %4988 = vmatpush2.bf16.msra.mxu0 %v3498
    %4989 = vmatprep.subr.bf16.mxu0 %v3491
    %4990 = vmatpush2.bf16.msra.mxu0 %v3490
    %4991 = vmatprep.subr.bf16.mxu0 %v3483
    %4992 = vmatpush2.bf16.msra.mxu0 %v3482
    %4993 = vmatprep.subr.bf16.mxu0 %v3475
    %4994 = vmatpush2.bf16.msra.mxu0 %v3474
    %4995 = vmatprep.subr.bf16.mxu0 %v3467
    %4996 = vmatpush2.bf16.msra.mxu0 %v3466
    %4997 = vmatprep.subr.bf16.mxu0 %v3459
    %4998 = vmatpush2.bf16.msra.mxu0 %v3458
    %4999 = vmatprep.subr.bf16.mxu0 %v3451
    %5000 = vmatpush2.bf16.msra.mxu0 %v3450
    %5001 = vmatprep.mubr.bf16.mxu0 %v3775
    %5002 = vmatmul.mubr.bf16.gmra.mxu0 %v3774
    %v5003 = vpop.f32.mrf.mxu0
    %v5004 = vadd.f32 %v4963, %v5003
    %v5005 = vpop.f32.mrf.mxu0
    %v5006 = vadd.f32 %v4965, %v5005
    %v5007 = vpop.f32.mrf.mxu0
    %v5008 = vpop.f32.mrf.mxu0
    %5009 = vdwg.mxu0
    %5010 = vmatprep.subr.bf16.mxu0 %v3571
    %5011 = vmatpush1.bf16.msra.mxu0 %v3570
    %5012 = vmatprep.subr.bf16.mxu0 %v3563
    %5013 = vmatpush1.bf16.msra.mxu0 %v3562
    %5014 = vmatprep.subr.bf16.mxu0 %v3555
    %5015 = vmatpush1.bf16.msra.mxu0 %v3554
    %5016 = vmatprep.subr.bf16.mxu0 %v3547
    %5017 = vmatpush1.bf16.msra.mxu0 %v3546
    %5018 = vmatprep.subr.bf16.mxu0 %v3539
    %5019 = vmatpush1.bf16.msra.mxu0 %v3538
    %5020 = vmatprep.subr.bf16.mxu0 %v3531
    %5021 = vmatpush1.bf16.msra.mxu0 %v3530
    %5022 = vmatprep.subr.bf16.mxu0 %v3523
    %5023 = vmatpush1.bf16.msra.mxu0 %v3522
    %5024 = vmatprep.subr.bf16.mxu0 %v3515
    %5025 = vmatpush1.bf16.msra.mxu0 %v3514
    %5026 = vmatprep.subr.bf16.mxu0 %v3635
    %5027 = vmatpush2.bf16.msra.mxu0 %v3634
    %5028 = vmatprep.subr.bf16.mxu0 %v3627
    %5029 = vmatpush2.bf16.msra.mxu0 %v3626
    %5030 = vmatprep.subr.bf16.mxu0 %v3619
    %5031 = vmatpush2.bf16.msra.mxu0 %v3618
    %5032 = vmatprep.subr.bf16.mxu0 %v3611
    %5033 = vmatpush2.bf16.msra.mxu0 %v3610
    %5034 = vmatprep.subr.bf16.mxu0 %v3603
    %5035 = vmatpush2.bf16.msra.mxu0 %v3602
    %5036 = vmatprep.subr.bf16.mxu0 %v3595
    %5037 = vmatpush2.bf16.msra.mxu0 %v3594
    %5038 = vmatprep.subr.bf16.mxu0 %v3587
    %5039 = vmatpush2.bf16.msra.mxu0 %v3586
    %5040 = vmatprep.subr.bf16.mxu0 %v3579
    %5041 = vmatpush2.bf16.msra.mxu0 %v3578
    %5042 = vmatprep.mubr.bf16.mxu0 %v3777
    %5043 = vmatmul.mubr.bf16.gmra.mxu0 %v3776
    %v5044 = vpop.f32.mrf.mxu0
    %v5045 = vadd.f32 %v5004, %v5044
    %v5046 = vpop.f32.mrf.mxu0
    %v5047 = vadd.f32 %v5006, %v5046
    %v5048 = vpop.f32.mrf.mxu0
    %v5049 = vpop.f32.mrf.mxu0
    %5050 = vdwg.mxu0
    %5051 = vmatprep.subr.bf16.mxu0 %v3699
    %5052 = vmatpush1.bf16.msra.mxu0 %v3698
    %5053 = vmatprep.subr.bf16.mxu0 %v3691
    %5054 = vmatpush1.bf16.msra.mxu0 %v3690
    %5055 = vmatprep.subr.bf16.mxu0 %v3683
    %5056 = vmatpush1.bf16.msra.mxu0 %v3682
    %5057 = vmatprep.subr.bf16.mxu0 %v3675
    %5058 = vmatpush1.bf16.msra.mxu0 %v3674
    %5059 = vmatprep.subr.bf16.mxu0 %v3667
    %5060 = vmatpush1.bf16.msra.mxu0 %v3666
    %5061 = vmatprep.subr.bf16.mxu0 %v3659
    %5062 = vmatpush1.bf16.msra.mxu0 %v3658
    %5063 = vmatprep.subr.bf16.mxu0 %v3651
    %5064 = vmatpush1.bf16.msra.mxu0 %v3650
    %5065 = vmatprep.subr.bf16.mxu0 %v3643
    %5066 = vmatpush1.bf16.msra.mxu0 %v3642
    %5067 = vmatprep.subr.bf16.mxu0 %v3763
    %5068 = vmatpush2.bf16.msra.mxu0 %v3762
    %5069 = vmatprep.subr.bf16.mxu0 %v3755
    %5070 = vmatpush2.bf16.msra.mxu0 %v3754
    %5071 = vmatprep.subr.bf16.mxu0 %v3747
    %5072 = vmatpush2.bf16.msra.mxu0 %v3746
    %5073 = vmatprep.subr.bf16.mxu0 %v3739
    %5074 = vmatpush2.bf16.msra.mxu0 %v3738
    %5075 = vmatprep.subr.bf16.mxu0 %v3731
    %5076 = vmatpush2.bf16.msra.mxu0 %v3730
    %5077 = vmatprep.subr.bf16.mxu0 %v3723
    %5078 = vmatpush2.bf16.msra.mxu0 %v3722
    %5079 = vmatprep.subr.bf16.mxu0 %v3715
    %5080 = vmatpush2.bf16.msra.mxu0 %v3714
    %5081 = vmatprep.subr.bf16.mxu0 %v3707
    %5082 = vmatpush2.bf16.msra.mxu0 %v3706
    %5083 = vmatprep.mubr.bf16.mxu0 %v3779
    %5084 = vmatmul.mubr.bf16.gmra.mxu0 %v3778
    %v5085 = vpop.f32.mrf.mxu0
    %v5086 = vadd.f32 %v5045, %v5085
    %v5087 = vpop.f32.mrf.mxu0
    %v5088 = vadd.f32 %v5047, %v5087
    %v5089 = vpop.f32.mrf.mxu0
    %v5090 = vpop.f32.mrf.mxu0
    %5091 = vdwg.mxu0
    %s5092 = scalar_lea.vmem [#allocation7], 128
    %v5093 = vld [vmem:[%s5092] ss:$8 sm:$0xf]
    %v5094 = vld [vmem:[%s5092] ss:$8 sm:$0xf0]
    %v5095 = vor.u32 %v5093, %v5094
    %s5096 = scalar_lea.vmem [#allocation7], 1
    %v5097 = vld [vmem:[%s5096] ss:$8 sm:$0xf]
    %v5098 = vld [vmem:[%s5096] ss:$8 sm:$0xf0]
    %v5099 = vor.u32 %v5097, %v5098
    %v5101 = vlaneseq
    %v5102 = vshrl.u32 %v5101, 7
    %v5103 = vsub.s32 0, %v5102
    %v5104 = vrot.slane %v5095, %v5103
    %v5105 = vlaneseq
    %v5106 = vshrl.u32 %v5105, 7
    %v5107 = vsub.s32 1, %v5106
    %v5108 = vrot.slane %v5095, %v5107
    %v5109 = vlaneseq
    %v5110 = vshrl.u32 %v5109, 7
    %v5111 = vsub.s32 2, %v5110
    %v5112 = vrot.slane %v5095, %v5111
    %v5113 = vlaneseq
    %v5114 = vshrl.u32 %v5113, 7
    %v5115 = vsub.s32 3, %v5114
    %v5116 = vrot.slane %v5095, %v5115
    %v5117 = vlaneseq
    %v5118 = vshrl.u32 %v5117, 7
    %v5119 = vsub.s32 4, %v5118
    %v5120 = vrot.slane %v5095, %v5119
    %v5121 = vlaneseq
    %v5122 = vshrl.u32 %v5121, 7
    %v5123 = vsub.s32 5, %v5122
    %v5124 = vrot.slane %v5095, %v5123
    %v5125 = vlaneseq
    %v5126 = vshrl.u32 %v5125, 7
    %v5127 = vsub.s32 6, %v5126
    %v5128 = vrot.slane %v5095, %v5127
    %v5129 = vlaneseq
    %v5130 = vshrl.u32 %v5129, 7
    %v5131 = vsub.s32 7, %v5130
    %v5132 = vrot.slane %v5095, %v5131
    %v5141 = vmul.f32 %v4102, %v5104
    %v5142 = vmul.f32 %v4104, %v5108
    %v5143 = vmul.f32 %v4430, %v5112
    %v5144 = vmul.f32 %v4432, %v5116
    %v5145 = vmul.f32 %v4758, %v5120
    %v5146 = vmul.f32 %v4760, %v5124
    %v5147 = vmul.f32 %v5086, %v5128
    %v5148 = vmul.f32 %v5088, %v5132
    %v5150 = vlaneseq
    %v5151 = vshrl.u32 %v5150, 7
    %v5152 = vsub.s32 0, %v5151
    %v5153 = vrot.slane %v5099, %v5152
    %v5154 = vlaneseq
    %v5155 = vshrl.u32 %v5154, 7
    %v5156 = vsub.s32 1, %v5155
    %v5157 = vrot.slane %v5099, %v5156
    %v5158 = vlaneseq
    %v5159 = vshrl.u32 %v5158, 7
    %v5160 = vsub.s32 2, %v5159
    %v5161 = vrot.slane %v5099, %v5160
    %v5162 = vlaneseq
    %v5163 = vshrl.u32 %v5162, 7
    %v5164 = vsub.s32 3, %v5163
    %v5165 = vrot.slane %v5099, %v5164
    %v5166 = vlaneseq
    %v5167 = vshrl.u32 %v5166, 7
    %v5168 = vsub.s32 4, %v5167
    %v5169 = vrot.slane %v5099, %v5168
    %v5170 = vlaneseq
    %v5171 = vshrl.u32 %v5170, 7
    %v5172 = vsub.s32 5, %v5171
    %v5173 = vrot.slane %v5099, %v5172
    %v5174 = vlaneseq
    %v5175 = vshrl.u32 %v5174, 7
    %v5176 = vsub.s32 6, %v5175
    %v5177 = vrot.slane %v5099, %v5176
    %v5178 = vlaneseq
    %v5179 = vshrl.u32 %v5178, 7
    %v5180 = vsub.s32 7, %v5179
    %v5181 = vrot.slane %v5099, %v5180
    %v5190 = vadd.f32 %v5141, %v5153
    %v5191 = vadd.f32 %v5142, %v5157
    %v5192 = vadd.f32 %v5143, %v5161
    %v5193 = vadd.f32 %v5144, %v5165
    %v5194 = vadd.f32 %v5145, %v5169
    %v5195 = vadd.f32 %v5146, %v5173
    %v5196 = vadd.f32 %v5147, %v5177
    %v5197 = vadd.f32 %v5148, %v5181
    %v5198 = vmax.f32 %v5190, 0.0
    %v5199 = vmax.f32 %v5191, 0.0
    %v5200 = vmax.f32 %v5192, 0.0
    %v5201 = vmax.f32 %v5193, 0.0
    %v5202 = vmax.f32 %v5194, 0.0
    %v5203 = vmax.f32 %v5195, 0.0
    %v5204 = vmax.f32 %v5196, 0.0
    %v5205 = vmax.f32 %v5197, 0.0
    %s5206 = smul.u32 2, 128
    %s5207 = smul.u32 %s5206, 4
    %s5208 = sshll.u32 %s5207, 4
    %5209 = dma.done %s71, %s5208
    %v5210 = vld [vmem:[#allocation4] sm:$0xff]
    %v5211 = vld [vmem:[#allocation4 + $0x8] sm:$0xff]
    %v5212 = vld [vmem:[#allocation4 + $0x10] sm:$0xff]
    %v5213 = vld [vmem:[#allocation4 + $0x18] sm:$0xff]
    %v5214 = vld [vmem:[#allocation4 + $0x20] sm:$0xff]
    %v5215 = vld [vmem:[#allocation4 + $0x28] sm:$0xff]
    %v5216 = vld [vmem:[#allocation4 + $0x30] sm:$0xff]
    %v5217 = vld [vmem:[#allocation4 + $0x38] sm:$0xff]
    %v5218 = vld [vmem:[#allocation4 + $0x40] sm:$0xff]
    %v5219 = vld [vmem:[#allocation4 + $0x48] sm:$0xff]
    %v5220 = vld [vmem:[#allocation4 + $0x50] sm:$0xff]
    %v5221 = vld [vmem:[#allocation4 + $0x58] sm:$0xff]
    %v5222 = vld [vmem:[#allocation4 + $0x60] sm:$0xff]
    %v5223 = vld [vmem:[#allocation4 + $0x68] sm:$0xff]
    %v5224 = vld [vmem:[#allocation4 + $0x70] sm:$0xff]
    %v5225 = vld [vmem:[#allocation4 + $0x78] sm:$0xff]
    %v5226 = vld [vmem:[#allocation4 + $0x80] sm:$0xff]
    %v5227 = vld [vmem:[#allocation4 + $0x88] sm:$0xff]
    %v5228 = vld [vmem:[#allocation4 + $0x90] sm:$0xff]
    %v5229 = vld [vmem:[#allocation4 + $0x98] sm:$0xff]
    %v5230 = vld [vmem:[#allocation4 + $0xa0] sm:$0xff]
    %v5231 = vld [vmem:[#allocation4 + $0xa8] sm:$0xff]
    %v5232 = vld [vmem:[#allocation4 + $0xb0] sm:$0xff]
    %v5233 = vld [vmem:[#allocation4 + $0xb8] sm:$0xff]
    %v5234 = vld [vmem:[#allocation4 + $0xc0] sm:$0xff]
    %v5235 = vld [vmem:[#allocation4 + $0xc8] sm:$0xff]
    %v5236 = vld [vmem:[#allocation4 + $0xd0] sm:$0xff]
    %v5237 = vld [vmem:[#allocation4 + $0xd8] sm:$0xff]
    %v5238 = vld [vmem:[#allocation4 + $0xe0] sm:$0xff]
    %v5239 = vld [vmem:[#allocation4 + $0xe8] sm:$0xff]
    %v5240 = vld [vmem:[#allocation4 + $0xf0] sm:$0xff]
    %v5241 = vld [vmem:[#allocation4 + $0xf8] sm:$0xff]
    %v5242 = vld [vmem:[#allocation4 + $0x100] sm:$0xff]
    %v5243 = vld [vmem:[#allocation4 + $0x108] sm:$0xff]
    %v5244 = vld [vmem:[#allocation4 + $0x110] sm:$0xff]
    %v5245 = vld [vmem:[#allocation4 + $0x118] sm:$0xff]
    %v5246 = vld [vmem:[#allocation4 + $0x120] sm:$0xff]
    %v5247 = vld [vmem:[#allocation4 + $0x128] sm:$0xff]
    %v5248 = vld [vmem:[#allocation4 + $0x130] sm:$0xff]
    %v5249 = vld [vmem:[#allocation4 + $0x138] sm:$0xff]
    %v5250 = vld [vmem:[#allocation4 + $0x140] sm:$0xff]
    %v5251 = vld [vmem:[#allocation4 + $0x148] sm:$0xff]
    %v5252 = vld [vmem:[#allocation4 + $0x150] sm:$0xff]
    %v5253 = vld [vmem:[#allocation4 + $0x158] sm:$0xff]
    %v5254 = vld [vmem:[#allocation4 + $0x160] sm:$0xff]
    %v5255 = vld [vmem:[#allocation4 + $0x168] sm:$0xff]
    %v5256 = vld [vmem:[#allocation4 + $0x170] sm:$0xff]
    %v5257 = vld [vmem:[#allocation4 + $0x178] sm:$0xff]
    %v5258 = vld [vmem:[#allocation4 + $0x180] sm:$0xff]
    %v5259 = vld [vmem:[#allocation4 + $0x188] sm:$0xff]
    %v5260 = vld [vmem:[#allocation4 + $0x190] sm:$0xff]
    %v5261 = vld [vmem:[#allocation4 + $0x198] sm:$0xff]
    %v5262 = vld [vmem:[#allocation4 + $0x1a0] sm:$0xff]
    %v5263 = vld [vmem:[#allocation4 + $0x1a8] sm:$0xff]
    %v5264 = vld [vmem:[#allocation4 + $0x1b0] sm:$0xff]
    %v5265 = vld [vmem:[#allocation4 + $0x1b8] sm:$0xff]
    %v5266 = vld [vmem:[#allocation4 + $0x1c0] sm:$0xff]
    %v5267 = vld [vmem:[#allocation4 + $0x1c8] sm:$0xff]
    %v5268 = vld [vmem:[#allocation4 + $0x1d0] sm:$0xff]
    %v5269 = vld [vmem:[#allocation4 + $0x1d8] sm:$0xff]
    %v5270 = vld [vmem:[#allocation4 + $0x1e0] sm:$0xff]
    %v5271 = vld [vmem:[#allocation4 + $0x1e8] sm:$0xff]
    %v5272 = vld [vmem:[#allocation4 + $0x1f0] sm:$0xff]
    %v5273 = vld [vmem:[#allocation4 + $0x1f8] sm:$0xff]
    %v5274 = vld [vmem:[#allocation4 + $0x200] sm:$0xff]
    %v5275 = vld [vmem:[#allocation4 + $0x208] sm:$0xff]
    %v5276 = vld [vmem:[#allocation4 + $0x210] sm:$0xff]
    %v5277 = vld [vmem:[#allocation4 + $0x218] sm:$0xff]
    %v5278 = vld [vmem:[#allocation4 + $0x220] sm:$0xff]
    %v5279 = vld [vmem:[#allocation4 + $0x228] sm:$0xff]
    %v5280 = vld [vmem:[#allocation4 + $0x230] sm:$0xff]
    %v5281 = vld [vmem:[#allocation4 + $0x238] sm:$0xff]
    %v5282 = vld [vmem:[#allocation4 + $0x240] sm:$0xff]
    %v5283 = vld [vmem:[#allocation4 + $0x248] sm:$0xff]
    %v5284 = vld [vmem:[#allocation4 + $0x250] sm:$0xff]
    %v5285 = vld [vmem:[#allocation4 + $0x258] sm:$0xff]
    %v5286 = vld [vmem:[#allocation4 + $0x260] sm:$0xff]
    %v5287 = vld [vmem:[#allocation4 + $0x268] sm:$0xff]
    %v5288 = vld [vmem:[#allocation4 + $0x270] sm:$0xff]
    %v5289 = vld [vmem:[#allocation4 + $0x278] sm:$0xff]
    %v5290 = vld [vmem:[#allocation4 + $0x280] sm:$0xff]
    %v5291 = vld [vmem:[#allocation4 + $0x288] sm:$0xff]
    %v5292 = vld [vmem:[#allocation4 + $0x290] sm:$0xff]
    %v5293 = vld [vmem:[#allocation4 + $0x298] sm:$0xff]
    %v5294 = vld [vmem:[#allocation4 + $0x2a0] sm:$0xff]
    %v5295 = vld [vmem:[#allocation4 + $0x2a8] sm:$0xff]
    %v5296 = vld [vmem:[#allocation4 + $0x2b0] sm:$0xff]
    %v5297 = vld [vmem:[#allocation4 + $0x2b8] sm:$0xff]
    %v5298 = vld [vmem:[#allocation4 + $0x2c0] sm:$0xff]
    %v5299 = vld [vmem:[#allocation4 + $0x2c8] sm:$0xff]
    %v5300 = vld [vmem:[#allocation4 + $0x2d0] sm:$0xff]
    %v5301 = vld [vmem:[#allocation4 + $0x2d8] sm:$0xff]
    %v5302 = vld [vmem:[#allocation4 + $0x2e0] sm:$0xff]
    %v5303 = vld [vmem:[#allocation4 + $0x2e8] sm:$0xff]
    %v5304 = vld [vmem:[#allocation4 + $0x2f0] sm:$0xff]
    %v5305 = vld [vmem:[#allocation4 + $0x2f8] sm:$0xff]
    %v5306 = vld [vmem:[#allocation4 + $0x300] sm:$0xff]
    %v5307 = vld [vmem:[#allocation4 + $0x308] sm:$0xff]
    %v5308 = vld [vmem:[#allocation4 + $0x310] sm:$0xff]
    %v5309 = vld [vmem:[#allocation4 + $0x318] sm:$0xff]
    %v5310 = vld [vmem:[#allocation4 + $0x320] sm:$0xff]
    %v5311 = vld [vmem:[#allocation4 + $0x328] sm:$0xff]
    %v5312 = vld [vmem:[#allocation4 + $0x330] sm:$0xff]
    %v5313 = vld [vmem:[#allocation4 + $0x338] sm:$0xff]
    %v5314 = vld [vmem:[#allocation4 + $0x340] sm:$0xff]
    %v5315 = vld [vmem:[#allocation4 + $0x348] sm:$0xff]
    %v5316 = vld [vmem:[#allocation4 + $0x350] sm:$0xff]
    %v5317 = vld [vmem:[#allocation4 + $0x358] sm:$0xff]
    %v5318 = vld [vmem:[#allocation4 + $0x360] sm:$0xff]
    %v5319 = vld [vmem:[#allocation4 + $0x368] sm:$0xff]
    %v5320 = vld [vmem:[#allocation4 + $0x370] sm:$0xff]
    %v5321 = vld [vmem:[#allocation4 + $0x378] sm:$0xff]
    %v5322 = vld [vmem:[#allocation4 + $0x380] sm:$0xff]
    %v5323 = vld [vmem:[#allocation4 + $0x388] sm:$0xff]
    %v5324 = vld [vmem:[#allocation4 + $0x390] sm:$0xff]
    %v5325 = vld [vmem:[#allocation4 + $0x398] sm:$0xff]
    %v5326 = vld [vmem:[#allocation4 + $0x3a0] sm:$0xff]
    %v5327 = vld [vmem:[#allocation4 + $0x3a8] sm:$0xff]
    %v5328 = vld [vmem:[#allocation4 + $0x3b0] sm:$0xff]
    %v5329 = vld [vmem:[#allocation4 + $0x3b8] sm:$0xff]
    %v5330 = vld [vmem:[#allocation4 + $0x3c0] sm:$0xff]
    %v5331 = vld [vmem:[#allocation4 + $0x3c8] sm:$0xff]
    %v5332 = vld [vmem:[#allocation4 + $0x3d0] sm:$0xff]
    %v5333 = vld [vmem:[#allocation4 + $0x3d8] sm:$0xff]
    %v5334 = vld [vmem:[#allocation4 + $0x3e0] sm:$0xff]
    %v5335 = vld [vmem:[#allocation4 + $0x3e8] sm:$0xff]
    %v5336 = vld [vmem:[#allocation4 + $0x3f0] sm:$0xff]
    %v5337 = vld [vmem:[#allocation4 + $0x3f8] sm:$0xff]
    %v5338 = vunpack.c.l.s8.bf16 %v5210
    %v5339 = vunpack.c.l.s8.bf16 %v5211
    %v5340 = vunpack.c.l.s8.bf16 %v5212
    %v5341 = vunpack.c.l.s8.bf16 %v5213
    %v5342 = vunpack.c.h.s8.bf16 %v5210
    %v5343 = vunpack.c.h.s8.bf16 %v5211
    %v5344 = vunpack.c.h.s8.bf16 %v5212
    %v5345 = vunpack.c.h.s8.bf16 %v5213
    %v5346 = vunpack.c.l.s8.bf16 %v5214
    %v5347 = vunpack.c.l.s8.bf16 %v5215
    %v5348 = vunpack.c.l.s8.bf16 %v5216
    %v5349 = vunpack.c.l.s8.bf16 %v5217
    %v5350 = vunpack.c.h.s8.bf16 %v5214
    %v5351 = vunpack.c.h.s8.bf16 %v5215
    %v5352 = vunpack.c.h.s8.bf16 %v5216
    %v5353 = vunpack.c.h.s8.bf16 %v5217
    %v5354 = vunpack.c.l.s8.bf16 %v5218
    %v5355 = vunpack.c.l.s8.bf16 %v5219
    %v5356 = vunpack.c.l.s8.bf16 %v5220
    %v5357 = vunpack.c.l.s8.bf16 %v5221
    %v5358 = vunpack.c.h.s8.bf16 %v5218
    %v5359 = vunpack.c.h.s8.bf16 %v5219
    %v5360 = vunpack.c.h.s8.bf16 %v5220
    %v5361 = vunpack.c.h.s8.bf16 %v5221
    %v5362 = vunpack.c.l.s8.bf16 %v5222
    %v5363 = vunpack.c.l.s8.bf16 %v5223
    %v5364 = vunpack.c.l.s8.bf16 %v5224
    %v5365 = vunpack.c.l.s8.bf16 %v5225
    %v5366 = vunpack.c.h.s8.bf16 %v5222
    %v5367 = vunpack.c.h.s8.bf16 %v5223
    %v5368 = vunpack.c.h.s8.bf16 %v5224
    %v5369 = vunpack.c.h.s8.bf16 %v5225
    %v5370 = vunpack.c.l.s8.bf16 %v5226
    %v5371 = vunpack.c.l.s8.bf16 %v5227
    %v5372 = vunpack.c.l.s8.bf16 %v5228
    %v5373 = vunpack.c.l.s8.bf16 %v5229
    %v5374 = vunpack.c.h.s8.bf16 %v5226
    %v5375 = vunpack.c.h.s8.bf16 %v5227
    %v5376 = vunpack.c.h.s8.bf16 %v5228
    %v5377 = vunpack.c.h.s8.bf16 %v5229
    %v5378 = vunpack.c.l.s8.bf16 %v5230
    %v5379 = vunpack.c.l.s8.bf16 %v5231
    %v5380 = vunpack.c.l.s8.bf16 %v5232
    %v5381 = vunpack.c.l.s8.bf16 %v5233
    %v5382 = vunpack.c.h.s8.bf16 %v5230
    %v5383 = vunpack.c.h.s8.bf16 %v5231
    %v5384 = vunpack.c.h.s8.bf16 %v5232
    %v5385 = vunpack.c.h.s8.bf16 %v5233
    %v5386 = vunpack.c.l.s8.bf16 %v5234
    %v5387 = vunpack.c.l.s8.bf16 %v5235
    %v5388 = vunpack.c.l.s8.bf16 %v5236
    %v5389 = vunpack.c.l.s8.bf16 %v5237
    %v5390 = vunpack.c.h.s8.bf16 %v5234
    %v5391 = vunpack.c.h.s8.bf16 %v5235
    %v5392 = vunpack.c.h.s8.bf16 %v5236
    %v5393 = vunpack.c.h.s8.bf16 %v5237
    %v5394 = vunpack.c.l.s8.bf16 %v5238
    %v5395 = vunpack.c.l.s8.bf16 %v5239
    %v5396 = vunpack.c.l.s8.bf16 %v5240
    %v5397 = vunpack.c.l.s8.bf16 %v5241
    %v5398 = vunpack.c.h.s8.bf16 %v5238
    %v5399 = vunpack.c.h.s8.bf16 %v5239
    %v5400 = vunpack.c.h.s8.bf16 %v5240
    %v5401 = vunpack.c.h.s8.bf16 %v5241
    %v5402 = vunpack.c.l.s8.bf16 %v5242
    %v5403 = vunpack.c.l.s8.bf16 %v5243
    %v5404 = vunpack.c.l.s8.bf16 %v5244
    %v5405 = vunpack.c.l.s8.bf16 %v5245
    %v5406 = vunpack.c.h.s8.bf16 %v5242
    %v5407 = vunpack.c.h.s8.bf16 %v5243
    %v5408 = vunpack.c.h.s8.bf16 %v5244
    %v5409 = vunpack.c.h.s8.bf16 %v5245
    %v5410 = vunpack.c.l.s8.bf16 %v5246
    %v5411 = vunpack.c.l.s8.bf16 %v5247
    %v5412 = vunpack.c.l.s8.bf16 %v5248
    %v5413 = vunpack.c.l.s8.bf16 %v5249
    %v5414 = vunpack.c.h.s8.bf16 %v5246
    %v5415 = vunpack.c.h.s8.bf16 %v5247
    %v5416 = vunpack.c.h.s8.bf16 %v5248
    %v5417 = vunpack.c.h.s8.bf16 %v5249
    %v5418 = vunpack.c.l.s8.bf16 %v5250
    %v5419 = vunpack.c.l.s8.bf16 %v5251
    %v5420 = vunpack.c.l.s8.bf16 %v5252
    %v5421 = vunpack.c.l.s8.bf16 %v5253
    %v5422 = vunpack.c.h.s8.bf16 %v5250
    %v5423 = vunpack.c.h.s8.bf16 %v5251
    %v5424 = vunpack.c.h.s8.bf16 %v5252
    %v5425 = vunpack.c.h.s8.bf16 %v5253
    %v5426 = vunpack.c.l.s8.bf16 %v5254
    %v5427 = vunpack.c.l.s8.bf16 %v5255
    %v5428 = vunpack.c.l.s8.bf16 %v5256
    %v5429 = vunpack.c.l.s8.bf16 %v5257
    %v5430 = vunpack.c.h.s8.bf16 %v5254
    %v5431 = vunpack.c.h.s8.bf16 %v5255
    %v5432 = vunpack.c.h.s8.bf16 %v5256
    %v5433 = vunpack.c.h.s8.bf16 %v5257
    %v5434 = vunpack.c.l.s8.bf16 %v5258
    %v5435 = vunpack.c.l.s8.bf16 %v5259
    %v5436 = vunpack.c.l.s8.bf16 %v5260
    %v5437 = vunpack.c.l.s8.bf16 %v5261
    %v5438 = vunpack.c.h.s8.bf16 %v5258
    %v5439 = vunpack.c.h.s8.bf16 %v5259
    %v5440 = vunpack.c.h.s8.bf16 %v5260
    %v5441 = vunpack.c.h.s8.bf16 %v5261
    %v5442 = vunpack.c.l.s8.bf16 %v5262
    %v5443 = vunpack.c.l.s8.bf16 %v5263
    %v5444 = vunpack.c.l.s8.bf16 %v5264
    %v5445 = vunpack.c.l.s8.bf16 %v5265
    %v5446 = vunpack.c.h.s8.bf16 %v5262
    %v5447 = vunpack.c.h.s8.bf16 %v5263
    %v5448 = vunpack.c.h.s8.bf16 %v5264
    %v5449 = vunpack.c.h.s8.bf16 %v5265
    %v5450 = vunpack.c.l.s8.bf16 %v5266
    %v5451 = vunpack.c.l.s8.bf16 %v5267
    %v5452 = vunpack.c.l.s8.bf16 %v5268
    %v5453 = vunpack.c.l.s8.bf16 %v5269
    %v5454 = vunpack.c.h.s8.bf16 %v5266
    %v5455 = vunpack.c.h.s8.bf16 %v5267
    %v5456 = vunpack.c.h.s8.bf16 %v5268
    %v5457 = vunpack.c.h.s8.bf16 %v5269
    %v5458 = vunpack.c.l.s8.bf16 %v5270
    %v5459 = vunpack.c.l.s8.bf16 %v5271
    %v5460 = vunpack.c.l.s8.bf16 %v5272
    %v5461 = vunpack.c.l.s8.bf16 %v5273
    %v5462 = vunpack.c.h.s8.bf16 %v5270
    %v5463 = vunpack.c.h.s8.bf16 %v5271
    %v5464 = vunpack.c.h.s8.bf16 %v5272
    %v5465 = vunpack.c.h.s8.bf16 %v5273
    %v5466 = vunpack.c.l.s8.bf16 %v5274
    %v5467 = vunpack.c.l.s8.bf16 %v5275
    %v5468 = vunpack.c.l.s8.bf16 %v5276
    %v5469 = vunpack.c.l.s8.bf16 %v5277
    %v5470 = vunpack.c.h.s8.bf16 %v5274
    %v5471 = vunpack.c.h.s8.bf16 %v5275
    %v5472 = vunpack.c.h.s8.bf16 %v5276
    %v5473 = vunpack.c.h.s8.bf16 %v5277
    %v5474 = vunpack.c.l.s8.bf16 %v5278
    %v5475 = vunpack.c.l.s8.bf16 %v5279
    %v5476 = vunpack.c.l.s8.bf16 %v5280
    %v5477 = vunpack.c.l.s8.bf16 %v5281
    %v5478 = vunpack.c.h.s8.bf16 %v5278
    %v5479 = vunpack.c.h.s8.bf16 %v5279
    %v5480 = vunpack.c.h.s8.bf16 %v5280
    %v5481 = vunpack.c.h.s8.bf16 %v5281
    %v5482 = vunpack.c.l.s8.bf16 %v5282
    %v5483 = vunpack.c.l.s8.bf16 %v5283
    %v5484 = vunpack.c.l.s8.bf16 %v5284
    %v5485 = vunpack.c.l.s8.bf16 %v5285
    %v5486 = vunpack.c.h.s8.bf16 %v5282
    %v5487 = vunpack.c.h.s8.bf16 %v5283
    %v5488 = vunpack.c.h.s8.bf16 %v5284
    %v5489 = vunpack.c.h.s8.bf16 %v5285
    %v5490 = vunpack.c.l.s8.bf16 %v5286
    %v5491 = vunpack.c.l.s8.bf16 %v5287
    %v5492 = vunpack.c.l.s8.bf16 %v5288
    %v5493 = vunpack.c.l.s8.bf16 %v5289
    %v5494 = vunpack.c.h.s8.bf16 %v5286
    %v5495 = vunpack.c.h.s8.bf16 %v5287
    %v5496 = vunpack.c.h.s8.bf16 %v5288
    %v5497 = vunpack.c.h.s8.bf16 %v5289
    %v5498 = vunpack.c.l.s8.bf16 %v5290
    %v5499 = vunpack.c.l.s8.bf16 %v5291
    %v5500 = vunpack.c.l.s8.bf16 %v5292
    %v5501 = vunpack.c.l.s8.bf16 %v5293
    %v5502 = vunpack.c.h.s8.bf16 %v5290
    %v5503 = vunpack.c.h.s8.bf16 %v5291
    %v5504 = vunpack.c.h.s8.bf16 %v5292
    %v5505 = vunpack.c.h.s8.bf16 %v5293
    %v5506 = vunpack.c.l.s8.bf16 %v5294
    %v5507 = vunpack.c.l.s8.bf16 %v5295
    %v5508 = vunpack.c.l.s8.bf16 %v5296
    %v5509 = vunpack.c.l.s8.bf16 %v5297
    %v5510 = vunpack.c.h.s8.bf16 %v5294
    %v5511 = vunpack.c.h.s8.bf16 %v5295
    %v5512 = vunpack.c.h.s8.bf16 %v5296
    %v5513 = vunpack.c.h.s8.bf16 %v5297
    %v5514 = vunpack.c.l.s8.bf16 %v5298
    %v5515 = vunpack.c.l.s8.bf16 %v5299
    %v5516 = vunpack.c.l.s8.bf16 %v5300
    %v5517 = vunpack.c.l.s8.bf16 %v5301
    %v5518 = vunpack.c.h.s8.bf16 %v5298
    %v5519 = vunpack.c.h.s8.bf16 %v5299
    %v5520 = vunpack.c.h.s8.bf16 %v5300
    %v5521 = vunpack.c.h.s8.bf16 %v5301
    %v5522 = vunpack.c.l.s8.bf16 %v5302
    %v5523 = vunpack.c.l.s8.bf16 %v5303
    %v5524 = vunpack.c.l.s8.bf16 %v5304
    %v5525 = vunpack.c.l.s8.bf16 %v5305
    %v5526 = vunpack.c.h.s8.bf16 %v5302
    %v5527 = vunpack.c.h.s8.bf16 %v5303
    %v5528 = vunpack.c.h.s8.bf16 %v5304
    %v5529 = vunpack.c.h.s8.bf16 %v5305
    %v5530 = vunpack.c.l.s8.bf16 %v5306
    %v5531 = vunpack.c.l.s8.bf16 %v5307
    %v5532 = vunpack.c.l.s8.bf16 %v5308
    %v5533 = vunpack.c.l.s8.bf16 %v5309
    %v5534 = vunpack.c.h.s8.bf16 %v5306
    %v5535 = vunpack.c.h.s8.bf16 %v5307
    %v5536 = vunpack.c.h.s8.bf16 %v5308
    %v5537 = vunpack.c.h.s8.bf16 %v5309
    %v5538 = vunpack.c.l.s8.bf16 %v5310
    %v5539 = vunpack.c.l.s8.bf16 %v5311
    %v5540 = vunpack.c.l.s8.bf16 %v5312
    %v5541 = vunpack.c.l.s8.bf16 %v5313
    %v5542 = vunpack.c.h.s8.bf16 %v5310
    %v5543 = vunpack.c.h.s8.bf16 %v5311
    %v5544 = vunpack.c.h.s8.bf16 %v5312
    %v5545 = vunpack.c.h.s8.bf16 %v5313
    %v5546 = vunpack.c.l.s8.bf16 %v5314
    %v5547 = vunpack.c.l.s8.bf16 %v5315
    %v5548 = vunpack.c.l.s8.bf16 %v5316
    %v5549 = vunpack.c.l.s8.bf16 %v5317
    %v5550 = vunpack.c.h.s8.bf16 %v5314
    %v5551 = vunpack.c.h.s8.bf16 %v5315
    %v5552 = vunpack.c.h.s8.bf16 %v5316
    %v5553 = vunpack.c.h.s8.bf16 %v5317
    %v5554 = vunpack.c.l.s8.bf16 %v5318
    %v5555 = vunpack.c.l.s8.bf16 %v5319
    %v5556 = vunpack.c.l.s8.bf16 %v5320
    %v5557 = vunpack.c.l.s8.bf16 %v5321
    %v5558 = vunpack.c.h.s8.bf16 %v5318
    %v5559 = vunpack.c.h.s8.bf16 %v5319
    %v5560 = vunpack.c.h.s8.bf16 %v5320
    %v5561 = vunpack.c.h.s8.bf16 %v5321
    %v5562 = vunpack.c.l.s8.bf16 %v5322
    %v5563 = vunpack.c.l.s8.bf16 %v5323
    %v5564 = vunpack.c.l.s8.bf16 %v5324
    %v5565 = vunpack.c.l.s8.bf16 %v5325
    %v5566 = vunpack.c.h.s8.bf16 %v5322
    %v5567 = vunpack.c.h.s8.bf16 %v5323
    %v5568 = vunpack.c.h.s8.bf16 %v5324
    %v5569 = vunpack.c.h.s8.bf16 %v5325
    %v5570 = vunpack.c.l.s8.bf16 %v5326
    %v5571 = vunpack.c.l.s8.bf16 %v5327
    %v5572 = vunpack.c.l.s8.bf16 %v5328
    %v5573 = vunpack.c.l.s8.bf16 %v5329
    %v5574 = vunpack.c.h.s8.bf16 %v5326
    %v5575 = vunpack.c.h.s8.bf16 %v5327
    %v5576 = vunpack.c.h.s8.bf16 %v5328
    %v5577 = vunpack.c.h.s8.bf16 %v5329
    %v5578 = vunpack.c.l.s8.bf16 %v5330
    %v5579 = vunpack.c.l.s8.bf16 %v5331
    %v5580 = vunpack.c.l.s8.bf16 %v5332
    %v5581 = vunpack.c.l.s8.bf16 %v5333
    %v5582 = vunpack.c.h.s8.bf16 %v5330
    %v5583 = vunpack.c.h.s8.bf16 %v5331
    %v5584 = vunpack.c.h.s8.bf16 %v5332
    %v5585 = vunpack.c.h.s8.bf16 %v5333
    %v5586 = vunpack.c.l.s8.bf16 %v5334
    %v5587 = vunpack.c.l.s8.bf16 %v5335
    %v5588 = vunpack.c.l.s8.bf16 %v5336
    %v5589 = vunpack.c.l.s8.bf16 %v5337
    %v5590 = vunpack.c.h.s8.bf16 %v5334
    %v5591 = vunpack.c.h.s8.bf16 %v5335
    %v5592 = vunpack.c.h.s8.bf16 %v5336
    %v5593 = vunpack.c.h.s8.bf16 %v5337
    %v5594 = vpack.c.bf16 %v5198, %v5198
    %v5595 = vpack.c.bf16 %v5199, %v5199
    %v5596 = vpack.c.bf16 %v5200, %v5200
    %v5597 = vpack.c.bf16 %v5201, %v5201
    %v5598 = vpack.c.bf16 %v5202, %v5202
    %v5599 = vpack.c.bf16 %v5203, %v5203
    %v5600 = vpack.c.bf16 %v5204, %v5204
    %v5601 = vpack.c.bf16 %v5205, %v5205
    %5602 = vmatprep.subr.bf16.mxu0 %v5367
    %5603 = vmatpush1.bf16.msra.mxu0 %v5366
    %5604 = vmatprep.subr.bf16.mxu0 %v5363
    %5605 = vmatpush1.bf16.msra.mxu0 %v5362
    %5606 = vmatprep.subr.bf16.mxu0 %v5359
    %5607 = vmatpush1.bf16.msra.mxu0 %v5358
    %5608 = vmatprep.subr.bf16.mxu0 %v5355
    %5609 = vmatpush1.bf16.msra.mxu0 %v5354
    %5610 = vmatprep.subr.bf16.mxu0 %v5351
    %5611 = vmatpush1.bf16.msra.mxu0 %v5350
    %5612 = vmatprep.subr.bf16.mxu0 %v5347
    %5613 = vmatpush1.bf16.msra.mxu0 %v5346
    %5614 = vmatprep.subr.bf16.mxu0 %v5343
    %5615 = vmatpush1.bf16.msra.mxu0 %v5342
    %5616 = vmatprep.subr.bf16.mxu0 %v5339
    %5617 = vmatpush1.bf16.msra.mxu0 %v5338
    %5618 = vmatprep.subr.bf16.mxu0 %v5399
    %5619 = vmatpush2.bf16.msra.mxu0 %v5398
    %5620 = vmatprep.subr.bf16.mxu0 %v5395
    %5621 = vmatpush2.bf16.msra.mxu0 %v5394
    %5622 = vmatprep.subr.bf16.mxu0 %v5391
    %5623 = vmatpush2.bf16.msra.mxu0 %v5390
    %5624 = vmatprep.subr.bf16.mxu0 %v5387
    %5625 = vmatpush2.bf16.msra.mxu0 %v5386
    %5626 = vmatprep.subr.bf16.mxu0 %v5383
    %5627 = vmatpush2.bf16.msra.mxu0 %v5382
    %5628 = vmatprep.subr.bf16.mxu0 %v5379
    %5629 = vmatpush2.bf16.msra.mxu0 %v5378
    %5630 = vmatprep.subr.bf16.mxu0 %v5375
    %5631 = vmatpush2.bf16.msra.mxu0 %v5374
    %5632 = vmatprep.subr.bf16.mxu0 %v5371
    %5633 = vmatpush2.bf16.msra.mxu0 %v5370
    %5634 = vmatprep.mubr.bf16.mxu0 %v5595
    %5635 = vmatmul.mubr.bf16.gmra.mxu0 %v5594
    %v5636 = vpop.f32.mrf.mxu0
    %v5637 = vadd.f32 0.0, %v5636
    %v5638 = vpop.f32.mrf.mxu0
    %v5639 = vadd.f32 0.0, %v5638
    %v5640 = vpop.f32.mrf.mxu0
    %v5641 = vpop.f32.mrf.mxu0
    %5642 = vdwg.mxu0
    %5643 = vmatprep.subr.bf16.mxu0 %v5431
    %5644 = vmatpush1.bf16.msra.mxu0 %v5430
    %5645 = vmatprep.subr.bf16.mxu0 %v5427
    %5646 = vmatpush1.bf16.msra.mxu0 %v5426
    %5647 = vmatprep.subr.bf16.mxu0 %v5423
    %5648 = vmatpush1.bf16.msra.mxu0 %v5422
    %5649 = vmatprep.subr.bf16.mxu0 %v5419
    %5650 = vmatpush1.bf16.msra.mxu0 %v5418
    %5651 = vmatprep.subr.bf16.mxu0 %v5415
    %5652 = vmatpush1.bf16.msra.mxu0 %v5414
    %5653 = vmatprep.subr.bf16.mxu0 %v5411
    %5654 = vmatpush1.bf16.msra.mxu0 %v5410
    %5655 = vmatprep.subr.bf16.mxu0 %v5407
    %5656 = vmatpush1.bf16.msra.mxu0 %v5406
    %5657 = vmatprep.subr.bf16.mxu0 %v5403
    %5658 = vmatpush1.bf16.msra.mxu0 %v5402
    %5659 = vmatprep.subr.bf16.mxu0 %v5463
    %5660 = vmatpush2.bf16.msra.mxu0 %v5462
    %5661 = vmatprep.subr.bf16.mxu0 %v5459
    %5662 = vmatpush2.bf16.msra.mxu0 %v5458
    %5663 = vmatprep.subr.bf16.mxu0 %v5455
    %5664 = vmatpush2.bf16.msra.mxu0 %v5454
    %5665 = vmatprep.subr.bf16.mxu0 %v5451
    %5666 = vmatpush2.bf16.msra.mxu0 %v5450
    %5667 = vmatprep.subr.bf16.mxu0 %v5447
    %5668 = vmatpush2.bf16.msra.mxu0 %v5446
    %5669 = vmatprep.subr.bf16.mxu0 %v5443
    %5670 = vmatpush2.bf16.msra.mxu0 %v5442
    %5671 = vmatprep.subr.bf16.mxu0 %v5439
    %5672 = vmatpush2.bf16.msra.mxu0 %v5438
    %5673 = vmatprep.subr.bf16.mxu0 %v5435
    %5674 = vmatpush2.bf16.msra.mxu0 %v5434
    %5675 = vmatprep.mubr.bf16.mxu0 %v5597
    %5676 = vmatmul.mubr.bf16.gmra.mxu0 %v5596
    %v5677 = vpop.f32.mrf.mxu0
    %v5678 = vadd.f32 %v5637, %v5677
    %v5679 = vpop.f32.mrf.mxu0
    %v5680 = vadd.f32 %v5639, %v5679
    %v5681 = vpop.f32.mrf.mxu0
    %v5682 = vpop.f32.mrf.mxu0
    %5683 = vdwg.mxu0
    %5684 = vmatprep.subr.bf16.mxu0 %v5495
    %5685 = vmatpush1.bf16.msra.mxu0 %v5494
    %5686 = vmatprep.subr.bf16.mxu0 %v5491
    %5687 = vmatpush1.bf16.msra.mxu0 %v5490
    %5688 = vmatprep.subr.bf16.mxu0 %v5487
    %5689 = vmatpush1.bf16.msra.mxu0 %v5486
    %5690 = vmatprep.subr.bf16.mxu0 %v5483
    %5691 = vmatpush1.bf16.msra.mxu0 %v5482
    %5692 = vmatprep.subr.bf16.mxu0 %v5479
    %5693 = vmatpush1.bf16.msra.mxu0 %v5478
    %5694 = vmatprep.subr.bf16.mxu0 %v5475
    %5695 = vmatpush1.bf16.msra.mxu0 %v5474
    %5696 = vmatprep.subr.bf16.mxu0 %v5471
    %5697 = vmatpush1.bf16.msra.mxu0 %v5470
    %5698 = vmatprep.subr.bf16.mxu0 %v5467
    %5699 = vmatpush1.bf16.msra.mxu0 %v5466
    %5700 = vmatprep.subr.bf16.mxu0 %v5527
    %5701 = vmatpush2.bf16.msra.mxu0 %v5526
    %5702 = vmatprep.subr.bf16.mxu0 %v5523
    %5703 = vmatpush2.bf16.msra.mxu0 %v5522
    %5704 = vmatprep.subr.bf16.mxu0 %v5519
    %5705 = vmatpush2.bf16.msra.mxu0 %v5518
    %5706 = vmatprep.subr.bf16.mxu0 %v5515
    %5707 = vmatpush2.bf16.msra.mxu0 %v5514
    %5708 = vmatprep.subr.bf16.mxu0 %v5511
    %5709 = vmatpush2.bf16.msra.mxu0 %v5510
    %5710 = vmatprep.subr.bf16.mxu0 %v5507
    %5711 = vmatpush2.bf16.msra.mxu0 %v5506
    %5712 = vmatprep.subr.bf16.mxu0 %v5503
    %5713 = vmatpush2.bf16.msra.mxu0 %v5502
    %5714 = vmatprep.subr.bf16.mxu0 %v5499
    %5715 = vmatpush2.bf16.msra.mxu0 %v5498
    %5716 = vmatprep.mubr.bf16.mxu0 %v5599
    %5717 = vmatmul.mubr.bf16.gmra.mxu0 %v5598
    %v5718 = vpop.f32.mrf.mxu0
    %v5719 = vadd.f32 %v5678, %v5718
    %v5720 = vpop.f32.mrf.mxu0
    %v5721 = vadd.f32 %v5680, %v5720
    %v5722 = vpop.f32.mrf.mxu0
    %v5723 = vpop.f32.mrf.mxu0
    %5724 = vdwg.mxu0
    %5725 = vmatprep.subr.bf16.mxu0 %v5559
    %5726 = vmatpush1.bf16.msra.mxu0 %v5558
    %5727 = vmatprep.subr.bf16.mxu0 %v5555
    %5728 = vmatpush1.bf16.msra.mxu0 %v5554
    %5729 = vmatprep.subr.bf16.mxu0 %v5551
    %5730 = vmatpush1.bf16.msra.mxu0 %v5550
    %5731 = vmatprep.subr.bf16.mxu0 %v5547
    %5732 = vmatpush1.bf16.msra.mxu0 %v5546
    %5733 = vmatprep.subr.bf16.mxu0 %v5543
    %5734 = vmatpush1.bf16.msra.mxu0 %v5542
    %5735 = vmatprep.subr.bf16.mxu0 %v5539
    %5736 = vmatpush1.bf16.msra.mxu0 %v5538
    %5737 = vmatprep.subr.bf16.mxu0 %v5535
    %5738 = vmatpush1.bf16.msra.mxu0 %v5534
    %5739 = vmatprep.subr.bf16.mxu0 %v5531
    %5740 = vmatpush1.bf16.msra.mxu0 %v5530
    %5741 = vmatprep.subr.bf16.mxu0 %v5591
    %5742 = vmatpush2.bf16.msra.mxu0 %v5590
    %5743 = vmatprep.subr.bf16.mxu0 %v5587
    %5744 = vmatpush2.bf16.msra.mxu0 %v5586
    %5745 = vmatprep.subr.bf16.mxu0 %v5583
    %5746 = vmatpush2.bf16.msra.mxu0 %v5582
    %5747 = vmatprep.subr.bf16.mxu0 %v5579
    %5748 = vmatpush2.bf16.msra.mxu0 %v5578
    %5749 = vmatprep.subr.bf16.mxu0 %v5575
    %5750 = vmatpush2.bf16.msra.mxu0 %v5574
    %5751 = vmatprep.subr.bf16.mxu0 %v5571
    %5752 = vmatpush2.bf16.msra.mxu0 %v5570
    %5753 = vmatprep.subr.bf16.mxu0 %v5567
    %5754 = vmatpush2.bf16.msra.mxu0 %v5566
    %5755 = vmatprep.subr.bf16.mxu0 %v5563
    %5756 = vmatpush2.bf16.msra.mxu0 %v5562
    %5757 = vmatprep.mubr.bf16.mxu0 %v5601
    %5758 = vmatmul.mubr.bf16.gmra.mxu0 %v5600
    %v5759 = vpop.f32.mrf.mxu0
    %v5760 = vadd.f32 %v5719, %v5759
    %v5761 = vpop.f32.mrf.mxu0
    %v5762 = vadd.f32 %v5721, %v5761
    %v5763 = vpop.f32.mrf.mxu0
    %v5764 = vpop.f32.mrf.mxu0
    %5765 = vdwg.mxu0
    %5766 = vmatprep.subr.bf16.mxu0 %v5369
    %5767 = vmatpush1.bf16.msra.mxu0 %v5368
    %5768 = vmatprep.subr.bf16.mxu0 %v5365
    %5769 = vmatpush1.bf16.msra.mxu0 %v5364
    %5770 = vmatprep.subr.bf16.mxu0 %v5361
    %5771 = vmatpush1.bf16.msra.mxu0 %v5360
    %5772 = vmatprep.subr.bf16.mxu0 %v5357
    %5773 = vmatpush1.bf16.msra.mxu0 %v5356
    %5774 = vmatprep.subr.bf16.mxu0 %v5353
    %5775 = vmatpush1.bf16.msra.mxu0 %v5352
    %5776 = vmatprep.subr.bf16.mxu0 %v5349
    %5777 = vmatpush1.bf16.msra.mxu0 %v5348
    %5778 = vmatprep.subr.bf16.mxu0 %v5345
    %5779 = vmatpush1.bf16.msra.mxu0 %v5344
    %5780 = vmatprep.subr.bf16.mxu0 %v5341
    %5781 = vmatpush1.bf16.msra.mxu0 %v5340
    %5782 = vmatprep.subr.bf16.mxu0 %v5401
    %5783 = vmatpush2.bf16.msra.mxu0 %v5400
    %5784 = vmatprep.subr.bf16.mxu0 %v5397
    %5785 = vmatpush2.bf16.msra.mxu0 %v5396
    %5786 = vmatprep.subr.bf16.mxu0 %v5393
    %5787 = vmatpush2.bf16.msra.mxu0 %v5392
    %5788 = vmatprep.subr.bf16.mxu0 %v5389
    %5789 = vmatpush2.bf16.msra.mxu0 %v5388
    %5790 = vmatprep.subr.bf16.mxu0 %v5385
    %5791 = vmatpush2.bf16.msra.mxu0 %v5384
    %5792 = vmatprep.subr.bf16.mxu0 %v5381
    %5793 = vmatpush2.bf16.msra.mxu0 %v5380
    %5794 = vmatprep.subr.bf16.mxu0 %v5377
    %5795 = vmatpush2.bf16.msra.mxu0 %v5376
    %5796 = vmatprep.subr.bf16.mxu0 %v5373
    %5797 = vmatpush2.bf16.msra.mxu0 %v5372
    %5798 = vmatprep.mubr.bf16.mxu0 %v5595
    %5799 = vmatmul.mubr.bf16.gmra.mxu0 %v5594
    %v5800 = vpop.f32.mrf.mxu0
    %v5801 = vadd.f32 0.0, %v5800
    %v5802 = vpop.f32.mrf.mxu0
    %v5803 = vadd.f32 0.0, %v5802
    %v5804 = vpop.f32.mrf.mxu0
    %v5805 = vpop.f32.mrf.mxu0
    %5806 = vdwg.mxu0
    %5807 = vmatprep.subr.bf16.mxu0 %v5433
    %5808 = vmatpush1.bf16.msra.mxu0 %v5432
    %5809 = vmatprep.subr.bf16.mxu0 %v5429
    %5810 = vmatpush1.bf16.msra.mxu0 %v5428
    %5811 = vmatprep.subr.bf16.mxu0 %v5425
    %5812 = vmatpush1.bf16.msra.mxu0 %v5424
    %5813 = vmatprep.subr.bf16.mxu0 %v5421
    %5814 = vmatpush1.bf16.msra.mxu0 %v5420
    %5815 = vmatprep.subr.bf16.mxu0 %v5417
    %5816 = vmatpush1.bf16.msra.mxu0 %v5416
    %5817 = vmatprep.subr.bf16.mxu0 %v5413
    %5818 = vmatpush1.bf16.msra.mxu0 %v5412
    %5819 = vmatprep.subr.bf16.mxu0 %v5409
    %5820 = vmatpush1.bf16.msra.mxu0 %v5408
    %5821 = vmatprep.subr.bf16.mxu0 %v5405
    %5822 = vmatpush1.bf16.msra.mxu0 %v5404
    %5823 = vmatprep.subr.bf16.mxu0 %v5465
    %5824 = vmatpush2.bf16.msra.mxu0 %v5464
    %5825 = vmatprep.subr.bf16.mxu0 %v5461
    %5826 = vmatpush2.bf16.msra.mxu0 %v5460
    %5827 = vmatprep.subr.bf16.mxu0 %v5457
    %5828 = vmatpush2.bf16.msra.mxu0 %v5456
    %5829 = vmatprep.subr.bf16.mxu0 %v5453
    %5830 = vmatpush2.bf16.msra.mxu0 %v5452
    %5831 = vmatprep.subr.bf16.mxu0 %v5449
    %5832 = vmatpush2.bf16.msra.mxu0 %v5448
    %5833 = vmatprep.subr.bf16.mxu0 %v5445
    %5834 = vmatpush2.bf16.msra.mxu0 %v5444
    %5835 = vmatprep.subr.bf16.mxu0 %v5441
    %5836 = vmatpush2.bf16.msra.mxu0 %v5440
    %5837 = vmatprep.subr.bf16.mxu0 %v5437
    %5838 = vmatpush2.bf16.msra.mxu0 %v5436
    %5839 = vmatprep.mubr.bf16.mxu0 %v5597
    %5840 = vmatmul.mubr.bf16.gmra.mxu0 %v5596
    %v5841 = vpop.f32.mrf.mxu0
    %v5842 = vadd.f32 %v5801, %v5841
    %v5843 = vpop.f32.mrf.mxu0
    %v5844 = vadd.f32 %v5803, %v5843
    %v5845 = vpop.f32.mrf.mxu0
    %v5846 = vpop.f32.mrf.mxu0
    %5847 = vdwg.mxu0
    %5848 = vmatprep.subr.bf16.mxu0 %v5497
    %5849 = vmatpush1.bf16.msra.mxu0 %v5496
    %5850 = vmatprep.subr.bf16.mxu0 %v5493
    %5851 = vmatpush1.bf16.msra.mxu0 %v5492
    %5852 = vmatprep.subr.bf16.mxu0 %v5489
    %5853 = vmatpush1.bf16.msra.mxu0 %v5488
    %5854 = vmatprep.subr.bf16.mxu0 %v5485
    %5855 = vmatpush1.bf16.msra.mxu0 %v5484
    %5856 = vmatprep.subr.bf16.mxu0 %v5481
    %5857 = vmatpush1.bf16.msra.mxu0 %v5480
    %5858 = vmatprep.subr.bf16.mxu0 %v5477
    %5859 = vmatpush1.bf16.msra.mxu0 %v5476
    %5860 = vmatprep.subr.bf16.mxu0 %v5473
    %5861 = vmatpush1.bf16.msra.mxu0 %v5472
    %5862 = vmatprep.subr.bf16.mxu0 %v5469
    %5863 = vmatpush1.bf16.msra.mxu0 %v5468
    %5864 = vmatprep.subr.bf16.mxu0 %v5529
    %5865 = vmatpush2.bf16.msra.mxu0 %v5528
    %5866 = vmatprep.subr.bf16.mxu0 %v5525
    %5867 = vmatpush2.bf16.msra.mxu0 %v5524
    %5868 = vmatprep.subr.bf16.mxu0 %v5521
    %5869 = vmatpush2.bf16.msra.mxu0 %v5520
    %5870 = vmatprep.subr.bf16.mxu0 %v5517
    %5871 = vmatpush2.bf16.msra.mxu0 %v5516
    %5872 = vmatprep.subr.bf16.mxu0 %v5513
    %5873 = vmatpush2.bf16.msra.mxu0 %v5512
    %5874 = vmatprep.subr.bf16.mxu0 %v5509
    %5875 = vmatpush2.bf16.msra.mxu0 %v5508
    %5876 = vmatprep.subr.bf16.mxu0 %v5505
    %5877 = vmatpush2.bf16.msra.mxu0 %v5504
    %5878 = vmatprep.subr.bf16.mxu0 %v5501
    %5879 = vmatpush2.bf16.msra.mxu0 %v5500
    %5880 = vmatprep.mubr.bf16.mxu0 %v5599
    %5881 = vmatmul.mubr.bf16.gmra.mxu0 %v5598
    %v5882 = vpop.f32.mrf.mxu0
    %v5883 = vadd.f32 %v5842, %v5882
    %v5884 = vpop.f32.mrf.mxu0
    %v5885 = vadd.f32 %v5844, %v5884
    %v5886 = vpop.f32.mrf.mxu0
    %v5887 = vpop.f32.mrf.mxu0
    %5888 = vdwg.mxu0
    %5889 = vmatprep.subr.bf16.mxu0 %v5561
    %5890 = vmatpush1.bf16.msra.mxu0 %v5560
    %5891 = vmatprep.subr.bf16.mxu0 %v5557
    %5892 = vmatpush1.bf16.msra.mxu0 %v5556
    %5893 = vmatprep.subr.bf16.mxu0 %v5553
    %5894 = vmatpush1.bf16.msra.mxu0 %v5552
    %5895 = vmatprep.subr.bf16.mxu0 %v5549
    %5896 = vmatpush1.bf16.msra.mxu0 %v5548
    %5897 = vmatprep.subr.bf16.mxu0 %v5545
    %5898 = vmatpush1.bf16.msra.mxu0 %v5544
    %5899 = vmatprep.subr.bf16.mxu0 %v5541
    %5900 = vmatpush1.bf16.msra.mxu0 %v5540
    %5901 = vmatprep.subr.bf16.mxu0 %v5537
    %5902 = vmatpush1.bf16.msra.mxu0 %v5536
    %5903 = vmatprep.subr.bf16.mxu0 %v5533
    %5904 = vmatpush1.bf16.msra.mxu0 %v5532
    %5905 = vmatprep.subr.bf16.mxu0 %v5593
    %5906 = vmatpush2.bf16.msra.mxu0 %v5592
    %5907 = vmatprep.subr.bf16.mxu0 %v5589
    %5908 = vmatpush2.bf16.msra.mxu0 %v5588
    %5909 = vmatprep.subr.bf16.mxu0 %v5585
    %5910 = vmatpush2.bf16.msra.mxu0 %v5584
    %5911 = vmatprep.subr.bf16.mxu0 %v5581
    %5912 = vmatpush2.bf16.msra.mxu0 %v5580
    %5913 = vmatprep.subr.bf16.mxu0 %v5577
    %5914 = vmatpush2.bf16.msra.mxu0 %v5576
    %5915 = vmatprep.subr.bf16.mxu0 %v5573
    %5916 = vmatpush2.bf16.msra.mxu0 %v5572
    %5917 = vmatprep.subr.bf16.mxu0 %v5569
    %5918 = vmatpush2.bf16.msra.mxu0 %v5568
    %5919 = vmatprep.subr.bf16.mxu0 %v5565
    %5920 = vmatpush2.bf16.msra.mxu0 %v5564
    %5921 = vmatprep.mubr.bf16.mxu0 %v5601
    %5922 = vmatmul.mubr.bf16.gmra.mxu0 %v5600
    %v5923 = vpop.f32.mrf.mxu0
    %v5924 = vadd.f32 %v5883, %v5923
    %v5925 = vpop.f32.mrf.mxu0
    %v5926 = vadd.f32 %v5885, %v5925
    %v5927 = vpop.f32.mrf.mxu0
    %v5928 = vpop.f32.mrf.mxu0
    %5929 = vdwg.mxu0
    %s5930 = scalar_lea.vmem [#allocation7], 129
    %v5931 = vld [vmem:[%s5930] ss:$8 sm:$0xf]
    %s5932 = scalar_lea.vmem [#allocation7], 2
    %v5933 = vld [vmem:[%s5932] ss:$8 sm:$0xf]
    %v5935 = vlaneseq
    %v5936 = vshrl.u32 %v5935, 7
    %v5937 = vsub.s32 0, %v5936
    %v5938 = vrot.slane %v5931, %v5937
    %v5939 = vlaneseq
    %v5940 = vshrl.u32 %v5939, 7
    %v5941 = vsub.s32 1, %v5940
    %v5942 = vrot.slane %v5931, %v5941
    %v5943 = vlaneseq
    %v5944 = vshrl.u32 %v5943, 7
    %v5945 = vsub.s32 2, %v5944
    %v5946 = vrot.slane %v5931, %v5945
    %v5947 = vlaneseq
    %v5948 = vshrl.u32 %v5947, 7
    %v5949 = vsub.s32 3, %v5948
    %v5950 = vrot.slane %v5931, %v5949
    %v5955 = vmul.f32 %v5760, %v5938
    %v5956 = vmul.f32 %v5762, %v5942
    %v5957 = vmul.f32 %v5924, %v5946
    %v5958 = vmul.f32 %v5926, %v5950
    %v5960 = vlaneseq
    %v5961 = vshrl.u32 %v5960, 7
    %v5962 = vsub.s32 0, %v5961
    %v5963 = vrot.slane %v5933, %v5962
    %v5964 = vlaneseq
    %v5965 = vshrl.u32 %v5964, 7
    %v5966 = vsub.s32 1, %v5965
    %v5967 = vrot.slane %v5933, %v5966
    %v5968 = vlaneseq
    %v5969 = vshrl.u32 %v5968, 7
    %v5970 = vsub.s32 2, %v5969
    %v5971 = vrot.slane %v5933, %v5970
    %v5972 = vlaneseq
    %v5973 = vshrl.u32 %v5972, 7
    %v5974 = vsub.s32 3, %v5973
    %v5975 = vrot.slane %v5933, %v5974
    %v5980 = vadd.f32 %v5955, %v5963
    %v5981 = vadd.f32 %v5956, %v5967
    %v5982 = vadd.f32 %v5957, %v5971
    %v5983 = vadd.f32 %v5958, %v5975
    %v5984 = vmax.f32 %v5980, 0.0
    %v5985 = vmax.f32 %v5981, 0.0
    %v5986 = vmax.f32 %v5982, 0.0
    %v5987 = vmax.f32 %v5983, 0.0
    %s5988 = smul.u32 2, 64
    %s5989 = smul.u32 %s5988, 2
    %s5990 = sshll.u32 %s5989, 4
    %5991 = dma.done %s83, %s5990
    %v5992 = vld [vmem:[#allocation5] sm:$0xff]
    %v5993 = vld [vmem:[#allocation5 + $0x8] sm:$0xff]
    %v5994 = vld [vmem:[#allocation5 + $0x10] sm:$0xff]
    %v5995 = vld [vmem:[#allocation5 + $0x18] sm:$0xff]
    %v5996 = vld [vmem:[#allocation5 + $0x20] sm:$0xff]
    %v5997 = vld [vmem:[#allocation5 + $0x28] sm:$0xff]
    %v5998 = vld [vmem:[#allocation5 + $0x30] sm:$0xff]
    %v5999 = vld [vmem:[#allocation5 + $0x38] sm:$0xff]
    %v6000 = vld [vmem:[#allocation5 + $0x40] sm:$0xff]
    %v6001 = vld [vmem:[#allocation5 + $0x48] sm:$0xff]
    %v6002 = vld [vmem:[#allocation5 + $0x50] sm:$0xff]
    %v6003 = vld [vmem:[#allocation5 + $0x58] sm:$0xff]
    %v6004 = vld [vmem:[#allocation5 + $0x60] sm:$0xff]
    %v6005 = vld [vmem:[#allocation5 + $0x68] sm:$0xff]
    %v6006 = vld [vmem:[#allocation5 + $0x70] sm:$0xff]
    %v6007 = vld [vmem:[#allocation5 + $0x78] sm:$0xff]
    %v6008 = vld [vmem:[#allocation5 + $0x80] sm:$0xff]
    %v6009 = vld [vmem:[#allocation5 + $0x88] sm:$0xff]
    %v6010 = vld [vmem:[#allocation5 + $0x90] sm:$0xff]
    %v6011 = vld [vmem:[#allocation5 + $0x98] sm:$0xff]
    %v6012 = vld [vmem:[#allocation5 + $0xa0] sm:$0xff]
    %v6013 = vld [vmem:[#allocation5 + $0xa8] sm:$0xff]
    %v6014 = vld [vmem:[#allocation5 + $0xb0] sm:$0xff]
    %v6015 = vld [vmem:[#allocation5 + $0xb8] sm:$0xff]
    %v6016 = vld [vmem:[#allocation5 + $0xc0] sm:$0xff]
    %v6017 = vld [vmem:[#allocation5 + $0xc8] sm:$0xff]
    %v6018 = vld [vmem:[#allocation5 + $0xd0] sm:$0xff]
    %v6019 = vld [vmem:[#allocation5 + $0xd8] sm:$0xff]
    %v6020 = vld [vmem:[#allocation5 + $0xe0] sm:$0xff]
    %v6021 = vld [vmem:[#allocation5 + $0xe8] sm:$0xff]
    %v6022 = vld [vmem:[#allocation5 + $0xf0] sm:$0xff]
    %v6023 = vld [vmem:[#allocation5 + $0xf8] sm:$0xff]
    %v6024 = vunpack.c.l.s8.bf16 %v5992
    %v6025 = vunpack.c.l.s8.bf16 %v5993
    %v6026 = vunpack.c.h.s8.bf16 %v5992
    %v6027 = vunpack.c.h.s8.bf16 %v5993
    %v6028 = vunpack.c.l.s8.bf16 %v5994
    %v6029 = vunpack.c.l.s8.bf16 %v5995
    %v6030 = vunpack.c.h.s8.bf16 %v5994
    %v6031 = vunpack.c.h.s8.bf16 %v5995
    %v6032 = vunpack.c.l.s8.bf16 %v5996
    %v6033 = vunpack.c.l.s8.bf16 %v5997
    %v6034 = vunpack.c.h.s8.bf16 %v5996
    %v6035 = vunpack.c.h.s8.bf16 %v5997
    %v6036 = vunpack.c.l.s8.bf16 %v5998
    %v6037 = vunpack.c.l.s8.bf16 %v5999
    %v6038 = vunpack.c.h.s8.bf16 %v5998
    %v6039 = vunpack.c.h.s8.bf16 %v5999
    %v6040 = vunpack.c.l.s8.bf16 %v6000
    %v6041 = vunpack.c.l.s8.bf16 %v6001
    %v6042 = vunpack.c.h.s8.bf16 %v6000
    %v6043 = vunpack.c.h.s8.bf16 %v6001
    %v6044 = vunpack.c.l.s8.bf16 %v6002
    %v6045 = vunpack.c.l.s8.bf16 %v6003
    %v6046 = vunpack.c.h.s8.bf16 %v6002
    %v6047 = vunpack.c.h.s8.bf16 %v6003
    %v6048 = vunpack.c.l.s8.bf16 %v6004
    %v6049 = vunpack.c.l.s8.bf16 %v6005
    %v6050 = vunpack.c.h.s8.bf16 %v6004
    %v6051 = vunpack.c.h.s8.bf16 %v6005
    %v6052 = vunpack.c.l.s8.bf16 %v6006
    %v6053 = vunpack.c.l.s8.bf16 %v6007
    %v6054 = vunpack.c.h.s8.bf16 %v6006
    %v6055 = vunpack.c.h.s8.bf16 %v6007
    %v6056 = vunpack.c.l.s8.bf16 %v6008
    %v6057 = vunpack.c.l.s8.bf16 %v6009
    %v6058 = vunpack.c.h.s8.bf16 %v6008
    %v6059 = vunpack.c.h.s8.bf16 %v6009
    %v6060 = vunpack.c.l.s8.bf16 %v6010
    %v6061 = vunpack.c.l.s8.bf16 %v6011
    %v6062 = vunpack.c.h.s8.bf16 %v6010
    %v6063 = vunpack.c.h.s8.bf16 %v6011
    %v6064 = vunpack.c.l.s8.bf16 %v6012
    %v6065 = vunpack.c.l.s8.bf16 %v6013
    %v6066 = vunpack.c.h.s8.bf16 %v6012
    %v6067 = vunpack.c.h.s8.bf16 %v6013
    %v6068 = vunpack.c.l.s8.bf16 %v6014
    %v6069 = vunpack.c.l.s8.bf16 %v6015
    %v6070 = vunpack.c.h.s8.bf16 %v6014
    %v6071 = vunpack.c.h.s8.bf16 %v6015
    %v6072 = vunpack.c.l.s8.bf16 %v6016
    %v6073 = vunpack.c.l.s8.bf16 %v6017
    %v6074 = vunpack.c.h.s8.bf16 %v6016
    %v6075 = vunpack.c.h.s8.bf16 %v6017
    %v6076 = vunpack.c.l.s8.bf16 %v6018
    %v6077 = vunpack.c.l.s8.bf16 %v6019
    %v6078 = vunpack.c.h.s8.bf16 %v6018
    %v6079 = vunpack.c.h.s8.bf16 %v6019
    %v6080 = vunpack.c.l.s8.bf16 %v6020
    %v6081 = vunpack.c.l.s8.bf16 %v6021
    %v6082 = vunpack.c.h.s8.bf16 %v6020
    %v6083 = vunpack.c.h.s8.bf16 %v6021
    %v6084 = vunpack.c.l.s8.bf16 %v6022
    %v6085 = vunpack.c.l.s8.bf16 %v6023
    %v6086 = vunpack.c.h.s8.bf16 %v6022
    %v6087 = vunpack.c.h.s8.bf16 %v6023
    %v6088 = vpack.c.bf16 %v5984, %v5984
    %v6089 = vpack.c.bf16 %v5985, %v5985
    %v6090 = vpack.c.bf16 %v5986, %v5986
    %v6091 = vpack.c.bf16 %v5987, %v5987
    %6092 = vmatprep.subr.bf16.mxu0 %v6039
    %6093 = vmatpush1.bf16.msra.mxu0 %v6038
    %6094 = vmatprep.subr.bf16.mxu0 %v6037
    %6095 = vmatpush1.bf16.msra.mxu0 %v6036
    %6096 = vmatprep.subr.bf16.mxu0 %v6035
    %6097 = vmatpush1.bf16.msra.mxu0 %v6034
    %6098 = vmatprep.subr.bf16.mxu0 %v6033
    %6099 = vmatpush1.bf16.msra.mxu0 %v6032
    %6100 = vmatprep.subr.bf16.mxu0 %v6031
    %6101 = vmatpush1.bf16.msra.mxu0 %v6030
    %6102 = vmatprep.subr.bf16.mxu0 %v6029
    %6103 = vmatpush1.bf16.msra.mxu0 %v6028
    %6104 = vmatprep.subr.bf16.mxu0 %v6027
    %6105 = vmatpush1.bf16.msra.mxu0 %v6026
    %6106 = vmatprep.subr.bf16.mxu0 %v6025
    %6107 = vmatpush1.bf16.msra.mxu0 %v6024
    %6108 = vmatprep.subr.bf16.mxu0 %v6055
    %6109 = vmatpush2.bf16.msra.mxu0 %v6054
    %6110 = vmatprep.subr.bf16.mxu0 %v6053
    %6111 = vmatpush2.bf16.msra.mxu0 %v6052
    %6112 = vmatprep.subr.bf16.mxu0 %v6051
    %6113 = vmatpush2.bf16.msra.mxu0 %v6050
    %6114 = vmatprep.subr.bf16.mxu0 %v6049
    %6115 = vmatpush2.bf16.msra.mxu0 %v6048
    %6116 = vmatprep.subr.bf16.mxu0 %v6047
    %6117 = vmatpush2.bf16.msra.mxu0 %v6046
    %6118 = vmatprep.subr.bf16.mxu0 %v6045
    %6119 = vmatpush2.bf16.msra.mxu0 %v6044
    %6120 = vmatprep.subr.bf16.mxu0 %v6043
    %6121 = vmatpush2.bf16.msra.mxu0 %v6042
    %6122 = vmatprep.subr.bf16.mxu0 %v6041
    %6123 = vmatpush2.bf16.msra.mxu0 %v6040
    %6124 = vmatprep.mubr.bf16.mxu0 %v6089
    %6125 = vmatmul.mubr.bf16.gmra.mxu0 %v6088
    %v6126 = vpop.f32.mrf.mxu0
    %v6127 = vadd.f32 0.0, %v6126
    %v6128 = vpop.f32.mrf.mxu0
    %v6129 = vadd.f32 0.0, %v6128
    %v6130 = vpop.f32.mrf.mxu0
    %v6131 = vpop.f32.mrf.mxu0
    %6132 = vdwg.mxu0
    %6133 = vmatprep.subr.bf16.mxu0 %v6071
    %6134 = vmatpush1.bf16.msra.mxu0 %v6070
    %6135 = vmatprep.subr.bf16.mxu0 %v6069
    %6136 = vmatpush1.bf16.msra.mxu0 %v6068
    %6137 = vmatprep.subr.bf16.mxu0 %v6067
    %6138 = vmatpush1.bf16.msra.mxu0 %v6066
    %6139 = vmatprep.subr.bf16.mxu0 %v6065
    %6140 = vmatpush1.bf16.msra.mxu0 %v6064
    %6141 = vmatprep.subr.bf16.mxu0 %v6063
    %6142 = vmatpush1.bf16.msra.mxu0 %v6062
    %6143 = vmatprep.subr.bf16.mxu0 %v6061
    %6144 = vmatpush1.bf16.msra.mxu0 %v6060
    %6145 = vmatprep.subr.bf16.mxu0 %v6059
    %6146 = vmatpush1.bf16.msra.mxu0 %v6058
    %6147 = vmatprep.subr.bf16.mxu0 %v6057
    %6148 = vmatpush1.bf16.msra.mxu0 %v6056
    %6149 = vmatprep.subr.bf16.mxu0 %v6087
    %6150 = vmatpush2.bf16.msra.mxu0 %v6086
    %6151 = vmatprep.subr.bf16.mxu0 %v6085
    %6152 = vmatpush2.bf16.msra.mxu0 %v6084
    %6153 = vmatprep.subr.bf16.mxu0 %v6083
    %6154 = vmatpush2.bf16.msra.mxu0 %v6082
    %6155 = vmatprep.subr.bf16.mxu0 %v6081
    %6156 = vmatpush2.bf16.msra.mxu0 %v6080
    %6157 = vmatprep.subr.bf16.mxu0 %v6079
    %6158 = vmatpush2.bf16.msra.mxu0 %v6078
    %6159 = vmatprep.subr.bf16.mxu0 %v6077
    %6160 = vmatpush2.bf16.msra.mxu0 %v6076
    %6161 = vmatprep.subr.bf16.mxu0 %v6075
    %6162 = vmatpush2.bf16.msra.mxu0 %v6074
    %6163 = vmatprep.subr.bf16.mxu0 %v6073
    %6164 = vmatpush2.bf16.msra.mxu0 %v6072
    %6165 = vmatprep.mubr.bf16.mxu0 %v6091
    %6166 = vmatmul.mubr.bf16.gmra.mxu0 %v6090
    %v6167 = vpop.f32.mrf.mxu0
    %v6168 = vadd.f32 %v6127, %v6167
    %v6169 = vpop.f32.mrf.mxu0
    %v6170 = vadd.f32 %v6129, %v6169
    %v6171 = vpop.f32.mrf.mxu0
    %v6172 = vpop.f32.mrf.mxu0
    %6173 = vdwg.mxu0
    %s6174 = scalar_lea.vmem [#allocation7], 130
    %v6175 = vld [vmem:[%s6174] ss:$8 sm:$0x3]
    %s6176 = scalar_lea.vmem [#allocation7], 3
    %v6177 = vld [vmem:[%s6176] ss:$8 sm:$0x3]
    %v6179 = vlaneseq
    %v6180 = vshrl.u32 %v6179, 7
    %v6181 = vsub.s32 0, %v6180
    %v6182 = vrot.slane %v6175, %v6181
    %v6183 = vlaneseq
    %v6184 = vshrl.u32 %v6183, 7
    %v6185 = vsub.s32 1, %v6184
    %v6186 = vrot.slane %v6175, %v6185
    %v6189 = vmul.f32 %v6168, %v6182
    %v6190 = vmul.f32 %v6170, %v6186
    %v6192 = vlaneseq
    %v6193 = vshrl.u32 %v6192, 7
    %v6194 = vsub.s32 0, %v6193
    %v6195 = vrot.slane %v6177, %v6194
    %v6196 = vlaneseq
    %v6197 = vshrl.u32 %v6196, 7
    %v6198 = vsub.s32 1, %v6197
    %v6199 = vrot.slane %v6177, %v6198
    %v6202 = vadd.f32 %v6189, %v6195
    %v6203 = vadd.f32 %v6190, %v6199
    %v6204 = vmax.f32 %v6202, 0.0
    %v6205 = vmax.f32 %v6203, 0.0
    %v6206 = vld [vmem:[#allocation10] sm:$0xff]
    %v6207 = vld [vmem:[#allocation10 + $0x8] sm:$0xff]
    %v6208 = vld [vmem:[#allocation10 + $0x10] sm:$0xff]
    %v6209 = vld [vmem:[#allocation10 + $0x18] sm:$0xff]
    %v6210 = vld [vmem:[#allocation10 + $0x20] sm:$0xff]
    %v6211 = vld [vmem:[#allocation10 + $0x28] sm:$0xff]
    %v6212 = vld [vmem:[#allocation10 + $0x30] sm:$0xff]
    %v6213 = vld [vmem:[#allocation10 + $0x38] sm:$0xff]
    %v6214 = vunpack.c.l.s8.bf16 %v6206
    %v6215 = vunpack.c.h.s8.bf16 %v6206
    %v6216 = vunpack.c.l.s8.bf16 %v6207
    %v6217 = vunpack.c.h.s8.bf16 %v6207
    %v6218 = vunpack.c.l.s8.bf16 %v6208
    %v6219 = vunpack.c.h.s8.bf16 %v6208
    %v6220 = vunpack.c.l.s8.bf16 %v6209
    %v6221 = vunpack.c.h.s8.bf16 %v6209
    %v6222 = vunpack.c.l.s8.bf16 %v6210
    %v6223 = vunpack.c.h.s8.bf16 %v6210
    %v6224 = vunpack.c.l.s8.bf16 %v6211
    %v6225 = vunpack.c.h.s8.bf16 %v6211
    %v6226 = vunpack.c.l.s8.bf16 %v6212
    %v6227 = vunpack.c.h.s8.bf16 %v6212
    %v6228 = vunpack.c.l.s8.bf16 %v6213
    %v6229 = vunpack.c.h.s8.bf16 %v6213
    %v6230 = vpack.c.bf16 %v6204, %v6204
    %v6231 = vpack.c.bf16 %v6205, %v6205
    %6232 = vmatprep.subr.bf16.mxu0 0
    %6233 = vmatpush1.bf16.msra.mxu0 %v6221
    %6234 = vmatprep.subr.bf16.mxu0 0
    %6235 = vmatpush1.bf16.msra.mxu0 %v6220
    %6236 = vmatprep.subr.bf16.mxu0 0
    %6237 = vmatpush1.bf16.msra.mxu0 %v6219
    %6238 = vmatprep.subr.bf16.mxu0 0
    %6239 = vmatpush1.bf16.msra.mxu0 %v6218
    %6240 = vmatprep.subr.bf16.mxu0 0
    %6241 = vmatpush1.bf16.msra.mxu0 %v6217
    %6242 = vmatprep.subr.bf16.mxu0 0
    %6243 = vmatpush1.bf16.msra.mxu0 %v6216
    %6244 = vmatprep.subr.bf16.mxu0 0
    %6245 = vmatpush1.bf16.msra.mxu0 %v6215
    %6246 = vmatprep.subr.bf16.mxu0 0
    %6247 = vmatpush1.bf16.msra.mxu0 %v6214
    %6248 = vmatprep.subr.bf16.mxu0 0
    %6249 = vmatpush2.bf16.msra.mxu0 %v6229
    %6250 = vmatprep.subr.bf16.mxu0 0
    %6251 = vmatpush2.bf16.msra.mxu0 %v6228
    %6252 = vmatprep.subr.bf16.mxu0 0
    %6253 = vmatpush2.bf16.msra.mxu0 %v6227
    %6254 = vmatprep.subr.bf16.mxu0 0
    %6255 = vmatpush2.bf16.msra.mxu0 %v6226
    %6256 = vmatprep.subr.bf16.mxu0 0
    %6257 = vmatpush2.bf16.msra.mxu0 %v6225
    %6258 = vmatprep.subr.bf16.mxu0 0
    %6259 = vmatpush2.bf16.msra.mxu0 %v6224
    %6260 = vmatprep.subr.bf16.mxu0 0
    %6261 = vmatpush2.bf16.msra.mxu0 %v6223
    %6262 = vmatprep.subr.bf16.mxu0 0
    %6263 = vmatpush2.bf16.msra.mxu0 %v6222
    %6264 = vmatprep.mubr.bf16.mxu0 %v6231
    %6265 = vmatmul.mubr.bf16.gmra.mxu0 %v6230
    %v6266 = vpop.f32.mrf.mxu0
    %v6267 = vadd.f32 0.0, %v6266
    %v6268 = vpop.f32.mrf.mxu0
    %v6269 = vpop.f32.mrf.mxu0
    %v6270 = vpop.f32.mrf.mxu0
    %6271 = vdwg.mxu0
    %v6272 = vld [vmem:[#allocation7 + $0x83] ss:$0 sm:$0xff]
    %v6273 = vld [vmem:[#allocation7 + $0x4] ss:$0 sm:$0xff]
    %v6274 = vmul.f32 %v6267, %v6272
    %v6275 = vadd.f32 %v6274, %v6273
    %v6276 = vmax.f32 %v6275, 0.0
    %v6277 = vld [vmem:[#allocation10 + $0x40] sm:$0xff]
    %v6278 = vld [vmem:[#allocation10 + $0x48] sm:$0xff]
    %v6279 = vld [vmem:[#allocation10 + $0x50] sm:$0xff]
    %v6280 = vld [vmem:[#allocation10 + $0x58] sm:$0xff]
    %v6281 = vunpack.c.l.s8.bf16 %v6277
    %v6282 = vunpack.c.h.s8.bf16 %v6277
    %v6283 = vunpack.c.l.s8.bf16 %v6278
    %v6284 = vunpack.c.h.s8.bf16 %v6278
    %v6285 = vunpack.c.l.s8.bf16 %v6279
    %v6286 = vunpack.c.h.s8.bf16 %v6279
    %v6287 = vunpack.c.l.s8.bf16 %v6280
    %v6288 = vunpack.c.h.s8.bf16 %v6280
    %v6289 = vpack.c.bf16 %v6276, %v6276
    %6290 = vmatprep.subr.bf16.mxu0 0
    %6291 = vmatpush1.bf16.msra.mxu0 %v6288
    %6292 = vmatprep.subr.bf16.mxu0 0
    %6293 = vmatpush1.bf16.msra.mxu0 %v6287
    %6294 = vmatprep.subr.bf16.mxu0 0
    %6295 = vmatpush1.bf16.msra.mxu0 %v6286
    %6296 = vmatprep.subr.bf16.mxu0 0
    %6297 = vmatpush1.bf16.msra.mxu0 %v6285
    %6298 = vmatprep.subr.bf16.mxu0 0
    %6299 = vmatpush1.bf16.msra.mxu0 %v6284
    %6300 = vmatprep.subr.bf16.mxu0 0
    %6301 = vmatpush1.bf16.msra.mxu0 %v6283
    %6302 = vmatprep.subr.bf16.mxu0 0
    %6303 = vmatpush1.bf16.msra.mxu0 %v6282
    %6304 = vmatprep.subr.bf16.mxu0 0
    %6305 = vmatpush1.bf16.msra.mxu0 %v6281
    %6306 = vmatprep.subr.bf16.mxu0 0
    %6307 = vmatpush2.bf16.msra.mxu0 0
    %6308 = vmatprep.subr.bf16.mxu0 0
    %6309 = vmatpush2.bf16.msra.mxu0 0
    %6310 = vmatprep.subr.bf16.mxu0 0
    %6311 = vmatpush2.bf16.msra.mxu0 0
    %6312 = vmatprep.subr.bf16.mxu0 0
    %6313 = vmatpush2.bf16.msra.mxu0 0
    %6314 = vmatprep.subr.bf16.mxu0 0
    %6315 = vmatpush2.bf16.msra.mxu0 0
    %6316 = vmatprep.subr.bf16.mxu0 0
    %6317 = vmatpush2.bf16.msra.mxu0 0
    %6318 = vmatprep.subr.bf16.mxu0 0
    %6319 = vmatpush2.bf16.msra.mxu0 0
    %6320 = vmatprep.subr.bf16.mxu0 0
    %6321 = vmatpush2.bf16.msra.mxu0 0
    %6322 = vmatprep.mubr.bf16.mxu0 0
    %6323 = vmatmul.mubr.bf16.gmra.mxu0 %v6289
    %v6324 = vpop.f32.mrf.mxu0
    %v6325 = vadd.f32 0.0, %v6324
    %v6326 = vpop.f32.mrf.mxu0
    %v6327 = vpop.f32.mrf.mxu0
    %v6328 = vpop.f32.mrf.mxu0
    %6329 = vdwg.mxu0
    %v6330 = vld [vmem:[#allocation7 + $0x84] ss:$0 sm:$0xff]
    %v6331 = vld [vmem:[#allocation7 + $0x5] ss:$0 sm:$0xff]
    %v6332 = vmul.f32 %v6325, %v6330
    %v6333 = vadd.f32 %v6332, %v6331
    %v6334 = vmax.f32 %v6333, 0.0
    %v6335 = vld [vmem:[#allocation10 + $0x60] sm:$0xff]
    %v6336 = vld [vmem:[#allocation10 + $0x68] sm:$0xff]
    %v6337 = vunpack.c.l.s8.bf16 %v6335
    %v6338 = vunpack.c.h.s8.bf16 %v6335
    %v6339 = vunpack.c.l.s8.bf16 %v6336
    %v6340 = vunpack.c.h.s8.bf16 %v6336
    %v6341 = vpack.c.bf16 %v6334, %v6334
    %vm6342 = vcmask 523264
    %v6344 = vsel %vm6342, %v6341, 0
    %6346 = vmatprep.subr.bf16.mxu0 0
    %6347 = vmatpush1.bf16.msra.mxu0 0
    %6348 = vmatprep.subr.bf16.mxu0 0
    %6349 = vmatpush1.bf16.msra.mxu0 0
    %6350 = vmatprep.subr.bf16.mxu0 0
    %6351 = vmatpush1.bf16.msra.mxu0 0
    %6352 = vmatprep.subr.bf16.mxu0 0
    %6353 = vmatpush1.bf16.msra.mxu0 0
    %6354 = vmatprep.subr.bf16.mxu0 0
    %6355 = vmatpush1.bf16.msra.mxu0 %v6340
    %6356 = vmatprep.subr.bf16.mxu0 0
    %6357 = vmatpush1.bf16.msra.mxu0 %v6339
    %6358 = vmatprep.subr.bf16.mxu0 0
    %6359 = vmatpush1.bf16.msra.mxu0 %v6338
    %6360 = vmatprep.subr.bf16.mxu0 0
    %6361 = vmatpush1.bf16.msra.mxu0 %v6337
    %6362 = vmatprep.subr.bf16.mxu0 0
    %6363 = vmatpush2.bf16.msra.mxu0 0
    %6364 = vmatprep.subr.bf16.mxu0 0
    %6365 = vmatpush2.bf16.msra.mxu0 0
    %6366 = vmatprep.subr.bf16.mxu0 0
    %6367 = vmatpush2.bf16.msra.mxu0 0
    %6368 = vmatprep.subr.bf16.mxu0 0
    %6369 = vmatpush2.bf16.msra.mxu0 0
    %6370 = vmatprep.subr.bf16.mxu0 0
    %6371 = vmatpush2.bf16.msra.mxu0 0
    %6372 = vmatprep.subr.bf16.mxu0 0
    %6373 = vmatpush2.bf16.msra.mxu0 0
    %6374 = vmatprep.subr.bf16.mxu0 0
    %6375 = vmatpush2.bf16.msra.mxu0 0
    %6376 = vmatprep.subr.bf16.mxu0 0
    %6377 = vmatpush2.bf16.msra.mxu0 0
    %6378 = vmatprep.mubr.bf16.mxu0 0
    %6379 = vmatmul.mubr.bf16.gmra.mxu0 %v6344
    %v6380 = vpop.f32.mrf.mxu0
    %v6381 = vadd.f32 0.0, %v6380
    %v6382 = vpop.f32.mrf.mxu0
    %v6383 = vpop.f32.mrf.mxu0
    %v6384 = vpop.f32.mrf.mxu0
    %6385 = vdwg.mxu0
    %v6386 = vld [vmem:[#allocation7 + $0x85] ss:$0 sm:$0xff]
    %v6387 = vld [vmem:[#allocation7 + $0x6] ss:$0 sm:$0xff]
    %v6388 = vmul.f32 %v6381, %v6386
    %v6389 = vadd.f32 %v6388, %v6387
    %vm6390 = vcmask 9216
    %6391 = vst.msk [vmem:[#allocation12] sm:$0x3] %vm6390, %v6389
    // Predicated region
    $region38: #{cnn_forward.1} parent=1 // pred_check
      _
    $region39: #{cnn_forward.1} parent=1 // pred_check_branch
      %6393 = sbr.rel (0) target = $region41
    $region40: #{cnn_forward.1} parent=1 // pred_region
      %s6395 = ssub.s32 32, 32
      %6396 = vsyncadd [#allocation9], %s6395
      %s6398 = sshll.u32 [#allocation12], 4
      %s6399 = int_to_ptr.vmem [resolvable:$true] %s6398
      %6401 = dma.vmem_to_hbm [thread:$0]  %s6399, 32, %s7, [#allocation9]
    $region41: #{cnn_forward.1} parent=1 // pred_fallthru
      _
    // Predicated region
    $region42: #{cnn_forward.1} parent=1 // pred_check
      _
    $region43: #{cnn_forward.1} parent=1 // pred_check_branch
      %6403 = sbr.rel (0) target = $region45
    $region44: #{cnn_forward.1} parent=1 // pred_region
      %6404 = dma.done [#allocation9], 32
    $region45: #{cnn_forward.1} parent=1 // pred_fallthru
      _
    %6405 = vsyncpa [#allocation8], 1
    %6406 = vsyncpa [#allocation11], 1
    %6407 = vsyncpa [#allocation9], 1
  %6408 = vsyncmov [#allocation6]
  %s6409 = vpop.sfrf %6408
  %p6410 = scmp.eq.s32.totalorder %s6409, 0
  %p6411 = pneg %p6410
  %6413 = shalt.err (%p6411)
  %s6414 = scalar_lea.sflag [#allocation6], 1
  %6415 = vsyncmov %s6414
  %s6416 = vpop.sfrf %6415
  %p6417 = scmp.eq.s32.totalorder %s6416, 0
  %p6418 = pneg %p6417
  %6420 = shalt.err (%p6418)
  %s6421 = scalar_lea.sflag [#allocation6], 2
  %6422 = vsyncmov %s6421
  %s6423 = vpop.sfrf %6422
  %p6424 = scmp.eq.s32.totalorder %s6423, 0
  %p6425 = pneg %p6424
  %6427 = shalt.err (%p6425)
  %s6428 = scalar_lea.sflag [#allocation6], 3
  %6429 = vsyncmov %s6428
  %s6430 = vpop.sfrf %6429
  %p6431 = scmp.eq.s32.totalorder %s6430, 0
  %p6432 = pneg %p6431
  %6434 = shalt.err (%p6432)

</llo_original>
